<compile_context>
chip_gen: v7x
topology: tpu7x:2x2x1
jax: 0.10.0
libtpu: 0.0.40
codegen_flags: <defaults>
</compile_context>

<pallas_src>
import functools

import jax
import jax.numpy as jnp
from jax import lax
from jax.experimental import pallas as pl
from jax.experimental.pallas import tpu as pltpu


def _fcn_head_kernel(x_ref, w1_ref, ss_ref, w2_ref, b2_ref, o_ref, *, wp):
    """Fused FCNHead: 3x3 conv (9 MXU taps + XLU rolls) -> BN -> ReLU -> 1x1 conv.

    x_ref : (M, C_in)      bf16  zero-padded NHWC activations, flattened row-major
                                 over the padded (hp, wp) grid per batch element.
    w1_ref: (9, C_in, C_mid) bf16  3x3 conv taps.
    ss_ref: (2, C_mid)     f32   folded BatchNorm scale / shift.
    w2_ref: (C_mid, Npad)  bf16  1x1 conv, class dim zero-padded to 128 lanes.
    b2_ref: (1, Npad)      f32   bias (zero-padded).
    o_ref : (M, Npad)      f32   lane-dense output slab on the padded grid
                                 (interior sliced out in the wrapper).
    """
    m = x_ref.shape[0]
    x = x_ref[...]                                     # single bf16 load

    # Center tap (dy=1, dx=1) initializes the accumulator (no zero-fill + add).
    acc = jnp.dot(x, w1_ref[4], preferred_element_type=jnp.float32)

    # Remaining 8 taps: matmul the *unshifted* padded slab (no unaligned slices /
    # relayouts), then align the 4x-narrower result with a static XLU roll.
    # rolled[p] = yk[p + (dy-1)*wp + (dx-1)]; wrap only lands on padded border
    # rows which are discarded by the wrapper's interior slice.
    for k in (0, 1, 2, 3, 5, 6, 7, 8):
        dy, dx = divmod(k, 3)
        flat_shift = (dy - 1) * wp + (dx - 1)          # static per tap
        yk = jnp.dot(x, w1_ref[k], preferred_element_type=jnp.float32)
        acc = acc + pltpu.roll(yk, shift=(-flat_shift) % m, axis=0)

    # Folded inference BatchNorm + ReLU epilogue (f32, VPU).
    y = jnp.maximum(acc * ss_ref[0:1, :] + ss_ref[1:2, :], 0.0)

    # Dropout(0.1) is identity at inference.  1x1 conv + bias, lane-dense store.
    o_ref[...] = (jnp.dot(y.astype(jnp.bfloat16), w2_ref[...],
                          preferred_element_type=jnp.float32) + b2_ref[...])


def fcn_classifier_forward(features, params, *, b_tile=None):
    """features: dict with 'layer4' -> (B, C_in, H, W) NCHW (like the PyTorch module).

    params (PyTorch layouts): conv1_w (C_mid, C_in, 3, 3) [no bias],
      bn_gamma/bn_beta/bn_mean/bn_var (C_mid,), bn_eps,
      conv2_w (n_cls, C_mid, 1, 1), conv2_b (n_cls,).
    Returns (B, n_cls, H, W) to match the PyTorch output layout.
    """
    x = features["layer4"]
    b, c_in, h, w = x.shape
    w1 = params["conv1_w"]
    c_mid = w1.shape[0]
    w2 = params["conv2_w"]
    n_cls = w2.shape[0]

    hp, wp = h + 2, w + 2
    m_elem = hp * wp
    m_pad = -(-m_elem // 8) * 8                 # per-element rows, sublane multiple
    n_pad = -(-n_cls // 128) * 128              # lane-dense padded class dim

    if b_tile is None:
        # Small feature maps: fold the whole batch into one grid step (amortize
        # per-step overhead, fill MXU rows).  Large inputs: one element per step
        # so the batch axis can shard across TensorCores.
        b_tile = b if b * m_pad * c_in * 2 <= (4 << 20) else 1
    assert b % b_tile == 0, "batch must be divisible by b_tile"

    # ---- Layout plumbing in the wrapper (free relative to the kernel) ----------
    # NCHW -> NHWC -> zero-pad for the SAME 3x3 conv -> flatten + per-element row
    # padding -> bf16.
    x_nhwc = jnp.transpose(x, (0, 2, 3, 1)).astype(jnp.float32)
    x_p = jnp.pad(x_nhwc, ((0, 0), (1, 1), (1, 1), (0, 0)))
    x_flat = x_p.reshape(b, m_elem, c_in)
    if m_pad != m_elem:
        x_flat = jnp.pad(x_flat, ((0, 0), (0, m_pad - m_elem), (0, 0)))
    x_flat = x_flat.reshape(b * m_pad, c_in).astype(jnp.bfloat16)

    # OIHW -> (9, C_in, C_mid) bf16: w1_r[k][ci, cm] = conv1_w[cm, ci, k//3, k%3].
    w1_r = jnp.transpose(w1, (2, 3, 1, 0)).reshape(9, c_in, c_mid).astype(jnp.bfloat16)

    # Fold BatchNorm (inference) into one resident scale/shift pair (f32).
    scale = params["bn_gamma"] / jnp.sqrt(params["bn_var"] + params["bn_eps"])
    shift = params["bn_beta"] - params["bn_mean"] * scale
    scale_shift = jnp.stack([scale, shift], axis=0).astype(jnp.float32)  # (2, C_mid)

    # 1x1 conv weights / bias, zero-padded to 128 lanes.
    w2_r = jnp.transpose(w2[:, :, 0, 0], (1, 0)).astype(jnp.float32)    # (C_mid, n_cls)
    w2_p = jnp.pad(w2_r, ((0, 0), (0, n_pad - n_cls))).astype(jnp.bfloat16)
    b2_p = jnp.pad(params["conv2_b"].astype(jnp.float32).reshape(1, n_cls),
                   ((0, 0), (0, n_pad - n_cls)))

    m_blk = b_tile * m_pad
    grid = (b // b_tile,)

    # VMEM budget: double-buffered activation/output blocks + resident weights +
    # f32 temporaries, with headroom.  (At real layer4 shapes size this properly.)
    blk_bytes = m_blk * c_in * 2 + m_blk * n_pad * 4 + 3 * m_blk * max(c_mid, n_pad) * 4
    res_bytes = 9 * c_in * c_mid * 2 + 2 * c_mid * 4 + c_mid * n_pad * 2 + n_pad * 4
    vmem_limit = int(min(max(2 * blk_bytes + res_bytes + (4 << 20), 16 << 20), 48 << 20))

    cost = pl.CostEstimate(
        flops=2 * b * m_pad * c_in * c_mid * 9 + 2 * b * m_pad * c_mid * n_pad,
        transcendentals=0,
        bytes_accessed=(b * m_pad * c_in * 2 + 9 * c_in * c_mid * 2
                        + 2 * c_mid * 4 + c_mid * n_pad * 2 + n_pad * 4
                        + b * m_pad * n_pad * 4),
    )

    out_flat = pl.pallas_call(
        functools.partial(_fcn_head_kernel, wp=wp),
        out_shape=jax.ShapeDtypeStruct((b * m_pad, n_pad), jnp.float32),
        grid=grid,
        in_specs=[
            pl.BlockSpec((m_blk, c_in), lambda i: (i, 0)),        # streamed activations
            pl.BlockSpec((9, c_in, c_mid), lambda i: (0, 0, 0)),  # resident 3x3 taps
            pl.BlockSpec((2, c_mid), lambda i: (0, 0)),           # resident BN scale/shift
            pl.BlockSpec((c_mid, n_pad), lambda i: (0, 0)),       # resident 1x1 weights
            pl.BlockSpec((1, n_pad), lambda i: (0, 0)),           # resident bias
        ],
        out_specs=pl.BlockSpec((m_blk, n_pad), lambda i: (i, 0)),
        compiler_params=pltpu.CompilerParams(
            dimension_semantics=("parallel",),
            vmem_limit_bytes=vmem_limit,
        ),
        cost_estimate=cost,
    )(x_flat, w1_r, scale_shift, w2_p, b2_p)

    # (B*Mpad, Npad) -> (B, n_cls, H, W): drop row padding, padded conv border and
    # padded class lanes, then NHWC -> NCHW.  All free layout plumbing in XLA.
    out = out_flat.reshape(b, m_pad, n_pad)[:, :m_elem, :n_cls]
    out = out.reshape(b, hp, wp, n_cls)[:, 1:1 + h, 1:1 + w, :]
    return jnp.transpose(out, (0, 3, 1, 2))


def _reference_f32(x, conv1_w, gamma, beta, mean, var, eps, conv2_w, conv2_b):
    y = lax.conv_general_dilated(x, conv1_w, (1, 1), "SAME",
                                 dimension_numbers=("NCHW", "OIHW", "NCHW"))
    scale = gamma / jnp.sqrt(var + eps)
    shift = beta - mean * scale
    y = jnp.maximum(y * scale[None, :, None, None] + shift[None, :, None, None], 0.0)
    out = lax.conv_general_dilated(y, conv2_w, (1, 1), "VALID",
                                   dimension_numbers=("NCHW", "OIHW", "NCHW"))
    return out + conv2_b[None, :, None, None]


def _reference_bf16_mirror(x, conv1_w, gamma, beta, mean, var, eps, conv2_w, conv2_b):
    # Mirrors the kernel's numerics: bf16 matmul operands, f32 accumulation/epilogue.
    f32 = jnp.float32
    q = lambda a: a.astype(jnp.bfloat16).astype(f32)
    y = lax.conv_general_dilated(q(x), q(conv1_w), (1, 1), "SAME",
                                 dimension_numbers=("NCHW", "OIHW", "NCHW"),
                                 precision=lax.Precision.HIGHEST)
    scale = gamma / jnp.sqrt(var + eps)
    shift = beta - mean * scale
    y = jnp.maximum(y * scale[None, :, None, None] + shift[None, :, None, None], 0.0)
    out = lax.conv_general_dilated(q(y), q(conv2_w), (1, 1), "VALID",
                                   dimension_numbers=("NCHW", "OIHW", "NCHW"),
                                 precision=lax.Precision.HIGHEST)
    return out + conv2_b[None, :, None, None]


if __name__ == "__main__":
    # Small shapes consistent with the module: x['layer4'] is (B, C_in, H, W),
    # FCNHead inter_channels = C_in // 4.
    B, C_in, H, W, n_classes = 2, 32, 16, 16, 5
    C_mid = C_in // 4
    eps = 1e-5

    key = jax.random.PRNGKey(0)
    ks = jax.random.split(key, 8)
    x = jax.random.normal(ks[0], (B, C_in, H, W), dtype=jnp.float32)
    conv1_w = jax.random.normal(ks[1], (C_mid, C_in, 3, 3), dtype=jnp.float32) * 0.1
    bn_gamma = jax.random.uniform(ks[2], (C_mid,), minval=0.5, maxval=1.5)
    bn_beta = jax.random.normal(ks[3], (C_mid,)) * 0.1
    bn_mean = jax.random.normal(ks[4], (C_mid,)) * 0.1
    bn_var = jax.random.uniform(ks[5], (C_mid,), minval=0.5, maxval=1.5)
    conv2_w = jax.random.normal(ks[6], (n_classes, C_mid, 1, 1), dtype=jnp.float32) * 0.1
    conv2_b = jax.random.normal(ks[7], (n_classes,)) * 0.1

    params = {
        "conv1_w": conv1_w,
        "bn_gamma": bn_gamma, "bn_beta": bn_beta,
        "bn_mean": bn_mean, "bn_var": bn_var, "bn_eps": eps,
        "conv2_w": conv2_w, "conv2_b": conv2_b,
    }

    out = fcn_classifier_forward({"layer4": x}, params)
    jax.block_until_ready(out)
    assert out.shape == (B, n_classes, H, W), out.shape

    # Tight check against a reference with the same bf16 operand quantization.
    ref_m = _reference_bf16_mirror(x, conv1_w, bn_gamma, bn_beta, bn_mean, bn_var,
                                   eps, conv2_w, conv2_b)
    assert jnp.allclose(out, ref_m, atol=2e-3, rtol=2e-3), float(
        jnp.max(jnp.abs(out - ref_m)))

    # Loose sanity check against the pure-f32 module semantics.
    ref_f = _reference_f32(x, conv1_w, bn_gamma, bn_beta, bn_mean, bn_var,
                           eps, conv2_w, conv2_b)
    assert float(jnp.max(jnp.abs(out - ref_f))) < 0.35

    print("KERNEL_OK")
</pallas_src>

<mosaic_0001>
module attributes {stable_mosaic.version = 11 : i64} {
  func.func @_fcn_head_kernel(%arg0: i32, %arg1: memref<656x32xbf16, #tpu.memory_space<vmem>>, %arg2: memref<9x32x8xbf16, #tpu.memory_space<vmem>>, %arg3: memref<2x8xf32, #tpu.memory_space<vmem>>, %arg4: memref<8x128xbf16, #tpu.memory_space<vmem>>, %arg5: memref<1x128xf32, #tpu.memory_space<vmem>>, %arg6: memref<656x128xf32, #tpu.memory_space<vmem>>) attributes {dimension_semantics = [#tpu.dimension_semantics<parallel>], iteration_bounds = array<i64: 1>, scalar_prefetch = 0 : i64, scratch_operands = 0 : i64, tpu.core_type = #tpu.core_type<tc>, window_params = [{transform_indices = @transform_0, window_bounds = array<i64: 656, 32>}, {pipeline_mode = #tpu.pipeline_mode<synchronous>, transform_indices = @transform_1, window_bounds = array<i64: 9, 32, 8>}, {pipeline_mode = #tpu.pipeline_mode<synchronous>, transform_indices = @transform_2, window_bounds = array<i64: 2, 8>}, {pipeline_mode = #tpu.pipeline_mode<synchronous>, transform_indices = @transform_3, window_bounds = array<i64: 8, 128>}, {pipeline_mode = #tpu.pipeline_mode<synchronous>, transform_indices = @transform_4, window_bounds = array<i64: 1, 128>}, {transform_indices = @transform_5, window_bounds = array<i64: 656, 128>}]} {
    %c0 = arith.constant 0 : index
    %c0_0 = arith.constant 0 : index
    %0 = vector.load %arg1[%c0, %c0_0] : memref<656x32xbf16, #tpu.memory_space<vmem>>, vector<656x32xbf16>
    %c4 = arith.constant 4 : index
    %c0_1 = arith.constant 0 : index
    %c0_2 = arith.constant 0 : index
    %1 = vector.load %arg2[%c4, %c0_1, %c0_2] : memref<9x32x8xbf16, #tpu.memory_space<vmem>>, vector<1x32x8xbf16>
    %2 = vector.shape_cast %1 : vector<1x32x8xbf16> to vector<32x8xbf16>
    %cst = arith.constant dense<0.000000e+00> : vector<656x8xf32>
    %3 = tpu.matmul %0, %2, %cst {dimension_numbers = #tpu.dot_dimension_numbers<[1], [0], [0], [1], [0, 0, 1, 1], [], []>} : vector<656x32xbf16>, vector<32x8xbf16>, vector<656x8xf32> -> vector<656x8xf32>
    %c0_3 = arith.constant 0 : index
    %c0_4 = arith.constant 0 : index
    %c0_5 = arith.constant 0 : index
    %4 = vector.load %arg2[%c0_3, %c0_4, %c0_5] : memref<9x32x8xbf16, #tpu.memory_space<vmem>>, vector<1x32x8xbf16>
    %5 = vector.shape_cast %4 : vector<1x32x8xbf16> to vector<32x8xbf16>
    %cst_6 = arith.constant dense<0.000000e+00> : vector<656x8xf32>
    %6 = tpu.matmul %0, %5, %cst_6 {dimension_numbers = #tpu.dot_dimension_numbers<[1], [0], [0], [1], [0, 0, 1, 1], [], []>} : vector<656x32xbf16>, vector<32x8xbf16>, vector<656x8xf32> -> vector<656x8xf32>
    %c19_i32 = arith.constant 19 : i32
    %7 = tpu.dynamic_rotate %6 by %c19_i32 dim 0 : vector<656x8xf32>, i32 -> vector<656x8xf32>
    %8 = arith.addf %3, %7 : vector<656x8xf32>
    %c1 = arith.constant 1 : index
    %c0_7 = arith.constant 0 : index
    %c0_8 = arith.constant 0 : index
    %9 = vector.load %arg2[%c1, %c0_7, %c0_8] : memref<9x32x8xbf16, #tpu.memory_space<vmem>>, vector<1x32x8xbf16>
    %10 = vector.shape_cast %9 : vector<1x32x8xbf16> to vector<32x8xbf16>
    %cst_9 = arith.constant dense<0.000000e+00> : vector<656x8xf32>
    %11 = tpu.matmul %0, %10, %cst_9 {dimension_numbers = #tpu.dot_dimension_numbers<[1], [0], [0], [1], [0, 0, 1, 1], [], []>} : vector<656x32xbf16>, vector<32x8xbf16>, vector<656x8xf32> -> vector<656x8xf32>
    %c18_i32 = arith.constant 18 : i32
    %12 = tpu.dynamic_rotate %11 by %c18_i32 dim 0 : vector<656x8xf32>, i32 -> vector<656x8xf32>
    %13 = arith.addf %8, %12 : vector<656x8xf32>
    %c2 = arith.constant 2 : index
    %c0_10 = arith.constant 0 : index
    %c0_11 = arith.constant 0 : index
    %14 = vector.load %arg2[%c2, %c0_10, %c0_11] : memref<9x32x8xbf16, #tpu.memory_space<vmem>>, vector<1x32x8xbf16>
    %15 = vector.shape_cast %14 : vector<1x32x8xbf16> to vector<32x8xbf16>
    %cst_12 = arith.constant dense<0.000000e+00> : vector<656x8xf32>
    %16 = tpu.matmul %0, %15, %cst_12 {dimension_numbers = #tpu.dot_dimension_numbers<[1], [0], [0], [1], [0, 0, 1, 1], [], []>} : vector<656x32xbf16>, vector<32x8xbf16>, vector<656x8xf32> -> vector<656x8xf32>
    %c17_i32 = arith.constant 17 : i32
    %17 = tpu.dynamic_rotate %16 by %c17_i32 dim 0 : vector<656x8xf32>, i32 -> vector<656x8xf32>
    %18 = arith.addf %13, %17 : vector<656x8xf32>
    %c3 = arith.constant 3 : index
    %c0_13 = arith.constant 0 : index
    %c0_14 = arith.constant 0 : index
    %19 = vector.load %arg2[%c3, %c0_13, %c0_14] : memref<9x32x8xbf16, #tpu.memory_space<vmem>>, vector<1x32x8xbf16>
    %20 = vector.shape_cast %19 : vector<1x32x8xbf16> to vector<32x8xbf16>
    %cst_15 = arith.constant dense<0.000000e+00> : vector<656x8xf32>
    %21 = tpu.matmul %0, %20, %cst_15 {dimension_numbers = #tpu.dot_dimension_numbers<[1], [0], [0], [1], [0, 0, 1, 1], [], []>} : vector<656x32xbf16>, vector<32x8xbf16>, vector<656x8xf32> -> vector<656x8xf32>
    %c1_i32 = arith.constant 1 : i32
    %22 = tpu.dynamic_rotate %21 by %c1_i32 dim 0 : vector<656x8xf32>, i32 -> vector<656x8xf32>
    %23 = arith.addf %18, %22 : vector<656x8xf32>
    %c5 = arith.constant 5 : index
    %c0_16 = arith.constant 0 : index
    %c0_17 = arith.constant 0 : index
    %24 = vector.load %arg2[%c5, %c0_16, %c0_17] : memref<9x32x8xbf16, #tpu.memory_space<vmem>>, vector<1x32x8xbf16>
    %25 = vector.shape_cast %24 : vector<1x32x8xbf16> to vector<32x8xbf16>
    %cst_18 = arith.constant dense<0.000000e+00> : vector<656x8xf32>
    %26 = tpu.matmul %0, %25, %cst_18 {dimension_numbers = #tpu.dot_dimension_numbers<[1], [0], [0], [1], [0, 0, 1, 1], [], []>} : vector<656x32xbf16>, vector<32x8xbf16>, vector<656x8xf32> -> vector<656x8xf32>
    %c655_i32 = arith.constant 655 : i32
    %27 = tpu.dynamic_rotate %26 by %c655_i32 dim 0 : vector<656x8xf32>, i32 -> vector<656x8xf32>
    %28 = arith.addf %23, %27 : vector<656x8xf32>
    %c6 = arith.constant 6 : index
    %c0_19 = arith.constant 0 : index
    %c0_20 = arith.constant 0 : index
    %29 = vector.load %arg2[%c6, %c0_19, %c0_20] : memref<9x32x8xbf16, #tpu.memory_space<vmem>>, vector<1x32x8xbf16>
    %30 = vector.shape_cast %29 : vector<1x32x8xbf16> to vector<32x8xbf16>
    %cst_21 = arith.constant dense<0.000000e+00> : vector<656x8xf32>
    %31 = tpu.matmul %0, %30, %cst_21 {dimension_numbers = #tpu.dot_dimension_numbers<[1], [0], [0], [1], [0, 0, 1, 1], [], []>} : vector<656x32xbf16>, vector<32x8xbf16>, vector<656x8xf32> -> vector<656x8xf32>
    %c639_i32 = arith.constant 639 : i32
    %32 = tpu.dynamic_rotate %31 by %c639_i32 dim 0 : vector<656x8xf32>, i32 -> vector<656x8xf32>
    %33 = arith.addf %28, %32 : vector<656x8xf32>
    %c7 = arith.constant 7 : index
    %c0_22 = arith.constant 0 : index
    %c0_23 = arith.constant 0 : index
    %34 = vector.load %arg2[%c7, %c0_22, %c0_23] : memref<9x32x8xbf16, #tpu.memory_space<vmem>>, vector<1x32x8xbf16>
    %35 = vector.shape_cast %34 : vector<1x32x8xbf16> to vector<32x8xbf16>
    %cst_24 = arith.constant dense<0.000000e+00> : vector<656x8xf32>
    %36 = tpu.matmul %0, %35, %cst_24 {dimension_numbers = #tpu.dot_dimension_numbers<[1], [0], [0], [1], [0, 0, 1, 1], [], []>} : vector<656x32xbf16>, vector<32x8xbf16>, vector<656x8xf32> -> vector<656x8xf32>
    %c638_i32 = arith.constant 638 : i32
    %37 = tpu.dynamic_rotate %36 by %c638_i32 dim 0 : vector<656x8xf32>, i32 -> vector<656x8xf32>
    %38 = arith.addf %33, %37 : vector<656x8xf32>
    %c8 = arith.constant 8 : index
    %c0_25 = arith.constant 0 : index
    %c0_26 = arith.constant 0 : index
    %39 = vector.load %arg2[%c8, %c0_25, %c0_26] : memref<9x32x8xbf16, #tpu.memory_space<vmem>>, vector<1x32x8xbf16>
    %40 = vector.shape_cast %39 : vector<1x32x8xbf16> to vector<32x8xbf16>
    %cst_27 = arith.constant dense<0.000000e+00> : vector<656x8xf32>
    %41 = tpu.matmul %0, %40, %cst_27 {dimension_numbers = #tpu.dot_dimension_numbers<[1], [0], [0], [1], [0, 0, 1, 1], [], []>} : vector<656x32xbf16>, vector<32x8xbf16>, vector<656x8xf32> -> vector<656x8xf32>
    %c637_i32 = arith.constant 637 : i32
    %42 = tpu.dynamic_rotate %41 by %c637_i32 dim 0 : vector<656x8xf32>, i32 -> vector<656x8xf32>
    %43 = arith.addf %38, %42 : vector<656x8xf32>
    %c0_28 = arith.constant 0 : index
    %c0_29 = arith.constant 0 : index
    %44 = vector.load %arg3[%c0_28, %c0_29] : memref<2x8xf32, #tpu.memory_space<vmem>>, vector<1x8xf32>
    %45 = vector.broadcast %44 : vector<1x8xf32> to vector<656x8xf32>
    %46 = arith.mulf %43, %45 : vector<656x8xf32>
    %c1_30 = arith.constant 1 : index
    %c0_31 = arith.constant 0 : index
    %47 = vector.load %arg3[%c1_30, %c0_31] : memref<2x8xf32, #tpu.memory_space<vmem>>, vector<1x8xf32>
    %48 = vector.broadcast %47 : vector<1x8xf32> to vector<656x8xf32>
    %49 = arith.addf %46, %48 : vector<656x8xf32>
    %cst_32 = arith.constant 0.000000e+00 : f32
    %50 = vector.broadcast %cst_32 : f32 to vector<656x8xf32>
    %51 = arith.maximumf %49, %50 : vector<656x8xf32>
    %52 = arith.truncf %51 : vector<656x8xf32> to vector<656x8xbf16>
    %c0_33 = arith.constant 0 : index
    %c0_34 = arith.constant 0 : index
    %53 = vector.load %arg4[%c0_33, %c0_34] : memref<8x128xbf16, #tpu.memory_space<vmem>>, vector<8x128xbf16>
    %cst_35 = arith.constant dense<0.000000e+00> : vector<656x128xf32>
    %54 = tpu.matmul %52, %53, %cst_35 {dimension_numbers = #tpu.dot_dimension_numbers<[1], [0], [0], [1], [0, 0, 1, 1], [], []>} : vector<656x8xbf16>, vector<8x128xbf16>, vector<656x128xf32> -> vector<656x128xf32>
    %c0_36 = arith.constant 0 : index
    %c0_37 = arith.constant 0 : index
    %55 = vector.load %arg5[%c0_36, %c0_37] : memref<1x128xf32, #tpu.memory_space<vmem>>, vector<1x128xf32>
    %56 = vector.broadcast %55 : vector<1x128xf32> to vector<656x128xf32>
    %57 = arith.addf %54, %56 : vector<656x128xf32>
    %c0_38 = arith.constant 0 : index
    %c0_39 = arith.constant 0 : index
    %58 = vector.load %arg6[%c0_38, %c0_39] : memref<656x128xf32, #tpu.memory_space<vmem>>, vector<656x128xf32>
    tpu.vector_store %arg6[%c0_38, %c0_39], %57 {strides = array<i32>} : memref<656x128xf32, #tpu.memory_space<vmem>>, vector<656x128xf32>,
    return
  }
  func.func @transform_0(%arg0: i32) -> (i32, i32) {
    %c0_i32 = arith.constant 0 : i32
    %c0_i32_0 = arith.constant 0 : i32
    return %arg0, %c0_i32 : i32, i32
  }
  func.func @transform_1(%arg0: i32) -> (i32, i32, i32) {
    %c0_i32 = arith.constant 0 : i32
    %c0_i32_0 = arith.constant 0 : i32
    %c0_i32_1 = arith.constant 0 : i32
    %c0_i32_2 = arith.constant 0 : i32
    return %c0_i32, %c0_i32_0, %c0_i32_1 : i32, i32, i32
  }
  func.func @transform_2(%arg0: i32) -> (i32, i32) {
    %c0_i32 = arith.constant 0 : i32
    %c0_i32_0 = arith.constant 0 : i32
    %c0_i32_1 = arith.constant 0 : i32
    return %c0_i32, %c0_i32_0 : i32, i32
  }
  func.func @transform_3(%arg0: i32) -> (i32, i32) {
    %c0_i32 = arith.constant 0 : i32
    %c0_i32_0 = arith.constant 0 : i32
    %c0_i32_1 = arith.constant 0 : i32
    return %c0_i32, %c0_i32_0 : i32, i32
  }
  func.func @transform_4(%arg0: i32) -> (i32, i32) {
    %c0_i32 = arith.constant 0 : i32
    %c0_i32_0 = arith.constant 0 : i32
    %c0_i32_1 = arith.constant 0 : i32
    return %c0_i32, %c0_i32_0 : i32, i32
  }
  func.func @transform_5(%arg0: i32) -> (i32, i32) {
    %c0_i32 = arith.constant 0 : i32
    %c0_i32_0 = arith.constant 0 : i32
    return %arg0, %c0_i32 : i32, i32
  }
}

</mosaic_0001>

<llo_original>
// kernel: tpu_custom_call.1
$region0: #{tpu_custom_call.1}
  #allocation0 [shape = 'u32[]', space=smem, size = 0x4, offset = 0x4, fixed_abs, tag = 'smem constant byte address 0x4 - core index']
  #allocation1 [shape = 'u32[144,128]{1,0:T(1,128)}', space=vmem, size = 0x12000, scoped, tag = 'internal scratch']
  %s0 = inlined_call_operand.vmem [shape: bf16[656,32], index: 0, kind: input, shape index: {}]
  %s1 = inlined_call_operand.vmem [shape: bf16[9,32,8], index: 1, kind: input, shape index: {}]
  %s2 = inlined_call_operand.vmem [shape: f32[2,8], index: 2, kind: input, shape index: {}]
  %s3 = inlined_call_operand.vmem [shape: bf16[8,128], index: 3, kind: input, shape index: {}]
  %s4 = inlined_call_operand.vmem [shape: f32[1,128], index: 4, kind: input, shape index: {}]
  %s5 = inlined_call_operand.hbm [shape: f32[656,128], index: 5, kind: output, shape index: {}]
  %s6 = sld [smem:[#allocation0]]
  $region30: #{tpu_custom_call.1} parent=0
    _
  %s8 = ssub.s32 1, %s6
  %s9 = scalar_select 0, %s8, %s6
  $region1: #{tpu_custom_call.1} parent=0
    #allocation2 [shape = 'u8[335872]{0}', space=vmem, size = 0x52000, scoped, tag = 'output window, operand 0, single buffered']
    #allocation3 [shape = 's32[1]{0}', space=sflag, size = 0x4, scoped, tag = 'scoped memory for tpu_custom_call.1']
    %10 = vsyncpa [#allocation3], 0
    // Predicated region
    $region2: #{tpu_custom_call.1} parent=1 // pred_check
      _
    $region3: #{tpu_custom_call.1} parent=1 // pred_check_branch
      %12 = sbr.rel (0) target = $region5
    $region4: #{tpu_custom_call.1} parent=1 // pred_region
      _
    $region5: #{tpu_custom_call.1} parent=1 // pred_fallthru
      _
    // Predicated region
    $region6: #{tpu_custom_call.1} parent=1 // pred_check
      _
    $region7: #{tpu_custom_call.1} parent=1 // pred_check_branch
      %14 = sbr.rel (0) target = $region9
    $region8: #{tpu_custom_call.1} parent=1 // pred_region
      _
    $region9: #{tpu_custom_call.1} parent=1 // pred_fallthru
      _
    // Predicated region
    $region10: #{tpu_custom_call.1} parent=1 // pred_check
      _
    $region11: #{tpu_custom_call.1} parent=1 // pred_check_branch
      %16 = sbr.rel (0) target = $region13
    $region12: #{tpu_custom_call.1} parent=1 // pred_region
      _
    $region13: #{tpu_custom_call.1} parent=1 // pred_fallthru
      _
    // Predicated region
    $region14: #{tpu_custom_call.1} parent=1 // pred_check
      _
    $region15: #{tpu_custom_call.1} parent=1 // pred_check_branch
      %18 = sbr.rel (0) target = $region17
    $region16: #{tpu_custom_call.1} parent=1 // pred_region
      _
    $region17: #{tpu_custom_call.1} parent=1 // pred_fallthru
      _
    // Predicated region
    $region18: #{tpu_custom_call.1} parent=1 // pred_check
      _
    $region19: #{tpu_custom_call.1} parent=1 // pred_check_branch
      %20 = sbr.rel (0) target = $region21
    $region20: #{tpu_custom_call.1} parent=1 // pred_region
      _
    $region21: #{tpu_custom_call.1} parent=1 // pred_fallthru
      _
    %v22 = vld [vmem:[%s0] sm:$0xf]
    %v23 = vld [vmem:[%s0 + $0x4] sm:$0xf]
    %v24 = vld [vmem:[%s0 + $0x8] sm:$0xf]
    %v25 = vld [vmem:[%s0 + $0xc] sm:$0xf]
    %v26 = vld [vmem:[%s0 + $0x10] sm:$0xf]
    %v27 = vld [vmem:[%s0 + $0x14] sm:$0xf]
    %v28 = vld [vmem:[%s0 + $0x18] sm:$0xf]
    %v29 = vld [vmem:[%s0 + $0x1c] sm:$0xf]
    %v30 = vld [vmem:[%s0 + $0x20] sm:$0xf]
    %v31 = vld [vmem:[%s0 + $0x24] sm:$0xf]
    %v32 = vld [vmem:[%s0 + $0x28] sm:$0xf]
    %v33 = vld [vmem:[%s0 + $0x2c] sm:$0xf]
    %v34 = vld [vmem:[%s0 + $0x30] sm:$0xf]
    %v35 = vld [vmem:[%s0 + $0x34] sm:$0xf]
    %v36 = vld [vmem:[%s0 + $0x38] sm:$0xf]
    %v37 = vld [vmem:[%s0 + $0x3c] sm:$0xf]
    %v38 = vld [vmem:[%s0 + $0x40] sm:$0xf]
    %v39 = vld [vmem:[%s0 + $0x44] sm:$0xf]
    %v40 = vld [vmem:[%s0 + $0x48] sm:$0xf]
    %v41 = vld [vmem:[%s0 + $0x4c] sm:$0xf]
    %v42 = vld [vmem:[%s0 + $0x50] sm:$0xf]
    %v43 = vld [vmem:[%s0 + $0x54] sm:$0xf]
    %v44 = vld [vmem:[%s0 + $0x58] sm:$0xf]
    %v45 = vld [vmem:[%s0 + $0x5c] sm:$0xf]
    %v46 = vld [vmem:[%s0 + $0x60] sm:$0xf]
    %v47 = vld [vmem:[%s0 + $0x64] sm:$0xf]
    %v48 = vld [vmem:[%s0 + $0x68] sm:$0xf]
    %v49 = vld [vmem:[%s0 + $0x6c] sm:$0xf]
    %v50 = vld [vmem:[%s0 + $0x70] sm:$0xf]
    %v51 = vld [vmem:[%s0 + $0x74] sm:$0xf]
    %v52 = vld [vmem:[%s0 + $0x78] sm:$0xf]
    %v53 = vld [vmem:[%s0 + $0x7c] sm:$0xf]
    %v54 = vld [vmem:[%s0 + $0x80] sm:$0xf]
    %v55 = vld [vmem:[%s0 + $0x84] sm:$0xf]
    %v56 = vld [vmem:[%s0 + $0x88] sm:$0xf]
    %v57 = vld [vmem:[%s0 + $0x8c] sm:$0xf]
    %v58 = vld [vmem:[%s0 + $0x90] sm:$0xf]
    %v59 = vld [vmem:[%s0 + $0x94] sm:$0xf]
    %v60 = vld [vmem:[%s0 + $0x98] sm:$0xf]
    %v61 = vld [vmem:[%s0 + $0x9c] sm:$0xf]
    %v62 = vld [vmem:[%s0 + $0xa0] sm:$0xf]
    %v63 = vld [vmem:[%s0 + $0xa4] sm:$0xf]
    %v64 = vld [vmem:[%s0 + $0xa8] sm:$0xf]
    %v65 = vld [vmem:[%s0 + $0xac] sm:$0xf]
    %v66 = vld [vmem:[%s0 + $0xb0] sm:$0xf]
    %v67 = vld [vmem:[%s0 + $0xb4] sm:$0xf]
    %v68 = vld [vmem:[%s0 + $0xb8] sm:$0xf]
    %v69 = vld [vmem:[%s0 + $0xbc] sm:$0xf]
    %v70 = vld [vmem:[%s0 + $0xc0] sm:$0xf]
    %v71 = vld [vmem:[%s0 + $0xc4] sm:$0xf]
    %v72 = vld [vmem:[%s0 + $0xc8] sm:$0xf]
    %v73 = vld [vmem:[%s0 + $0xcc] sm:$0xf]
    %v74 = vld [vmem:[%s0 + $0xd0] sm:$0xf]
    %v75 = vld [vmem:[%s0 + $0xd4] sm:$0xf]
    %v76 = vld [vmem:[%s0 + $0xd8] sm:$0xf]
    %v77 = vld [vmem:[%s0 + $0xdc] sm:$0xf]
    %v78 = vld [vmem:[%s0 + $0xe0] sm:$0xf]
    %v79 = vld [vmem:[%s0 + $0xe4] sm:$0xf]
    %v80 = vld [vmem:[%s0 + $0xe8] sm:$0xf]
    %v81 = vld [vmem:[%s0 + $0xec] sm:$0xf]
    %v82 = vld [vmem:[%s0 + $0xf0] sm:$0xf]
    %v83 = vld [vmem:[%s0 + $0xf4] sm:$0xf]
    %v84 = vld [vmem:[%s0 + $0xf8] sm:$0xf]
    %v85 = vld [vmem:[%s0 + $0xfc] sm:$0xf]
    %v86 = vld [vmem:[%s0 + $0x100] sm:$0xf]
    %v87 = vld [vmem:[%s0 + $0x104] sm:$0xf]
    %v88 = vld [vmem:[%s0 + $0x108] sm:$0xf]
    %v89 = vld [vmem:[%s0 + $0x10c] sm:$0xf]
    %v90 = vld [vmem:[%s0 + $0x110] sm:$0xf]
    %v91 = vld [vmem:[%s0 + $0x114] sm:$0xf]
    %v92 = vld [vmem:[%s0 + $0x118] sm:$0xf]
    %v93 = vld [vmem:[%s0 + $0x11c] sm:$0xf]
    %v94 = vld [vmem:[%s0 + $0x120] sm:$0xf]
    %v95 = vld [vmem:[%s0 + $0x124] sm:$0xf]
    %v96 = vld [vmem:[%s0 + $0x128] sm:$0xf]
    %v97 = vld [vmem:[%s0 + $0x12c] sm:$0xf]
    %v98 = vld [vmem:[%s0 + $0x130] sm:$0xf]
    %v99 = vld [vmem:[%s0 + $0x134] sm:$0xf]
    %v100 = vld [vmem:[%s0 + $0x138] sm:$0xf]
    %v101 = vld [vmem:[%s0 + $0x13c] sm:$0xf]
    %v102 = vld [vmem:[%s0 + $0x140] sm:$0xf]
    %v103 = vld [vmem:[%s0 + $0x144] sm:$0xf]
    %s104 = scalar_lea.vmem %s1, 64
    %v105 = vld [vmem:[%s104] sm:$0xf]
    %v106 = vld [vmem:[%s104 + $0x4] sm:$0xf]
    %v107 = vld [vmem:[%s104 + $0x8] sm:$0xf]
    %v108 = vld [vmem:[%s104 + $0xc] sm:$0xf]
    %v109 = vld [vmem:[%s1] sm:$0xf]
    %v110 = vld [vmem:[%s1 + $0x4] sm:$0xf]
    %v111 = vld [vmem:[%s1 + $0x8] sm:$0xf]
    %v112 = vld [vmem:[%s1 + $0xc] sm:$0xf]
    %v195 = vunpack.c.l.b16 %v22
    %v196 = vunpack.c.l.b16 %v23
    %v197 = vunpack.c.l.b16 %v24
    %v198 = vunpack.c.l.b16 %v25
    %v199 = vunpack.c.l.b16 %v26
    %v200 = vunpack.c.l.b16 %v27
    %v201 = vunpack.c.l.b16 %v28
    %v202 = vunpack.c.l.b16 %v29
    %v203 = vunpack.c.l.b16 %v30
    %v204 = vunpack.c.l.b16 %v31
    %v205 = vunpack.c.l.b16 %v32
    %v206 = vunpack.c.l.b16 %v33
    %v207 = vunpack.c.l.b16 %v34
    %v208 = vunpack.c.l.b16 %v35
    %v209 = vunpack.c.l.b16 %v36
    %v210 = vunpack.c.l.b16 %v37
    %v211 = vunpack.c.l.b16 %v38
    %v212 = vunpack.c.l.b16 %v39
    %v213 = vunpack.c.l.b16 %v40
    %v214 = vunpack.c.l.b16 %v41
    %v215 = vunpack.c.l.b16 %v42
    %v216 = vunpack.c.l.b16 %v43
    %v217 = vunpack.c.l.b16 %v44
    %v218 = vunpack.c.l.b16 %v45
    %v219 = vunpack.c.l.b16 %v46
    %v220 = vunpack.c.l.b16 %v47
    %v221 = vunpack.c.l.b16 %v48
    %v222 = vunpack.c.l.b16 %v49
    %v223 = vunpack.c.l.b16 %v50
    %v224 = vunpack.c.l.b16 %v51
    %v225 = vunpack.c.l.b16 %v52
    %v226 = vunpack.c.l.b16 %v53
    %v227 = vunpack.c.l.b16 %v54
    %v228 = vunpack.c.l.b16 %v55
    %v229 = vunpack.c.l.b16 %v56
    %v230 = vunpack.c.l.b16 %v57
    %v231 = vunpack.c.l.b16 %v58
    %v232 = vunpack.c.l.b16 %v59
    %v233 = vunpack.c.l.b16 %v60
    %v234 = vunpack.c.l.b16 %v61
    %v235 = vunpack.c.l.b16 %v62
    %v236 = vunpack.c.l.b16 %v63
    %v237 = vunpack.c.l.b16 %v64
    %v238 = vunpack.c.l.b16 %v65
    %v239 = vunpack.c.l.b16 %v66
    %v240 = vunpack.c.l.b16 %v67
    %v241 = vunpack.c.l.b16 %v68
    %v242 = vunpack.c.l.b16 %v69
    %v243 = vunpack.c.l.b16 %v70
    %v244 = vunpack.c.l.b16 %v71
    %v245 = vunpack.c.l.b16 %v72
    %v246 = vunpack.c.l.b16 %v73
    %v247 = vunpack.c.l.b16 %v74
    %v248 = vunpack.c.l.b16 %v75
    %v249 = vunpack.c.l.b16 %v76
    %v250 = vunpack.c.l.b16 %v77
    %v251 = vunpack.c.l.b16 %v78
    %v252 = vunpack.c.l.b16 %v79
    %v253 = vunpack.c.l.b16 %v80
    %v254 = vunpack.c.l.b16 %v81
    %v255 = vunpack.c.l.b16 %v82
    %v256 = vunpack.c.l.b16 %v83
    %v257 = vunpack.c.l.b16 %v84
    %v258 = vunpack.c.l.b16 %v85
    %v259 = vunpack.c.l.b16 %v86
    %v260 = vunpack.c.l.b16 %v87
    %v261 = vunpack.c.l.b16 %v88
    %v262 = vunpack.c.l.b16 %v89
    %v263 = vunpack.c.l.b16 %v90
    %v264 = vunpack.c.l.b16 %v91
    %v265 = vunpack.c.l.b16 %v92
    %v266 = vunpack.c.l.b16 %v93
    %v267 = vunpack.c.l.b16 %v94
    %v268 = vunpack.c.l.b16 %v95
    %v269 = vunpack.c.l.b16 %v96
    %v270 = vunpack.c.l.b16 %v97
    %v271 = vunpack.c.l.b16 %v98
    %v272 = vunpack.c.l.b16 %v99
    %v273 = vunpack.c.l.b16 %v100
    %v274 = vunpack.c.l.b16 %v101
    %v275 = vunpack.c.l.b16 %v102
    %v276 = vunpack.c.l.b16 %v103
    %v277 = vpack.c.b16 %v196, %v195
    %v278 = vpack.c.b16 %v198, %v197
    %v279 = vpack.c.b16 %v200, %v199
    %v280 = vpack.c.b16 %v202, %v201
    %v281 = vpack.c.b16 %v204, %v203
    %v282 = vpack.c.b16 %v206, %v205
    %v283 = vpack.c.b16 %v208, %v207
    %v284 = vpack.c.b16 %v210, %v209
    %v285 = vpack.c.b16 %v212, %v211
    %v286 = vpack.c.b16 %v214, %v213
    %v287 = vpack.c.b16 %v216, %v215
    %v288 = vpack.c.b16 %v218, %v217
    %v289 = vpack.c.b16 %v220, %v219
    %v290 = vpack.c.b16 %v222, %v221
    %v291 = vpack.c.b16 %v224, %v223
    %v292 = vpack.c.b16 %v226, %v225
    %v293 = vpack.c.b16 %v228, %v227
    %v294 = vpack.c.b16 %v230, %v229
    %v295 = vpack.c.b16 %v232, %v231
    %v296 = vpack.c.b16 %v234, %v233
    %v297 = vpack.c.b16 %v236, %v235
    %v298 = vpack.c.b16 %v238, %v237
    %v299 = vpack.c.b16 %v240, %v239
    %v300 = vpack.c.b16 %v242, %v241
    %v301 = vpack.c.b16 %v244, %v243
    %v302 = vpack.c.b16 %v246, %v245
    %v303 = vpack.c.b16 %v248, %v247
    %v304 = vpack.c.b16 %v250, %v249
    %v305 = vpack.c.b16 %v252, %v251
    %v306 = vpack.c.b16 %v254, %v253
    %v307 = vpack.c.b16 %v256, %v255
    %v308 = vpack.c.b16 %v258, %v257
    %v309 = vpack.c.b16 %v260, %v259
    %v310 = vpack.c.b16 %v262, %v261
    %v311 = vpack.c.b16 %v264, %v263
    %v312 = vpack.c.b16 %v266, %v265
    %v313 = vpack.c.b16 %v268, %v267
    %v314 = vpack.c.b16 %v270, %v269
    %v315 = vpack.c.b16 %v272, %v271
    %v316 = vpack.c.b16 %v274, %v273
    %v317 = vpack.c.b16 %v276, %v275
    %v322 = vunpack.c.l.b16 %v109
    %v323 = vunpack.c.l.b16 %v110
    %v324 = vunpack.c.l.b16 %v111
    %v325 = vunpack.c.l.b16 %v112
    %v326 = vpack.c.b16 %v323, %v322
    %v327 = vpack.c.b16 %v325, %v324
    %vm330 = vcmask 261120
    %v332 = vsel %vm330, %v277, 0
    %v335 = vsel %vm330, %v278, 0
    %v338 = vsel %vm330, %v279, 0
    %v341 = vsel %vm330, %v280, 0
    %v344 = vsel %vm330, %v281, 0
    %v347 = vsel %vm330, %v282, 0
    %v350 = vsel %vm330, %v283, 0
    %v353 = vsel %vm330, %v284, 0
    %v356 = vsel %vm330, %v285, 0
    %v359 = vsel %vm330, %v286, 0
    %v362 = vsel %vm330, %v287, 0
    %v365 = vsel %vm330, %v288, 0
    %v368 = vsel %vm330, %v289, 0
    %v371 = vsel %vm330, %v290, 0
    %v374 = vsel %vm330, %v291, 0
    %v377 = vsel %vm330, %v292, 0
    %v380 = vsel %vm330, %v293, 0
    %v383 = vsel %vm330, %v294, 0
    %v386 = vsel %vm330, %v295, 0
    %v389 = vsel %vm330, %v296, 0
    %v392 = vsel %vm330, %v297, 0
    %v395 = vsel %vm330, %v298, 0
    %v398 = vsel %vm330, %v299, 0
    %v401 = vsel %vm330, %v300, 0
    %v404 = vsel %vm330, %v301, 0
    %v407 = vsel %vm330, %v302, 0
    %v410 = vsel %vm330, %v303, 0
    %v413 = vsel %vm330, %v304, 0
    %v416 = vsel %vm330, %v305, 0
    %v419 = vsel %vm330, %v306, 0
    %v422 = vsel %vm330, %v307, 0
    %v425 = vsel %vm330, %v308, 0
    %v428 = vsel %vm330, %v309, 0
    %v431 = vsel %vm330, %v310, 0
    %v434 = vsel %vm330, %v311, 0
    %v437 = vsel %vm330, %v312, 0
    %v440 = vsel %vm330, %v313, 0
    %v443 = vsel %vm330, %v314, 0
    %v446 = vsel %vm330, %v315, 0
    %v449 = vsel %vm330, %v316, 0
    %v452 = vsel %vm330, %v317, 0
    %454 = vmatprep.subr.bf16.mxu0 0
    %455 = vmatpush1.bf16.msra.mxu0 %v326
    %456 = vmatprep.subr.bf16.mxu0 0
    %457 = vmatpush1.bf16.msra.mxu0 %v327
    %458 = vmatprep.subr.bf16.mxu0 0
    %459 = vmatpush1.bf16.msra.mxu0 0
    %460 = vmatprep.subr.bf16.mxu0 0
    %461 = vmatpush1.bf16.msra.mxu0 0
    %462 = vmatprep.subr.bf16.mxu0 0
    %463 = vmatpush1.bf16.msra.mxu0 0
    %464 = vmatprep.subr.bf16.mxu0 0
    %465 = vmatpush1.bf16.msra.mxu0 0
    %466 = vmatprep.subr.bf16.mxu0 0
    %467 = vmatpush1.bf16.msra.mxu0 0
    %468 = vmatprep.subr.bf16.mxu0 0
    %469 = vmatpush1.bf16.msra.mxu0 0
    %470 = vmatprep.subr.bf16.mxu0 0
    %471 = vmatpush1.bf16.msra.mxu0 0
    %472 = vmatprep.subr.bf16.mxu0 0
    %473 = vmatpush1.bf16.msra.mxu0 0
    %474 = vmatprep.subr.bf16.mxu0 0
    %475 = vmatpush1.bf16.msra.mxu0 0
    %476 = vmatprep.subr.bf16.mxu0 0
    %477 = vmatpush1.bf16.msra.mxu0 0
    %478 = vmatprep.subr.bf16.mxu0 0
    %479 = vmatpush1.bf16.msra.mxu0 0
    %480 = vmatprep.subr.bf16.mxu0 0
    %481 = vmatpush1.bf16.msra.mxu0 0
    %482 = vmatprep.subr.bf16.mxu0 0
    %483 = vmatpush1.bf16.msra.mxu0 0
    %484 = vmatprep.subr.bf16.mxu0 0
    %485 = vmatpush1.bf16.msra.mxu0 0
    %486 = vmatprep.mubr.bf16.mxu0 0
    %487 = vmatmul.mubr.bf16.gmra.mrb[0].mxu0 %v332
    %v488 = vpop.f32.mrb[0].mxu0
    %v489 = vadd.f32 0.0, %v488
    %v490 = vpop.f32.mrb[0].mxu0
    %v491 = vpop.f32.mrb[0].mxu0
    %v492 = vadd.f32 0.0, %v491
    %v493 = vpop.f32.mrb[0].mxu0
    %494 = vmatprep.mubr.bf16.mxu0 0
    %495 = vmatmul.mubr.bf16.gmra.mrb[0].mxu0 %v335
    %v496 = vpop.f32.mrb[0].mxu0
    %v497 = vadd.f32 0.0, %v496
    %v498 = vpop.f32.mrb[0].mxu0
    %v499 = vpop.f32.mrb[0].mxu0
    %v500 = vadd.f32 0.0, %v499
    %v501 = vpop.f32.mrb[0].mxu0
    %502 = vmatprep.mubr.bf16.mxu0 0
    %503 = vmatmul.mubr.bf16.gmra.mrb[0].mxu0 %v338
    %v504 = vpop.f32.mrb[0].mxu0
    %v505 = vadd.f32 0.0, %v504
    %v506 = vpop.f32.mrb[0].mxu0
    %v507 = vpop.f32.mrb[0].mxu0
    %v508 = vadd.f32 0.0, %v507
    %v509 = vpop.f32.mrb[0].mxu0
    %510 = vmatprep.mubr.bf16.mxu0 0
    %511 = vmatmul.mubr.bf16.gmra.mrb[0].mxu0 %v341
    %v512 = vpop.f32.mrb[0].mxu0
    %v513 = vadd.f32 0.0, %v512
    %v514 = vpop.f32.mrb[0].mxu0
    %v515 = vpop.f32.mrb[0].mxu0
    %v516 = vadd.f32 0.0, %v515
    %v517 = vpop.f32.mrb[0].mxu0
    %518 = vmatprep.mubr.bf16.mxu0 0
    %519 = vmatmul.mubr.bf16.gmra.mrb[0].mxu0 %v344
    %v520 = vpop.f32.mrb[0].mxu0
    %v521 = vadd.f32 0.0, %v520
    %v522 = vpop.f32.mrb[0].mxu0
    %v523 = vpop.f32.mrb[0].mxu0
    %v524 = vadd.f32 0.0, %v523
    %v525 = vpop.f32.mrb[0].mxu0
    %526 = vmatprep.mubr.bf16.mxu0 0
    %527 = vmatmul.mubr.bf16.gmra.mrb[0].mxu0 %v347
    %v528 = vpop.f32.mrb[0].mxu0
    %v529 = vadd.f32 0.0, %v528
    %v530 = vpop.f32.mrb[0].mxu0
    %v531 = vpop.f32.mrb[0].mxu0
    %v532 = vadd.f32 0.0, %v531
    %v533 = vpop.f32.mrb[0].mxu0
    %534 = vmatprep.mubr.bf16.mxu0 0
    %535 = vmatmul.mubr.bf16.gmra.mrb[0].mxu0 %v350
    %v536 = vpop.f32.mrb[0].mxu0
    %v537 = vadd.f32 0.0, %v536
    %v538 = vpop.f32.mrb[0].mxu0
    %v539 = vpop.f32.mrb[0].mxu0
    %v540 = vadd.f32 0.0, %v539
    %v541 = vpop.f32.mrb[0].mxu0
    %542 = vmatprep.mubr.bf16.mxu0 0
    %543 = vmatmul.mubr.bf16.gmra.mrb[0].mxu0 %v353
    %v544 = vpop.f32.mrb[0].mxu0
    %v545 = vadd.f32 0.0, %v544
    %v546 = vpop.f32.mrb[0].mxu0
    %v547 = vpop.f32.mrb[0].mxu0
    %v548 = vadd.f32 0.0, %v547
    %v549 = vpop.f32.mrb[0].mxu0
    %550 = vmatprep.mubr.bf16.mxu0 0
    %551 = vmatmul.mubr.bf16.gmra.mrb[0].mxu0 %v356
    %v552 = vpop.f32.mrb[0].mxu0
    %v553 = vadd.f32 0.0, %v552
    %v554 = vpop.f32.mrb[0].mxu0
    %v555 = vpop.f32.mrb[0].mxu0
    %v556 = vadd.f32 0.0, %v555
    %v557 = vpop.f32.mrb[0].mxu0
    %558 = vmatprep.mubr.bf16.mxu0 0
    %559 = vmatmul.mubr.bf16.gmra.mrb[0].mxu0 %v359
    %v560 = vpop.f32.mrb[0].mxu0
    %v561 = vadd.f32 0.0, %v560
    %v562 = vpop.f32.mrb[0].mxu0
    %v563 = vpop.f32.mrb[0].mxu0
    %v564 = vadd.f32 0.0, %v563
    %v565 = vpop.f32.mrb[0].mxu0
    %566 = vmatprep.mubr.bf16.mxu0 0
    %567 = vmatmul.mubr.bf16.gmra.mrb[0].mxu0 %v362
    %v568 = vpop.f32.mrb[0].mxu0
    %v569 = vadd.f32 0.0, %v568
    %v570 = vpop.f32.mrb[0].mxu0
    %v571 = vpop.f32.mrb[0].mxu0
    %v572 = vadd.f32 0.0, %v571
    %v573 = vpop.f32.mrb[0].mxu0
    %574 = vmatprep.mubr.bf16.mxu0 0
    %575 = vmatmul.mubr.bf16.gmra.mrb[0].mxu0 %v365
    %v576 = vpop.f32.mrb[0].mxu0
    %v577 = vadd.f32 0.0, %v576
    %v578 = vpop.f32.mrb[0].mxu0
    %v579 = vpop.f32.mrb[0].mxu0
    %v580 = vadd.f32 0.0, %v579
    %v581 = vpop.f32.mrb[0].mxu0
    %582 = vmatprep.mubr.bf16.mxu0 0
    %583 = vmatmul.mubr.bf16.gmra.mrb[0].mxu0 %v368
    %v584 = vpop.f32.mrb[0].mxu0
    %v585 = vadd.f32 0.0, %v584
    %v586 = vpop.f32.mrb[0].mxu0
    %v587 = vpop.f32.mrb[0].mxu0
    %v588 = vadd.f32 0.0, %v587
    %v589 = vpop.f32.mrb[0].mxu0
    %590 = vmatprep.mubr.bf16.mxu0 0
    %591 = vmatmul.mubr.bf16.gmra.mrb[0].mxu0 %v371
    %v592 = vpop.f32.mrb[0].mxu0
    %v593 = vadd.f32 0.0, %v592
    %v594 = vpop.f32.mrb[0].mxu0
    %v595 = vpop.f32.mrb[0].mxu0
    %v596 = vadd.f32 0.0, %v595
    %v597 = vpop.f32.mrb[0].mxu0
    %598 = vmatprep.mubr.bf16.mxu0 0
    %599 = vmatmul.mubr.bf16.gmra.mrb[0].mxu0 %v374
    %v600 = vpop.f32.mrb[0].mxu0
    %v601 = vadd.f32 0.0, %v600
    %v602 = vpop.f32.mrb[0].mxu0
    %v603 = vpop.f32.mrb[0].mxu0
    %v604 = vadd.f32 0.0, %v603
    %v605 = vpop.f32.mrb[0].mxu0
    %606 = vmatprep.mubr.bf16.mxu0 0
    %607 = vmatmul.mubr.bf16.gmra.mrb[0].mxu0 %v377
    %v608 = vpop.f32.mrb[0].mxu0
    %v609 = vadd.f32 0.0, %v608
    %v610 = vpop.f32.mrb[0].mxu0
    %v611 = vpop.f32.mrb[0].mxu0
    %v612 = vadd.f32 0.0, %v611
    %v613 = vpop.f32.mrb[0].mxu0
    %614 = vmatprep.mubr.bf16.mxu0 0
    %615 = vmatmul.mubr.bf16.gmra.mrb[0].mxu0 %v380
    %v616 = vpop.f32.mrb[0].mxu0
    %v617 = vadd.f32 0.0, %v616
    %v618 = vpop.f32.mrb[0].mxu0
    %v619 = vpop.f32.mrb[0].mxu0
    %v620 = vadd.f32 0.0, %v619
    %v621 = vpop.f32.mrb[0].mxu0
    %622 = vmatprep.mubr.bf16.mxu0 0
    %623 = vmatmul.mubr.bf16.gmra.mrb[0].mxu0 %v383
    %v624 = vpop.f32.mrb[0].mxu0
    %v625 = vadd.f32 0.0, %v624
    %v626 = vpop.f32.mrb[0].mxu0
    %v627 = vpop.f32.mrb[0].mxu0
    %v628 = vadd.f32 0.0, %v627
    %v629 = vpop.f32.mrb[0].mxu0
    %630 = vmatprep.mubr.bf16.mxu0 0
    %631 = vmatmul.mubr.bf16.gmra.mrb[0].mxu0 %v386
    %v632 = vpop.f32.mrb[0].mxu0
    %v633 = vadd.f32 0.0, %v632
    %v634 = vpop.f32.mrb[0].mxu0
    %v635 = vpop.f32.mrb[0].mxu0
    %v636 = vadd.f32 0.0, %v635
    %v637 = vpop.f32.mrb[0].mxu0
    %638 = vmatprep.mubr.bf16.mxu0 0
    %639 = vmatmul.mubr.bf16.gmra.mrb[0].mxu0 %v389
    %v640 = vpop.f32.mrb[0].mxu0
    %v641 = vadd.f32 0.0, %v640
    %v642 = vpop.f32.mrb[0].mxu0
    %v643 = vpop.f32.mrb[0].mxu0
    %v644 = vadd.f32 0.0, %v643
    %v645 = vpop.f32.mrb[0].mxu0
    %646 = vmatprep.mubr.bf16.mxu0 0
    %647 = vmatmul.mubr.bf16.gmra.mrb[0].mxu0 %v392
    %v648 = vpop.f32.mrb[0].mxu0
    %v649 = vadd.f32 0.0, %v648
    %v650 = vpop.f32.mrb[0].mxu0
    %v651 = vpop.f32.mrb[0].mxu0
    %v652 = vadd.f32 0.0, %v651
    %v653 = vpop.f32.mrb[0].mxu0
    %654 = vmatprep.mubr.bf16.mxu0 0
    %655 = vmatmul.mubr.bf16.gmra.mrb[0].mxu0 %v395
    %v656 = vpop.f32.mrb[0].mxu0
    %v657 = vadd.f32 0.0, %v656
    %v658 = vpop.f32.mrb[0].mxu0
    %v659 = vpop.f32.mrb[0].mxu0
    %v660 = vadd.f32 0.0, %v659
    %v661 = vpop.f32.mrb[0].mxu0
    %662 = vmatprep.mubr.bf16.mxu0 0
    %663 = vmatmul.mubr.bf16.gmra.mrb[0].mxu0 %v398
    %v664 = vpop.f32.mrb[0].mxu0
    %v665 = vadd.f32 0.0, %v664
    %v666 = vpop.f32.mrb[0].mxu0
    %v667 = vpop.f32.mrb[0].mxu0
    %v668 = vadd.f32 0.0, %v667
    %v669 = vpop.f32.mrb[0].mxu0
    %670 = vmatprep.mubr.bf16.mxu0 0
    %671 = vmatmul.mubr.bf16.gmra.mrb[0].mxu0 %v401
    %v672 = vpop.f32.mrb[0].mxu0
    %v673 = vadd.f32 0.0, %v672
    %v674 = vpop.f32.mrb[0].mxu0
    %v675 = vpop.f32.mrb[0].mxu0
    %v676 = vadd.f32 0.0, %v675
    %v677 = vpop.f32.mrb[0].mxu0
    %678 = vmatprep.mubr.bf16.mxu0 0
    %679 = vmatmul.mubr.bf16.gmra.mrb[0].mxu0 %v404
    %v680 = vpop.f32.mrb[0].mxu0
    %v681 = vadd.f32 0.0, %v680
    %v682 = vpop.f32.mrb[0].mxu0
    %v683 = vpop.f32.mrb[0].mxu0
    %v684 = vadd.f32 0.0, %v683
    %v685 = vpop.f32.mrb[0].mxu0
    %686 = vmatprep.mubr.bf16.mxu0 0
    %687 = vmatmul.mubr.bf16.gmra.mrb[0].mxu0 %v407
    %v688 = vpop.f32.mrb[0].mxu0
    %v689 = vadd.f32 0.0, %v688
    %v690 = vpop.f32.mrb[0].mxu0
    %v691 = vpop.f32.mrb[0].mxu0
    %v692 = vadd.f32 0.0, %v691
    %v693 = vpop.f32.mrb[0].mxu0
    %694 = vmatprep.mubr.bf16.mxu0 0
    %695 = vmatmul.mubr.bf16.gmra.mrb[0].mxu0 %v410
    %v696 = vpop.f32.mrb[0].mxu0
    %v697 = vadd.f32 0.0, %v696
    %v698 = vpop.f32.mrb[0].mxu0
    %v699 = vpop.f32.mrb[0].mxu0
    %v700 = vadd.f32 0.0, %v699
    %v701 = vpop.f32.mrb[0].mxu0
    %702 = vmatprep.mubr.bf16.mxu0 0
    %703 = vmatmul.mubr.bf16.gmra.mrb[0].mxu0 %v413
    %v704 = vpop.f32.mrb[0].mxu0
    %v705 = vadd.f32 0.0, %v704
    %v706 = vpop.f32.mrb[0].mxu0
    %v707 = vpop.f32.mrb[0].mxu0
    %v708 = vadd.f32 0.0, %v707
    %v709 = vpop.f32.mrb[0].mxu0
    %710 = vmatprep.mubr.bf16.mxu0 0
    %711 = vmatmul.mubr.bf16.gmra.mrb[0].mxu0 %v416
    %v712 = vpop.f32.mrb[0].mxu0
    %v713 = vadd.f32 0.0, %v712
    %v714 = vpop.f32.mrb[0].mxu0
    %v715 = vpop.f32.mrb[0].mxu0
    %v716 = vadd.f32 0.0, %v715
    %v717 = vpop.f32.mrb[0].mxu0
    %718 = vmatprep.mubr.bf16.mxu0 0
    %719 = vmatmul.mubr.bf16.gmra.mrb[0].mxu0 %v419
    %v720 = vpop.f32.mrb[0].mxu0
    %v721 = vadd.f32 0.0, %v720
    %v722 = vpop.f32.mrb[0].mxu0
    %v723 = vpop.f32.mrb[0].mxu0
    %v724 = vadd.f32 0.0, %v723
    %v725 = vpop.f32.mrb[0].mxu0
    %726 = vmatprep.mubr.bf16.mxu0 0
    %727 = vmatmul.mubr.bf16.gmra.mrb[0].mxu0 %v422
    %v728 = vpop.f32.mrb[0].mxu0
    %v729 = vadd.f32 0.0, %v728
    %v730 = vpop.f32.mrb[0].mxu0
    %v731 = vpop.f32.mrb[0].mxu0
    %v732 = vadd.f32 0.0, %v731
    %v733 = vpop.f32.mrb[0].mxu0
    %734 = vmatprep.mubr.bf16.mxu0 0
    %735 = vmatmul.mubr.bf16.gmra.mrb[0].mxu0 %v425
    %v736 = vpop.f32.mrb[0].mxu0
    %v737 = vadd.f32 0.0, %v736
    %v738 = vpop.f32.mrb[0].mxu0
    %v739 = vpop.f32.mrb[0].mxu0
    %v740 = vadd.f32 0.0, %v739
    %v741 = vpop.f32.mrb[0].mxu0
    %742 = vmatprep.mubr.bf16.mxu0 0
    %743 = vmatmul.mubr.bf16.gmra.mrb[0].mxu0 %v428
    %v744 = vpop.f32.mrb[0].mxu0
    %v745 = vadd.f32 0.0, %v744
    %v746 = vpop.f32.mrb[0].mxu0
    %v747 = vpop.f32.mrb[0].mxu0
    %v748 = vadd.f32 0.0, %v747
    %v749 = vpop.f32.mrb[0].mxu0
    %750 = vmatprep.mubr.bf16.mxu0 0
    %751 = vmatmul.mubr.bf16.gmra.mrb[0].mxu0 %v431
    %v752 = vpop.f32.mrb[0].mxu0
    %v753 = vadd.f32 0.0, %v752
    %v754 = vpop.f32.mrb[0].mxu0
    %v755 = vpop.f32.mrb[0].mxu0
    %v756 = vadd.f32 0.0, %v755
    %v757 = vpop.f32.mrb[0].mxu0
    %758 = vmatprep.mubr.bf16.mxu0 0
    %759 = vmatmul.mubr.bf16.gmra.mrb[0].mxu0 %v434
    %v760 = vpop.f32.mrb[0].mxu0
    %v761 = vadd.f32 0.0, %v760
    %v762 = vpop.f32.mrb[0].mxu0
    %v763 = vpop.f32.mrb[0].mxu0
    %v764 = vadd.f32 0.0, %v763
    %v765 = vpop.f32.mrb[0].mxu0
    %766 = vmatprep.mubr.bf16.mxu0 0
    %767 = vmatmul.mubr.bf16.gmra.mrb[0].mxu0 %v437
    %v768 = vpop.f32.mrb[0].mxu0
    %v769 = vadd.f32 0.0, %v768
    %v770 = vpop.f32.mrb[0].mxu0
    %v771 = vpop.f32.mrb[0].mxu0
    %v772 = vadd.f32 0.0, %v771
    %v773 = vpop.f32.mrb[0].mxu0
    %774 = vmatprep.mubr.bf16.mxu0 0
    %775 = vmatmul.mubr.bf16.gmra.mrb[0].mxu0 %v440
    %v776 = vpop.f32.mrb[0].mxu0
    %v777 = vadd.f32 0.0, %v776
    %v778 = vpop.f32.mrb[0].mxu0
    %v779 = vpop.f32.mrb[0].mxu0
    %v780 = vadd.f32 0.0, %v779
    %v781 = vpop.f32.mrb[0].mxu0
    %782 = vmatprep.mubr.bf16.mxu0 0
    %783 = vmatmul.mubr.bf16.gmra.mrb[0].mxu0 %v443
    %v784 = vpop.f32.mrb[0].mxu0
    %v785 = vadd.f32 0.0, %v784
    %v786 = vpop.f32.mrb[0].mxu0
    %v787 = vpop.f32.mrb[0].mxu0
    %v788 = vadd.f32 0.0, %v787
    %v789 = vpop.f32.mrb[0].mxu0
    %790 = vmatprep.mubr.bf16.mxu0 0
    %791 = vmatmul.mubr.bf16.gmra.mrb[0].mxu0 %v446
    %v792 = vpop.f32.mrb[0].mxu0
    %v793 = vadd.f32 0.0, %v792
    %v794 = vpop.f32.mrb[0].mxu0
    %v795 = vpop.f32.mrb[0].mxu0
    %v796 = vadd.f32 0.0, %v795
    %v797 = vpop.f32.mrb[0].mxu0
    %798 = vmatprep.mubr.bf16.mxu0 0
    %799 = vmatmul.mubr.bf16.gmra.mrb[0].mxu0 %v449
    %v800 = vpop.f32.mrb[0].mxu0
    %v801 = vadd.f32 0.0, %v800
    %v802 = vpop.f32.mrb[0].mxu0
    %v803 = vpop.f32.mrb[0].mxu0
    %v804 = vadd.f32 0.0, %v803
    %v805 = vpop.f32.mrb[0].mxu0
    %806 = vmatprep.mubr.bf16.mxu0 0
    %807 = vmatmul.mubr.bf16.gmra.mrb[0].mxu0 %v452
    %v808 = vpop.f32.mrb[0].mxu0
    %v809 = vadd.f32 0.0, %v808
    %v810 = vpop.f32.mrb[0].mxu0
    %v811 = vpop.f32.mrb[0].mxu0
    %v812 = vadd.f32 0.0, %v811
    %v813 = vpop.f32.mrb[0].mxu0
    %814 = vdwg.mxu0
    %v815 = vrot.slane %v489, 5
    %v816 = vrot.slane %v492, 5
    %v817 = vrot.slane %v497, 5
    %v818 = vrot.slane %v500, 5
    %v819 = vrot.slane %v505, 5
    %v820 = vrot.slane %v508, 5
    %v821 = vrot.slane %v513, 5
    %v822 = vrot.slane %v516, 5
    %v823 = vrot.slane %v521, 5
    %v824 = vrot.slane %v524, 5
    %v825 = vrot.slane %v529, 5
    %v826 = vrot.slane %v532, 5
    %v827 = vrot.slane %v537, 5
    %v828 = vrot.slane %v540, 5
    %v829 = vrot.slane %v545, 5
    %v830 = vrot.slane %v548, 5
    %v831 = vrot.slane %v553, 5
    %v832 = vrot.slane %v556, 5
    %v833 = vrot.slane %v561, 5
    %v834 = vrot.slane %v564, 5
    %v835 = vrot.slane %v569, 5
    %v836 = vrot.slane %v572, 5
    %v837 = vrot.slane %v577, 5
    %v838 = vrot.slane %v580, 5
    %v839 = vrot.slane %v585, 5
    %v840 = vrot.slane %v588, 5
    %v841 = vrot.slane %v593, 5
    %v842 = vrot.slane %v596, 5
    %v843 = vrot.slane %v601, 5
    %v844 = vrot.slane %v604, 5
    %v845 = vrot.slane %v609, 5
    %v846 = vrot.slane %v612, 5
    %v847 = vrot.slane %v617, 5
    %v848 = vrot.slane %v620, 5
    %v849 = vrot.slane %v625, 5
    %v850 = vrot.slane %v628, 5
    %v851 = vrot.slane %v633, 5
    %v852 = vrot.slane %v636, 5
    %v853 = vrot.slane %v641, 5
    %v854 = vrot.slane %v644, 5
    %v855 = vrot.slane %v649, 5
    %v856 = vrot.slane %v652, 5
    %v857 = vrot.slane %v657, 5
    %v858 = vrot.slane %v660, 5
    %v859 = vrot.slane %v665, 5
    %v860 = vrot.slane %v668, 5
    %v861 = vrot.slane %v673, 5
    %v862 = vrot.slane %v676, 5
    %v863 = vrot.slane %v681, 5
    %v864 = vrot.slane %v684, 5
    %v865 = vrot.slane %v689, 5
    %v866 = vrot.slane %v692, 5
    %v867 = vrot.slane %v697, 5
    %v868 = vrot.slane %v700, 5
    %v869 = vrot.slane %v705, 5
    %v870 = vrot.slane %v708, 5
    %v871 = vrot.slane %v713, 5
    %v872 = vrot.slane %v716, 5
    %v873 = vrot.slane %v721, 5
    %v874 = vrot.slane %v724, 5
    %v875 = vrot.slane %v729, 5
    %v876 = vrot.slane %v732, 5
    %v877 = vrot.slane %v737, 5
    %v878 = vrot.slane %v740, 5
    %v879 = vrot.slane %v745, 5
    %v880 = vrot.slane %v748, 5
    %v881 = vrot.slane %v753, 5
    %v882 = vrot.slane %v756, 5
    %v883 = vrot.slane %v761, 5
    %v884 = vrot.slane %v764, 5
    %v885 = vrot.slane %v769, 5
    %v886 = vrot.slane %v772, 5
    %v887 = vrot.slane %v777, 5
    %v888 = vrot.slane %v780, 5
    %v889 = vrot.slane %v785, 5
    %v890 = vrot.slane %v788, 5
    %v891 = vrot.slane %v793, 5
    %v892 = vrot.slane %v796, 5
    %v893 = vrot.slane %v801, 5
    %v894 = vrot.slane %v804, 5
    %v895 = vrot.slane %v809, 5
    %v896 = vrot.slane %v812, 5
    %v897 = vlaneseq
    %v898 = vshrl.u32 %v897, 7
    %vm899 = vcmp.lt.s32.totalorder %v898, 3
    %v900 = vsel %vm899, %v895, %v896
    %v901 = vsel %vm899, %v894, %v895
    %v902 = vsel %vm899, %v893, %v894
    %v903 = vsel %vm899, %v892, %v893
    %v904 = vsel %vm899, %v891, %v892
    %v905 = vsel %vm899, %v890, %v891
    %v906 = vsel %vm899, %v889, %v890
    %v907 = vsel %vm899, %v888, %v889
    %v908 = vsel %vm899, %v887, %v888
    %v909 = vsel %vm899, %v886, %v887
    %v910 = vsel %vm899, %v885, %v886
    %v911 = vsel %vm899, %v884, %v885
    %v912 = vsel %vm899, %v883, %v884
    %v913 = vsel %vm899, %v882, %v883
    %v914 = vsel %vm899, %v881, %v882
    %v915 = vsel %vm899, %v880, %v881
    %v916 = vsel %vm899, %v879, %v880
    %v917 = vsel %vm899, %v878, %v879
    %v918 = vsel %vm899, %v877, %v878
    %v919 = vsel %vm899, %v876, %v877
    %v920 = vsel %vm899, %v875, %v876
    %v921 = vsel %vm899, %v874, %v875
    %v922 = vsel %vm899, %v873, %v874
    %v923 = vsel %vm899, %v872, %v873
    %v924 = vsel %vm899, %v871, %v872
    %v925 = vsel %vm899, %v870, %v871
    %v926 = vsel %vm899, %v869, %v870
    %v927 = vsel %vm899, %v868, %v869
    %v928 = vsel %vm899, %v867, %v868
    %v929 = vsel %vm899, %v866, %v867
    %v930 = vsel %vm899, %v865, %v866
    %v931 = vsel %vm899, %v864, %v865
    %v932 = vsel %vm899, %v863, %v864
    %v933 = vsel %vm899, %v862, %v863
    %v934 = vsel %vm899, %v861, %v862
    %v935 = vsel %vm899, %v860, %v861
    %v936 = vsel %vm899, %v859, %v860
    %v937 = vsel %vm899, %v858, %v859
    %v938 = vsel %vm899, %v857, %v858
    %v939 = vsel %vm899, %v856, %v857
    %v940 = vsel %vm899, %v855, %v856
    %v941 = vsel %vm899, %v854, %v855
    %v942 = vsel %vm899, %v853, %v854
    %v943 = vsel %vm899, %v852, %v853
    %v944 = vsel %vm899, %v851, %v852
    %v945 = vsel %vm899, %v850, %v851
    %v946 = vsel %vm899, %v849, %v850
    %v947 = vsel %vm899, %v848, %v849
    %v948 = vsel %vm899, %v847, %v848
    %v949 = vsel %vm899, %v846, %v847
    %v950 = vsel %vm899, %v845, %v846
    %v951 = vsel %vm899, %v844, %v845
    %v952 = vsel %vm899, %v843, %v844
    %v953 = vsel %vm899, %v842, %v843
    %v954 = vsel %vm899, %v841, %v842
    %v955 = vsel %vm899, %v840, %v841
    %v956 = vsel %vm899, %v839, %v840
    %v957 = vsel %vm899, %v838, %v839
    %v958 = vsel %vm899, %v837, %v838
    %v959 = vsel %vm899, %v836, %v837
    %v960 = vsel %vm899, %v835, %v836
    %v961 = vsel %vm899, %v834, %v835
    %v962 = vsel %vm899, %v833, %v834
    %v963 = vsel %vm899, %v832, %v833
    %v964 = vsel %vm899, %v831, %v832
    %v965 = vsel %vm899, %v830, %v831
    %v966 = vsel %vm899, %v829, %v830
    %v967 = vsel %vm899, %v828, %v829
    %v968 = vsel %vm899, %v827, %v828
    %v969 = vsel %vm899, %v826, %v827
    %v970 = vsel %vm899, %v825, %v826
    %v971 = vsel %vm899, %v824, %v825
    %v972 = vsel %vm899, %v823, %v824
    %v973 = vsel %vm899, %v822, %v823
    %v974 = vsel %vm899, %v821, %v822
    %v975 = vsel %vm899, %v820, %v821
    %v976 = vsel %vm899, %v819, %v820
    %v977 = vsel %vm899, %v818, %v819
    %v978 = vsel %vm899, %v817, %v818
    %v979 = vsel %vm899, %v816, %v817
    %v980 = vsel %vm899, %v815, %v816
    %v981 = vsel %vm899, %v896, %v815
    %v986 = vunpack.c.l.b16 %v105
    %v987 = vunpack.c.l.b16 %v106
    %v988 = vunpack.c.l.b16 %v107
    %v989 = vunpack.c.l.b16 %v108
    %v990 = vpack.c.b16 %v987, %v986
    %v991 = vpack.c.b16 %v989, %v988
    %994 = vmatprep.subr.bf16.mxu0 0
    %995 = vmatpush1.bf16.msra.mxu0 %v990
    %996 = vmatprep.subr.bf16.mxu0 0
    %997 = vmatpush1.bf16.msra.mxu0 %v991
    %998 = vmatprep.subr.bf16.mxu0 0
    %999 = vmatpush1.bf16.msra.mxu0 0
    %1000 = vmatprep.subr.bf16.mxu0 0
    %1001 = vmatpush1.bf16.msra.mxu0 0
    %1002 = vmatprep.subr.bf16.mxu0 0
    %1003 = vmatpush1.bf16.msra.mxu0 0
    %1004 = vmatprep.subr.bf16.mxu0 0
    %1005 = vmatpush1.bf16.msra.mxu0 0
    %1006 = vmatprep.subr.bf16.mxu0 0
    %1007 = vmatpush1.bf16.msra.mxu0 0
    %1008 = vmatprep.subr.bf16.mxu0 0
    %1009 = vmatpush1.bf16.msra.mxu0 0
    %1010 = vmatprep.subr.bf16.mxu0 0
    %1011 = vmatpush1.bf16.msra.mxu0 0
    %1012 = vmatprep.subr.bf16.mxu0 0
    %1013 = vmatpush1.bf16.msra.mxu0 0
    %1014 = vmatprep.subr.bf16.mxu0 0
    %1015 = vmatpush1.bf16.msra.mxu0 0
    %1016 = vmatprep.subr.bf16.mxu0 0
    %1017 = vmatpush1.bf16.msra.mxu0 0
    %1018 = vmatprep.subr.bf16.mxu0 0
    %1019 = vmatpush1.bf16.msra.mxu0 0
    %1020 = vmatprep.subr.bf16.mxu0 0
    %1021 = vmatpush1.bf16.msra.mxu0 0
    %1022 = vmatprep.subr.bf16.mxu0 0
    %1023 = vmatpush1.bf16.msra.mxu0 0
    %1024 = vmatprep.subr.bf16.mxu0 0
    %1025 = vmatpush1.bf16.msra.mxu0 0
    %1026 = vmatprep.mubr.bf16.mxu0 0
    %1027 = vmatmul.mubr.bf16.gmra.mrb[0].mxu0 %v332
    %v1028 = vpop.f32.mrb[0].mxu0
    %v1029 = vadd.f32 %v901, %v1028
    %v1030 = vpop.f32.mrb[0].mxu0
    %v1031 = vpop.f32.mrb[0].mxu0
    %v1032 = vadd.f32 %v900, %v1031
    %v1033 = vpop.f32.mrb[0].mxu0
    %1034 = vmatprep.mubr.bf16.mxu0 0
    %1035 = vmatmul.mubr.bf16.gmra.mrb[0].mxu0 %v335
    %v1036 = vpop.f32.mrb[0].mxu0
    %v1037 = vadd.f32 %v981, %v1036
    %v1038 = vpop.f32.mrb[0].mxu0
    %v1039 = vpop.f32.mrb[0].mxu0
    %v1040 = vadd.f32 %v980, %v1039
    %v1041 = vpop.f32.mrb[0].mxu0
    %1042 = vmatprep.mubr.bf16.mxu0 0
    %1043 = vmatmul.mubr.bf16.gmra.mrb[0].mxu0 %v338
    %v1044 = vpop.f32.mrb[0].mxu0
    %v1045 = vadd.f32 %v979, %v1044
    %v1046 = vpop.f32.mrb[0].mxu0
    %v1047 = vpop.f32.mrb[0].mxu0
    %v1048 = vadd.f32 %v978, %v1047
    %v1049 = vpop.f32.mrb[0].mxu0
    %1050 = vmatprep.mubr.bf16.mxu0 0
    %1051 = vmatmul.mubr.bf16.gmra.mrb[0].mxu0 %v341
    %v1052 = vpop.f32.mrb[0].mxu0
    %v1053 = vadd.f32 %v977, %v1052
    %v1054 = vpop.f32.mrb[0].mxu0
    %v1055 = vpop.f32.mrb[0].mxu0
    %v1056 = vadd.f32 %v976, %v1055
    %v1057 = vpop.f32.mrb[0].mxu0
    %1058 = vmatprep.mubr.bf16.mxu0 0
    %1059 = vmatmul.mubr.bf16.gmra.mrb[0].mxu0 %v344
    %v1060 = vpop.f32.mrb[0].mxu0
    %v1061 = vadd.f32 %v975, %v1060
    %v1062 = vpop.f32.mrb[0].mxu0
    %v1063 = vpop.f32.mrb[0].mxu0
    %v1064 = vadd.f32 %v974, %v1063
    %v1065 = vpop.f32.mrb[0].mxu0
    %1066 = vmatprep.mubr.bf16.mxu0 0
    %1067 = vmatmul.mubr.bf16.gmra.mrb[0].mxu0 %v347
    %v1068 = vpop.f32.mrb[0].mxu0
    %v1069 = vadd.f32 %v973, %v1068
    %v1070 = vpop.f32.mrb[0].mxu0
    %v1071 = vpop.f32.mrb[0].mxu0
    %v1072 = vadd.f32 %v972, %v1071
    %v1073 = vpop.f32.mrb[0].mxu0
    %1074 = vmatprep.mubr.bf16.mxu0 0
    %1075 = vmatmul.mubr.bf16.gmra.mrb[0].mxu0 %v350
    %v1076 = vpop.f32.mrb[0].mxu0
    %v1077 = vadd.f32 %v971, %v1076
    %v1078 = vpop.f32.mrb[0].mxu0
    %v1079 = vpop.f32.mrb[0].mxu0
    %v1080 = vadd.f32 %v970, %v1079
    %v1081 = vpop.f32.mrb[0].mxu0
    %1082 = vmatprep.mubr.bf16.mxu0 0
    %1083 = vmatmul.mubr.bf16.gmra.mrb[0].mxu0 %v353
    %v1084 = vpop.f32.mrb[0].mxu0
    %v1085 = vadd.f32 %v969, %v1084
    %v1086 = vpop.f32.mrb[0].mxu0
    %v1087 = vpop.f32.mrb[0].mxu0
    %v1088 = vadd.f32 %v968, %v1087
    %v1089 = vpop.f32.mrb[0].mxu0
    %1090 = vmatprep.mubr.bf16.mxu0 0
    %1091 = vmatmul.mubr.bf16.gmra.mrb[0].mxu0 %v356
    %v1092 = vpop.f32.mrb[0].mxu0
    %v1093 = vadd.f32 %v967, %v1092
    %v1094 = vpop.f32.mrb[0].mxu0
    %v1095 = vpop.f32.mrb[0].mxu0
    %v1096 = vadd.f32 %v966, %v1095
    %v1097 = vpop.f32.mrb[0].mxu0
    %1098 = vmatprep.mubr.bf16.mxu0 0
    %1099 = vmatmul.mubr.bf16.gmra.mrb[0].mxu0 %v359
    %v1100 = vpop.f32.mrb[0].mxu0
    %v1101 = vadd.f32 %v965, %v1100
    %v1102 = vpop.f32.mrb[0].mxu0
    %v1103 = vpop.f32.mrb[0].mxu0
    %v1104 = vadd.f32 %v964, %v1103
    %v1105 = vpop.f32.mrb[0].mxu0
    %1106 = vmatprep.mubr.bf16.mxu0 0
    %1107 = vmatmul.mubr.bf16.gmra.mrb[0].mxu0 %v362
    %v1108 = vpop.f32.mrb[0].mxu0
    %v1109 = vadd.f32 %v963, %v1108
    %v1110 = vpop.f32.mrb[0].mxu0
    %v1111 = vpop.f32.mrb[0].mxu0
    %v1112 = vadd.f32 %v962, %v1111
    %v1113 = vpop.f32.mrb[0].mxu0
    %1114 = vmatprep.mubr.bf16.mxu0 0
    %1115 = vmatmul.mubr.bf16.gmra.mrb[0].mxu0 %v365
    %v1116 = vpop.f32.mrb[0].mxu0
    %v1117 = vadd.f32 %v961, %v1116
    %v1118 = vpop.f32.mrb[0].mxu0
    %v1119 = vpop.f32.mrb[0].mxu0
    %v1120 = vadd.f32 %v960, %v1119
    %v1121 = vpop.f32.mrb[0].mxu0
    %1122 = vmatprep.mubr.bf16.mxu0 0
    %1123 = vmatmul.mubr.bf16.gmra.mrb[0].mxu0 %v368
    %v1124 = vpop.f32.mrb[0].mxu0
    %v1125 = vadd.f32 %v959, %v1124
    %v1126 = vpop.f32.mrb[0].mxu0
    %v1127 = vpop.f32.mrb[0].mxu0
    %v1128 = vadd.f32 %v958, %v1127
    %v1129 = vpop.f32.mrb[0].mxu0
    %1130 = vmatprep.mubr.bf16.mxu0 0
    %1131 = vmatmul.mubr.bf16.gmra.mrb[0].mxu0 %v371
    %v1132 = vpop.f32.mrb[0].mxu0
    %v1133 = vadd.f32 %v957, %v1132
    %v1134 = vpop.f32.mrb[0].mxu0
    %v1135 = vpop.f32.mrb[0].mxu0
    %v1136 = vadd.f32 %v956, %v1135
    %v1137 = vpop.f32.mrb[0].mxu0
    %1138 = vmatprep.mubr.bf16.mxu0 0
    %1139 = vmatmul.mubr.bf16.gmra.mrb[0].mxu0 %v374
    %v1140 = vpop.f32.mrb[0].mxu0
    %v1141 = vadd.f32 %v955, %v1140
    %v1142 = vpop.f32.mrb[0].mxu0
    %v1143 = vpop.f32.mrb[0].mxu0
    %v1144 = vadd.f32 %v954, %v1143
    %v1145 = vpop.f32.mrb[0].mxu0
    %1146 = vmatprep.mubr.bf16.mxu0 0
    %1147 = vmatmul.mubr.bf16.gmra.mrb[0].mxu0 %v377
    %v1148 = vpop.f32.mrb[0].mxu0
    %v1149 = vadd.f32 %v953, %v1148
    %v1150 = vpop.f32.mrb[0].mxu0
    %v1151 = vpop.f32.mrb[0].mxu0
    %v1152 = vadd.f32 %v952, %v1151
    %v1153 = vpop.f32.mrb[0].mxu0
    %1154 = vmatprep.mubr.bf16.mxu0 0
    %1155 = vmatmul.mubr.bf16.gmra.mrb[0].mxu0 %v380
    %v1156 = vpop.f32.mrb[0].mxu0
    %v1157 = vadd.f32 %v951, %v1156
    %v1158 = vpop.f32.mrb[0].mxu0
    %v1159 = vpop.f32.mrb[0].mxu0
    %v1160 = vadd.f32 %v950, %v1159
    %v1161 = vpop.f32.mrb[0].mxu0
    %1162 = vmatprep.mubr.bf16.mxu0 0
    %1163 = vmatmul.mubr.bf16.gmra.mrb[0].mxu0 %v383
    %v1164 = vpop.f32.mrb[0].mxu0
    %v1165 = vadd.f32 %v949, %v1164
    %v1166 = vpop.f32.mrb[0].mxu0
    %v1167 = vpop.f32.mrb[0].mxu0
    %v1168 = vadd.f32 %v948, %v1167
    %v1169 = vpop.f32.mrb[0].mxu0
    %1170 = vmatprep.mubr.bf16.mxu0 0
    %1171 = vmatmul.mubr.bf16.gmra.mrb[0].mxu0 %v386
    %v1172 = vpop.f32.mrb[0].mxu0
    %v1173 = vadd.f32 %v947, %v1172
    %v1174 = vpop.f32.mrb[0].mxu0
    %v1175 = vpop.f32.mrb[0].mxu0
    %v1176 = vadd.f32 %v946, %v1175
    %v1177 = vpop.f32.mrb[0].mxu0
    %1178 = vmatprep.mubr.bf16.mxu0 0
    %1179 = vmatmul.mubr.bf16.gmra.mrb[0].mxu0 %v389
    %v1180 = vpop.f32.mrb[0].mxu0
    %v1181 = vadd.f32 %v945, %v1180
    %v1182 = vpop.f32.mrb[0].mxu0
    %v1183 = vpop.f32.mrb[0].mxu0
    %v1184 = vadd.f32 %v944, %v1183
    %v1185 = vpop.f32.mrb[0].mxu0
    %1186 = vmatprep.mubr.bf16.mxu0 0
    %1187 = vmatmul.mubr.bf16.gmra.mrb[0].mxu0 %v392
    %v1188 = vpop.f32.mrb[0].mxu0
    %v1189 = vadd.f32 %v943, %v1188
    %v1190 = vpop.f32.mrb[0].mxu0
    %v1191 = vpop.f32.mrb[0].mxu0
    %v1192 = vadd.f32 %v942, %v1191
    %v1193 = vpop.f32.mrb[0].mxu0
    %1194 = vmatprep.mubr.bf16.mxu0 0
    %1195 = vmatmul.mubr.bf16.gmra.mrb[0].mxu0 %v395
    %v1196 = vpop.f32.mrb[0].mxu0
    %v1197 = vadd.f32 %v941, %v1196
    %v1198 = vpop.f32.mrb[0].mxu0
    %v1199 = vpop.f32.mrb[0].mxu0
    %v1200 = vadd.f32 %v940, %v1199
    %v1201 = vpop.f32.mrb[0].mxu0
    %1202 = vmatprep.mubr.bf16.mxu0 0
    %1203 = vmatmul.mubr.bf16.gmra.mrb[0].mxu0 %v398
    %v1204 = vpop.f32.mrb[0].mxu0
    %v1205 = vadd.f32 %v939, %v1204
    %v1206 = vpop.f32.mrb[0].mxu0
    %v1207 = vpop.f32.mrb[0].mxu0
    %v1208 = vadd.f32 %v938, %v1207
    %v1209 = vpop.f32.mrb[0].mxu0
    %1210 = vmatprep.mubr.bf16.mxu0 0
    %1211 = vmatmul.mubr.bf16.gmra.mrb[0].mxu0 %v401
    %v1212 = vpop.f32.mrb[0].mxu0
    %v1213 = vadd.f32 %v937, %v1212
    %v1214 = vpop.f32.mrb[0].mxu0
    %v1215 = vpop.f32.mrb[0].mxu0
    %v1216 = vadd.f32 %v936, %v1215
    %v1217 = vpop.f32.mrb[0].mxu0
    %1218 = vmatprep.mubr.bf16.mxu0 0
    %1219 = vmatmul.mubr.bf16.gmra.mrb[0].mxu0 %v404
    %v1220 = vpop.f32.mrb[0].mxu0
    %v1221 = vadd.f32 %v935, %v1220
    %v1222 = vpop.f32.mrb[0].mxu0
    %v1223 = vpop.f32.mrb[0].mxu0
    %v1224 = vadd.f32 %v934, %v1223
    %v1225 = vpop.f32.mrb[0].mxu0
    %1226 = vmatprep.mubr.bf16.mxu0 0
    %1227 = vmatmul.mubr.bf16.gmra.mrb[0].mxu0 %v407
    %v1228 = vpop.f32.mrb[0].mxu0
    %v1229 = vadd.f32 %v933, %v1228
    %v1230 = vpop.f32.mrb[0].mxu0
    %v1231 = vpop.f32.mrb[0].mxu0
    %v1232 = vadd.f32 %v932, %v1231
    %v1233 = vpop.f32.mrb[0].mxu0
    %1234 = vmatprep.mubr.bf16.mxu0 0
    %1235 = vmatmul.mubr.bf16.gmra.mrb[0].mxu0 %v410
    %v1236 = vpop.f32.mrb[0].mxu0
    %v1237 = vadd.f32 %v931, %v1236
    %v1238 = vpop.f32.mrb[0].mxu0
    %v1239 = vpop.f32.mrb[0].mxu0
    %v1240 = vadd.f32 %v930, %v1239
    %v1241 = vpop.f32.mrb[0].mxu0
    %1242 = vmatprep.mubr.bf16.mxu0 0
    %1243 = vmatmul.mubr.bf16.gmra.mrb[0].mxu0 %v413
    %v1244 = vpop.f32.mrb[0].mxu0
    %v1245 = vadd.f32 %v929, %v1244
    %v1246 = vpop.f32.mrb[0].mxu0
    %v1247 = vpop.f32.mrb[0].mxu0
    %v1248 = vadd.f32 %v928, %v1247
    %v1249 = vpop.f32.mrb[0].mxu0
    %1250 = vmatprep.mubr.bf16.mxu0 0
    %1251 = vmatmul.mubr.bf16.gmra.mrb[0].mxu0 %v416
    %v1252 = vpop.f32.mrb[0].mxu0
    %v1253 = vadd.f32 %v927, %v1252
    %v1254 = vpop.f32.mrb[0].mxu0
    %v1255 = vpop.f32.mrb[0].mxu0
    %v1256 = vadd.f32 %v926, %v1255
    %v1257 = vpop.f32.mrb[0].mxu0
    %1258 = vmatprep.mubr.bf16.mxu0 0
    %1259 = vmatmul.mubr.bf16.gmra.mrb[0].mxu0 %v419
    %v1260 = vpop.f32.mrb[0].mxu0
    %v1261 = vadd.f32 %v925, %v1260
    %v1262 = vpop.f32.mrb[0].mxu0
    %v1263 = vpop.f32.mrb[0].mxu0
    %v1264 = vadd.f32 %v924, %v1263
    %v1265 = vpop.f32.mrb[0].mxu0
    %1266 = vmatprep.mubr.bf16.mxu0 0
    %1267 = vmatmul.mubr.bf16.gmra.mrb[0].mxu0 %v422
    %v1268 = vpop.f32.mrb[0].mxu0
    %v1269 = vadd.f32 %v923, %v1268
    %v1270 = vpop.f32.mrb[0].mxu0
    %v1271 = vpop.f32.mrb[0].mxu0
    %v1272 = vadd.f32 %v922, %v1271
    %v1273 = vpop.f32.mrb[0].mxu0
    %1274 = vmatprep.mubr.bf16.mxu0 0
    %1275 = vmatmul.mubr.bf16.gmra.mrb[0].mxu0 %v425
    %v1276 = vpop.f32.mrb[0].mxu0
    %v1277 = vadd.f32 %v921, %v1276
    %v1278 = vpop.f32.mrb[0].mxu0
    %v1279 = vpop.f32.mrb[0].mxu0
    %v1280 = vadd.f32 %v920, %v1279
    %v1281 = vpop.f32.mrb[0].mxu0
    %1282 = vmatprep.mubr.bf16.mxu0 0
    %1283 = vmatmul.mubr.bf16.gmra.mrb[0].mxu0 %v428
    %v1284 = vpop.f32.mrb[0].mxu0
    %v1285 = vadd.f32 %v919, %v1284
    %v1286 = vpop.f32.mrb[0].mxu0
    %v1287 = vpop.f32.mrb[0].mxu0
    %v1288 = vadd.f32 %v918, %v1287
    %v1289 = vpop.f32.mrb[0].mxu0
    %1290 = vmatprep.mubr.bf16.mxu0 0
    %1291 = vmatmul.mubr.bf16.gmra.mrb[0].mxu0 %v431
    %v1292 = vpop.f32.mrb[0].mxu0
    %v1293 = vadd.f32 %v917, %v1292
    %v1294 = vpop.f32.mrb[0].mxu0
    %v1295 = vpop.f32.mrb[0].mxu0
    %v1296 = vadd.f32 %v916, %v1295
    %v1297 = vpop.f32.mrb[0].mxu0
    %1298 = vmatprep.mubr.bf16.mxu0 0
    %1299 = vmatmul.mubr.bf16.gmra.mrb[0].mxu0 %v434
    %v1300 = vpop.f32.mrb[0].mxu0
    %v1301 = vadd.f32 %v915, %v1300
    %v1302 = vpop.f32.mrb[0].mxu0
    %v1303 = vpop.f32.mrb[0].mxu0
    %v1304 = vadd.f32 %v914, %v1303
    %v1305 = vpop.f32.mrb[0].mxu0
    %1306 = vmatprep.mubr.bf16.mxu0 0
    %1307 = vmatmul.mubr.bf16.gmra.mrb[0].mxu0 %v437
    %v1308 = vpop.f32.mrb[0].mxu0
    %v1309 = vadd.f32 %v913, %v1308
    %v1310 = vpop.f32.mrb[0].mxu0
    %v1311 = vpop.f32.mrb[0].mxu0
    %v1312 = vadd.f32 %v912, %v1311
    %v1313 = vpop.f32.mrb[0].mxu0
    %1314 = vmatprep.mubr.bf16.mxu0 0
    %1315 = vmatmul.mubr.bf16.gmra.mrb[0].mxu0 %v440
    %v1316 = vpop.f32.mrb[0].mxu0
    %v1317 = vadd.f32 %v911, %v1316
    %v1318 = vpop.f32.mrb[0].mxu0
    %v1319 = vpop.f32.mrb[0].mxu0
    %v1320 = vadd.f32 %v910, %v1319
    %v1321 = vpop.f32.mrb[0].mxu0
    %1322 = vmatprep.mubr.bf16.mxu0 0
    %1323 = vmatmul.mubr.bf16.gmra.mrb[0].mxu0 %v443
    %v1324 = vpop.f32.mrb[0].mxu0
    %v1325 = vadd.f32 %v909, %v1324
    %v1326 = vpop.f32.mrb[0].mxu0
    %v1327 = vpop.f32.mrb[0].mxu0
    %v1328 = vadd.f32 %v908, %v1327
    %v1329 = vpop.f32.mrb[0].mxu0
    %1330 = vmatprep.mubr.bf16.mxu0 0
    %1331 = vmatmul.mubr.bf16.gmra.mrb[0].mxu0 %v446
    %v1332 = vpop.f32.mrb[0].mxu0
    %v1333 = vadd.f32 %v907, %v1332
    %v1334 = vpop.f32.mrb[0].mxu0
    %v1335 = vpop.f32.mrb[0].mxu0
    %v1336 = vadd.f32 %v906, %v1335
    %v1337 = vpop.f32.mrb[0].mxu0
    %1338 = vmatprep.mubr.bf16.mxu0 0
    %1339 = vmatmul.mubr.bf16.gmra.mrb[0].mxu0 %v449
    %v1340 = vpop.f32.mrb[0].mxu0
    %v1341 = vadd.f32 %v905, %v1340
    %v1342 = vpop.f32.mrb[0].mxu0
    %v1343 = vpop.f32.mrb[0].mxu0
    %v1344 = vadd.f32 %v904, %v1343
    %v1345 = vpop.f32.mrb[0].mxu0
    %1346 = vmatprep.mubr.bf16.mxu0 0
    %1347 = vmatmul.mubr.bf16.gmra.mrb[0].mxu0 %v452
    %v1348 = vpop.f32.mrb[0].mxu0
    %v1349 = vadd.f32 %v903, %v1348
    %v1350 = vpop.f32.mrb[0].mxu0
    %v1351 = vpop.f32.mrb[0].mxu0
    %v1352 = vadd.f32 %v902, %v1351
    %v1353 = vpop.f32.mrb[0].mxu0
    %1354 = vdwg.mxu0
    %s1355 = scalar_lea.vmem %s1, 16
    %v1356 = vld [vmem:[%s1355] sm:$0xf]
    %v1357 = vld [vmem:[%s1355 + $0x4] sm:$0xf]
    %v1358 = vld [vmem:[%s1355 + $0x8] sm:$0xf]
    %v1359 = vld [vmem:[%s1355 + $0xc] sm:$0xf]
    %v1364 = vunpack.c.l.b16 %v1356
    %v1365 = vunpack.c.l.b16 %v1357
    %v1366 = vunpack.c.l.b16 %v1358
    %v1367 = vunpack.c.l.b16 %v1359
    %v1368 = vpack.c.b16 %v1365, %v1364
    %v1369 = vpack.c.b16 %v1367, %v1366
    %1372 = vmatprep.subr.bf16.mxu0 0
    %1373 = vmatpush1.bf16.msra.mxu0 %v1368
    %1374 = vmatprep.subr.bf16.mxu0 0
    %1375 = vmatpush1.bf16.msra.mxu0 %v1369
    %1376 = vmatprep.subr.bf16.mxu0 0
    %1377 = vmatpush1.bf16.msra.mxu0 0
    %1378 = vmatprep.subr.bf16.mxu0 0
    %1379 = vmatpush1.bf16.msra.mxu0 0
    %1380 = vmatprep.subr.bf16.mxu0 0
    %1381 = vmatpush1.bf16.msra.mxu0 0
    %1382 = vmatprep.subr.bf16.mxu0 0
    %1383 = vmatpush1.bf16.msra.mxu0 0
    %1384 = vmatprep.subr.bf16.mxu0 0
    %1385 = vmatpush1.bf16.msra.mxu0 0
    %1386 = vmatprep.subr.bf16.mxu0 0
    %1387 = vmatpush1.bf16.msra.mxu0 0
    %1388 = vmatprep.subr.bf16.mxu0 0
    %1389 = vmatpush1.bf16.msra.mxu0 0
    %1390 = vmatprep.subr.bf16.mxu0 0
    %1391 = vmatpush1.bf16.msra.mxu0 0
    %1392 = vmatprep.subr.bf16.mxu0 0
    %1393 = vmatpush1.bf16.msra.mxu0 0
    %1394 = vmatprep.subr.bf16.mxu0 0
    %1395 = vmatpush1.bf16.msra.mxu0 0
    %1396 = vmatprep.subr.bf16.mxu0 0
    %1397 = vmatpush1.bf16.msra.mxu0 0
    %1398 = vmatprep.subr.bf16.mxu0 0
    %1399 = vmatpush1.bf16.msra.mxu0 0
    %1400 = vmatprep.subr.bf16.mxu0 0
    %1401 = vmatpush1.bf16.msra.mxu0 0
    %1402 = vmatprep.subr.bf16.mxu0 0
    %1403 = vmatpush1.bf16.msra.mxu0 0
    %1404 = vmatprep.mubr.bf16.mxu0 0
    %1405 = vmatmul.mubr.bf16.gmra.mrb[0].mxu0 %v332
    %v1406 = vpop.f32.mrb[0].mxu0
    %v1407 = vadd.f32 0.0, %v1406
    %v1408 = vpop.f32.mrb[0].mxu0
    %v1409 = vpop.f32.mrb[0].mxu0
    %v1410 = vadd.f32 0.0, %v1409
    %v1411 = vpop.f32.mrb[0].mxu0
    %1412 = vmatprep.mubr.bf16.mxu0 0
    %1413 = vmatmul.mubr.bf16.gmra.mrb[0].mxu0 %v335
    %v1414 = vpop.f32.mrb[0].mxu0
    %v1415 = vadd.f32 0.0, %v1414
    %v1416 = vpop.f32.mrb[0].mxu0
    %v1417 = vpop.f32.mrb[0].mxu0
    %v1418 = vadd.f32 0.0, %v1417
    %v1419 = vpop.f32.mrb[0].mxu0
    %1420 = vmatprep.mubr.bf16.mxu0 0
    %1421 = vmatmul.mubr.bf16.gmra.mrb[0].mxu0 %v338
    %v1422 = vpop.f32.mrb[0].mxu0
    %v1423 = vadd.f32 0.0, %v1422
    %v1424 = vpop.f32.mrb[0].mxu0
    %v1425 = vpop.f32.mrb[0].mxu0
    %v1426 = vadd.f32 0.0, %v1425
    %v1427 = vpop.f32.mrb[0].mxu0
    %1428 = vmatprep.mubr.bf16.mxu0 0
    %1429 = vmatmul.mubr.bf16.gmra.mrb[0].mxu0 %v341
    %v1430 = vpop.f32.mrb[0].mxu0
    %v1431 = vadd.f32 0.0, %v1430
    %v1432 = vpop.f32.mrb[0].mxu0
    %v1433 = vpop.f32.mrb[0].mxu0
    %v1434 = vadd.f32 0.0, %v1433
    %v1435 = vpop.f32.mrb[0].mxu0
    %1436 = vmatprep.mubr.bf16.mxu0 0
    %1437 = vmatmul.mubr.bf16.gmra.mrb[0].mxu0 %v344
    %v1438 = vpop.f32.mrb[0].mxu0
    %v1439 = vadd.f32 0.0, %v1438
    %v1440 = vpop.f32.mrb[0].mxu0
    %v1441 = vpop.f32.mrb[0].mxu0
    %v1442 = vadd.f32 0.0, %v1441
    %v1443 = vpop.f32.mrb[0].mxu0
    %1444 = vmatprep.mubr.bf16.mxu0 0
    %1445 = vmatmul.mubr.bf16.gmra.mrb[0].mxu0 %v347
    %v1446 = vpop.f32.mrb[0].mxu0
    %v1447 = vadd.f32 0.0, %v1446
    %v1448 = vpop.f32.mrb[0].mxu0
    %v1449 = vpop.f32.mrb[0].mxu0
    %v1450 = vadd.f32 0.0, %v1449
    %v1451 = vpop.f32.mrb[0].mxu0
    %1452 = vmatprep.mubr.bf16.mxu0 0
    %1453 = vmatmul.mubr.bf16.gmra.mrb[0].mxu0 %v350
    %v1454 = vpop.f32.mrb[0].mxu0
    %v1455 = vadd.f32 0.0, %v1454
    %v1456 = vpop.f32.mrb[0].mxu0
    %v1457 = vpop.f32.mrb[0].mxu0
    %v1458 = vadd.f32 0.0, %v1457
    %v1459 = vpop.f32.mrb[0].mxu0
    %1460 = vmatprep.mubr.bf16.mxu0 0
    %1461 = vmatmul.mubr.bf16.gmra.mrb[0].mxu0 %v353
    %v1462 = vpop.f32.mrb[0].mxu0
    %v1463 = vadd.f32 0.0, %v1462
    %v1464 = vpop.f32.mrb[0].mxu0
    %v1465 = vpop.f32.mrb[0].mxu0
    %v1466 = vadd.f32 0.0, %v1465
    %v1467 = vpop.f32.mrb[0].mxu0
    %1468 = vmatprep.mubr.bf16.mxu0 0
    %1469 = vmatmul.mubr.bf16.gmra.mrb[0].mxu0 %v356
    %v1470 = vpop.f32.mrb[0].mxu0
    %v1471 = vadd.f32 0.0, %v1470
    %v1472 = vpop.f32.mrb[0].mxu0
    %v1473 = vpop.f32.mrb[0].mxu0
    %v1474 = vadd.f32 0.0, %v1473
    %v1475 = vpop.f32.mrb[0].mxu0
    %1476 = vmatprep.mubr.bf16.mxu0 0
    %1477 = vmatmul.mubr.bf16.gmra.mrb[0].mxu0 %v359
    %v1478 = vpop.f32.mrb[0].mxu0
    %v1479 = vadd.f32 0.0, %v1478
    %v1480 = vpop.f32.mrb[0].mxu0
    %v1481 = vpop.f32.mrb[0].mxu0
    %v1482 = vadd.f32 0.0, %v1481
    %v1483 = vpop.f32.mrb[0].mxu0
    %1484 = vmatprep.mubr.bf16.mxu0 0
    %1485 = vmatmul.mubr.bf16.gmra.mrb[0].mxu0 %v362
    %v1486 = vpop.f32.mrb[0].mxu0
    %v1487 = vadd.f32 0.0, %v1486
    %v1488 = vpop.f32.mrb[0].mxu0
    %v1489 = vpop.f32.mrb[0].mxu0
    %v1490 = vadd.f32 0.0, %v1489
    %v1491 = vpop.f32.mrb[0].mxu0
    %1492 = vmatprep.mubr.bf16.mxu0 0
    %1493 = vmatmul.mubr.bf16.gmra.mrb[0].mxu0 %v365
    %v1494 = vpop.f32.mrb[0].mxu0
    %v1495 = vadd.f32 0.0, %v1494
    %v1496 = vpop.f32.mrb[0].mxu0
    %v1497 = vpop.f32.mrb[0].mxu0
    %v1498 = vadd.f32 0.0, %v1497
    %v1499 = vpop.f32.mrb[0].mxu0
    %1500 = vmatprep.mubr.bf16.mxu0 0
    %1501 = vmatmul.mubr.bf16.gmra.mrb[0].mxu0 %v368
    %v1502 = vpop.f32.mrb[0].mxu0
    %v1503 = vadd.f32 0.0, %v1502
    %v1504 = vpop.f32.mrb[0].mxu0
    %v1505 = vpop.f32.mrb[0].mxu0
    %v1506 = vadd.f32 0.0, %v1505
    %v1507 = vpop.f32.mrb[0].mxu0
    %1508 = vmatprep.mubr.bf16.mxu0 0
    %1509 = vmatmul.mubr.bf16.gmra.mrb[0].mxu0 %v371
    %v1510 = vpop.f32.mrb[0].mxu0
    %v1511 = vadd.f32 0.0, %v1510
    %v1512 = vpop.f32.mrb[0].mxu0
    %v1513 = vpop.f32.mrb[0].mxu0
    %v1514 = vadd.f32 0.0, %v1513
    %v1515 = vpop.f32.mrb[0].mxu0
    %1516 = vmatprep.mubr.bf16.mxu0 0
    %1517 = vmatmul.mubr.bf16.gmra.mrb[0].mxu0 %v374
    %v1518 = vpop.f32.mrb[0].mxu0
    %v1519 = vadd.f32 0.0, %v1518
    %v1520 = vpop.f32.mrb[0].mxu0
    %v1521 = vpop.f32.mrb[0].mxu0
    %v1522 = vadd.f32 0.0, %v1521
    %v1523 = vpop.f32.mrb[0].mxu0
    %1524 = vmatprep.mubr.bf16.mxu0 0
    %1525 = vmatmul.mubr.bf16.gmra.mrb[0].mxu0 %v377
    %v1526 = vpop.f32.mrb[0].mxu0
    %v1527 = vadd.f32 0.0, %v1526
    %v1528 = vpop.f32.mrb[0].mxu0
    %v1529 = vpop.f32.mrb[0].mxu0
    %v1530 = vadd.f32 0.0, %v1529
    %v1531 = vpop.f32.mrb[0].mxu0
    %1532 = vmatprep.mubr.bf16.mxu0 0
    %1533 = vmatmul.mubr.bf16.gmra.mrb[0].mxu0 %v380
    %v1534 = vpop.f32.mrb[0].mxu0
    %v1535 = vadd.f32 0.0, %v1534
    %v1536 = vpop.f32.mrb[0].mxu0
    %v1537 = vpop.f32.mrb[0].mxu0
    %v1538 = vadd.f32 0.0, %v1537
    %v1539 = vpop.f32.mrb[0].mxu0
    %1540 = vmatprep.mubr.bf16.mxu0 0
    %1541 = vmatmul.mubr.bf16.gmra.mrb[0].mxu0 %v383
    %v1542 = vpop.f32.mrb[0].mxu0
    %v1543 = vadd.f32 0.0, %v1542
    %v1544 = vpop.f32.mrb[0].mxu0
    %v1545 = vpop.f32.mrb[0].mxu0
    %v1546 = vadd.f32 0.0, %v1545
    %v1547 = vpop.f32.mrb[0].mxu0
    %1548 = vmatprep.mubr.bf16.mxu0 0
    %1549 = vmatmul.mubr.bf16.gmra.mrb[0].mxu0 %v386
    %v1550 = vpop.f32.mrb[0].mxu0
    %v1551 = vadd.f32 0.0, %v1550
    %v1552 = vpop.f32.mrb[0].mxu0
    %v1553 = vpop.f32.mrb[0].mxu0
    %v1554 = vadd.f32 0.0, %v1553
    %v1555 = vpop.f32.mrb[0].mxu0
    %1556 = vmatprep.mubr.bf16.mxu0 0
    %1557 = vmatmul.mubr.bf16.gmra.mrb[0].mxu0 %v389
    %v1558 = vpop.f32.mrb[0].mxu0
    %v1559 = vadd.f32 0.0, %v1558
    %v1560 = vpop.f32.mrb[0].mxu0
    %v1561 = vpop.f32.mrb[0].mxu0
    %v1562 = vadd.f32 0.0, %v1561
    %v1563 = vpop.f32.mrb[0].mxu0
    %1564 = vmatprep.mubr.bf16.mxu0 0
    %1565 = vmatmul.mubr.bf16.gmra.mrb[0].mxu0 %v392
    %v1566 = vpop.f32.mrb[0].mxu0
    %v1567 = vadd.f32 0.0, %v1566
    %v1568 = vpop.f32.mrb[0].mxu0
    %v1569 = vpop.f32.mrb[0].mxu0
    %v1570 = vadd.f32 0.0, %v1569
    %v1571 = vpop.f32.mrb[0].mxu0
    %1572 = vmatprep.mubr.bf16.mxu0 0
    %1573 = vmatmul.mubr.bf16.gmra.mrb[0].mxu0 %v395
    %v1574 = vpop.f32.mrb[0].mxu0
    %v1575 = vadd.f32 0.0, %v1574
    %v1576 = vpop.f32.mrb[0].mxu0
    %v1577 = vpop.f32.mrb[0].mxu0
    %v1578 = vadd.f32 0.0, %v1577
    %v1579 = vpop.f32.mrb[0].mxu0
    %1580 = vmatprep.mubr.bf16.mxu0 0
    %1581 = vmatmul.mubr.bf16.gmra.mrb[0].mxu0 %v398
    %v1582 = vpop.f32.mrb[0].mxu0
    %v1583 = vadd.f32 0.0, %v1582
    %v1584 = vpop.f32.mrb[0].mxu0
    %v1585 = vpop.f32.mrb[0].mxu0
    %v1586 = vadd.f32 0.0, %v1585
    %v1587 = vpop.f32.mrb[0].mxu0
    %1588 = vmatprep.mubr.bf16.mxu0 0
    %1589 = vmatmul.mubr.bf16.gmra.mrb[0].mxu0 %v401
    %v1590 = vpop.f32.mrb[0].mxu0
    %v1591 = vadd.f32 0.0, %v1590
    %v1592 = vpop.f32.mrb[0].mxu0
    %v1593 = vpop.f32.mrb[0].mxu0
    %v1594 = vadd.f32 0.0, %v1593
    %v1595 = vpop.f32.mrb[0].mxu0
    %1596 = vmatprep.mubr.bf16.mxu0 0
    %1597 = vmatmul.mubr.bf16.gmra.mrb[0].mxu0 %v404
    %v1598 = vpop.f32.mrb[0].mxu0
    %v1599 = vadd.f32 0.0, %v1598
    %v1600 = vpop.f32.mrb[0].mxu0
    %v1601 = vpop.f32.mrb[0].mxu0
    %v1602 = vadd.f32 0.0, %v1601
    %v1603 = vpop.f32.mrb[0].mxu0
    %1604 = vmatprep.mubr.bf16.mxu0 0
    %1605 = vmatmul.mubr.bf16.gmra.mrb[0].mxu0 %v407
    %v1606 = vpop.f32.mrb[0].mxu0
    %v1607 = vadd.f32 0.0, %v1606
    %v1608 = vpop.f32.mrb[0].mxu0
    %v1609 = vpop.f32.mrb[0].mxu0
    %v1610 = vadd.f32 0.0, %v1609
    %v1611 = vpop.f32.mrb[0].mxu0
    %1612 = vmatprep.mubr.bf16.mxu0 0
    %1613 = vmatmul.mubr.bf16.gmra.mrb[0].mxu0 %v410
    %v1614 = vpop.f32.mrb[0].mxu0
    %v1615 = vadd.f32 0.0, %v1614
    %v1616 = vpop.f32.mrb[0].mxu0
    %v1617 = vpop.f32.mrb[0].mxu0
    %v1618 = vadd.f32 0.0, %v1617
    %v1619 = vpop.f32.mrb[0].mxu0
    %1620 = vmatprep.mubr.bf16.mxu0 0
    %1621 = vmatmul.mubr.bf16.gmra.mrb[0].mxu0 %v413
    %v1622 = vpop.f32.mrb[0].mxu0
    %v1623 = vadd.f32 0.0, %v1622
    %v1624 = vpop.f32.mrb[0].mxu0
    %v1625 = vpop.f32.mrb[0].mxu0
    %v1626 = vadd.f32 0.0, %v1625
    %v1627 = vpop.f32.mrb[0].mxu0
    %1628 = vmatprep.mubr.bf16.mxu0 0
    %1629 = vmatmul.mubr.bf16.gmra.mrb[0].mxu0 %v416
    %v1630 = vpop.f32.mrb[0].mxu0
    %v1631 = vadd.f32 0.0, %v1630
    %v1632 = vpop.f32.mrb[0].mxu0
    %v1633 = vpop.f32.mrb[0].mxu0
    %v1634 = vadd.f32 0.0, %v1633
    %v1635 = vpop.f32.mrb[0].mxu0
    %1636 = vmatprep.mubr.bf16.mxu0 0
    %1637 = vmatmul.mubr.bf16.gmra.mrb[0].mxu0 %v419
    %v1638 = vpop.f32.mrb[0].mxu0
    %v1639 = vadd.f32 0.0, %v1638
    %v1640 = vpop.f32.mrb[0].mxu0
    %v1641 = vpop.f32.mrb[0].mxu0
    %v1642 = vadd.f32 0.0, %v1641
    %v1643 = vpop.f32.mrb[0].mxu0
    %1644 = vmatprep.mubr.bf16.mxu0 0
    %1645 = vmatmul.mubr.bf16.gmra.mrb[0].mxu0 %v422
    %v1646 = vpop.f32.mrb[0].mxu0
    %v1647 = vadd.f32 0.0, %v1646
    %v1648 = vpop.f32.mrb[0].mxu0
    %v1649 = vpop.f32.mrb[0].mxu0
    %v1650 = vadd.f32 0.0, %v1649
    %v1651 = vpop.f32.mrb[0].mxu0
    %1652 = vmatprep.mubr.bf16.mxu0 0
    %1653 = vmatmul.mubr.bf16.gmra.mrb[0].mxu0 %v425
    %v1654 = vpop.f32.mrb[0].mxu0
    %v1655 = vadd.f32 0.0, %v1654
    %v1656 = vpop.f32.mrb[0].mxu0
    %v1657 = vpop.f32.mrb[0].mxu0
    %v1658 = vadd.f32 0.0, %v1657
    %v1659 = vpop.f32.mrb[0].mxu0
    %1660 = vmatprep.mubr.bf16.mxu0 0
    %1661 = vmatmul.mubr.bf16.gmra.mrb[0].mxu0 %v428
    %v1662 = vpop.f32.mrb[0].mxu0
    %v1663 = vadd.f32 0.0, %v1662
    %v1664 = vpop.f32.mrb[0].mxu0
    %v1665 = vpop.f32.mrb[0].mxu0
    %v1666 = vadd.f32 0.0, %v1665
    %v1667 = vpop.f32.mrb[0].mxu0
    %1668 = vmatprep.mubr.bf16.mxu0 0
    %1669 = vmatmul.mubr.bf16.gmra.mrb[0].mxu0 %v431
    %v1670 = vpop.f32.mrb[0].mxu0
    %v1671 = vadd.f32 0.0, %v1670
    %v1672 = vpop.f32.mrb[0].mxu0
    %v1673 = vpop.f32.mrb[0].mxu0
    %v1674 = vadd.f32 0.0, %v1673
    %v1675 = vpop.f32.mrb[0].mxu0
    %1676 = vmatprep.mubr.bf16.mxu0 0
    %1677 = vmatmul.mubr.bf16.gmra.mrb[0].mxu0 %v434
    %v1678 = vpop.f32.mrb[0].mxu0
    %v1679 = vadd.f32 0.0, %v1678
    %v1680 = vpop.f32.mrb[0].mxu0
    %v1681 = vpop.f32.mrb[0].mxu0
    %v1682 = vadd.f32 0.0, %v1681
    %v1683 = vpop.f32.mrb[0].mxu0
    %1684 = vmatprep.mubr.bf16.mxu0 0
    %1685 = vmatmul.mubr.bf16.gmra.mrb[0].mxu0 %v437
    %v1686 = vpop.f32.mrb[0].mxu0
    %v1687 = vadd.f32 0.0, %v1686
    %v1688 = vpop.f32.mrb[0].mxu0
    %v1689 = vpop.f32.mrb[0].mxu0
    %v1690 = vadd.f32 0.0, %v1689
    %v1691 = vpop.f32.mrb[0].mxu0
    %1692 = vmatprep.mubr.bf16.mxu0 0
    %1693 = vmatmul.mubr.bf16.gmra.mrb[0].mxu0 %v440
    %v1694 = vpop.f32.mrb[0].mxu0
    %v1695 = vadd.f32 0.0, %v1694
    %v1696 = vpop.f32.mrb[0].mxu0
    %v1697 = vpop.f32.mrb[0].mxu0
    %v1698 = vadd.f32 0.0, %v1697
    %v1699 = vpop.f32.mrb[0].mxu0
    %1700 = vmatprep.mubr.bf16.mxu0 0
    %1701 = vmatmul.mubr.bf16.gmra.mrb[0].mxu0 %v443
    %v1702 = vpop.f32.mrb[0].mxu0
    %v1703 = vadd.f32 0.0, %v1702
    %v1704 = vpop.f32.mrb[0].mxu0
    %v1705 = vpop.f32.mrb[0].mxu0
    %v1706 = vadd.f32 0.0, %v1705
    %v1707 = vpop.f32.mrb[0].mxu0
    %1708 = vmatprep.mubr.bf16.mxu0 0
    %1709 = vmatmul.mubr.bf16.gmra.mrb[0].mxu0 %v446
    %v1710 = vpop.f32.mrb[0].mxu0
    %v1711 = vadd.f32 0.0, %v1710
    %v1712 = vpop.f32.mrb[0].mxu0
    %v1713 = vpop.f32.mrb[0].mxu0
    %v1714 = vadd.f32 0.0, %v1713
    %v1715 = vpop.f32.mrb[0].mxu0
    %1716 = vmatprep.mubr.bf16.mxu0 0
    %1717 = vmatmul.mubr.bf16.gmra.mrb[0].mxu0 %v449
    %v1718 = vpop.f32.mrb[0].mxu0
    %v1719 = vadd.f32 0.0, %v1718
    %v1720 = vpop.f32.mrb[0].mxu0
    %v1721 = vpop.f32.mrb[0].mxu0
    %v1722 = vadd.f32 0.0, %v1721
    %v1723 = vpop.f32.mrb[0].mxu0
    %1724 = vmatprep.mubr.bf16.mxu0 0
    %1725 = vmatmul.mubr.bf16.gmra.mrb[0].mxu0 %v452
    %v1726 = vpop.f32.mrb[0].mxu0
    %v1727 = vadd.f32 0.0, %v1726
    %v1728 = vpop.f32.mrb[0].mxu0
    %v1729 = vpop.f32.mrb[0].mxu0
    %v1730 = vadd.f32 0.0, %v1729
    %v1731 = vpop.f32.mrb[0].mxu0
    %1732 = vdwg.mxu0
    %v1733 = vrot.slane %v1407, 6
    %v1734 = vrot.slane %v1410, 6
    %v1735 = vrot.slane %v1415, 6
    %v1736 = vrot.slane %v1418, 6
    %v1737 = vrot.slane %v1423, 6
    %v1738 = vrot.slane %v1426, 6
    %v1739 = vrot.slane %v1431, 6
    %v1740 = vrot.slane %v1434, 6
    %v1741 = vrot.slane %v1439, 6
    %v1742 = vrot.slane %v1442, 6
    %v1743 = vrot.slane %v1447, 6
    %v1744 = vrot.slane %v1450, 6
    %v1745 = vrot.slane %v1455, 6
    %v1746 = vrot.slane %v1458, 6
    %v1747 = vrot.slane %v1463, 6
    %v1748 = vrot.slane %v1466, 6
    %v1749 = vrot.slane %v1471, 6
    %v1750 = vrot.slane %v1474, 6
    %v1751 = vrot.slane %v1479, 6
    %v1752 = vrot.slane %v1482, 6
    %v1753 = vrot.slane %v1487, 6
    %v1754 = vrot.slane %v1490, 6
    %v1755 = vrot.slane %v1495, 6
    %v1756 = vrot.slane %v1498, 6
    %v1757 = vrot.slane %v1503, 6
    %v1758 = vrot.slane %v1506, 6
    %v1759 = vrot.slane %v1511, 6
    %v1760 = vrot.slane %v1514, 6
    %v1761 = vrot.slane %v1519, 6
    %v1762 = vrot.slane %v1522, 6
    %v1763 = vrot.slane %v1527, 6
    %v1764 = vrot.slane %v1530, 6
    %v1765 = vrot.slane %v1535, 6
    %v1766 = vrot.slane %v1538, 6
    %v1767 = vrot.slane %v1543, 6
    %v1768 = vrot.slane %v1546, 6
    %v1769 = vrot.slane %v1551, 6
    %v1770 = vrot.slane %v1554, 6
    %v1771 = vrot.slane %v1559, 6
    %v1772 = vrot.slane %v1562, 6
    %v1773 = vrot.slane %v1567, 6
    %v1774 = vrot.slane %v1570, 6
    %v1775 = vrot.slane %v1575, 6
    %v1776 = vrot.slane %v1578, 6
    %v1777 = vrot.slane %v1583, 6
    %v1778 = vrot.slane %v1586, 6
    %v1779 = vrot.slane %v1591, 6
    %v1780 = vrot.slane %v1594, 6
    %v1781 = vrot.slane %v1599, 6
    %v1782 = vrot.slane %v1602, 6
    %v1783 = vrot.slane %v1607, 6
    %v1784 = vrot.slane %v1610, 6
    %v1785 = vrot.slane %v1615, 6
    %v1786 = vrot.slane %v1618, 6
    %v1787 = vrot.slane %v1623, 6
    %v1788 = vrot.slane %v1626, 6
    %v1789 = vrot.slane %v1631, 6
    %v1790 = vrot.slane %v1634, 6
    %v1791 = vrot.slane %v1639, 6
    %v1792 = vrot.slane %v1642, 6
    %v1793 = vrot.slane %v1647, 6
    %v1794 = vrot.slane %v1650, 6
    %v1795 = vrot.slane %v1655, 6
    %v1796 = vrot.slane %v1658, 6
    %v1797 = vrot.slane %v1663, 6
    %v1798 = vrot.slane %v1666, 6
    %v1799 = vrot.slane %v1671, 6
    %v1800 = vrot.slane %v1674, 6
    %v1801 = vrot.slane %v1679, 6
    %v1802 = vrot.slane %v1682, 6
    %v1803 = vrot.slane %v1687, 6
    %v1804 = vrot.slane %v1690, 6
    %v1805 = vrot.slane %v1695, 6
    %v1806 = vrot.slane %v1698, 6
    %v1807 = vrot.slane %v1703, 6
    %v1808 = vrot.slane %v1706, 6
    %v1809 = vrot.slane %v1711, 6
    %v1810 = vrot.slane %v1714, 6
    %v1811 = vrot.slane %v1719, 6
    %v1812 = vrot.slane %v1722, 6
    %v1813 = vrot.slane %v1727, 6
    %v1814 = vrot.slane %v1730, 6
    %vm1815 = vcmp.lt.s32.totalorder %v898, 2
    %v1816 = vsel %vm1815, %v1813, %v1814
    %v1817 = vsel %vm1815, %v1812, %v1813
    %v1818 = vsel %vm1815, %v1811, %v1812
    %v1819 = vsel %vm1815, %v1810, %v1811
    %v1820 = vsel %vm1815, %v1809, %v1810
    %v1821 = vsel %vm1815, %v1808, %v1809
    %v1822 = vsel %vm1815, %v1807, %v1808
    %v1823 = vsel %vm1815, %v1806, %v1807
    %v1824 = vsel %vm1815, %v1805, %v1806
    %v1825 = vsel %vm1815, %v1804, %v1805
    %v1826 = vsel %vm1815, %v1803, %v1804
    %v1827 = vsel %vm1815, %v1802, %v1803
    %v1828 = vsel %vm1815, %v1801, %v1802
    %v1829 = vsel %vm1815, %v1800, %v1801
    %v1830 = vsel %vm1815, %v1799, %v1800
    %v1831 = vsel %vm1815, %v1798, %v1799
    %v1832 = vsel %vm1815, %v1797, %v1798
    %v1833 = vsel %vm1815, %v1796, %v1797
    %v1834 = vsel %vm1815, %v1795, %v1796
    %v1835 = vsel %vm1815, %v1794, %v1795
    %v1836 = vsel %vm1815, %v1793, %v1794
    %v1837 = vsel %vm1815, %v1792, %v1793
    %v1838 = vsel %vm1815, %v1791, %v1792
    %v1839 = vsel %vm1815, %v1790, %v1791
    %v1840 = vsel %vm1815, %v1789, %v1790
    %v1841 = vsel %vm1815, %v1788, %v1789
    %v1842 = vsel %vm1815, %v1787, %v1788
    %v1843 = vsel %vm1815, %v1786, %v1787
    %v1844 = vsel %vm1815, %v1785, %v1786
    %v1845 = vsel %vm1815, %v1784, %v1785
    %v1846 = vsel %vm1815, %v1783, %v1784
    %v1847 = vsel %vm1815, %v1782, %v1783
    %v1848 = vsel %vm1815, %v1781, %v1782
    %v1849 = vsel %vm1815, %v1780, %v1781
    %v1850 = vsel %vm1815, %v1779, %v1780
    %v1851 = vsel %vm1815, %v1778, %v1779
    %v1852 = vsel %vm1815, %v1777, %v1778
    %v1853 = vsel %vm1815, %v1776, %v1777
    %v1854 = vsel %vm1815, %v1775, %v1776
    %v1855 = vsel %vm1815, %v1774, %v1775
    %v1856 = vsel %vm1815, %v1773, %v1774
    %v1857 = vsel %vm1815, %v1772, %v1773
    %v1858 = vsel %vm1815, %v1771, %v1772
    %v1859 = vsel %vm1815, %v1770, %v1771
    %v1860 = vsel %vm1815, %v1769, %v1770
    %v1861 = vsel %vm1815, %v1768, %v1769
    %v1862 = vsel %vm1815, %v1767, %v1768
    %v1863 = vsel %vm1815, %v1766, %v1767
    %v1864 = vsel %vm1815, %v1765, %v1766
    %v1865 = vsel %vm1815, %v1764, %v1765
    %v1866 = vsel %vm1815, %v1763, %v1764
    %v1867 = vsel %vm1815, %v1762, %v1763
    %v1868 = vsel %vm1815, %v1761, %v1762
    %v1869 = vsel %vm1815, %v1760, %v1761
    %v1870 = vsel %vm1815, %v1759, %v1760
    %v1871 = vsel %vm1815, %v1758, %v1759
    %v1872 = vsel %vm1815, %v1757, %v1758
    %v1873 = vsel %vm1815, %v1756, %v1757
    %v1874 = vsel %vm1815, %v1755, %v1756
    %v1875 = vsel %vm1815, %v1754, %v1755
    %v1876 = vsel %vm1815, %v1753, %v1754
    %v1877 = vsel %vm1815, %v1752, %v1753
    %v1878 = vsel %vm1815, %v1751, %v1752
    %v1879 = vsel %vm1815, %v1750, %v1751
    %v1880 = vsel %vm1815, %v1749, %v1750
    %v1881 = vsel %vm1815, %v1748, %v1749
    %v1882 = vsel %vm1815, %v1747, %v1748
    %v1883 = vsel %vm1815, %v1746, %v1747
    %v1884 = vsel %vm1815, %v1745, %v1746
    %v1885 = vsel %vm1815, %v1744, %v1745
    %v1886 = vsel %vm1815, %v1743, %v1744
    %v1887 = vsel %vm1815, %v1742, %v1743
    %v1888 = vsel %vm1815, %v1741, %v1742
    %v1889 = vsel %vm1815, %v1740, %v1741
    %v1890 = vsel %vm1815, %v1739, %v1740
    %v1891 = vsel %vm1815, %v1738, %v1739
    %v1892 = vsel %vm1815, %v1737, %v1738
    %v1893 = vsel %vm1815, %v1736, %v1737
    %v1894 = vsel %vm1815, %v1735, %v1736
    %v1895 = vsel %vm1815, %v1734, %v1735
    %v1896 = vsel %vm1815, %v1733, %v1734
    %v1897 = vsel %vm1815, %v1814, %v1733
    %v1898 = vadd.f32 %v1029, %v1817
    %v1899 = vadd.f32 %v1032, %v1816
    %v1900 = vadd.f32 %v1037, %v1897
    %v1901 = vadd.f32 %v1040, %v1896
    %v1902 = vadd.f32 %v1045, %v1895
    %v1903 = vadd.f32 %v1048, %v1894
    %v1904 = vadd.f32 %v1053, %v1893
    %v1905 = vadd.f32 %v1056, %v1892
    %v1906 = vadd.f32 %v1061, %v1891
    %v1907 = vadd.f32 %v1064, %v1890
    %v1908 = vadd.f32 %v1069, %v1889
    %v1909 = vadd.f32 %v1072, %v1888
    %v1910 = vadd.f32 %v1077, %v1887
    %v1911 = vadd.f32 %v1080, %v1886
    %v1912 = vadd.f32 %v1085, %v1885
    %v1913 = vadd.f32 %v1088, %v1884
    %v1914 = vadd.f32 %v1093, %v1883
    %v1915 = vadd.f32 %v1096, %v1882
    %v1916 = vadd.f32 %v1101, %v1881
    %v1917 = vadd.f32 %v1104, %v1880
    %v1918 = vadd.f32 %v1109, %v1879
    %v1919 = vadd.f32 %v1112, %v1878
    %v1920 = vadd.f32 %v1117, %v1877
    %v1921 = vadd.f32 %v1120, %v1876
    %v1922 = vadd.f32 %v1125, %v1875
    %v1923 = vadd.f32 %v1128, %v1874
    %v1924 = vadd.f32 %v1133, %v1873
    %v1925 = vadd.f32 %v1136, %v1872
    %v1926 = vadd.f32 %v1141, %v1871
    %v1927 = vadd.f32 %v1144, %v1870
    %v1928 = vadd.f32 %v1149, %v1869
    %v1929 = vadd.f32 %v1152, %v1868
    %v1930 = vadd.f32 %v1157, %v1867
    %v1931 = vadd.f32 %v1160, %v1866
    %v1932 = vadd.f32 %v1165, %v1865
    %v1933 = vadd.f32 %v1168, %v1864
    %v1934 = vadd.f32 %v1173, %v1863
    %v1935 = vadd.f32 %v1176, %v1862
    %v1936 = vadd.f32 %v1181, %v1861
    %v1937 = vadd.f32 %v1184, %v1860
    %v1938 = vadd.f32 %v1189, %v1859
    %v1939 = vadd.f32 %v1192, %v1858
    %v1940 = vadd.f32 %v1197, %v1857
    %v1941 = vadd.f32 %v1200, %v1856
    %v1942 = vadd.f32 %v1205, %v1855
    %v1943 = vadd.f32 %v1208, %v1854
    %v1944 = vadd.f32 %v1213, %v1853
    %v1945 = vadd.f32 %v1216, %v1852
    %v1946 = vadd.f32 %v1221, %v1851
    %v1947 = vadd.f32 %v1224, %v1850
    %v1948 = vadd.f32 %v1229, %v1849
    %v1949 = vadd.f32 %v1232, %v1848
    %v1950 = vadd.f32 %v1237, %v1847
    %v1951 = vadd.f32 %v1240, %v1846
    %v1952 = vadd.f32 %v1245, %v1845
    %v1953 = vadd.f32 %v1248, %v1844
    %v1954 = vadd.f32 %v1253, %v1843
    %v1955 = vadd.f32 %v1256, %v1842
    %v1956 = vadd.f32 %v1261, %v1841
    %v1957 = vadd.f32 %v1264, %v1840
    %v1958 = vadd.f32 %v1269, %v1839
    %v1959 = vadd.f32 %v1272, %v1838
    %v1960 = vadd.f32 %v1277, %v1837
    %v1961 = vadd.f32 %v1280, %v1836
    %v1962 = vadd.f32 %v1285, %v1835
    %v1963 = vadd.f32 %v1288, %v1834
    %v1964 = vadd.f32 %v1293, %v1833
    %v1965 = vadd.f32 %v1296, %v1832
    %v1966 = vadd.f32 %v1301, %v1831
    %v1967 = vadd.f32 %v1304, %v1830
    %v1968 = vadd.f32 %v1309, %v1829
    %v1969 = vadd.f32 %v1312, %v1828
    %v1970 = vadd.f32 %v1317, %v1827
    %v1971 = vadd.f32 %v1320, %v1826
    %v1972 = vadd.f32 %v1325, %v1825
    %v1973 = vadd.f32 %v1328, %v1824
    %v1974 = vadd.f32 %v1333, %v1823
    %v1975 = vadd.f32 %v1336, %v1822
    %v1976 = vadd.f32 %v1341, %v1821
    %v1977 = vadd.f32 %v1344, %v1820
    %v1978 = vadd.f32 %v1349, %v1819
    %v1979 = vadd.f32 %v1352, %v1818
    %s1980 = scalar_lea.vmem %s1, 32
    %v1981 = vld [vmem:[%s1980] sm:$0xf]
    %v1982 = vld [vmem:[%s1980 + $0x4] sm:$0xf]
    %v1983 = vld [vmem:[%s1980 + $0x8] sm:$0xf]
    %v1984 = vld [vmem:[%s1980 + $0xc] sm:$0xf]
    %v1989 = vunpack.c.l.b16 %v1981
    %v1990 = vunpack.c.l.b16 %v1982
    %v1991 = vunpack.c.l.b16 %v1983
    %v1992 = vunpack.c.l.b16 %v1984
    %v1993 = vpack.c.b16 %v1990, %v1989
    %v1994 = vpack.c.b16 %v1992, %v1991
    %1997 = vmatprep.subr.bf16.mxu0 0
    %1998 = vmatpush1.bf16.msra.mxu0 %v1993
    %1999 = vmatprep.subr.bf16.mxu0 0
    %2000 = vmatpush1.bf16.msra.mxu0 %v1994
    %2001 = vmatprep.subr.bf16.mxu0 0
    %2002 = vmatpush1.bf16.msra.mxu0 0
    %2003 = vmatprep.subr.bf16.mxu0 0
    %2004 = vmatpush1.bf16.msra.mxu0 0
    %2005 = vmatprep.subr.bf16.mxu0 0
    %2006 = vmatpush1.bf16.msra.mxu0 0
    %2007 = vmatprep.subr.bf16.mxu0 0
    %2008 = vmatpush1.bf16.msra.mxu0 0
    %2009 = vmatprep.subr.bf16.mxu0 0
    %2010 = vmatpush1.bf16.msra.mxu0 0
    %2011 = vmatprep.subr.bf16.mxu0 0
    %2012 = vmatpush1.bf16.msra.mxu0 0
    %2013 = vmatprep.subr.bf16.mxu0 0
    %2014 = vmatpush1.bf16.msra.mxu0 0
    %2015 = vmatprep.subr.bf16.mxu0 0
    %2016 = vmatpush1.bf16.msra.mxu0 0
    %2017 = vmatprep.subr.bf16.mxu0 0
    %2018 = vmatpush1.bf16.msra.mxu0 0
    %2019 = vmatprep.subr.bf16.mxu0 0
    %2020 = vmatpush1.bf16.msra.mxu0 0
    %2021 = vmatprep.subr.bf16.mxu0 0
    %2022 = vmatpush1.bf16.msra.mxu0 0
    %2023 = vmatprep.subr.bf16.mxu0 0
    %2024 = vmatpush1.bf16.msra.mxu0 0
    %2025 = vmatprep.subr.bf16.mxu0 0
    %2026 = vmatpush1.bf16.msra.mxu0 0
    %2027 = vmatprep.subr.bf16.mxu0 0
    %2028 = vmatpush1.bf16.msra.mxu0 0
    %2029 = vmatprep.mubr.bf16.mxu0 0
    %2030 = vmatmul.mubr.bf16.gmra.mrb[0].mxu0 %v332
    %v2031 = vpop.f32.mrb[0].mxu0
    %v2032 = vadd.f32 0.0, %v2031
    %v2033 = vpop.f32.mrb[0].mxu0
    %v2034 = vpop.f32.mrb[0].mxu0
    %v2035 = vadd.f32 0.0, %v2034
    %v2036 = vpop.f32.mrb[0].mxu0
    %2037 = vmatprep.mubr.bf16.mxu0 0
    %2038 = vmatmul.mubr.bf16.gmra.mrb[0].mxu0 %v335
    %v2039 = vpop.f32.mrb[0].mxu0
    %v2040 = vadd.f32 0.0, %v2039
    %v2041 = vpop.f32.mrb[0].mxu0
    %v2042 = vpop.f32.mrb[0].mxu0
    %v2043 = vadd.f32 0.0, %v2042
    %v2044 = vpop.f32.mrb[0].mxu0
    %2045 = vmatprep.mubr.bf16.mxu0 0
    %2046 = vmatmul.mubr.bf16.gmra.mrb[0].mxu0 %v338
    %v2047 = vpop.f32.mrb[0].mxu0
    %v2048 = vadd.f32 0.0, %v2047
    %v2049 = vpop.f32.mrb[0].mxu0
    %v2050 = vpop.f32.mrb[0].mxu0
    %v2051 = vadd.f32 0.0, %v2050
    %v2052 = vpop.f32.mrb[0].mxu0
    %2053 = vmatprep.mubr.bf16.mxu0 0
    %2054 = vmatmul.mubr.bf16.gmra.mrb[0].mxu0 %v341
    %v2055 = vpop.f32.mrb[0].mxu0
    %v2056 = vadd.f32 0.0, %v2055
    %v2057 = vpop.f32.mrb[0].mxu0
    %v2058 = vpop.f32.mrb[0].mxu0
    %v2059 = vadd.f32 0.0, %v2058
    %v2060 = vpop.f32.mrb[0].mxu0
    %2061 = vmatprep.mubr.bf16.mxu0 0
    %2062 = vmatmul.mubr.bf16.gmra.mrb[0].mxu0 %v344
    %v2063 = vpop.f32.mrb[0].mxu0
    %v2064 = vadd.f32 0.0, %v2063
    %v2065 = vpop.f32.mrb[0].mxu0
    %v2066 = vpop.f32.mrb[0].mxu0
    %v2067 = vadd.f32 0.0, %v2066
    %v2068 = vpop.f32.mrb[0].mxu0
    %2069 = vmatprep.mubr.bf16.mxu0 0
    %2070 = vmatmul.mubr.bf16.gmra.mrb[0].mxu0 %v347
    %v2071 = vpop.f32.mrb[0].mxu0
    %v2072 = vadd.f32 0.0, %v2071
    %v2073 = vpop.f32.mrb[0].mxu0
    %v2074 = vpop.f32.mrb[0].mxu0
    %v2075 = vadd.f32 0.0, %v2074
    %v2076 = vpop.f32.mrb[0].mxu0
    %2077 = vmatprep.mubr.bf16.mxu0 0
    %2078 = vmatmul.mubr.bf16.gmra.mrb[0].mxu0 %v350
    %v2079 = vpop.f32.mrb[0].mxu0
    %v2080 = vadd.f32 0.0, %v2079
    %v2081 = vpop.f32.mrb[0].mxu0
    %v2082 = vpop.f32.mrb[0].mxu0
    %v2083 = vadd.f32 0.0, %v2082
    %v2084 = vpop.f32.mrb[0].mxu0
    %2085 = vmatprep.mubr.bf16.mxu0 0
    %2086 = vmatmul.mubr.bf16.gmra.mrb[0].mxu0 %v353
    %v2087 = vpop.f32.mrb[0].mxu0
    %v2088 = vadd.f32 0.0, %v2087
    %v2089 = vpop.f32.mrb[0].mxu0
    %v2090 = vpop.f32.mrb[0].mxu0
    %v2091 = vadd.f32 0.0, %v2090
    %v2092 = vpop.f32.mrb[0].mxu0
    %2093 = vmatprep.mubr.bf16.mxu0 0
    %2094 = vmatmul.mubr.bf16.gmra.mrb[0].mxu0 %v356
    %v2095 = vpop.f32.mrb[0].mxu0
    %v2096 = vadd.f32 0.0, %v2095
    %v2097 = vpop.f32.mrb[0].mxu0
    %v2098 = vpop.f32.mrb[0].mxu0
    %v2099 = vadd.f32 0.0, %v2098
    %v2100 = vpop.f32.mrb[0].mxu0
    %2101 = vmatprep.mubr.bf16.mxu0 0
    %2102 = vmatmul.mubr.bf16.gmra.mrb[0].mxu0 %v359
    %v2103 = vpop.f32.mrb[0].mxu0
    %v2104 = vadd.f32 0.0, %v2103
    %v2105 = vpop.f32.mrb[0].mxu0
    %v2106 = vpop.f32.mrb[0].mxu0
    %v2107 = vadd.f32 0.0, %v2106
    %v2108 = vpop.f32.mrb[0].mxu0
    %2109 = vmatprep.mubr.bf16.mxu0 0
    %2110 = vmatmul.mubr.bf16.gmra.mrb[0].mxu0 %v362
    %v2111 = vpop.f32.mrb[0].mxu0
    %v2112 = vadd.f32 0.0, %v2111
    %v2113 = vpop.f32.mrb[0].mxu0
    %v2114 = vpop.f32.mrb[0].mxu0
    %v2115 = vadd.f32 0.0, %v2114
    %v2116 = vpop.f32.mrb[0].mxu0
    %2117 = vmatprep.mubr.bf16.mxu0 0
    %2118 = vmatmul.mubr.bf16.gmra.mrb[0].mxu0 %v365
    %v2119 = vpop.f32.mrb[0].mxu0
    %v2120 = vadd.f32 0.0, %v2119
    %v2121 = vpop.f32.mrb[0].mxu0
    %v2122 = vpop.f32.mrb[0].mxu0
    %v2123 = vadd.f32 0.0, %v2122
    %v2124 = vpop.f32.mrb[0].mxu0
    %2125 = vmatprep.mubr.bf16.mxu0 0
    %2126 = vmatmul.mubr.bf16.gmra.mrb[0].mxu0 %v368
    %v2127 = vpop.f32.mrb[0].mxu0
    %v2128 = vadd.f32 0.0, %v2127
    %v2129 = vpop.f32.mrb[0].mxu0
    %v2130 = vpop.f32.mrb[0].mxu0
    %v2131 = vadd.f32 0.0, %v2130
    %v2132 = vpop.f32.mrb[0].mxu0
    %2133 = vmatprep.mubr.bf16.mxu0 0
    %2134 = vmatmul.mubr.bf16.gmra.mrb[0].mxu0 %v371
    %v2135 = vpop.f32.mrb[0].mxu0
    %v2136 = vadd.f32 0.0, %v2135
    %v2137 = vpop.f32.mrb[0].mxu0
    %v2138 = vpop.f32.mrb[0].mxu0
    %v2139 = vadd.f32 0.0, %v2138
    %v2140 = vpop.f32.mrb[0].mxu0
    %2141 = vmatprep.mubr.bf16.mxu0 0
    %2142 = vmatmul.mubr.bf16.gmra.mrb[0].mxu0 %v374
    %v2143 = vpop.f32.mrb[0].mxu0
    %v2144 = vadd.f32 0.0, %v2143
    %v2145 = vpop.f32.mrb[0].mxu0
    %v2146 = vpop.f32.mrb[0].mxu0
    %v2147 = vadd.f32 0.0, %v2146
    %v2148 = vpop.f32.mrb[0].mxu0
    %2149 = vmatprep.mubr.bf16.mxu0 0
    %2150 = vmatmul.mubr.bf16.gmra.mrb[0].mxu0 %v377
    %v2151 = vpop.f32.mrb[0].mxu0
    %v2152 = vadd.f32 0.0, %v2151
    %v2153 = vpop.f32.mrb[0].mxu0
    %v2154 = vpop.f32.mrb[0].mxu0
    %v2155 = vadd.f32 0.0, %v2154
    %v2156 = vpop.f32.mrb[0].mxu0
    %2157 = vmatprep.mubr.bf16.mxu0 0
    %2158 = vmatmul.mubr.bf16.gmra.mrb[0].mxu0 %v380
    %v2159 = vpop.f32.mrb[0].mxu0
    %v2160 = vadd.f32 0.0, %v2159
    %v2161 = vpop.f32.mrb[0].mxu0
    %v2162 = vpop.f32.mrb[0].mxu0
    %v2163 = vadd.f32 0.0, %v2162
    %v2164 = vpop.f32.mrb[0].mxu0
    %2165 = vmatprep.mubr.bf16.mxu0 0
    %2166 = vmatmul.mubr.bf16.gmra.mrb[0].mxu0 %v383
    %v2167 = vpop.f32.mrb[0].mxu0
    %v2168 = vadd.f32 0.0, %v2167
    %v2169 = vpop.f32.mrb[0].mxu0
    %v2170 = vpop.f32.mrb[0].mxu0
    %v2171 = vadd.f32 0.0, %v2170
    %v2172 = vpop.f32.mrb[0].mxu0
    %2173 = vmatprep.mubr.bf16.mxu0 0
    %2174 = vmatmul.mubr.bf16.gmra.mrb[0].mxu0 %v386
    %v2175 = vpop.f32.mrb[0].mxu0
    %v2176 = vadd.f32 0.0, %v2175
    %v2177 = vpop.f32.mrb[0].mxu0
    %v2178 = vpop.f32.mrb[0].mxu0
    %v2179 = vadd.f32 0.0, %v2178
    %v2180 = vpop.f32.mrb[0].mxu0
    %2181 = vmatprep.mubr.bf16.mxu0 0
    %2182 = vmatmul.mubr.bf16.gmra.mrb[0].mxu0 %v389
    %v2183 = vpop.f32.mrb[0].mxu0
    %v2184 = vadd.f32 0.0, %v2183
    %v2185 = vpop.f32.mrb[0].mxu0
    %v2186 = vpop.f32.mrb[0].mxu0
    %v2187 = vadd.f32 0.0, %v2186
    %v2188 = vpop.f32.mrb[0].mxu0
    %2189 = vmatprep.mubr.bf16.mxu0 0
    %2190 = vmatmul.mubr.bf16.gmra.mrb[0].mxu0 %v392
    %v2191 = vpop.f32.mrb[0].mxu0
    %v2192 = vadd.f32 0.0, %v2191
    %v2193 = vpop.f32.mrb[0].mxu0
    %v2194 = vpop.f32.mrb[0].mxu0
    %v2195 = vadd.f32 0.0, %v2194
    %v2196 = vpop.f32.mrb[0].mxu0
    %2197 = vmatprep.mubr.bf16.mxu0 0
    %2198 = vmatmul.mubr.bf16.gmra.mrb[0].mxu0 %v395
    %v2199 = vpop.f32.mrb[0].mxu0
    %v2200 = vadd.f32 0.0, %v2199
    %v2201 = vpop.f32.mrb[0].mxu0
    %v2202 = vpop.f32.mrb[0].mxu0
    %v2203 = vadd.f32 0.0, %v2202
    %v2204 = vpop.f32.mrb[0].mxu0
    %2205 = vmatprep.mubr.bf16.mxu0 0
    %2206 = vmatmul.mubr.bf16.gmra.mrb[0].mxu0 %v398
    %v2207 = vpop.f32.mrb[0].mxu0
    %v2208 = vadd.f32 0.0, %v2207
    %v2209 = vpop.f32.mrb[0].mxu0
    %v2210 = vpop.f32.mrb[0].mxu0
    %v2211 = vadd.f32 0.0, %v2210
    %v2212 = vpop.f32.mrb[0].mxu0
    %2213 = vmatprep.mubr.bf16.mxu0 0
    %2214 = vmatmul.mubr.bf16.gmra.mrb[0].mxu0 %v401
    %v2215 = vpop.f32.mrb[0].mxu0
    %v2216 = vadd.f32 0.0, %v2215
    %v2217 = vpop.f32.mrb[0].mxu0
    %v2218 = vpop.f32.mrb[0].mxu0
    %v2219 = vadd.f32 0.0, %v2218
    %v2220 = vpop.f32.mrb[0].mxu0
    %2221 = vmatprep.mubr.bf16.mxu0 0
    %2222 = vmatmul.mubr.bf16.gmra.mrb[0].mxu0 %v404
    %v2223 = vpop.f32.mrb[0].mxu0
    %v2224 = vadd.f32 0.0, %v2223
    %v2225 = vpop.f32.mrb[0].mxu0
    %v2226 = vpop.f32.mrb[0].mxu0
    %v2227 = vadd.f32 0.0, %v2226
    %v2228 = vpop.f32.mrb[0].mxu0
    %2229 = vmatprep.mubr.bf16.mxu0 0
    %2230 = vmatmul.mubr.bf16.gmra.mrb[0].mxu0 %v407
    %v2231 = vpop.f32.mrb[0].mxu0
    %v2232 = vadd.f32 0.0, %v2231
    %v2233 = vpop.f32.mrb[0].mxu0
    %v2234 = vpop.f32.mrb[0].mxu0
    %v2235 = vadd.f32 0.0, %v2234
    %v2236 = vpop.f32.mrb[0].mxu0
    %2237 = vmatprep.mubr.bf16.mxu0 0
    %2238 = vmatmul.mubr.bf16.gmra.mrb[0].mxu0 %v410
    %v2239 = vpop.f32.mrb[0].mxu0
    %v2240 = vadd.f32 0.0, %v2239
    %v2241 = vpop.f32.mrb[0].mxu0
    %v2242 = vpop.f32.mrb[0].mxu0
    %v2243 = vadd.f32 0.0, %v2242
    %v2244 = vpop.f32.mrb[0].mxu0
    %2245 = vmatprep.mubr.bf16.mxu0 0
    %2246 = vmatmul.mubr.bf16.gmra.mrb[0].mxu0 %v413
    %v2247 = vpop.f32.mrb[0].mxu0
    %v2248 = vadd.f32 0.0, %v2247
    %v2249 = vpop.f32.mrb[0].mxu0
    %v2250 = vpop.f32.mrb[0].mxu0
    %v2251 = vadd.f32 0.0, %v2250
    %v2252 = vpop.f32.mrb[0].mxu0
    %2253 = vmatprep.mubr.bf16.mxu0 0
    %2254 = vmatmul.mubr.bf16.gmra.mrb[0].mxu0 %v416
    %v2255 = vpop.f32.mrb[0].mxu0
    %v2256 = vadd.f32 0.0, %v2255
    %v2257 = vpop.f32.mrb[0].mxu0
    %v2258 = vpop.f32.mrb[0].mxu0
    %v2259 = vadd.f32 0.0, %v2258
    %v2260 = vpop.f32.mrb[0].mxu0
    %2261 = vmatprep.mubr.bf16.mxu0 0
    %2262 = vmatmul.mubr.bf16.gmra.mrb[0].mxu0 %v419
    %v2263 = vpop.f32.mrb[0].mxu0
    %v2264 = vadd.f32 0.0, %v2263
    %v2265 = vpop.f32.mrb[0].mxu0
    %v2266 = vpop.f32.mrb[0].mxu0
    %v2267 = vadd.f32 0.0, %v2266
    %v2268 = vpop.f32.mrb[0].mxu0
    %2269 = vmatprep.mubr.bf16.mxu0 0
    %2270 = vmatmul.mubr.bf16.gmra.mrb[0].mxu0 %v422
    %v2271 = vpop.f32.mrb[0].mxu0
    %v2272 = vadd.f32 0.0, %v2271
    %v2273 = vpop.f32.mrb[0].mxu0
    %v2274 = vpop.f32.mrb[0].mxu0
    %v2275 = vadd.f32 0.0, %v2274
    %v2276 = vpop.f32.mrb[0].mxu0
    %2277 = vmatprep.mubr.bf16.mxu0 0
    %2278 = vmatmul.mubr.bf16.gmra.mrb[0].mxu0 %v425
    %v2279 = vpop.f32.mrb[0].mxu0
    %v2280 = vadd.f32 0.0, %v2279
    %v2281 = vpop.f32.mrb[0].mxu0
    %v2282 = vpop.f32.mrb[0].mxu0
    %v2283 = vadd.f32 0.0, %v2282
    %v2284 = vpop.f32.mrb[0].mxu0
    %2285 = vmatprep.mubr.bf16.mxu0 0
    %2286 = vmatmul.mubr.bf16.gmra.mrb[0].mxu0 %v428
    %v2287 = vpop.f32.mrb[0].mxu0
    %v2288 = vadd.f32 0.0, %v2287
    %v2289 = vpop.f32.mrb[0].mxu0
    %v2290 = vpop.f32.mrb[0].mxu0
    %v2291 = vadd.f32 0.0, %v2290
    %v2292 = vpop.f32.mrb[0].mxu0
    %2293 = vmatprep.mubr.bf16.mxu0 0
    %2294 = vmatmul.mubr.bf16.gmra.mrb[0].mxu0 %v431
    %v2295 = vpop.f32.mrb[0].mxu0
    %v2296 = vadd.f32 0.0, %v2295
    %v2297 = vpop.f32.mrb[0].mxu0
    %v2298 = vpop.f32.mrb[0].mxu0
    %v2299 = vadd.f32 0.0, %v2298
    %v2300 = vpop.f32.mrb[0].mxu0
    %2301 = vmatprep.mubr.bf16.mxu0 0
    %2302 = vmatmul.mubr.bf16.gmra.mrb[0].mxu0 %v434
    %v2303 = vpop.f32.mrb[0].mxu0
    %v2304 = vadd.f32 0.0, %v2303
    %v2305 = vpop.f32.mrb[0].mxu0
    %v2306 = vpop.f32.mrb[0].mxu0
    %v2307 = vadd.f32 0.0, %v2306
    %v2308 = vpop.f32.mrb[0].mxu0
    %2309 = vmatprep.mubr.bf16.mxu0 0
    %2310 = vmatmul.mubr.bf16.gmra.mrb[0].mxu0 %v437
    %v2311 = vpop.f32.mrb[0].mxu0
    %v2312 = vadd.f32 0.0, %v2311
    %v2313 = vpop.f32.mrb[0].mxu0
    %v2314 = vpop.f32.mrb[0].mxu0
    %v2315 = vadd.f32 0.0, %v2314
    %v2316 = vpop.f32.mrb[0].mxu0
    %2317 = vmatprep.mubr.bf16.mxu0 0
    %2318 = vmatmul.mubr.bf16.gmra.mrb[0].mxu0 %v440
    %v2319 = vpop.f32.mrb[0].mxu0
    %v2320 = vadd.f32 0.0, %v2319
    %v2321 = vpop.f32.mrb[0].mxu0
    %v2322 = vpop.f32.mrb[0].mxu0
    %v2323 = vadd.f32 0.0, %v2322
    %v2324 = vpop.f32.mrb[0].mxu0
    %2325 = vmatprep.mubr.bf16.mxu0 0
    %2326 = vmatmul.mubr.bf16.gmra.mrb[0].mxu0 %v443
    %v2327 = vpop.f32.mrb[0].mxu0
    %v2328 = vadd.f32 0.0, %v2327
    %v2329 = vpop.f32.mrb[0].mxu0
    %v2330 = vpop.f32.mrb[0].mxu0
    %v2331 = vadd.f32 0.0, %v2330
    %v2332 = vpop.f32.mrb[0].mxu0
    %2333 = vmatprep.mubr.bf16.mxu0 0
    %2334 = vmatmul.mubr.bf16.gmra.mrb[0].mxu0 %v446
    %v2335 = vpop.f32.mrb[0].mxu0
    %v2336 = vadd.f32 0.0, %v2335
    %v2337 = vpop.f32.mrb[0].mxu0
    %v2338 = vpop.f32.mrb[0].mxu0
    %v2339 = vadd.f32 0.0, %v2338
    %v2340 = vpop.f32.mrb[0].mxu0
    %2341 = vmatprep.mubr.bf16.mxu0 0
    %2342 = vmatmul.mubr.bf16.gmra.mrb[0].mxu0 %v449
    %v2343 = vpop.f32.mrb[0].mxu0
    %v2344 = vadd.f32 0.0, %v2343
    %v2345 = vpop.f32.mrb[0].mxu0
    %v2346 = vpop.f32.mrb[0].mxu0
    %v2347 = vadd.f32 0.0, %v2346
    %v2348 = vpop.f32.mrb[0].mxu0
    %2349 = vmatprep.mubr.bf16.mxu0 0
    %2350 = vmatmul.mubr.bf16.gmra.mrb[0].mxu0 %v452
    %v2351 = vpop.f32.mrb[0].mxu0
    %v2352 = vadd.f32 0.0, %v2351
    %v2353 = vpop.f32.mrb[0].mxu0
    %v2354 = vpop.f32.mrb[0].mxu0
    %v2355 = vadd.f32 0.0, %v2354
    %v2356 = vpop.f32.mrb[0].mxu0
    %2357 = vdwg.mxu0
    %v2358 = vrot.slane %v2032, 7
    %v2359 = vrot.slane %v2035, 7
    %v2360 = vrot.slane %v2040, 7
    %v2361 = vrot.slane %v2043, 7
    %v2362 = vrot.slane %v2048, 7
    %v2363 = vrot.slane %v2051, 7
    %v2364 = vrot.slane %v2056, 7
    %v2365 = vrot.slane %v2059, 7
    %v2366 = vrot.slane %v2064, 7
    %v2367 = vrot.slane %v2067, 7
    %v2368 = vrot.slane %v2072, 7
    %v2369 = vrot.slane %v2075, 7
    %v2370 = vrot.slane %v2080, 7
    %v2371 = vrot.slane %v2083, 7
    %v2372 = vrot.slane %v2088, 7
    %v2373 = vrot.slane %v2091, 7
    %v2374 = vrot.slane %v2096, 7
    %v2375 = vrot.slane %v2099, 7
    %v2376 = vrot.slane %v2104, 7
    %v2377 = vrot.slane %v2107, 7
    %v2378 = vrot.slane %v2112, 7
    %v2379 = vrot.slane %v2115, 7
    %v2380 = vrot.slane %v2120, 7
    %v2381 = vrot.slane %v2123, 7
    %v2382 = vrot.slane %v2128, 7
    %v2383 = vrot.slane %v2131, 7
    %v2384 = vrot.slane %v2136, 7
    %v2385 = vrot.slane %v2139, 7
    %v2386 = vrot.slane %v2144, 7
    %v2387 = vrot.slane %v2147, 7
    %v2388 = vrot.slane %v2152, 7
    %v2389 = vrot.slane %v2155, 7
    %v2390 = vrot.slane %v2160, 7
    %v2391 = vrot.slane %v2163, 7
    %v2392 = vrot.slane %v2168, 7
    %v2393 = vrot.slane %v2171, 7
    %v2394 = vrot.slane %v2176, 7
    %v2395 = vrot.slane %v2179, 7
    %v2396 = vrot.slane %v2184, 7
    %v2397 = vrot.slane %v2187, 7
    %v2398 = vrot.slane %v2192, 7
    %v2399 = vrot.slane %v2195, 7
    %v2400 = vrot.slane %v2200, 7
    %v2401 = vrot.slane %v2203, 7
    %v2402 = vrot.slane %v2208, 7
    %v2403 = vrot.slane %v2211, 7
    %v2404 = vrot.slane %v2216, 7
    %v2405 = vrot.slane %v2219, 7
    %v2406 = vrot.slane %v2224, 7
    %v2407 = vrot.slane %v2227, 7
    %v2408 = vrot.slane %v2232, 7
    %v2409 = vrot.slane %v2235, 7
    %v2410 = vrot.slane %v2240, 7
    %v2411 = vrot.slane %v2243, 7
    %v2412 = vrot.slane %v2248, 7
    %v2413 = vrot.slane %v2251, 7
    %v2414 = vrot.slane %v2256, 7
    %v2415 = vrot.slane %v2259, 7
    %v2416 = vrot.slane %v2264, 7
    %v2417 = vrot.slane %v2267, 7
    %v2418 = vrot.slane %v2272, 7
    %v2419 = vrot.slane %v2275, 7
    %v2420 = vrot.slane %v2280, 7
    %v2421 = vrot.slane %v2283, 7
    %v2422 = vrot.slane %v2288, 7
    %v2423 = vrot.slane %v2291, 7
    %v2424 = vrot.slane %v2296, 7
    %v2425 = vrot.slane %v2299, 7
    %v2426 = vrot.slane %v2304, 7
    %v2427 = vrot.slane %v2307, 7
    %v2428 = vrot.slane %v2312, 7
    %v2429 = vrot.slane %v2315, 7
    %v2430 = vrot.slane %v2320, 7
    %v2431 = vrot.slane %v2323, 7
    %v2432 = vrot.slane %v2328, 7
    %v2433 = vrot.slane %v2331, 7
    %v2434 = vrot.slane %v2336, 7
    %v2435 = vrot.slane %v2339, 7
    %v2436 = vrot.slane %v2344, 7
    %v2437 = vrot.slane %v2347, 7
    %v2438 = vrot.slane %v2352, 7
    %v2439 = vrot.slane %v2355, 7
    %vm2440 = vcmp.lt.s32.totalorder %v898, 1
    %v2441 = vsel %vm2440, %v2438, %v2439
    %v2442 = vsel %vm2440, %v2437, %v2438
    %v2443 = vsel %vm2440, %v2436, %v2437
    %v2444 = vsel %vm2440, %v2435, %v2436
    %v2445 = vsel %vm2440, %v2434, %v2435
    %v2446 = vsel %vm2440, %v2433, %v2434
    %v2447 = vsel %vm2440, %v2432, %v2433
    %v2448 = vsel %vm2440, %v2431, %v2432
    %v2449 = vsel %vm2440, %v2430, %v2431
    %v2450 = vsel %vm2440, %v2429, %v2430
    %v2451 = vsel %vm2440, %v2428, %v2429
    %v2452 = vsel %vm2440, %v2427, %v2428
    %v2453 = vsel %vm2440, %v2426, %v2427
    %v2454 = vsel %vm2440, %v2425, %v2426
    %v2455 = vsel %vm2440, %v2424, %v2425
    %v2456 = vsel %vm2440, %v2423, %v2424
    %v2457 = vsel %vm2440, %v2422, %v2423
    %v2458 = vsel %vm2440, %v2421, %v2422
    %v2459 = vsel %vm2440, %v2420, %v2421
    %v2460 = vsel %vm2440, %v2419, %v2420
    %v2461 = vsel %vm2440, %v2418, %v2419
    %v2462 = vsel %vm2440, %v2417, %v2418
    %v2463 = vsel %vm2440, %v2416, %v2417
    %v2464 = vsel %vm2440, %v2415, %v2416
    %v2465 = vsel %vm2440, %v2414, %v2415
    %v2466 = vsel %vm2440, %v2413, %v2414
    %v2467 = vsel %vm2440, %v2412, %v2413
    %v2468 = vsel %vm2440, %v2411, %v2412
    %v2469 = vsel %vm2440, %v2410, %v2411
    %v2470 = vsel %vm2440, %v2409, %v2410
    %v2471 = vsel %vm2440, %v2408, %v2409
    %v2472 = vsel %vm2440, %v2407, %v2408
    %v2473 = vsel %vm2440, %v2406, %v2407
    %v2474 = vsel %vm2440, %v2405, %v2406
    %v2475 = vsel %vm2440, %v2404, %v2405
    %v2476 = vsel %vm2440, %v2403, %v2404
    %v2477 = vsel %vm2440, %v2402, %v2403
    %v2478 = vsel %vm2440, %v2401, %v2402
    %v2479 = vsel %vm2440, %v2400, %v2401
    %v2480 = vsel %vm2440, %v2399, %v2400
    %v2481 = vsel %vm2440, %v2398, %v2399
    %v2482 = vsel %vm2440, %v2397, %v2398
    %v2483 = vsel %vm2440, %v2396, %v2397
    %v2484 = vsel %vm2440, %v2395, %v2396
    %v2485 = vsel %vm2440, %v2394, %v2395
    %v2486 = vsel %vm2440, %v2393, %v2394
    %v2487 = vsel %vm2440, %v2392, %v2393
    %v2488 = vsel %vm2440, %v2391, %v2392
    %v2489 = vsel %vm2440, %v2390, %v2391
    %v2490 = vsel %vm2440, %v2389, %v2390
    %v2491 = vsel %vm2440, %v2388, %v2389
    %v2492 = vsel %vm2440, %v2387, %v2388
    %v2493 = vsel %vm2440, %v2386, %v2387
    %v2494 = vsel %vm2440, %v2385, %v2386
    %v2495 = vsel %vm2440, %v2384, %v2385
    %v2496 = vsel %vm2440, %v2383, %v2384
    %v2497 = vsel %vm2440, %v2382, %v2383
    %v2498 = vsel %vm2440, %v2381, %v2382
    %v2499 = vsel %vm2440, %v2380, %v2381
    %v2500 = vsel %vm2440, %v2379, %v2380
    %v2501 = vsel %vm2440, %v2378, %v2379
    %v2502 = vsel %vm2440, %v2377, %v2378
    %v2503 = vsel %vm2440, %v2376, %v2377
    %v2504 = vsel %vm2440, %v2375, %v2376
    %v2505 = vsel %vm2440, %v2374, %v2375
    %v2506 = vsel %vm2440, %v2373, %v2374
    %v2507 = vsel %vm2440, %v2372, %v2373
    %v2508 = vsel %vm2440, %v2371, %v2372
    %v2509 = vsel %vm2440, %v2370, %v2371
    %v2510 = vsel %vm2440, %v2369, %v2370
    %v2511 = vsel %vm2440, %v2368, %v2369
    %v2512 = vsel %vm2440, %v2367, %v2368
    %v2513 = vsel %vm2440, %v2366, %v2367
    %v2514 = vsel %vm2440, %v2365, %v2366
    %v2515 = vsel %vm2440, %v2364, %v2365
    %v2516 = vsel %vm2440, %v2363, %v2364
    %v2517 = vsel %vm2440, %v2362, %v2363
    %v2518 = vsel %vm2440, %v2361, %v2362
    %v2519 = vsel %vm2440, %v2360, %v2361
    %v2520 = vsel %vm2440, %v2359, %v2360
    %v2521 = vsel %vm2440, %v2358, %v2359
    %v2522 = vsel %vm2440, %v2439, %v2358
    %v2523 = vadd.f32 %v1898, %v2442
    %v2524 = vadd.f32 %v1899, %v2441
    %v2525 = vadd.f32 %v1900, %v2522
    %v2526 = vadd.f32 %v1901, %v2521
    %v2527 = vadd.f32 %v1902, %v2520
    %v2528 = vadd.f32 %v1903, %v2519
    %v2529 = vadd.f32 %v1904, %v2518
    %v2530 = vadd.f32 %v1905, %v2517
    %v2531 = vadd.f32 %v1906, %v2516
    %v2532 = vadd.f32 %v1907, %v2515
    %v2533 = vadd.f32 %v1908, %v2514
    %v2534 = vadd.f32 %v1909, %v2513
    %v2535 = vadd.f32 %v1910, %v2512
    %v2536 = vadd.f32 %v1911, %v2511
    %v2537 = vadd.f32 %v1912, %v2510
    %v2538 = vadd.f32 %v1913, %v2509
    %v2539 = vadd.f32 %v1914, %v2508
    %v2540 = vadd.f32 %v1915, %v2507
    %v2541 = vadd.f32 %v1916, %v2506
    %v2542 = vadd.f32 %v1917, %v2505
    %v2543 = vadd.f32 %v1918, %v2504
    %v2544 = vadd.f32 %v1919, %v2503
    %v2545 = vadd.f32 %v1920, %v2502
    %v2546 = vadd.f32 %v1921, %v2501
    %v2547 = vadd.f32 %v1922, %v2500
    %v2548 = vadd.f32 %v1923, %v2499
    %v2549 = vadd.f32 %v1924, %v2498
    %v2550 = vadd.f32 %v1925, %v2497
    %v2551 = vadd.f32 %v1926, %v2496
    %v2552 = vadd.f32 %v1927, %v2495
    %v2553 = vadd.f32 %v1928, %v2494
    %v2554 = vadd.f32 %v1929, %v2493
    %v2555 = vadd.f32 %v1930, %v2492
    %v2556 = vadd.f32 %v1931, %v2491
    %v2557 = vadd.f32 %v1932, %v2490
    %v2558 = vadd.f32 %v1933, %v2489
    %v2559 = vadd.f32 %v1934, %v2488
    %v2560 = vadd.f32 %v1935, %v2487
    %v2561 = vadd.f32 %v1936, %v2486
    %v2562 = vadd.f32 %v1937, %v2485
    %v2563 = vadd.f32 %v1938, %v2484
    %v2564 = vadd.f32 %v1939, %v2483
    %v2565 = vadd.f32 %v1940, %v2482
    %v2566 = vadd.f32 %v1941, %v2481
    %v2567 = vadd.f32 %v1942, %v2480
    %v2568 = vadd.f32 %v1943, %v2479
    %v2569 = vadd.f32 %v1944, %v2478
    %v2570 = vadd.f32 %v1945, %v2477
    %v2571 = vadd.f32 %v1946, %v2476
    %v2572 = vadd.f32 %v1947, %v2475
    %v2573 = vadd.f32 %v1948, %v2474
    %v2574 = vadd.f32 %v1949, %v2473
    %v2575 = vadd.f32 %v1950, %v2472
    %v2576 = vadd.f32 %v1951, %v2471
    %v2577 = vadd.f32 %v1952, %v2470
    %v2578 = vadd.f32 %v1953, %v2469
    %v2579 = vadd.f32 %v1954, %v2468
    %v2580 = vadd.f32 %v1955, %v2467
    %v2581 = vadd.f32 %v1956, %v2466
    %v2582 = vadd.f32 %v1957, %v2465
    %v2583 = vadd.f32 %v1958, %v2464
    %v2584 = vadd.f32 %v1959, %v2463
    %v2585 = vadd.f32 %v1960, %v2462
    %v2586 = vadd.f32 %v1961, %v2461
    %v2587 = vadd.f32 %v1962, %v2460
    %v2588 = vadd.f32 %v1963, %v2459
    %v2589 = vadd.f32 %v1964, %v2458
    %v2590 = vadd.f32 %v1965, %v2457
    %v2591 = vadd.f32 %v1966, %v2456
    %v2592 = vadd.f32 %v1967, %v2455
    %v2593 = vadd.f32 %v1968, %v2454
    %v2594 = vadd.f32 %v1969, %v2453
    %v2595 = vadd.f32 %v1970, %v2452
    %v2596 = vadd.f32 %v1971, %v2451
    %v2597 = vadd.f32 %v1972, %v2450
    %v2598 = vadd.f32 %v1973, %v2449
    %v2599 = vadd.f32 %v1974, %v2448
    %v2600 = vadd.f32 %v1975, %v2447
    %v2601 = vadd.f32 %v1976, %v2446
    %v2602 = vadd.f32 %v1977, %v2445
    %v2603 = vadd.f32 %v1978, %v2444
    %v2604 = vadd.f32 %v1979, %v2443
    %s2605 = scalar_lea.vmem %s1, 48
    %v2606 = vld [vmem:[%s2605] sm:$0xf]
    %v2607 = vld [vmem:[%s2605 + $0x4] sm:$0xf]
    %v2608 = vld [vmem:[%s2605 + $0x8] sm:$0xf]
    %v2609 = vld [vmem:[%s2605 + $0xc] sm:$0xf]
    %v2614 = vunpack.c.l.b16 %v2606
    %v2615 = vunpack.c.l.b16 %v2607
    %v2616 = vunpack.c.l.b16 %v2608
    %v2617 = vunpack.c.l.b16 %v2609
    %v2618 = vpack.c.b16 %v2615, %v2614
    %v2619 = vpack.c.b16 %v2617, %v2616
    %2622 = vmatprep.subr.bf16.mxu0 0
    %2623 = vmatpush1.bf16.msra.mxu0 %v2618
    %2624 = vmatprep.subr.bf16.mxu0 0
    %2625 = vmatpush1.bf16.msra.mxu0 %v2619
    %2626 = vmatprep.subr.bf16.mxu0 0
    %2627 = vmatpush1.bf16.msra.mxu0 0
    %2628 = vmatprep.subr.bf16.mxu0 0
    %2629 = vmatpush1.bf16.msra.mxu0 0
    %2630 = vmatprep.subr.bf16.mxu0 0
    %2631 = vmatpush1.bf16.msra.mxu0 0
    %2632 = vmatprep.subr.bf16.mxu0 0
    %2633 = vmatpush1.bf16.msra.mxu0 0
    %2634 = vmatprep.subr.bf16.mxu0 0
    %2635 = vmatpush1.bf16.msra.mxu0 0
    %2636 = vmatprep.subr.bf16.mxu0 0
    %2637 = vmatpush1.bf16.msra.mxu0 0
    %2638 = vmatprep.subr.bf16.mxu0 0
    %2639 = vmatpush1.bf16.msra.mxu0 0
    %2640 = vmatprep.subr.bf16.mxu0 0
    %2641 = vmatpush1.bf16.msra.mxu0 0
    %2642 = vmatprep.subr.bf16.mxu0 0
    %2643 = vmatpush1.bf16.msra.mxu0 0
    %2644 = vmatprep.subr.bf16.mxu0 0
    %2645 = vmatpush1.bf16.msra.mxu0 0
    %2646 = vmatprep.subr.bf16.mxu0 0
    %2647 = vmatpush1.bf16.msra.mxu0 0
    %2648 = vmatprep.subr.bf16.mxu0 0
    %2649 = vmatpush1.bf16.msra.mxu0 0
    %2650 = vmatprep.subr.bf16.mxu0 0
    %2651 = vmatpush1.bf16.msra.mxu0 0
    %2652 = vmatprep.subr.bf16.mxu0 0
    %2653 = vmatpush1.bf16.msra.mxu0 0
    %2654 = vmatprep.mubr.bf16.mxu0 0
    %2655 = vmatmul.mubr.bf16.gmra.mrb[0].mxu0 %v332
    %v2656 = vpop.f32.mrb[0].mxu0
    %v2657 = vadd.f32 0.0, %v2656
    %v2658 = vpop.f32.mrb[0].mxu0
    %v2659 = vpop.f32.mrb[0].mxu0
    %v2660 = vadd.f32 0.0, %v2659
    %v2661 = vpop.f32.mrb[0].mxu0
    %2662 = vmatprep.mubr.bf16.mxu0 0
    %2663 = vmatmul.mubr.bf16.gmra.mrb[0].mxu0 %v335
    %v2664 = vpop.f32.mrb[0].mxu0
    %v2665 = vadd.f32 0.0, %v2664
    %v2666 = vpop.f32.mrb[0].mxu0
    %v2667 = vpop.f32.mrb[0].mxu0
    %v2668 = vadd.f32 0.0, %v2667
    %v2669 = vpop.f32.mrb[0].mxu0
    %2670 = vmatprep.mubr.bf16.mxu0 0
    %2671 = vmatmul.mubr.bf16.gmra.mrb[0].mxu0 %v338
    %v2672 = vpop.f32.mrb[0].mxu0
    %v2673 = vadd.f32 0.0, %v2672
    %v2674 = vpop.f32.mrb[0].mxu0
    %v2675 = vpop.f32.mrb[0].mxu0
    %v2676 = vadd.f32 0.0, %v2675
    %v2677 = vpop.f32.mrb[0].mxu0
    %2678 = vmatprep.mubr.bf16.mxu0 0
    %2679 = vmatmul.mubr.bf16.gmra.mrb[0].mxu0 %v341
    %v2680 = vpop.f32.mrb[0].mxu0
    %v2681 = vadd.f32 0.0, %v2680
    %v2682 = vpop.f32.mrb[0].mxu0
    %v2683 = vpop.f32.mrb[0].mxu0
    %v2684 = vadd.f32 0.0, %v2683
    %v2685 = vpop.f32.mrb[0].mxu0
    %2686 = vmatprep.mubr.bf16.mxu0 0
    %2687 = vmatmul.mubr.bf16.gmra.mrb[0].mxu0 %v344
    %v2688 = vpop.f32.mrb[0].mxu0
    %v2689 = vadd.f32 0.0, %v2688
    %v2690 = vpop.f32.mrb[0].mxu0
    %v2691 = vpop.f32.mrb[0].mxu0
    %v2692 = vadd.f32 0.0, %v2691
    %v2693 = vpop.f32.mrb[0].mxu0
    %2694 = vmatprep.mubr.bf16.mxu0 0
    %2695 = vmatmul.mubr.bf16.gmra.mrb[0].mxu0 %v347
    %v2696 = vpop.f32.mrb[0].mxu0
    %v2697 = vadd.f32 0.0, %v2696
    %v2698 = vpop.f32.mrb[0].mxu0
    %v2699 = vpop.f32.mrb[0].mxu0
    %v2700 = vadd.f32 0.0, %v2699
    %v2701 = vpop.f32.mrb[0].mxu0
    %2702 = vmatprep.mubr.bf16.mxu0 0
    %2703 = vmatmul.mubr.bf16.gmra.mrb[0].mxu0 %v350
    %v2704 = vpop.f32.mrb[0].mxu0
    %v2705 = vadd.f32 0.0, %v2704
    %v2706 = vpop.f32.mrb[0].mxu0
    %v2707 = vpop.f32.mrb[0].mxu0
    %v2708 = vadd.f32 0.0, %v2707
    %v2709 = vpop.f32.mrb[0].mxu0
    %2710 = vmatprep.mubr.bf16.mxu0 0
    %2711 = vmatmul.mubr.bf16.gmra.mrb[0].mxu0 %v353
    %v2712 = vpop.f32.mrb[0].mxu0
    %v2713 = vadd.f32 0.0, %v2712
    %v2714 = vpop.f32.mrb[0].mxu0
    %v2715 = vpop.f32.mrb[0].mxu0
    %v2716 = vadd.f32 0.0, %v2715
    %v2717 = vpop.f32.mrb[0].mxu0
    %2718 = vmatprep.mubr.bf16.mxu0 0
    %2719 = vmatmul.mubr.bf16.gmra.mrb[0].mxu0 %v356
    %v2720 = vpop.f32.mrb[0].mxu0
    %v2721 = vadd.f32 0.0, %v2720
    %v2722 = vpop.f32.mrb[0].mxu0
    %v2723 = vpop.f32.mrb[0].mxu0
    %v2724 = vadd.f32 0.0, %v2723
    %v2725 = vpop.f32.mrb[0].mxu0
    %2726 = vmatprep.mubr.bf16.mxu0 0
    %2727 = vmatmul.mubr.bf16.gmra.mrb[0].mxu0 %v359
    %v2728 = vpop.f32.mrb[0].mxu0
    %v2729 = vadd.f32 0.0, %v2728
    %v2730 = vpop.f32.mrb[0].mxu0
    %v2731 = vpop.f32.mrb[0].mxu0
    %v2732 = vadd.f32 0.0, %v2731
    %v2733 = vpop.f32.mrb[0].mxu0
    %2734 = vmatprep.mubr.bf16.mxu0 0
    %2735 = vmatmul.mubr.bf16.gmra.mrb[0].mxu0 %v362
    %v2736 = vpop.f32.mrb[0].mxu0
    %v2737 = vadd.f32 0.0, %v2736
    %v2738 = vpop.f32.mrb[0].mxu0
    %v2739 = vpop.f32.mrb[0].mxu0
    %v2740 = vadd.f32 0.0, %v2739
    %v2741 = vpop.f32.mrb[0].mxu0
    %2742 = vmatprep.mubr.bf16.mxu0 0
    %2743 = vmatmul.mubr.bf16.gmra.mrb[0].mxu0 %v365
    %v2744 = vpop.f32.mrb[0].mxu0
    %v2745 = vadd.f32 0.0, %v2744
    %v2746 = vpop.f32.mrb[0].mxu0
    %v2747 = vpop.f32.mrb[0].mxu0
    %v2748 = vadd.f32 0.0, %v2747
    %v2749 = vpop.f32.mrb[0].mxu0
    %2750 = vmatprep.mubr.bf16.mxu0 0
    %2751 = vmatmul.mubr.bf16.gmra.mrb[0].mxu0 %v368
    %v2752 = vpop.f32.mrb[0].mxu0
    %v2753 = vadd.f32 0.0, %v2752
    %v2754 = vpop.f32.mrb[0].mxu0
    %v2755 = vpop.f32.mrb[0].mxu0
    %v2756 = vadd.f32 0.0, %v2755
    %v2757 = vpop.f32.mrb[0].mxu0
    %2758 = vmatprep.mubr.bf16.mxu0 0
    %2759 = vmatmul.mubr.bf16.gmra.mrb[0].mxu0 %v371
    %v2760 = vpop.f32.mrb[0].mxu0
    %v2761 = vadd.f32 0.0, %v2760
    %v2762 = vpop.f32.mrb[0].mxu0
    %v2763 = vpop.f32.mrb[0].mxu0
    %v2764 = vadd.f32 0.0, %v2763
    %v2765 = vpop.f32.mrb[0].mxu0
    %2766 = vmatprep.mubr.bf16.mxu0 0
    %2767 = vmatmul.mubr.bf16.gmra.mrb[0].mxu0 %v374
    %v2768 = vpop.f32.mrb[0].mxu0
    %v2769 = vadd.f32 0.0, %v2768
    %v2770 = vpop.f32.mrb[0].mxu0
    %v2771 = vpop.f32.mrb[0].mxu0
    %v2772 = vadd.f32 0.0, %v2771
    %v2773 = vpop.f32.mrb[0].mxu0
    %2774 = vmatprep.mubr.bf16.mxu0 0
    %2775 = vmatmul.mubr.bf16.gmra.mrb[0].mxu0 %v377
    %v2776 = vpop.f32.mrb[0].mxu0
    %v2777 = vadd.f32 0.0, %v2776
    %v2778 = vpop.f32.mrb[0].mxu0
    %v2779 = vpop.f32.mrb[0].mxu0
    %v2780 = vadd.f32 0.0, %v2779
    %v2781 = vpop.f32.mrb[0].mxu0
    %2782 = vmatprep.mubr.bf16.mxu0 0
    %2783 = vmatmul.mubr.bf16.gmra.mrb[0].mxu0 %v380
    %v2784 = vpop.f32.mrb[0].mxu0
    %v2785 = vadd.f32 0.0, %v2784
    %v2786 = vpop.f32.mrb[0].mxu0
    %v2787 = vpop.f32.mrb[0].mxu0
    %v2788 = vadd.f32 0.0, %v2787
    %v2789 = vpop.f32.mrb[0].mxu0
    %2790 = vmatprep.mubr.bf16.mxu0 0
    %2791 = vmatmul.mubr.bf16.gmra.mrb[0].mxu0 %v383
    %v2792 = vpop.f32.mrb[0].mxu0
    %v2793 = vadd.f32 0.0, %v2792
    %v2794 = vpop.f32.mrb[0].mxu0
    %v2795 = vpop.f32.mrb[0].mxu0
    %v2796 = vadd.f32 0.0, %v2795
    %v2797 = vpop.f32.mrb[0].mxu0
    %2798 = vmatprep.mubr.bf16.mxu0 0
    %2799 = vmatmul.mubr.bf16.gmra.mrb[0].mxu0 %v386
    %v2800 = vpop.f32.mrb[0].mxu0
    %v2801 = vadd.f32 0.0, %v2800
    %v2802 = vpop.f32.mrb[0].mxu0
    %v2803 = vpop.f32.mrb[0].mxu0
    %v2804 = vadd.f32 0.0, %v2803
    %v2805 = vpop.f32.mrb[0].mxu0
    %2806 = vmatprep.mubr.bf16.mxu0 0
    %2807 = vmatmul.mubr.bf16.gmra.mrb[0].mxu0 %v389
    %v2808 = vpop.f32.mrb[0].mxu0
    %v2809 = vadd.f32 0.0, %v2808
    %v2810 = vpop.f32.mrb[0].mxu0
    %v2811 = vpop.f32.mrb[0].mxu0
    %v2812 = vadd.f32 0.0, %v2811
    %v2813 = vpop.f32.mrb[0].mxu0
    %2814 = vmatprep.mubr.bf16.mxu0 0
    %2815 = vmatmul.mubr.bf16.gmra.mrb[0].mxu0 %v392
    %v2816 = vpop.f32.mrb[0].mxu0
    %v2817 = vadd.f32 0.0, %v2816
    %v2818 = vpop.f32.mrb[0].mxu0
    %v2819 = vpop.f32.mrb[0].mxu0
    %v2820 = vadd.f32 0.0, %v2819
    %v2821 = vpop.f32.mrb[0].mxu0
    %2822 = vmatprep.mubr.bf16.mxu0 0
    %2823 = vmatmul.mubr.bf16.gmra.mrb[0].mxu0 %v395
    %v2824 = vpop.f32.mrb[0].mxu0
    %v2825 = vadd.f32 0.0, %v2824
    %v2826 = vpop.f32.mrb[0].mxu0
    %v2827 = vpop.f32.mrb[0].mxu0
    %v2828 = vadd.f32 0.0, %v2827
    %v2829 = vpop.f32.mrb[0].mxu0
    %2830 = vmatprep.mubr.bf16.mxu0 0
    %2831 = vmatmul.mubr.bf16.gmra.mrb[0].mxu0 %v398
    %v2832 = vpop.f32.mrb[0].mxu0
    %v2833 = vadd.f32 0.0, %v2832
    %v2834 = vpop.f32.mrb[0].mxu0
    %v2835 = vpop.f32.mrb[0].mxu0
    %v2836 = vadd.f32 0.0, %v2835
    %v2837 = vpop.f32.mrb[0].mxu0
    %2838 = vmatprep.mubr.bf16.mxu0 0
    %2839 = vmatmul.mubr.bf16.gmra.mrb[0].mxu0 %v401
    %v2840 = vpop.f32.mrb[0].mxu0
    %v2841 = vadd.f32 0.0, %v2840
    %v2842 = vpop.f32.mrb[0].mxu0
    %v2843 = vpop.f32.mrb[0].mxu0
    %v2844 = vadd.f32 0.0, %v2843
    %v2845 = vpop.f32.mrb[0].mxu0
    %2846 = vmatprep.mubr.bf16.mxu0 0
    %2847 = vmatmul.mubr.bf16.gmra.mrb[0].mxu0 %v404
    %v2848 = vpop.f32.mrb[0].mxu0
    %v2849 = vadd.f32 0.0, %v2848
    %v2850 = vpop.f32.mrb[0].mxu0
    %v2851 = vpop.f32.mrb[0].mxu0
    %v2852 = vadd.f32 0.0, %v2851
    %v2853 = vpop.f32.mrb[0].mxu0
    %2854 = vmatprep.mubr.bf16.mxu0 0
    %2855 = vmatmul.mubr.bf16.gmra.mrb[0].mxu0 %v407
    %v2856 = vpop.f32.mrb[0].mxu0
    %v2857 = vadd.f32 0.0, %v2856
    %v2858 = vpop.f32.mrb[0].mxu0
    %v2859 = vpop.f32.mrb[0].mxu0
    %v2860 = vadd.f32 0.0, %v2859
    %v2861 = vpop.f32.mrb[0].mxu0
    %2862 = vmatprep.mubr.bf16.mxu0 0
    %2863 = vmatmul.mubr.bf16.gmra.mrb[0].mxu0 %v410
    %v2864 = vpop.f32.mrb[0].mxu0
    %v2865 = vadd.f32 0.0, %v2864
    %v2866 = vpop.f32.mrb[0].mxu0
    %v2867 = vpop.f32.mrb[0].mxu0
    %v2868 = vadd.f32 0.0, %v2867
    %v2869 = vpop.f32.mrb[0].mxu0
    %2870 = vmatprep.mubr.bf16.mxu0 0
    %2871 = vmatmul.mubr.bf16.gmra.mrb[0].mxu0 %v413
    %v2872 = vpop.f32.mrb[0].mxu0
    %v2873 = vadd.f32 0.0, %v2872
    %v2874 = vpop.f32.mrb[0].mxu0
    %v2875 = vpop.f32.mrb[0].mxu0
    %v2876 = vadd.f32 0.0, %v2875
    %v2877 = vpop.f32.mrb[0].mxu0
    %2878 = vmatprep.mubr.bf16.mxu0 0
    %2879 = vmatmul.mubr.bf16.gmra.mrb[0].mxu0 %v416
    %v2880 = vpop.f32.mrb[0].mxu0
    %v2881 = vadd.f32 0.0, %v2880
    %v2882 = vpop.f32.mrb[0].mxu0
    %v2883 = vpop.f32.mrb[0].mxu0
    %v2884 = vadd.f32 0.0, %v2883
    %v2885 = vpop.f32.mrb[0].mxu0
    %2886 = vmatprep.mubr.bf16.mxu0 0
    %2887 = vmatmul.mubr.bf16.gmra.mrb[0].mxu0 %v419
    %v2888 = vpop.f32.mrb[0].mxu0
    %v2889 = vadd.f32 0.0, %v2888
    %v2890 = vpop.f32.mrb[0].mxu0
    %v2891 = vpop.f32.mrb[0].mxu0
    %v2892 = vadd.f32 0.0, %v2891
    %v2893 = vpop.f32.mrb[0].mxu0
    %2894 = vmatprep.mubr.bf16.mxu0 0
    %2895 = vmatmul.mubr.bf16.gmra.mrb[0].mxu0 %v422
    %v2896 = vpop.f32.mrb[0].mxu0
    %v2897 = vadd.f32 0.0, %v2896
    %v2898 = vpop.f32.mrb[0].mxu0
    %v2899 = vpop.f32.mrb[0].mxu0
    %v2900 = vadd.f32 0.0, %v2899
    %v2901 = vpop.f32.mrb[0].mxu0
    %2902 = vmatprep.mubr.bf16.mxu0 0
    %2903 = vmatmul.mubr.bf16.gmra.mrb[0].mxu0 %v425
    %v2904 = vpop.f32.mrb[0].mxu0
    %v2905 = vadd.f32 0.0, %v2904
    %v2906 = vpop.f32.mrb[0].mxu0
    %v2907 = vpop.f32.mrb[0].mxu0
    %v2908 = vadd.f32 0.0, %v2907
    %v2909 = vpop.f32.mrb[0].mxu0
    %2910 = vmatprep.mubr.bf16.mxu0 0
    %2911 = vmatmul.mubr.bf16.gmra.mrb[0].mxu0 %v428
    %v2912 = vpop.f32.mrb[0].mxu0
    %v2913 = vadd.f32 0.0, %v2912
    %v2914 = vpop.f32.mrb[0].mxu0
    %v2915 = vpop.f32.mrb[0].mxu0
    %v2916 = vadd.f32 0.0, %v2915
    %v2917 = vpop.f32.mrb[0].mxu0
    %2918 = vmatprep.mubr.bf16.mxu0 0
    %2919 = vmatmul.mubr.bf16.gmra.mrb[0].mxu0 %v431
    %v2920 = vpop.f32.mrb[0].mxu0
    %v2921 = vadd.f32 0.0, %v2920
    %v2922 = vpop.f32.mrb[0].mxu0
    %v2923 = vpop.f32.mrb[0].mxu0
    %v2924 = vadd.f32 0.0, %v2923
    %v2925 = vpop.f32.mrb[0].mxu0
    %2926 = vmatprep.mubr.bf16.mxu0 0
    %2927 = vmatmul.mubr.bf16.gmra.mrb[0].mxu0 %v434
    %v2928 = vpop.f32.mrb[0].mxu0
    %v2929 = vadd.f32 0.0, %v2928
    %v2930 = vpop.f32.mrb[0].mxu0
    %v2931 = vpop.f32.mrb[0].mxu0
    %v2932 = vadd.f32 0.0, %v2931
    %v2933 = vpop.f32.mrb[0].mxu0
    %2934 = vmatprep.mubr.bf16.mxu0 0
    %2935 = vmatmul.mubr.bf16.gmra.mrb[0].mxu0 %v437
    %v2936 = vpop.f32.mrb[0].mxu0
    %v2937 = vadd.f32 0.0, %v2936
    %v2938 = vpop.f32.mrb[0].mxu0
    %v2939 = vpop.f32.mrb[0].mxu0
    %v2940 = vadd.f32 0.0, %v2939
    %v2941 = vpop.f32.mrb[0].mxu0
    %2942 = vmatprep.mubr.bf16.mxu0 0
    %2943 = vmatmul.mubr.bf16.gmra.mrb[0].mxu0 %v440
    %v2944 = vpop.f32.mrb[0].mxu0
    %v2945 = vadd.f32 0.0, %v2944
    %v2946 = vpop.f32.mrb[0].mxu0
    %v2947 = vpop.f32.mrb[0].mxu0
    %v2948 = vadd.f32 0.0, %v2947
    %v2949 = vpop.f32.mrb[0].mxu0
    %2950 = vmatprep.mubr.bf16.mxu0 0
    %2951 = vmatmul.mubr.bf16.gmra.mrb[0].mxu0 %v443
    %v2952 = vpop.f32.mrb[0].mxu0
    %v2953 = vadd.f32 0.0, %v2952
    %v2954 = vpop.f32.mrb[0].mxu0
    %v2955 = vpop.f32.mrb[0].mxu0
    %v2956 = vadd.f32 0.0, %v2955
    %v2957 = vpop.f32.mrb[0].mxu0
    %2958 = vmatprep.mubr.bf16.mxu0 0
    %2959 = vmatmul.mubr.bf16.gmra.mrb[0].mxu0 %v446
    %v2960 = vpop.f32.mrb[0].mxu0
    %v2961 = vadd.f32 0.0, %v2960
    %v2962 = vpop.f32.mrb[0].mxu0
    %v2963 = vpop.f32.mrb[0].mxu0
    %v2964 = vadd.f32 0.0, %v2963
    %v2965 = vpop.f32.mrb[0].mxu0
    %2966 = vmatprep.mubr.bf16.mxu0 0
    %2967 = vmatmul.mubr.bf16.gmra.mrb[0].mxu0 %v449
    %v2968 = vpop.f32.mrb[0].mxu0
    %v2969 = vadd.f32 0.0, %v2968
    %v2970 = vpop.f32.mrb[0].mxu0
    %v2971 = vpop.f32.mrb[0].mxu0
    %v2972 = vadd.f32 0.0, %v2971
    %v2973 = vpop.f32.mrb[0].mxu0
    %2974 = vmatprep.mubr.bf16.mxu0 0
    %2975 = vmatmul.mubr.bf16.gmra.mrb[0].mxu0 %v452
    %v2976 = vpop.f32.mrb[0].mxu0
    %v2977 = vadd.f32 0.0, %v2976
    %v2978 = vpop.f32.mrb[0].mxu0
    %v2979 = vpop.f32.mrb[0].mxu0
    %v2980 = vadd.f32 0.0, %v2979
    %v2981 = vpop.f32.mrb[0].mxu0
    %2982 = vdwg.mxu0
    %v2983 = vrot.slane %v2657, 7
    %v2984 = vrot.slane %v2660, 7
    %v2985 = vrot.slane %v2665, 7
    %v2986 = vrot.slane %v2668, 7
    %v2987 = vrot.slane %v2673, 7
    %v2988 = vrot.slane %v2676, 7
    %v2989 = vrot.slane %v2681, 7
    %v2990 = vrot.slane %v2684, 7
    %v2991 = vrot.slane %v2689, 7
    %v2992 = vrot.slane %v2692, 7
    %v2993 = vrot.slane %v2697, 7
    %v2994 = vrot.slane %v2700, 7
    %v2995 = vrot.slane %v2705, 7
    %v2996 = vrot.slane %v2708, 7
    %v2997 = vrot.slane %v2713, 7
    %v2998 = vrot.slane %v2716, 7
    %v2999 = vrot.slane %v2721, 7
    %v3000 = vrot.slane %v2724, 7
    %v3001 = vrot.slane %v2729, 7
    %v3002 = vrot.slane %v2732, 7
    %v3003 = vrot.slane %v2737, 7
    %v3004 = vrot.slane %v2740, 7
    %v3005 = vrot.slane %v2745, 7
    %v3006 = vrot.slane %v2748, 7
    %v3007 = vrot.slane %v2753, 7
    %v3008 = vrot.slane %v2756, 7
    %v3009 = vrot.slane %v2761, 7
    %v3010 = vrot.slane %v2764, 7
    %v3011 = vrot.slane %v2769, 7
    %v3012 = vrot.slane %v2772, 7
    %v3013 = vrot.slane %v2777, 7
    %v3014 = vrot.slane %v2780, 7
    %v3015 = vrot.slane %v2785, 7
    %v3016 = vrot.slane %v2788, 7
    %v3017 = vrot.slane %v2793, 7
    %v3018 = vrot.slane %v2796, 7
    %v3019 = vrot.slane %v2801, 7
    %v3020 = vrot.slane %v2804, 7
    %v3021 = vrot.slane %v2809, 7
    %v3022 = vrot.slane %v2812, 7
    %v3023 = vrot.slane %v2817, 7
    %v3024 = vrot.slane %v2820, 7
    %v3025 = vrot.slane %v2825, 7
    %v3026 = vrot.slane %v2828, 7
    %v3027 = vrot.slane %v2833, 7
    %v3028 = vrot.slane %v2836, 7
    %v3029 = vrot.slane %v2841, 7
    %v3030 = vrot.slane %v2844, 7
    %v3031 = vrot.slane %v2849, 7
    %v3032 = vrot.slane %v2852, 7
    %v3033 = vrot.slane %v2857, 7
    %v3034 = vrot.slane %v2860, 7
    %v3035 = vrot.slane %v2865, 7
    %v3036 = vrot.slane %v2868, 7
    %v3037 = vrot.slane %v2873, 7
    %v3038 = vrot.slane %v2876, 7
    %v3039 = vrot.slane %v2881, 7
    %v3040 = vrot.slane %v2884, 7
    %v3041 = vrot.slane %v2889, 7
    %v3042 = vrot.slane %v2892, 7
    %v3043 = vrot.slane %v2897, 7
    %v3044 = vrot.slane %v2900, 7
    %v3045 = vrot.slane %v2905, 7
    %v3046 = vrot.slane %v2908, 7
    %v3047 = vrot.slane %v2913, 7
    %v3048 = vrot.slane %v2916, 7
    %v3049 = vrot.slane %v2921, 7
    %v3050 = vrot.slane %v2924, 7
    %v3051 = vrot.slane %v2929, 7
    %v3052 = vrot.slane %v2932, 7
    %v3053 = vrot.slane %v2937, 7
    %v3054 = vrot.slane %v2940, 7
    %v3055 = vrot.slane %v2945, 7
    %v3056 = vrot.slane %v2948, 7
    %v3057 = vrot.slane %v2953, 7
    %v3058 = vrot.slane %v2956, 7
    %v3059 = vrot.slane %v2961, 7
    %v3060 = vrot.slane %v2964, 7
    %v3061 = vrot.slane %v2969, 7
    %v3062 = vrot.slane %v2972, 7
    %v3063 = vrot.slane %v2977, 7
    %v3064 = vrot.slane %v2980, 7
    %v3065 = vsel %vm2440, %v3063, %v3064
    %v3066 = vsel %vm2440, %v3062, %v3063
    %v3067 = vsel %vm2440, %v3061, %v3062
    %v3068 = vsel %vm2440, %v3060, %v3061
    %v3069 = vsel %vm2440, %v3059, %v3060
    %v3070 = vsel %vm2440, %v3058, %v3059
    %v3071 = vsel %vm2440, %v3057, %v3058
    %v3072 = vsel %vm2440, %v3056, %v3057
    %v3073 = vsel %vm2440, %v3055, %v3056
    %v3074 = vsel %vm2440, %v3054, %v3055
    %v3075 = vsel %vm2440, %v3053, %v3054
    %v3076 = vsel %vm2440, %v3052, %v3053
    %v3077 = vsel %vm2440, %v3051, %v3052
    %v3078 = vsel %vm2440, %v3050, %v3051
    %v3079 = vsel %vm2440, %v3049, %v3050
    %v3080 = vsel %vm2440, %v3048, %v3049
    %v3081 = vsel %vm2440, %v3047, %v3048
    %v3082 = vsel %vm2440, %v3046, %v3047
    %v3083 = vsel %vm2440, %v3045, %v3046
    %v3084 = vsel %vm2440, %v3044, %v3045
    %v3085 = vsel %vm2440, %v3043, %v3044
    %v3086 = vsel %vm2440, %v3042, %v3043
    %v3087 = vsel %vm2440, %v3041, %v3042
    %v3088 = vsel %vm2440, %v3040, %v3041
    %v3089 = vsel %vm2440, %v3039, %v3040
    %v3090 = vsel %vm2440, %v3038, %v3039
    %v3091 = vsel %vm2440, %v3037, %v3038
    %v3092 = vsel %vm2440, %v3036, %v3037
    %v3093 = vsel %vm2440, %v3035, %v3036
    %v3094 = vsel %vm2440, %v3034, %v3035
    %v3095 = vsel %vm2440, %v3033, %v3034
    %v3096 = vsel %vm2440, %v3032, %v3033
    %v3097 = vsel %vm2440, %v3031, %v3032
    %v3098 = vsel %vm2440, %v3030, %v3031
    %v3099 = vsel %vm2440, %v3029, %v3030
    %v3100 = vsel %vm2440, %v3028, %v3029
    %v3101 = vsel %vm2440, %v3027, %v3028
    %v3102 = vsel %vm2440, %v3026, %v3027
    %v3103 = vsel %vm2440, %v3025, %v3026
    %v3104 = vsel %vm2440, %v3024, %v3025
    %v3105 = vsel %vm2440, %v3023, %v3024
    %v3106 = vsel %vm2440, %v3022, %v3023
    %v3107 = vsel %vm2440, %v3021, %v3022
    %v3108 = vsel %vm2440, %v3020, %v3021
    %v3109 = vsel %vm2440, %v3019, %v3020
    %v3110 = vsel %vm2440, %v3018, %v3019
    %v3111 = vsel %vm2440, %v3017, %v3018
    %v3112 = vsel %vm2440, %v3016, %v3017
    %v3113 = vsel %vm2440, %v3015, %v3016
    %v3114 = vsel %vm2440, %v3014, %v3015
    %v3115 = vsel %vm2440, %v3013, %v3014
    %v3116 = vsel %vm2440, %v3012, %v3013
    %v3117 = vsel %vm2440, %v3011, %v3012
    %v3118 = vsel %vm2440, %v3010, %v3011
    %v3119 = vsel %vm2440, %v3009, %v3010
    %v3120 = vsel %vm2440, %v3008, %v3009
    %v3121 = vsel %vm2440, %v3007, %v3008
    %v3122 = vsel %vm2440, %v3006, %v3007
    %v3123 = vsel %vm2440, %v3005, %v3006
    %v3124 = vsel %vm2440, %v3004, %v3005
    %v3125 = vsel %vm2440, %v3003, %v3004
    %v3126 = vsel %vm2440, %v3002, %v3003
    %v3127 = vsel %vm2440, %v3001, %v3002
    %v3128 = vsel %vm2440, %v3000, %v3001
    %v3129 = vsel %vm2440, %v2999, %v3000
    %v3130 = vsel %vm2440, %v2998, %v2999
    %v3131 = vsel %vm2440, %v2997, %v2998
    %v3132 = vsel %vm2440, %v2996, %v2997
    %v3133 = vsel %vm2440, %v2995, %v2996
    %v3134 = vsel %vm2440, %v2994, %v2995
    %v3135 = vsel %vm2440, %v2993, %v2994
    %v3136 = vsel %vm2440, %v2992, %v2993
    %v3137 = vsel %vm2440, %v2991, %v2992
    %v3138 = vsel %vm2440, %v2990, %v2991
    %v3139 = vsel %vm2440, %v2989, %v2990
    %v3140 = vsel %vm2440, %v2988, %v2989
    %v3141 = vsel %vm2440, %v2987, %v2988
    %v3142 = vsel %vm2440, %v2986, %v2987
    %v3143 = vsel %vm2440, %v2985, %v2986
    %v3144 = vsel %vm2440, %v2984, %v2985
    %v3145 = vsel %vm2440, %v2983, %v2984
    %v3146 = vsel %vm2440, %v3064, %v2983
    %v3147 = vadd.f32 %v2523, %v3146
    %v3148 = vadd.f32 %v2524, %v3145
    %v3149 = vadd.f32 %v2525, %v3144
    %v3150 = vadd.f32 %v2526, %v3143
    %v3151 = vadd.f32 %v2527, %v3142
    %v3152 = vadd.f32 %v2528, %v3141
    %v3153 = vadd.f32 %v2529, %v3140
    %v3154 = vadd.f32 %v2530, %v3139
    %v3155 = vadd.f32 %v2531, %v3138
    %v3156 = vadd.f32 %v2532, %v3137
    %v3157 = vadd.f32 %v2533, %v3136
    %v3158 = vadd.f32 %v2534, %v3135
    %v3159 = vadd.f32 %v2535, %v3134
    %v3160 = vadd.f32 %v2536, %v3133
    %v3161 = vadd.f32 %v2537, %v3132
    %v3162 = vadd.f32 %v2538, %v3131
    %v3163 = vadd.f32 %v2539, %v3130
    %v3164 = vadd.f32 %v2540, %v3129
    %v3165 = vadd.f32 %v2541, %v3128
    %v3166 = vadd.f32 %v2542, %v3127
    %v3167 = vadd.f32 %v2543, %v3126
    %v3168 = vadd.f32 %v2544, %v3125
    %v3169 = vadd.f32 %v2545, %v3124
    %v3170 = vadd.f32 %v2546, %v3123
    %v3171 = vadd.f32 %v2547, %v3122
    %v3172 = vadd.f32 %v2548, %v3121
    %v3173 = vadd.f32 %v2549, %v3120
    %v3174 = vadd.f32 %v2550, %v3119
    %v3175 = vadd.f32 %v2551, %v3118
    %v3176 = vadd.f32 %v2552, %v3117
    %v3177 = vadd.f32 %v2553, %v3116
    %v3178 = vadd.f32 %v2554, %v3115
    %v3179 = vadd.f32 %v2555, %v3114
    %v3180 = vadd.f32 %v2556, %v3113
    %v3181 = vadd.f32 %v2557, %v3112
    %v3182 = vadd.f32 %v2558, %v3111
    %v3183 = vadd.f32 %v2559, %v3110
    %v3184 = vadd.f32 %v2560, %v3109
    %v3185 = vadd.f32 %v2561, %v3108
    %v3186 = vadd.f32 %v2562, %v3107
    %v3187 = vadd.f32 %v2563, %v3106
    %v3188 = vadd.f32 %v2564, %v3105
    %v3189 = vadd.f32 %v2565, %v3104
    %v3190 = vadd.f32 %v2566, %v3103
    %v3191 = vadd.f32 %v2567, %v3102
    %v3192 = vadd.f32 %v2568, %v3101
    %v3193 = vadd.f32 %v2569, %v3100
    %v3194 = vadd.f32 %v2570, %v3099
    %v3195 = vadd.f32 %v2571, %v3098
    %v3196 = vadd.f32 %v2572, %v3097
    %v3197 = vadd.f32 %v2573, %v3096
    %v3198 = vadd.f32 %v2574, %v3095
    %v3199 = vadd.f32 %v2575, %v3094
    %v3200 = vadd.f32 %v2576, %v3093
    %v3201 = vadd.f32 %v2577, %v3092
    %v3202 = vadd.f32 %v2578, %v3091
    %v3203 = vadd.f32 %v2579, %v3090
    %v3204 = vadd.f32 %v2580, %v3089
    %v3205 = vadd.f32 %v2581, %v3088
    %v3206 = vadd.f32 %v2582, %v3087
    %v3207 = vadd.f32 %v2583, %v3086
    %v3208 = vadd.f32 %v2584, %v3085
    %v3209 = vadd.f32 %v2585, %v3084
    %v3210 = vadd.f32 %v2586, %v3083
    %v3211 = vadd.f32 %v2587, %v3082
    %v3212 = vadd.f32 %v2588, %v3081
    %v3213 = vadd.f32 %v2589, %v3080
    %v3214 = vadd.f32 %v2590, %v3079
    %v3215 = vadd.f32 %v2591, %v3078
    %v3216 = vadd.f32 %v2592, %v3077
    %v3217 = vadd.f32 %v2593, %v3076
    %v3218 = vadd.f32 %v2594, %v3075
    %v3219 = vadd.f32 %v2595, %v3074
    %v3220 = vadd.f32 %v2596, %v3073
    %v3221 = vadd.f32 %v2597, %v3072
    %v3222 = vadd.f32 %v2598, %v3071
    %v3223 = vadd.f32 %v2599, %v3070
    %v3224 = vadd.f32 %v2600, %v3069
    %v3225 = vadd.f32 %v2601, %v3068
    %v3226 = vadd.f32 %v2602, %v3067
    %v3227 = vadd.f32 %v2603, %v3066
    %v3228 = vadd.f32 %v2604, %v3065
    %s3229 = scalar_lea.vmem %s1, 80
    %v3230 = vld [vmem:[%s3229] sm:$0xf]
    %v3231 = vld [vmem:[%s3229 + $0x4] sm:$0xf]
    %v3232 = vld [vmem:[%s3229 + $0x8] sm:$0xf]
    %v3233 = vld [vmem:[%s3229 + $0xc] sm:$0xf]
    %v3238 = vunpack.c.l.b16 %v3230
    %v3239 = vunpack.c.l.b16 %v3231
    %v3240 = vunpack.c.l.b16 %v3232
    %v3241 = vunpack.c.l.b16 %v3233
    %v3242 = vpack.c.b16 %v3239, %v3238
    %v3243 = vpack.c.b16 %v3241, %v3240
    %3246 = vmatprep.subr.bf16.mxu0 0
    %3247 = vmatpush1.bf16.msra.mxu0 %v3242
    %3248 = vmatprep.subr.bf16.mxu0 0
    %3249 = vmatpush1.bf16.msra.mxu0 %v3243
    %3250 = vmatprep.subr.bf16.mxu0 0
    %3251 = vmatpush1.bf16.msra.mxu0 0
    %3252 = vmatprep.subr.bf16.mxu0 0
    %3253 = vmatpush1.bf16.msra.mxu0 0
    %3254 = vmatprep.subr.bf16.mxu0 0
    %3255 = vmatpush1.bf16.msra.mxu0 0
    %3256 = vmatprep.subr.bf16.mxu0 0
    %3257 = vmatpush1.bf16.msra.mxu0 0
    %3258 = vmatprep.subr.bf16.mxu0 0
    %3259 = vmatpush1.bf16.msra.mxu0 0
    %3260 = vmatprep.subr.bf16.mxu0 0
    %3261 = vmatpush1.bf16.msra.mxu0 0
    %3262 = vmatprep.subr.bf16.mxu0 0
    %3263 = vmatpush1.bf16.msra.mxu0 0
    %3264 = vmatprep.subr.bf16.mxu0 0
    %3265 = vmatpush1.bf16.msra.mxu0 0
    %3266 = vmatprep.subr.bf16.mxu0 0
    %3267 = vmatpush1.bf16.msra.mxu0 0
    %3268 = vmatprep.subr.bf16.mxu0 0
    %3269 = vmatpush1.bf16.msra.mxu0 0
    %3270 = vmatprep.subr.bf16.mxu0 0
    %3271 = vmatpush1.bf16.msra.mxu0 0
    %3272 = vmatprep.subr.bf16.mxu0 0
    %3273 = vmatpush1.bf16.msra.mxu0 0
    %3274 = vmatprep.subr.bf16.mxu0 0
    %3275 = vmatpush1.bf16.msra.mxu0 0
    %3276 = vmatprep.subr.bf16.mxu0 0
    %3277 = vmatpush1.bf16.msra.mxu0 0
    %3278 = vmatprep.mubr.bf16.mxu0 0
    %3279 = vmatmul.mubr.bf16.gmra.mrb[0].mxu0 %v332
    %v3280 = vpop.f32.mrb[0].mxu0
    %v3281 = vadd.f32 0.0, %v3280
    %v3282 = vpop.f32.mrb[0].mxu0
    %v3283 = vpop.f32.mrb[0].mxu0
    %v3284 = vadd.f32 0.0, %v3283
    %v3285 = vpop.f32.mrb[0].mxu0
    %3286 = vmatprep.mubr.bf16.mxu0 0
    %3287 = vmatmul.mubr.bf16.gmra.mrb[0].mxu0 %v335
    %v3288 = vpop.f32.mrb[0].mxu0
    %v3289 = vadd.f32 0.0, %v3288
    %v3290 = vpop.f32.mrb[0].mxu0
    %v3291 = vpop.f32.mrb[0].mxu0
    %v3292 = vadd.f32 0.0, %v3291
    %v3293 = vpop.f32.mrb[0].mxu0
    %3294 = vmatprep.mubr.bf16.mxu0 0
    %3295 = vmatmul.mubr.bf16.gmra.mrb[0].mxu0 %v338
    %v3296 = vpop.f32.mrb[0].mxu0
    %v3297 = vadd.f32 0.0, %v3296
    %v3298 = vpop.f32.mrb[0].mxu0
    %v3299 = vpop.f32.mrb[0].mxu0
    %v3300 = vadd.f32 0.0, %v3299
    %v3301 = vpop.f32.mrb[0].mxu0
    %3302 = vmatprep.mubr.bf16.mxu0 0
    %3303 = vmatmul.mubr.bf16.gmra.mrb[0].mxu0 %v341
    %v3304 = vpop.f32.mrb[0].mxu0
    %v3305 = vadd.f32 0.0, %v3304
    %v3306 = vpop.f32.mrb[0].mxu0
    %v3307 = vpop.f32.mrb[0].mxu0
    %v3308 = vadd.f32 0.0, %v3307
    %v3309 = vpop.f32.mrb[0].mxu0
    %3310 = vmatprep.mubr.bf16.mxu0 0
    %3311 = vmatmul.mubr.bf16.gmra.mrb[0].mxu0 %v344
    %v3312 = vpop.f32.mrb[0].mxu0
    %v3313 = vadd.f32 0.0, %v3312
    %v3314 = vpop.f32.mrb[0].mxu0
    %v3315 = vpop.f32.mrb[0].mxu0
    %v3316 = vadd.f32 0.0, %v3315
    %v3317 = vpop.f32.mrb[0].mxu0
    %3318 = vmatprep.mubr.bf16.mxu0 0
    %3319 = vmatmul.mubr.bf16.gmra.mrb[0].mxu0 %v347
    %v3320 = vpop.f32.mrb[0].mxu0
    %v3321 = vadd.f32 0.0, %v3320
    %v3322 = vpop.f32.mrb[0].mxu0
    %v3323 = vpop.f32.mrb[0].mxu0
    %v3324 = vadd.f32 0.0, %v3323
    %v3325 = vpop.f32.mrb[0].mxu0
    %3326 = vmatprep.mubr.bf16.mxu0 0
    %3327 = vmatmul.mubr.bf16.gmra.mrb[0].mxu0 %v350
    %v3328 = vpop.f32.mrb[0].mxu0
    %v3329 = vadd.f32 0.0, %v3328
    %v3330 = vpop.f32.mrb[0].mxu0
    %v3331 = vpop.f32.mrb[0].mxu0
    %v3332 = vadd.f32 0.0, %v3331
    %v3333 = vpop.f32.mrb[0].mxu0
    %3334 = vmatprep.mubr.bf16.mxu0 0
    %3335 = vmatmul.mubr.bf16.gmra.mrb[0].mxu0 %v353
    %v3336 = vpop.f32.mrb[0].mxu0
    %v3337 = vadd.f32 0.0, %v3336
    %v3338 = vpop.f32.mrb[0].mxu0
    %v3339 = vpop.f32.mrb[0].mxu0
    %v3340 = vadd.f32 0.0, %v3339
    %v3341 = vpop.f32.mrb[0].mxu0
    %3342 = vmatprep.mubr.bf16.mxu0 0
    %3343 = vmatmul.mubr.bf16.gmra.mrb[0].mxu0 %v356
    %v3344 = vpop.f32.mrb[0].mxu0
    %v3345 = vadd.f32 0.0, %v3344
    %v3346 = vpop.f32.mrb[0].mxu0
    %v3347 = vpop.f32.mrb[0].mxu0
    %v3348 = vadd.f32 0.0, %v3347
    %v3349 = vpop.f32.mrb[0].mxu0
    %3350 = vmatprep.mubr.bf16.mxu0 0
    %3351 = vmatmul.mubr.bf16.gmra.mrb[0].mxu0 %v359
    %v3352 = vpop.f32.mrb[0].mxu0
    %v3353 = vadd.f32 0.0, %v3352
    %v3354 = vpop.f32.mrb[0].mxu0
    %v3355 = vpop.f32.mrb[0].mxu0
    %v3356 = vadd.f32 0.0, %v3355
    %v3357 = vpop.f32.mrb[0].mxu0
    %3358 = vmatprep.mubr.bf16.mxu0 0
    %3359 = vmatmul.mubr.bf16.gmra.mrb[0].mxu0 %v362
    %v3360 = vpop.f32.mrb[0].mxu0
    %v3361 = vadd.f32 0.0, %v3360
    %v3362 = vpop.f32.mrb[0].mxu0
    %v3363 = vpop.f32.mrb[0].mxu0
    %v3364 = vadd.f32 0.0, %v3363
    %v3365 = vpop.f32.mrb[0].mxu0
    %3366 = vmatprep.mubr.bf16.mxu0 0
    %3367 = vmatmul.mubr.bf16.gmra.mrb[0].mxu0 %v365
    %v3368 = vpop.f32.mrb[0].mxu0
    %v3369 = vadd.f32 0.0, %v3368
    %v3370 = vpop.f32.mrb[0].mxu0
    %v3371 = vpop.f32.mrb[0].mxu0
    %v3372 = vadd.f32 0.0, %v3371
    %v3373 = vpop.f32.mrb[0].mxu0
    %3374 = vmatprep.mubr.bf16.mxu0 0
    %3375 = vmatmul.mubr.bf16.gmra.mrb[0].mxu0 %v368
    %v3376 = vpop.f32.mrb[0].mxu0
    %v3377 = vadd.f32 0.0, %v3376
    %v3378 = vpop.f32.mrb[0].mxu0
    %v3379 = vpop.f32.mrb[0].mxu0
    %v3380 = vadd.f32 0.0, %v3379
    %v3381 = vpop.f32.mrb[0].mxu0
    %3382 = vmatprep.mubr.bf16.mxu0 0
    %3383 = vmatmul.mubr.bf16.gmra.mrb[0].mxu0 %v371
    %v3384 = vpop.f32.mrb[0].mxu0
    %v3385 = vadd.f32 0.0, %v3384
    %v3386 = vpop.f32.mrb[0].mxu0
    %v3387 = vpop.f32.mrb[0].mxu0
    %v3388 = vadd.f32 0.0, %v3387
    %v3389 = vpop.f32.mrb[0].mxu0
    %3390 = vmatprep.mubr.bf16.mxu0 0
    %3391 = vmatmul.mubr.bf16.gmra.mrb[0].mxu0 %v374
    %v3392 = vpop.f32.mrb[0].mxu0
    %v3393 = vadd.f32 0.0, %v3392
    %v3394 = vpop.f32.mrb[0].mxu0
    %v3395 = vpop.f32.mrb[0].mxu0
    %v3396 = vadd.f32 0.0, %v3395
    %v3397 = vpop.f32.mrb[0].mxu0
    %3398 = vmatprep.mubr.bf16.mxu0 0
    %3399 = vmatmul.mubr.bf16.gmra.mrb[0].mxu0 %v377
    %v3400 = vpop.f32.mrb[0].mxu0
    %v3401 = vadd.f32 0.0, %v3400
    %v3402 = vpop.f32.mrb[0].mxu0
    %v3403 = vpop.f32.mrb[0].mxu0
    %v3404 = vadd.f32 0.0, %v3403
    %v3405 = vpop.f32.mrb[0].mxu0
    %3406 = vmatprep.mubr.bf16.mxu0 0
    %3407 = vmatmul.mubr.bf16.gmra.mrb[0].mxu0 %v380
    %v3408 = vpop.f32.mrb[0].mxu0
    %v3409 = vadd.f32 0.0, %v3408
    %v3410 = vpop.f32.mrb[0].mxu0
    %v3411 = vpop.f32.mrb[0].mxu0
    %v3412 = vadd.f32 0.0, %v3411
    %v3413 = vpop.f32.mrb[0].mxu0
    %3414 = vmatprep.mubr.bf16.mxu0 0
    %3415 = vmatmul.mubr.bf16.gmra.mrb[0].mxu0 %v383
    %v3416 = vpop.f32.mrb[0].mxu0
    %v3417 = vadd.f32 0.0, %v3416
    %v3418 = vpop.f32.mrb[0].mxu0
    %v3419 = vpop.f32.mrb[0].mxu0
    %v3420 = vadd.f32 0.0, %v3419
    %v3421 = vpop.f32.mrb[0].mxu0
    %3422 = vmatprep.mubr.bf16.mxu0 0
    %3423 = vmatmul.mubr.bf16.gmra.mrb[0].mxu0 %v386
    %v3424 = vpop.f32.mrb[0].mxu0
    %v3425 = vadd.f32 0.0, %v3424
    %v3426 = vpop.f32.mrb[0].mxu0
    %v3427 = vpop.f32.mrb[0].mxu0
    %v3428 = vadd.f32 0.0, %v3427
    %v3429 = vpop.f32.mrb[0].mxu0
    %3430 = vmatprep.mubr.bf16.mxu0 0
    %3431 = vmatmul.mubr.bf16.gmra.mrb[0].mxu0 %v389
    %v3432 = vpop.f32.mrb[0].mxu0
    %v3433 = vadd.f32 0.0, %v3432
    %v3434 = vpop.f32.mrb[0].mxu0
    %v3435 = vpop.f32.mrb[0].mxu0
    %v3436 = vadd.f32 0.0, %v3435
    %v3437 = vpop.f32.mrb[0].mxu0
    %3438 = vmatprep.mubr.bf16.mxu0 0
    %3439 = vmatmul.mubr.bf16.gmra.mrb[0].mxu0 %v392
    %v3440 = vpop.f32.mrb[0].mxu0
    %v3441 = vadd.f32 0.0, %v3440
    %v3442 = vpop.f32.mrb[0].mxu0
    %v3443 = vpop.f32.mrb[0].mxu0
    %v3444 = vadd.f32 0.0, %v3443
    %v3445 = vpop.f32.mrb[0].mxu0
    %3446 = vmatprep.mubr.bf16.mxu0 0
    %3447 = vmatmul.mubr.bf16.gmra.mrb[0].mxu0 %v395
    %v3448 = vpop.f32.mrb[0].mxu0
    %v3449 = vadd.f32 0.0, %v3448
    %v3450 = vpop.f32.mrb[0].mxu0
    %v3451 = vpop.f32.mrb[0].mxu0
    %v3452 = vadd.f32 0.0, %v3451
    %v3453 = vpop.f32.mrb[0].mxu0
    %3454 = vmatprep.mubr.bf16.mxu0 0
    %3455 = vmatmul.mubr.bf16.gmra.mrb[0].mxu0 %v398
    %v3456 = vpop.f32.mrb[0].mxu0
    %v3457 = vadd.f32 0.0, %v3456
    %v3458 = vpop.f32.mrb[0].mxu0
    %v3459 = vpop.f32.mrb[0].mxu0
    %v3460 = vadd.f32 0.0, %v3459
    %v3461 = vpop.f32.mrb[0].mxu0
    %3462 = vmatprep.mubr.bf16.mxu0 0
    %3463 = vmatmul.mubr.bf16.gmra.mrb[0].mxu0 %v401
    %v3464 = vpop.f32.mrb[0].mxu0
    %v3465 = vadd.f32 0.0, %v3464
    %v3466 = vpop.f32.mrb[0].mxu0
    %v3467 = vpop.f32.mrb[0].mxu0
    %v3468 = vadd.f32 0.0, %v3467
    %v3469 = vpop.f32.mrb[0].mxu0
    %3470 = vmatprep.mubr.bf16.mxu0 0
    %3471 = vmatmul.mubr.bf16.gmra.mrb[0].mxu0 %v404
    %v3472 = vpop.f32.mrb[0].mxu0
    %v3473 = vadd.f32 0.0, %v3472
    %v3474 = vpop.f32.mrb[0].mxu0
    %v3475 = vpop.f32.mrb[0].mxu0
    %v3476 = vadd.f32 0.0, %v3475
    %v3477 = vpop.f32.mrb[0].mxu0
    %3478 = vmatprep.mubr.bf16.mxu0 0
    %3479 = vmatmul.mubr.bf16.gmra.mrb[0].mxu0 %v407
    %v3480 = vpop.f32.mrb[0].mxu0
    %v3481 = vadd.f32 0.0, %v3480
    %v3482 = vpop.f32.mrb[0].mxu0
    %v3483 = vpop.f32.mrb[0].mxu0
    %v3484 = vadd.f32 0.0, %v3483
    %v3485 = vpop.f32.mrb[0].mxu0
    %3486 = vmatprep.mubr.bf16.mxu0 0
    %3487 = vmatmul.mubr.bf16.gmra.mrb[0].mxu0 %v410
    %v3488 = vpop.f32.mrb[0].mxu0
    %v3489 = vadd.f32 0.0, %v3488
    %v3490 = vpop.f32.mrb[0].mxu0
    %v3491 = vpop.f32.mrb[0].mxu0
    %v3492 = vadd.f32 0.0, %v3491
    %v3493 = vpop.f32.mrb[0].mxu0
    %3494 = vmatprep.mubr.bf16.mxu0 0
    %3495 = vmatmul.mubr.bf16.gmra.mrb[0].mxu0 %v413
    %v3496 = vpop.f32.mrb[0].mxu0
    %v3497 = vadd.f32 0.0, %v3496
    %v3498 = vpop.f32.mrb[0].mxu0
    %v3499 = vpop.f32.mrb[0].mxu0
    %v3500 = vadd.f32 0.0, %v3499
    %v3501 = vpop.f32.mrb[0].mxu0
    %3502 = vmatprep.mubr.bf16.mxu0 0
    %3503 = vmatmul.mubr.bf16.gmra.mrb[0].mxu0 %v416
    %v3504 = vpop.f32.mrb[0].mxu0
    %v3505 = vadd.f32 0.0, %v3504
    %v3506 = vpop.f32.mrb[0].mxu0
    %v3507 = vpop.f32.mrb[0].mxu0
    %v3508 = vadd.f32 0.0, %v3507
    %v3509 = vpop.f32.mrb[0].mxu0
    %3510 = vmatprep.mubr.bf16.mxu0 0
    %3511 = vmatmul.mubr.bf16.gmra.mrb[0].mxu0 %v419
    %v3512 = vpop.f32.mrb[0].mxu0
    %v3513 = vadd.f32 0.0, %v3512
    %v3514 = vpop.f32.mrb[0].mxu0
    %v3515 = vpop.f32.mrb[0].mxu0
    %v3516 = vadd.f32 0.0, %v3515
    %v3517 = vpop.f32.mrb[0].mxu0
    %3518 = vmatprep.mubr.bf16.mxu0 0
    %3519 = vmatmul.mubr.bf16.gmra.mrb[0].mxu0 %v422
    %v3520 = vpop.f32.mrb[0].mxu0
    %v3521 = vadd.f32 0.0, %v3520
    %v3522 = vpop.f32.mrb[0].mxu0
    %v3523 = vpop.f32.mrb[0].mxu0
    %v3524 = vadd.f32 0.0, %v3523
    %v3525 = vpop.f32.mrb[0].mxu0
    %3526 = vmatprep.mubr.bf16.mxu0 0
    %3527 = vmatmul.mubr.bf16.gmra.mrb[0].mxu0 %v425
    %v3528 = vpop.f32.mrb[0].mxu0
    %v3529 = vadd.f32 0.0, %v3528
    %v3530 = vpop.f32.mrb[0].mxu0
    %v3531 = vpop.f32.mrb[0].mxu0
    %v3532 = vadd.f32 0.0, %v3531
    %v3533 = vpop.f32.mrb[0].mxu0
    %3534 = vmatprep.mubr.bf16.mxu0 0
    %3535 = vmatmul.mubr.bf16.gmra.mrb[0].mxu0 %v428
    %v3536 = vpop.f32.mrb[0].mxu0
    %v3537 = vadd.f32 0.0, %v3536
    %v3538 = vpop.f32.mrb[0].mxu0
    %v3539 = vpop.f32.mrb[0].mxu0
    %v3540 = vadd.f32 0.0, %v3539
    %v3541 = vpop.f32.mrb[0].mxu0
    %3542 = vmatprep.mubr.bf16.mxu0 0
    %3543 = vmatmul.mubr.bf16.gmra.mrb[0].mxu0 %v431
    %v3544 = vpop.f32.mrb[0].mxu0
    %v3545 = vadd.f32 0.0, %v3544
    %v3546 = vpop.f32.mrb[0].mxu0
    %v3547 = vpop.f32.mrb[0].mxu0
    %v3548 = vadd.f32 0.0, %v3547
    %v3549 = vpop.f32.mrb[0].mxu0
    %3550 = vmatprep.mubr.bf16.mxu0 0
    %3551 = vmatmul.mubr.bf16.gmra.mrb[0].mxu0 %v434
    %v3552 = vpop.f32.mrb[0].mxu0
    %v3553 = vadd.f32 0.0, %v3552
    %v3554 = vpop.f32.mrb[0].mxu0
    %v3555 = vpop.f32.mrb[0].mxu0
    %v3556 = vadd.f32 0.0, %v3555
    %v3557 = vpop.f32.mrb[0].mxu0
    %3558 = vmatprep.mubr.bf16.mxu0 0
    %3559 = vmatmul.mubr.bf16.gmra.mrb[0].mxu0 %v437
    %v3560 = vpop.f32.mrb[0].mxu0
    %v3561 = vadd.f32 0.0, %v3560
    %v3562 = vpop.f32.mrb[0].mxu0
    %v3563 = vpop.f32.mrb[0].mxu0
    %v3564 = vadd.f32 0.0, %v3563
    %v3565 = vpop.f32.mrb[0].mxu0
    %3566 = vmatprep.mubr.bf16.mxu0 0
    %3567 = vmatmul.mubr.bf16.gmra.mrb[0].mxu0 %v440
    %v3568 = vpop.f32.mrb[0].mxu0
    %v3569 = vadd.f32 0.0, %v3568
    %v3570 = vpop.f32.mrb[0].mxu0
    %v3571 = vpop.f32.mrb[0].mxu0
    %v3572 = vadd.f32 0.0, %v3571
    %v3573 = vpop.f32.mrb[0].mxu0
    %3574 = vmatprep.mubr.bf16.mxu0 0
    %3575 = vmatmul.mubr.bf16.gmra.mrb[0].mxu0 %v443
    %v3576 = vpop.f32.mrb[0].mxu0
    %v3577 = vadd.f32 0.0, %v3576
    %v3578 = vpop.f32.mrb[0].mxu0
    %v3579 = vpop.f32.mrb[0].mxu0
    %v3580 = vadd.f32 0.0, %v3579
    %v3581 = vpop.f32.mrb[0].mxu0
    %3582 = vmatprep.mubr.bf16.mxu0 0
    %3583 = vmatmul.mubr.bf16.gmra.mrb[0].mxu0 %v446
    %v3584 = vpop.f32.mrb[0].mxu0
    %v3585 = vadd.f32 0.0, %v3584
    %v3586 = vpop.f32.mrb[0].mxu0
    %v3587 = vpop.f32.mrb[0].mxu0
    %v3588 = vadd.f32 0.0, %v3587
    %v3589 = vpop.f32.mrb[0].mxu0
    %3590 = vmatprep.mubr.bf16.mxu0 0
    %3591 = vmatmul.mubr.bf16.gmra.mrb[0].mxu0 %v449
    %v3592 = vpop.f32.mrb[0].mxu0
    %v3593 = vadd.f32 0.0, %v3592
    %v3594 = vpop.f32.mrb[0].mxu0
    %v3595 = vpop.f32.mrb[0].mxu0
    %v3596 = vadd.f32 0.0, %v3595
    %v3597 = vpop.f32.mrb[0].mxu0
    %3598 = vmatprep.mubr.bf16.mxu0 0
    %3599 = vmatmul.mubr.bf16.gmra.mrb[0].mxu0 %v452
    %v3600 = vpop.f32.mrb[0].mxu0
    %v3601 = vadd.f32 0.0, %v3600
    %v3602 = vpop.f32.mrb[0].mxu0
    %v3603 = vpop.f32.mrb[0].mxu0
    %v3604 = vadd.f32 0.0, %v3603
    %v3605 = vpop.f32.mrb[0].mxu0
    %3606 = vdwg.mxu0
    %v3607 = vrot.slane %v3281, 1
    %v3608 = vrot.slane %v3284, 1
    %v3609 = vrot.slane %v3289, 1
    %v3610 = vrot.slane %v3292, 1
    %v3611 = vrot.slane %v3297, 1
    %v3612 = vrot.slane %v3300, 1
    %v3613 = vrot.slane %v3305, 1
    %v3614 = vrot.slane %v3308, 1
    %v3615 = vrot.slane %v3313, 1
    %v3616 = vrot.slane %v3316, 1
    %v3617 = vrot.slane %v3321, 1
    %v3618 = vrot.slane %v3324, 1
    %v3619 = vrot.slane %v3329, 1
    %v3620 = vrot.slane %v3332, 1
    %v3621 = vrot.slane %v3337, 1
    %v3622 = vrot.slane %v3340, 1
    %v3623 = vrot.slane %v3345, 1
    %v3624 = vrot.slane %v3348, 1
    %v3625 = vrot.slane %v3353, 1
    %v3626 = vrot.slane %v3356, 1
    %v3627 = vrot.slane %v3361, 1
    %v3628 = vrot.slane %v3364, 1
    %v3629 = vrot.slane %v3369, 1
    %v3630 = vrot.slane %v3372, 1
    %v3631 = vrot.slane %v3377, 1
    %v3632 = vrot.slane %v3380, 1
    %v3633 = vrot.slane %v3385, 1
    %v3634 = vrot.slane %v3388, 1
    %v3635 = vrot.slane %v3393, 1
    %v3636 = vrot.slane %v3396, 1
    %v3637 = vrot.slane %v3401, 1
    %v3638 = vrot.slane %v3404, 1
    %v3639 = vrot.slane %v3409, 1
    %v3640 = vrot.slane %v3412, 1
    %v3641 = vrot.slane %v3417, 1
    %v3642 = vrot.slane %v3420, 1
    %v3643 = vrot.slane %v3425, 1
    %v3644 = vrot.slane %v3428, 1
    %v3645 = vrot.slane %v3433, 1
    %v3646 = vrot.slane %v3436, 1
    %v3647 = vrot.slane %v3441, 1
    %v3648 = vrot.slane %v3444, 1
    %v3649 = vrot.slane %v3449, 1
    %v3650 = vrot.slane %v3452, 1
    %v3651 = vrot.slane %v3457, 1
    %v3652 = vrot.slane %v3460, 1
    %v3653 = vrot.slane %v3465, 1
    %v3654 = vrot.slane %v3468, 1
    %v3655 = vrot.slane %v3473, 1
    %v3656 = vrot.slane %v3476, 1
    %v3657 = vrot.slane %v3481, 1
    %v3658 = vrot.slane %v3484, 1
    %v3659 = vrot.slane %v3489, 1
    %v3660 = vrot.slane %v3492, 1
    %v3661 = vrot.slane %v3497, 1
    %v3662 = vrot.slane %v3500, 1
    %v3663 = vrot.slane %v3505, 1
    %v3664 = vrot.slane %v3508, 1
    %v3665 = vrot.slane %v3513, 1
    %v3666 = vrot.slane %v3516, 1
    %v3667 = vrot.slane %v3521, 1
    %v3668 = vrot.slane %v3524, 1
    %v3669 = vrot.slane %v3529, 1
    %v3670 = vrot.slane %v3532, 1
    %v3671 = vrot.slane %v3537, 1
    %v3672 = vrot.slane %v3540, 1
    %v3673 = vrot.slane %v3545, 1
    %v3674 = vrot.slane %v3548, 1
    %v3675 = vrot.slane %v3553, 1
    %v3676 = vrot.slane %v3556, 1
    %v3677 = vrot.slane %v3561, 1
    %v3678 = vrot.slane %v3564, 1
    %v3679 = vrot.slane %v3569, 1
    %v3680 = vrot.slane %v3572, 1
    %v3681 = vrot.slane %v3577, 1
    %v3682 = vrot.slane %v3580, 1
    %v3683 = vrot.slane %v3585, 1
    %v3684 = vrot.slane %v3588, 1
    %v3685 = vrot.slane %v3593, 1
    %v3686 = vrot.slane %v3596, 1
    %v3687 = vrot.slane %v3601, 1
    %v3688 = vrot.slane %v3604, 1
    %vm3689 = vcmp.lt.s32.totalorder %v898, 7
    %v3690 = vsel %vm3689, %v3687, %v3688
    %v3691 = vsel %vm3689, %v3686, %v3687
    %v3692 = vsel %vm3689, %v3685, %v3686
    %v3693 = vsel %vm3689, %v3684, %v3685
    %v3694 = vsel %vm3689, %v3683, %v3684
    %v3695 = vsel %vm3689, %v3682, %v3683
    %v3696 = vsel %vm3689, %v3681, %v3682
    %v3697 = vsel %vm3689, %v3680, %v3681
    %v3698 = vsel %vm3689, %v3679, %v3680
    %v3699 = vsel %vm3689, %v3678, %v3679
    %v3700 = vsel %vm3689, %v3677, %v3678
    %v3701 = vsel %vm3689, %v3676, %v3677
    %v3702 = vsel %vm3689, %v3675, %v3676
    %v3703 = vsel %vm3689, %v3674, %v3675
    %v3704 = vsel %vm3689, %v3673, %v3674
    %v3705 = vsel %vm3689, %v3672, %v3673
    %v3706 = vsel %vm3689, %v3671, %v3672
    %v3707 = vsel %vm3689, %v3670, %v3671
    %v3708 = vsel %vm3689, %v3669, %v3670
    %v3709 = vsel %vm3689, %v3668, %v3669
    %v3710 = vsel %vm3689, %v3667, %v3668
    %v3711 = vsel %vm3689, %v3666, %v3667
    %v3712 = vsel %vm3689, %v3665, %v3666
    %v3713 = vsel %vm3689, %v3664, %v3665
    %v3714 = vsel %vm3689, %v3663, %v3664
    %v3715 = vsel %vm3689, %v3662, %v3663
    %v3716 = vsel %vm3689, %v3661, %v3662
    %v3717 = vsel %vm3689, %v3660, %v3661
    %v3718 = vsel %vm3689, %v3659, %v3660
    %v3719 = vsel %vm3689, %v3658, %v3659
    %v3720 = vsel %vm3689, %v3657, %v3658
    %v3721 = vsel %vm3689, %v3656, %v3657
    %v3722 = vsel %vm3689, %v3655, %v3656
    %v3723 = vsel %vm3689, %v3654, %v3655
    %v3724 = vsel %vm3689, %v3653, %v3654
    %v3725 = vsel %vm3689, %v3652, %v3653
    %v3726 = vsel %vm3689, %v3651, %v3652
    %v3727 = vsel %vm3689, %v3650, %v3651
    %v3728 = vsel %vm3689, %v3649, %v3650
    %v3729 = vsel %vm3689, %v3648, %v3649
    %v3730 = vsel %vm3689, %v3647, %v3648
    %v3731 = vsel %vm3689, %v3646, %v3647
    %v3732 = vsel %vm3689, %v3645, %v3646
    %v3733 = vsel %vm3689, %v3644, %v3645
    %v3734 = vsel %vm3689, %v3643, %v3644
    %v3735 = vsel %vm3689, %v3642, %v3643
    %v3736 = vsel %vm3689, %v3641, %v3642
    %v3737 = vsel %vm3689, %v3640, %v3641
    %v3738 = vsel %vm3689, %v3639, %v3640
    %v3739 = vsel %vm3689, %v3638, %v3639
    %v3740 = vsel %vm3689, %v3637, %v3638
    %v3741 = vsel %vm3689, %v3636, %v3637
    %v3742 = vsel %vm3689, %v3635, %v3636
    %v3743 = vsel %vm3689, %v3634, %v3635
    %v3744 = vsel %vm3689, %v3633, %v3634
    %v3745 = vsel %vm3689, %v3632, %v3633
    %v3746 = vsel %vm3689, %v3631, %v3632
    %v3747 = vsel %vm3689, %v3630, %v3631
    %v3748 = vsel %vm3689, %v3629, %v3630
    %v3749 = vsel %vm3689, %v3628, %v3629
    %v3750 = vsel %vm3689, %v3627, %v3628
    %v3751 = vsel %vm3689, %v3626, %v3627
    %v3752 = vsel %vm3689, %v3625, %v3626
    %v3753 = vsel %vm3689, %v3624, %v3625
    %v3754 = vsel %vm3689, %v3623, %v3624
    %v3755 = vsel %vm3689, %v3622, %v3623
    %v3756 = vsel %vm3689, %v3621, %v3622
    %v3757 = vsel %vm3689, %v3620, %v3621
    %v3758 = vsel %vm3689, %v3619, %v3620
    %v3759 = vsel %vm3689, %v3618, %v3619
    %v3760 = vsel %vm3689, %v3617, %v3618
    %v3761 = vsel %vm3689, %v3616, %v3617
    %v3762 = vsel %vm3689, %v3615, %v3616
    %v3763 = vsel %vm3689, %v3614, %v3615
    %v3764 = vsel %vm3689, %v3613, %v3614
    %v3765 = vsel %vm3689, %v3612, %v3613
    %v3766 = vsel %vm3689, %v3611, %v3612
    %v3767 = vsel %vm3689, %v3610, %v3611
    %v3768 = vsel %vm3689, %v3609, %v3610
    %v3769 = vsel %vm3689, %v3608, %v3609
    %v3770 = vsel %vm3689, %v3607, %v3608
    %v3771 = vsel %vm3689, %v3688, %v3607
    %v3772 = vadd.f32 %v3147, %v3770
    %v3773 = vadd.f32 %v3148, %v3769
    %v3774 = vadd.f32 %v3149, %v3768
    %v3775 = vadd.f32 %v3150, %v3767
    %v3776 = vadd.f32 %v3151, %v3766
    %v3777 = vadd.f32 %v3152, %v3765
    %v3778 = vadd.f32 %v3153, %v3764
    %v3779 = vadd.f32 %v3154, %v3763
    %v3780 = vadd.f32 %v3155, %v3762
    %v3781 = vadd.f32 %v3156, %v3761
    %v3782 = vadd.f32 %v3157, %v3760
    %v3783 = vadd.f32 %v3158, %v3759
    %v3784 = vadd.f32 %v3159, %v3758
    %v3785 = vadd.f32 %v3160, %v3757
    %v3786 = vadd.f32 %v3161, %v3756
    %v3787 = vadd.f32 %v3162, %v3755
    %v3788 = vadd.f32 %v3163, %v3754
    %v3789 = vadd.f32 %v3164, %v3753
    %v3790 = vadd.f32 %v3165, %v3752
    %v3791 = vadd.f32 %v3166, %v3751
    %v3792 = vadd.f32 %v3167, %v3750
    %v3793 = vadd.f32 %v3168, %v3749
    %v3794 = vadd.f32 %v3169, %v3748
    %v3795 = vadd.f32 %v3170, %v3747
    %v3796 = vadd.f32 %v3171, %v3746
    %v3797 = vadd.f32 %v3172, %v3745
    %v3798 = vadd.f32 %v3173, %v3744
    %v3799 = vadd.f32 %v3174, %v3743
    %v3800 = vadd.f32 %v3175, %v3742
    %v3801 = vadd.f32 %v3176, %v3741
    %v3802 = vadd.f32 %v3177, %v3740
    %v3803 = vadd.f32 %v3178, %v3739
    %v3804 = vadd.f32 %v3179, %v3738
    %v3805 = vadd.f32 %v3180, %v3737
    %v3806 = vadd.f32 %v3181, %v3736
    %v3807 = vadd.f32 %v3182, %v3735
    %v3808 = vadd.f32 %v3183, %v3734
    %v3809 = vadd.f32 %v3184, %v3733
    %v3810 = vadd.f32 %v3185, %v3732
    %v3811 = vadd.f32 %v3186, %v3731
    %v3812 = vadd.f32 %v3187, %v3730
    %v3813 = vadd.f32 %v3188, %v3729
    %v3814 = vadd.f32 %v3189, %v3728
    %v3815 = vadd.f32 %v3190, %v3727
    %v3816 = vadd.f32 %v3191, %v3726
    %v3817 = vadd.f32 %v3192, %v3725
    %v3818 = vadd.f32 %v3193, %v3724
    %v3819 = vadd.f32 %v3194, %v3723
    %v3820 = vadd.f32 %v3195, %v3722
    %v3821 = vadd.f32 %v3196, %v3721
    %v3822 = vadd.f32 %v3197, %v3720
    %v3823 = vadd.f32 %v3198, %v3719
    %v3824 = vadd.f32 %v3199, %v3718
    %v3825 = vadd.f32 %v3200, %v3717
    %v3826 = vadd.f32 %v3201, %v3716
    %v3827 = vadd.f32 %v3202, %v3715
    %v3828 = vadd.f32 %v3203, %v3714
    %v3829 = vadd.f32 %v3204, %v3713
    %v3830 = vadd.f32 %v3205, %v3712
    %v3831 = vadd.f32 %v3206, %v3711
    %v3832 = vadd.f32 %v3207, %v3710
    %v3833 = vadd.f32 %v3208, %v3709
    %v3834 = vadd.f32 %v3209, %v3708
    %v3835 = vadd.f32 %v3210, %v3707
    %v3836 = vadd.f32 %v3211, %v3706
    %v3837 = vadd.f32 %v3212, %v3705
    %v3838 = vadd.f32 %v3213, %v3704
    %v3839 = vadd.f32 %v3214, %v3703
    %v3840 = vadd.f32 %v3215, %v3702
    %v3841 = vadd.f32 %v3216, %v3701
    %v3842 = vadd.f32 %v3217, %v3700
    %v3843 = vadd.f32 %v3218, %v3699
    %v3844 = vadd.f32 %v3219, %v3698
    %v3845 = vadd.f32 %v3220, %v3697
    %v3846 = vadd.f32 %v3221, %v3696
    %v3847 = vadd.f32 %v3222, %v3695
    %v3848 = vadd.f32 %v3223, %v3694
    %v3849 = vadd.f32 %v3224, %v3693
    %v3850 = vadd.f32 %v3225, %v3692
    %v3851 = vadd.f32 %v3226, %v3691
    %v3852 = vadd.f32 %v3227, %v3690
    %v3853 = vadd.f32 %v3228, %v3771
    %s3854 = scalar_lea.vmem %s1, 96
    %v3855 = vld [vmem:[%s3854] sm:$0xf]
    %v3856 = vld [vmem:[%s3854 + $0x4] sm:$0xf]
    %v3857 = vld [vmem:[%s3854 + $0x8] sm:$0xf]
    %v3858 = vld [vmem:[%s3854 + $0xc] sm:$0xf]
    %v3863 = vunpack.c.l.b16 %v3855
    %v3864 = vunpack.c.l.b16 %v3856
    %v3865 = vunpack.c.l.b16 %v3857
    %v3866 = vunpack.c.l.b16 %v3858
    %v3867 = vpack.c.b16 %v3864, %v3863
    %v3868 = vpack.c.b16 %v3866, %v3865
    %3871 = vmatprep.subr.bf16.mxu0 0
    %3872 = vmatpush1.bf16.msra.mxu0 %v3867
    %3873 = vmatprep.subr.bf16.mxu0 0
    %3874 = vmatpush1.bf16.msra.mxu0 %v3868
    %3875 = vmatprep.subr.bf16.mxu0 0
    %3876 = vmatpush1.bf16.msra.mxu0 0
    %3877 = vmatprep.subr.bf16.mxu0 0
    %3878 = vmatpush1.bf16.msra.mxu0 0
    %3879 = vmatprep.subr.bf16.mxu0 0
    %3880 = vmatpush1.bf16.msra.mxu0 0
    %3881 = vmatprep.subr.bf16.mxu0 0
    %3882 = vmatpush1.bf16.msra.mxu0 0
    %3883 = vmatprep.subr.bf16.mxu0 0
    %3884 = vmatpush1.bf16.msra.mxu0 0
    %3885 = vmatprep.subr.bf16.mxu0 0
    %3886 = vmatpush1.bf16.msra.mxu0 0
    %3887 = vmatprep.subr.bf16.mxu0 0
    %3888 = vmatpush1.bf16.msra.mxu0 0
    %3889 = vmatprep.subr.bf16.mxu0 0
    %3890 = vmatpush1.bf16.msra.mxu0 0
    %3891 = vmatprep.subr.bf16.mxu0 0
    %3892 = vmatpush1.bf16.msra.mxu0 0
    %3893 = vmatprep.subr.bf16.mxu0 0
    %3894 = vmatpush1.bf16.msra.mxu0 0
    %3895 = vmatprep.subr.bf16.mxu0 0
    %3896 = vmatpush1.bf16.msra.mxu0 0
    %3897 = vmatprep.subr.bf16.mxu0 0
    %3898 = vmatpush1.bf16.msra.mxu0 0
    %3899 = vmatprep.subr.bf16.mxu0 0
    %3900 = vmatpush1.bf16.msra.mxu0 0
    %3901 = vmatprep.subr.bf16.mxu0 0
    %3902 = vmatpush1.bf16.msra.mxu0 0
    %3903 = vmatprep.mubr.bf16.mxu0 0
    %3904 = vmatmul.mubr.bf16.gmra.mrb[0].mxu0 %v332
    %v3905 = vpop.f32.mrb[0].mxu0
    %v3906 = vadd.f32 0.0, %v3905
    %v3907 = vpop.f32.mrb[0].mxu0
    %v3908 = vpop.f32.mrb[0].mxu0
    %v3909 = vadd.f32 0.0, %v3908
    %v3910 = vpop.f32.mrb[0].mxu0
    %3911 = vmatprep.mubr.bf16.mxu0 0
    %3912 = vmatmul.mubr.bf16.gmra.mrb[0].mxu0 %v335
    %v3913 = vpop.f32.mrb[0].mxu0
    %v3914 = vadd.f32 0.0, %v3913
    %v3915 = vpop.f32.mrb[0].mxu0
    %v3916 = vpop.f32.mrb[0].mxu0
    %v3917 = vadd.f32 0.0, %v3916
    %v3918 = vpop.f32.mrb[0].mxu0
    %3919 = vmatprep.mubr.bf16.mxu0 0
    %3920 = vmatmul.mubr.bf16.gmra.mrb[0].mxu0 %v338
    %v3921 = vpop.f32.mrb[0].mxu0
    %v3922 = vadd.f32 0.0, %v3921
    %v3923 = vpop.f32.mrb[0].mxu0
    %v3924 = vpop.f32.mrb[0].mxu0
    %v3925 = vadd.f32 0.0, %v3924
    %v3926 = vpop.f32.mrb[0].mxu0
    %3927 = vmatprep.mubr.bf16.mxu0 0
    %3928 = vmatmul.mubr.bf16.gmra.mrb[0].mxu0 %v341
    %v3929 = vpop.f32.mrb[0].mxu0
    %v3930 = vadd.f32 0.0, %v3929
    %v3931 = vpop.f32.mrb[0].mxu0
    %v3932 = vpop.f32.mrb[0].mxu0
    %v3933 = vadd.f32 0.0, %v3932
    %v3934 = vpop.f32.mrb[0].mxu0
    %3935 = vmatprep.mubr.bf16.mxu0 0
    %3936 = vmatmul.mubr.bf16.gmra.mrb[0].mxu0 %v344
    %v3937 = vpop.f32.mrb[0].mxu0
    %v3938 = vadd.f32 0.0, %v3937
    %v3939 = vpop.f32.mrb[0].mxu0
    %v3940 = vpop.f32.mrb[0].mxu0
    %v3941 = vadd.f32 0.0, %v3940
    %v3942 = vpop.f32.mrb[0].mxu0
    %3943 = vmatprep.mubr.bf16.mxu0 0
    %3944 = vmatmul.mubr.bf16.gmra.mrb[0].mxu0 %v347
    %v3945 = vpop.f32.mrb[0].mxu0
    %v3946 = vadd.f32 0.0, %v3945
    %v3947 = vpop.f32.mrb[0].mxu0
    %v3948 = vpop.f32.mrb[0].mxu0
    %v3949 = vadd.f32 0.0, %v3948
    %v3950 = vpop.f32.mrb[0].mxu0
    %3951 = vmatprep.mubr.bf16.mxu0 0
    %3952 = vmatmul.mubr.bf16.gmra.mrb[0].mxu0 %v350
    %v3953 = vpop.f32.mrb[0].mxu0
    %v3954 = vadd.f32 0.0, %v3953
    %v3955 = vpop.f32.mrb[0].mxu0
    %v3956 = vpop.f32.mrb[0].mxu0
    %v3957 = vadd.f32 0.0, %v3956
    %v3958 = vpop.f32.mrb[0].mxu0
    %3959 = vmatprep.mubr.bf16.mxu0 0
    %3960 = vmatmul.mubr.bf16.gmra.mrb[0].mxu0 %v353
    %v3961 = vpop.f32.mrb[0].mxu0
    %v3962 = vadd.f32 0.0, %v3961
    %v3963 = vpop.f32.mrb[0].mxu0
    %v3964 = vpop.f32.mrb[0].mxu0
    %v3965 = vadd.f32 0.0, %v3964
    %v3966 = vpop.f32.mrb[0].mxu0
    %3967 = vmatprep.mubr.bf16.mxu0 0
    %3968 = vmatmul.mubr.bf16.gmra.mrb[0].mxu0 %v356
    %v3969 = vpop.f32.mrb[0].mxu0
    %v3970 = vadd.f32 0.0, %v3969
    %v3971 = vpop.f32.mrb[0].mxu0
    %v3972 = vpop.f32.mrb[0].mxu0
    %v3973 = vadd.f32 0.0, %v3972
    %v3974 = vpop.f32.mrb[0].mxu0
    %3975 = vmatprep.mubr.bf16.mxu0 0
    %3976 = vmatmul.mubr.bf16.gmra.mrb[0].mxu0 %v359
    %v3977 = vpop.f32.mrb[0].mxu0
    %v3978 = vadd.f32 0.0, %v3977
    %v3979 = vpop.f32.mrb[0].mxu0
    %v3980 = vpop.f32.mrb[0].mxu0
    %v3981 = vadd.f32 0.0, %v3980
    %v3982 = vpop.f32.mrb[0].mxu0
    %3983 = vmatprep.mubr.bf16.mxu0 0
    %3984 = vmatmul.mubr.bf16.gmra.mrb[0].mxu0 %v362
    %v3985 = vpop.f32.mrb[0].mxu0
    %v3986 = vadd.f32 0.0, %v3985
    %v3987 = vpop.f32.mrb[0].mxu0
    %v3988 = vpop.f32.mrb[0].mxu0
    %v3989 = vadd.f32 0.0, %v3988
    %v3990 = vpop.f32.mrb[0].mxu0
    %3991 = vmatprep.mubr.bf16.mxu0 0
    %3992 = vmatmul.mubr.bf16.gmra.mrb[0].mxu0 %v365
    %v3993 = vpop.f32.mrb[0].mxu0
    %v3994 = vadd.f32 0.0, %v3993
    %v3995 = vpop.f32.mrb[0].mxu0
    %v3996 = vpop.f32.mrb[0].mxu0
    %v3997 = vadd.f32 0.0, %v3996
    %v3998 = vpop.f32.mrb[0].mxu0
    %3999 = vmatprep.mubr.bf16.mxu0 0
    %4000 = vmatmul.mubr.bf16.gmra.mrb[0].mxu0 %v368
    %v4001 = vpop.f32.mrb[0].mxu0
    %v4002 = vadd.f32 0.0, %v4001
    %v4003 = vpop.f32.mrb[0].mxu0
    %v4004 = vpop.f32.mrb[0].mxu0
    %v4005 = vadd.f32 0.0, %v4004
    %v4006 = vpop.f32.mrb[0].mxu0
    %4007 = vmatprep.mubr.bf16.mxu0 0
    %4008 = vmatmul.mubr.bf16.gmra.mrb[0].mxu0 %v371
    %v4009 = vpop.f32.mrb[0].mxu0
    %v4010 = vadd.f32 0.0, %v4009
    %v4011 = vpop.f32.mrb[0].mxu0
    %v4012 = vpop.f32.mrb[0].mxu0
    %v4013 = vadd.f32 0.0, %v4012
    %v4014 = vpop.f32.mrb[0].mxu0
    %4015 = vmatprep.mubr.bf16.mxu0 0
    %4016 = vmatmul.mubr.bf16.gmra.mrb[0].mxu0 %v374
    %v4017 = vpop.f32.mrb[0].mxu0
    %v4018 = vadd.f32 0.0, %v4017
    %v4019 = vpop.f32.mrb[0].mxu0
    %v4020 = vpop.f32.mrb[0].mxu0
    %v4021 = vadd.f32 0.0, %v4020
    %v4022 = vpop.f32.mrb[0].mxu0
    %4023 = vmatprep.mubr.bf16.mxu0 0
    %4024 = vmatmul.mubr.bf16.gmra.mrb[0].mxu0 %v377
    %v4025 = vpop.f32.mrb[0].mxu0
    %v4026 = vadd.f32 0.0, %v4025
    %v4027 = vpop.f32.mrb[0].mxu0
    %v4028 = vpop.f32.mrb[0].mxu0
    %v4029 = vadd.f32 0.0, %v4028
    %v4030 = vpop.f32.mrb[0].mxu0
    %4031 = vmatprep.mubr.bf16.mxu0 0
    %4032 = vmatmul.mubr.bf16.gmra.mrb[0].mxu0 %v380
    %v4033 = vpop.f32.mrb[0].mxu0
    %v4034 = vadd.f32 0.0, %v4033
    %v4035 = vpop.f32.mrb[0].mxu0
    %v4036 = vpop.f32.mrb[0].mxu0
    %v4037 = vadd.f32 0.0, %v4036
    %v4038 = vpop.f32.mrb[0].mxu0
    %4039 = vmatprep.mubr.bf16.mxu0 0
    %4040 = vmatmul.mubr.bf16.gmra.mrb[0].mxu0 %v383
    %v4041 = vpop.f32.mrb[0].mxu0
    %v4042 = vadd.f32 0.0, %v4041
    %v4043 = vpop.f32.mrb[0].mxu0
    %v4044 = vpop.f32.mrb[0].mxu0
    %v4045 = vadd.f32 0.0, %v4044
    %v4046 = vpop.f32.mrb[0].mxu0
    %4047 = vmatprep.mubr.bf16.mxu0 0
    %4048 = vmatmul.mubr.bf16.gmra.mrb[0].mxu0 %v386
    %v4049 = vpop.f32.mrb[0].mxu0
    %v4050 = vadd.f32 0.0, %v4049
    %v4051 = vpop.f32.mrb[0].mxu0
    %v4052 = vpop.f32.mrb[0].mxu0
    %v4053 = vadd.f32 0.0, %v4052
    %v4054 = vpop.f32.mrb[0].mxu0
    %4055 = vmatprep.mubr.bf16.mxu0 0
    %4056 = vmatmul.mubr.bf16.gmra.mrb[0].mxu0 %v389
    %v4057 = vpop.f32.mrb[0].mxu0
    %v4058 = vadd.f32 0.0, %v4057
    %v4059 = vpop.f32.mrb[0].mxu0
    %v4060 = vpop.f32.mrb[0].mxu0
    %v4061 = vadd.f32 0.0, %v4060
    %v4062 = vpop.f32.mrb[0].mxu0
    %4063 = vmatprep.mubr.bf16.mxu0 0
    %4064 = vmatmul.mubr.bf16.gmra.mrb[0].mxu0 %v392
    %v4065 = vpop.f32.mrb[0].mxu0
    %v4066 = vadd.f32 0.0, %v4065
    %v4067 = vpop.f32.mrb[0].mxu0
    %v4068 = vpop.f32.mrb[0].mxu0
    %v4069 = vadd.f32 0.0, %v4068
    %v4070 = vpop.f32.mrb[0].mxu0
    %4071 = vmatprep.mubr.bf16.mxu0 0
    %4072 = vmatmul.mubr.bf16.gmra.mrb[0].mxu0 %v395
    %v4073 = vpop.f32.mrb[0].mxu0
    %v4074 = vadd.f32 0.0, %v4073
    %v4075 = vpop.f32.mrb[0].mxu0
    %v4076 = vpop.f32.mrb[0].mxu0
    %v4077 = vadd.f32 0.0, %v4076
    %v4078 = vpop.f32.mrb[0].mxu0
    %4079 = vmatprep.mubr.bf16.mxu0 0
    %4080 = vmatmul.mubr.bf16.gmra.mrb[0].mxu0 %v398
    %v4081 = vpop.f32.mrb[0].mxu0
    %v4082 = vadd.f32 0.0, %v4081
    %v4083 = vpop.f32.mrb[0].mxu0
    %v4084 = vpop.f32.mrb[0].mxu0
    %v4085 = vadd.f32 0.0, %v4084
    %v4086 = vpop.f32.mrb[0].mxu0
    %4087 = vmatprep.mubr.bf16.mxu0 0
    %4088 = vmatmul.mubr.bf16.gmra.mrb[0].mxu0 %v401
    %v4089 = vpop.f32.mrb[0].mxu0
    %v4090 = vadd.f32 0.0, %v4089
    %v4091 = vpop.f32.mrb[0].mxu0
    %v4092 = vpop.f32.mrb[0].mxu0
    %v4093 = vadd.f32 0.0, %v4092
    %v4094 = vpop.f32.mrb[0].mxu0
    %4095 = vmatprep.mubr.bf16.mxu0 0
    %4096 = vmatmul.mubr.bf16.gmra.mrb[0].mxu0 %v404
    %v4097 = vpop.f32.mrb[0].mxu0
    %v4098 = vadd.f32 0.0, %v4097
    %v4099 = vpop.f32.mrb[0].mxu0
    %v4100 = vpop.f32.mrb[0].mxu0
    %v4101 = vadd.f32 0.0, %v4100
    %v4102 = vpop.f32.mrb[0].mxu0
    %4103 = vmatprep.mubr.bf16.mxu0 0
    %4104 = vmatmul.mubr.bf16.gmra.mrb[0].mxu0 %v407
    %v4105 = vpop.f32.mrb[0].mxu0
    %v4106 = vadd.f32 0.0, %v4105
    %v4107 = vpop.f32.mrb[0].mxu0
    %v4108 = vpop.f32.mrb[0].mxu0
    %v4109 = vadd.f32 0.0, %v4108
    %v4110 = vpop.f32.mrb[0].mxu0
    %4111 = vmatprep.mubr.bf16.mxu0 0
    %4112 = vmatmul.mubr.bf16.gmra.mrb[0].mxu0 %v410
    %v4113 = vpop.f32.mrb[0].mxu0
    %v4114 = vadd.f32 0.0, %v4113
    %v4115 = vpop.f32.mrb[0].mxu0
    %v4116 = vpop.f32.mrb[0].mxu0
    %v4117 = vadd.f32 0.0, %v4116
    %v4118 = vpop.f32.mrb[0].mxu0
    %4119 = vmatprep.mubr.bf16.mxu0 0
    %4120 = vmatmul.mubr.bf16.gmra.mrb[0].mxu0 %v413
    %v4121 = vpop.f32.mrb[0].mxu0
    %v4122 = vadd.f32 0.0, %v4121
    %v4123 = vpop.f32.mrb[0].mxu0
    %v4124 = vpop.f32.mrb[0].mxu0
    %v4125 = vadd.f32 0.0, %v4124
    %v4126 = vpop.f32.mrb[0].mxu0
    %4127 = vmatprep.mubr.bf16.mxu0 0
    %4128 = vmatmul.mubr.bf16.gmra.mrb[0].mxu0 %v416
    %v4129 = vpop.f32.mrb[0].mxu0
    %v4130 = vadd.f32 0.0, %v4129
    %v4131 = vpop.f32.mrb[0].mxu0
    %v4132 = vpop.f32.mrb[0].mxu0
    %v4133 = vadd.f32 0.0, %v4132
    %v4134 = vpop.f32.mrb[0].mxu0
    %4135 = vmatprep.mubr.bf16.mxu0 0
    %4136 = vmatmul.mubr.bf16.gmra.mrb[0].mxu0 %v419
    %v4137 = vpop.f32.mrb[0].mxu0
    %v4138 = vadd.f32 0.0, %v4137
    %v4139 = vpop.f32.mrb[0].mxu0
    %v4140 = vpop.f32.mrb[0].mxu0
    %v4141 = vadd.f32 0.0, %v4140
    %v4142 = vpop.f32.mrb[0].mxu0
    %4143 = vmatprep.mubr.bf16.mxu0 0
    %4144 = vmatmul.mubr.bf16.gmra.mrb[0].mxu0 %v422
    %v4145 = vpop.f32.mrb[0].mxu0
    %v4146 = vadd.f32 0.0, %v4145
    %v4147 = vpop.f32.mrb[0].mxu0
    %v4148 = vpop.f32.mrb[0].mxu0
    %v4149 = vadd.f32 0.0, %v4148
    %v4150 = vpop.f32.mrb[0].mxu0
    %4151 = vmatprep.mubr.bf16.mxu0 0
    %4152 = vmatmul.mubr.bf16.gmra.mrb[0].mxu0 %v425
    %v4153 = vpop.f32.mrb[0].mxu0
    %v4154 = vadd.f32 0.0, %v4153
    %v4155 = vpop.f32.mrb[0].mxu0
    %v4156 = vpop.f32.mrb[0].mxu0
    %v4157 = vadd.f32 0.0, %v4156
    %v4158 = vpop.f32.mrb[0].mxu0
    %4159 = vmatprep.mubr.bf16.mxu0 0
    %4160 = vmatmul.mubr.bf16.gmra.mrb[0].mxu0 %v428
    %v4161 = vpop.f32.mrb[0].mxu0
    %v4162 = vadd.f32 0.0, %v4161
    %v4163 = vpop.f32.mrb[0].mxu0
    %v4164 = vpop.f32.mrb[0].mxu0
    %v4165 = vadd.f32 0.0, %v4164
    %v4166 = vpop.f32.mrb[0].mxu0
    %4167 = vmatprep.mubr.bf16.mxu0 0
    %4168 = vmatmul.mubr.bf16.gmra.mrb[0].mxu0 %v431
    %v4169 = vpop.f32.mrb[0].mxu0
    %v4170 = vadd.f32 0.0, %v4169
    %v4171 = vpop.f32.mrb[0].mxu0
    %v4172 = vpop.f32.mrb[0].mxu0
    %v4173 = vadd.f32 0.0, %v4172
    %v4174 = vpop.f32.mrb[0].mxu0
    %4175 = vmatprep.mubr.bf16.mxu0 0
    %4176 = vmatmul.mubr.bf16.gmra.mrb[0].mxu0 %v434
    %v4177 = vpop.f32.mrb[0].mxu0
    %v4178 = vadd.f32 0.0, %v4177
    %v4179 = vpop.f32.mrb[0].mxu0
    %v4180 = vpop.f32.mrb[0].mxu0
    %v4181 = vadd.f32 0.0, %v4180
    %v4182 = vpop.f32.mrb[0].mxu0
    %4183 = vmatprep.mubr.bf16.mxu0 0
    %4184 = vmatmul.mubr.bf16.gmra.mrb[0].mxu0 %v437
    %v4185 = vpop.f32.mrb[0].mxu0
    %v4186 = vadd.f32 0.0, %v4185
    %v4187 = vpop.f32.mrb[0].mxu0
    %v4188 = vpop.f32.mrb[0].mxu0
    %v4189 = vadd.f32 0.0, %v4188
    %v4190 = vpop.f32.mrb[0].mxu0
    %4191 = vmatprep.mubr.bf16.mxu0 0
    %4192 = vmatmul.mubr.bf16.gmra.mrb[0].mxu0 %v440
    %v4193 = vpop.f32.mrb[0].mxu0
    %v4194 = vadd.f32 0.0, %v4193
    %v4195 = vpop.f32.mrb[0].mxu0
    %v4196 = vpop.f32.mrb[0].mxu0
    %v4197 = vadd.f32 0.0, %v4196
    %v4198 = vpop.f32.mrb[0].mxu0
    %4199 = vmatprep.mubr.bf16.mxu0 0
    %4200 = vmatmul.mubr.bf16.gmra.mrb[0].mxu0 %v443
    %v4201 = vpop.f32.mrb[0].mxu0
    %v4202 = vadd.f32 0.0, %v4201
    %v4203 = vpop.f32.mrb[0].mxu0
    %v4204 = vpop.f32.mrb[0].mxu0
    %v4205 = vadd.f32 0.0, %v4204
    %v4206 = vpop.f32.mrb[0].mxu0
    %4207 = vmatprep.mubr.bf16.mxu0 0
    %4208 = vmatmul.mubr.bf16.gmra.mrb[0].mxu0 %v446
    %v4209 = vpop.f32.mrb[0].mxu0
    %v4210 = vadd.f32 0.0, %v4209
    %v4211 = vpop.f32.mrb[0].mxu0
    %v4212 = vpop.f32.mrb[0].mxu0
    %v4213 = vadd.f32 0.0, %v4212
    %v4214 = vpop.f32.mrb[0].mxu0
    %4215 = vmatprep.mubr.bf16.mxu0 0
    %4216 = vmatmul.mubr.bf16.gmra.mrb[0].mxu0 %v449
    %v4217 = vpop.f32.mrb[0].mxu0
    %v4218 = vadd.f32 0.0, %v4217
    %v4219 = vpop.f32.mrb[0].mxu0
    %v4220 = vpop.f32.mrb[0].mxu0
    %v4221 = vadd.f32 0.0, %v4220
    %v4222 = vpop.f32.mrb[0].mxu0
    %4223 = vmatprep.mubr.bf16.mxu0 0
    %4224 = vmatmul.mubr.bf16.gmra.mrb[0].mxu0 %v452
    %v4225 = vpop.f32.mrb[0].mxu0
    %v4226 = vadd.f32 0.0, %v4225
    %v4227 = vpop.f32.mrb[0].mxu0
    %v4228 = vpop.f32.mrb[0].mxu0
    %v4229 = vadd.f32 0.0, %v4228
    %v4230 = vpop.f32.mrb[0].mxu0
    %4231 = vdwg.mxu0
    %v4232 = vrot.slane %v3906, 1
    %v4233 = vrot.slane %v3909, 1
    %v4234 = vrot.slane %v3914, 1
    %v4235 = vrot.slane %v3917, 1
    %v4236 = vrot.slane %v3922, 1
    %v4237 = vrot.slane %v3925, 1
    %v4238 = vrot.slane %v3930, 1
    %v4239 = vrot.slane %v3933, 1
    %v4240 = vrot.slane %v3938, 1
    %v4241 = vrot.slane %v3941, 1
    %v4242 = vrot.slane %v3946, 1
    %v4243 = vrot.slane %v3949, 1
    %v4244 = vrot.slane %v3954, 1
    %v4245 = vrot.slane %v3957, 1
    %v4246 = vrot.slane %v3962, 1
    %v4247 = vrot.slane %v3965, 1
    %v4248 = vrot.slane %v3970, 1
    %v4249 = vrot.slane %v3973, 1
    %v4250 = vrot.slane %v3978, 1
    %v4251 = vrot.slane %v3981, 1
    %v4252 = vrot.slane %v3986, 1
    %v4253 = vrot.slane %v3989, 1
    %v4254 = vrot.slane %v3994, 1
    %v4255 = vrot.slane %v3997, 1
    %v4256 = vrot.slane %v4002, 1
    %v4257 = vrot.slane %v4005, 1
    %v4258 = vrot.slane %v4010, 1
    %v4259 = vrot.slane %v4013, 1
    %v4260 = vrot.slane %v4018, 1
    %v4261 = vrot.slane %v4021, 1
    %v4262 = vrot.slane %v4026, 1
    %v4263 = vrot.slane %v4029, 1
    %v4264 = vrot.slane %v4034, 1
    %v4265 = vrot.slane %v4037, 1
    %v4266 = vrot.slane %v4042, 1
    %v4267 = vrot.slane %v4045, 1
    %v4268 = vrot.slane %v4050, 1
    %v4269 = vrot.slane %v4053, 1
    %v4270 = vrot.slane %v4058, 1
    %v4271 = vrot.slane %v4061, 1
    %v4272 = vrot.slane %v4066, 1
    %v4273 = vrot.slane %v4069, 1
    %v4274 = vrot.slane %v4074, 1
    %v4275 = vrot.slane %v4077, 1
    %v4276 = vrot.slane %v4082, 1
    %v4277 = vrot.slane %v4085, 1
    %v4278 = vrot.slane %v4090, 1
    %v4279 = vrot.slane %v4093, 1
    %v4280 = vrot.slane %v4098, 1
    %v4281 = vrot.slane %v4101, 1
    %v4282 = vrot.slane %v4106, 1
    %v4283 = vrot.slane %v4109, 1
    %v4284 = vrot.slane %v4114, 1
    %v4285 = vrot.slane %v4117, 1
    %v4286 = vrot.slane %v4122, 1
    %v4287 = vrot.slane %v4125, 1
    %v4288 = vrot.slane %v4130, 1
    %v4289 = vrot.slane %v4133, 1
    %v4290 = vrot.slane %v4138, 1
    %v4291 = vrot.slane %v4141, 1
    %v4292 = vrot.slane %v4146, 1
    %v4293 = vrot.slane %v4149, 1
    %v4294 = vrot.slane %v4154, 1
    %v4295 = vrot.slane %v4157, 1
    %v4296 = vrot.slane %v4162, 1
    %v4297 = vrot.slane %v4165, 1
    %v4298 = vrot.slane %v4170, 1
    %v4299 = vrot.slane %v4173, 1
    %v4300 = vrot.slane %v4178, 1
    %v4301 = vrot.slane %v4181, 1
    %v4302 = vrot.slane %v4186, 1
    %v4303 = vrot.slane %v4189, 1
    %v4304 = vrot.slane %v4194, 1
    %v4305 = vrot.slane %v4197, 1
    %v4306 = vrot.slane %v4202, 1
    %v4307 = vrot.slane %v4205, 1
    %v4308 = vrot.slane %v4210, 1
    %v4309 = vrot.slane %v4213, 1
    %v4310 = vrot.slane %v4218, 1
    %v4311 = vrot.slane %v4221, 1
    %v4312 = vrot.slane %v4226, 1
    %v4313 = vrot.slane %v4229, 1
    %v4314 = vsel %vm3689, %v4312, %v4313
    %v4315 = vsel %vm3689, %v4311, %v4312
    %v4316 = vsel %vm3689, %v4310, %v4311
    %v4317 = vsel %vm3689, %v4309, %v4310
    %v4318 = vsel %vm3689, %v4308, %v4309
    %v4319 = vsel %vm3689, %v4307, %v4308
    %v4320 = vsel %vm3689, %v4306, %v4307
    %v4321 = vsel %vm3689, %v4305, %v4306
    %v4322 = vsel %vm3689, %v4304, %v4305
    %v4323 = vsel %vm3689, %v4303, %v4304
    %v4324 = vsel %vm3689, %v4302, %v4303
    %v4325 = vsel %vm3689, %v4301, %v4302
    %v4326 = vsel %vm3689, %v4300, %v4301
    %v4327 = vsel %vm3689, %v4299, %v4300
    %v4328 = vsel %vm3689, %v4298, %v4299
    %v4329 = vsel %vm3689, %v4297, %v4298
    %v4330 = vsel %vm3689, %v4296, %v4297
    %v4331 = vsel %vm3689, %v4295, %v4296
    %v4332 = vsel %vm3689, %v4294, %v4295
    %v4333 = vsel %vm3689, %v4293, %v4294
    %v4334 = vsel %vm3689, %v4292, %v4293
    %v4335 = vsel %vm3689, %v4291, %v4292
    %v4336 = vsel %vm3689, %v4290, %v4291
    %v4337 = vsel %vm3689, %v4289, %v4290
    %v4338 = vsel %vm3689, %v4288, %v4289
    %v4339 = vsel %vm3689, %v4287, %v4288
    %v4340 = vsel %vm3689, %v4286, %v4287
    %v4341 = vsel %vm3689, %v4285, %v4286
    %v4342 = vsel %vm3689, %v4284, %v4285
    %v4343 = vsel %vm3689, %v4283, %v4284
    %v4344 = vsel %vm3689, %v4282, %v4283
    %v4345 = vsel %vm3689, %v4281, %v4282
    %v4346 = vsel %vm3689, %v4280, %v4281
    %v4347 = vsel %vm3689, %v4279, %v4280
    %v4348 = vsel %vm3689, %v4278, %v4279
    %v4349 = vsel %vm3689, %v4277, %v4278
    %v4350 = vsel %vm3689, %v4276, %v4277
    %v4351 = vsel %vm3689, %v4275, %v4276
    %v4352 = vsel %vm3689, %v4274, %v4275
    %v4353 = vsel %vm3689, %v4273, %v4274
    %v4354 = vsel %vm3689, %v4272, %v4273
    %v4355 = vsel %vm3689, %v4271, %v4272
    %v4356 = vsel %vm3689, %v4270, %v4271
    %v4357 = vsel %vm3689, %v4269, %v4270
    %v4358 = vsel %vm3689, %v4268, %v4269
    %v4359 = vsel %vm3689, %v4267, %v4268
    %v4360 = vsel %vm3689, %v4266, %v4267
    %v4361 = vsel %vm3689, %v4265, %v4266
    %v4362 = vsel %vm3689, %v4264, %v4265
    %v4363 = vsel %vm3689, %v4263, %v4264
    %v4364 = vsel %vm3689, %v4262, %v4263
    %v4365 = vsel %vm3689, %v4261, %v4262
    %v4366 = vsel %vm3689, %v4260, %v4261
    %v4367 = vsel %vm3689, %v4259, %v4260
    %v4368 = vsel %vm3689, %v4258, %v4259
    %v4369 = vsel %vm3689, %v4257, %v4258
    %v4370 = vsel %vm3689, %v4256, %v4257
    %v4371 = vsel %vm3689, %v4255, %v4256
    %v4372 = vsel %vm3689, %v4254, %v4255
    %v4373 = vsel %vm3689, %v4253, %v4254
    %v4374 = vsel %vm3689, %v4252, %v4253
    %v4375 = vsel %vm3689, %v4251, %v4252
    %v4376 = vsel %vm3689, %v4250, %v4251
    %v4377 = vsel %vm3689, %v4249, %v4250
    %v4378 = vsel %vm3689, %v4248, %v4249
    %v4379 = vsel %vm3689, %v4247, %v4248
    %v4380 = vsel %vm3689, %v4246, %v4247
    %v4381 = vsel %vm3689, %v4245, %v4246
    %v4382 = vsel %vm3689, %v4244, %v4245
    %v4383 = vsel %vm3689, %v4243, %v4244
    %v4384 = vsel %vm3689, %v4242, %v4243
    %v4385 = vsel %vm3689, %v4241, %v4242
    %v4386 = vsel %vm3689, %v4240, %v4241
    %v4387 = vsel %vm3689, %v4239, %v4240
    %v4388 = vsel %vm3689, %v4238, %v4239
    %v4389 = vsel %vm3689, %v4237, %v4238
    %v4390 = vsel %vm3689, %v4236, %v4237
    %v4391 = vsel %vm3689, %v4235, %v4236
    %v4392 = vsel %vm3689, %v4234, %v4235
    %v4393 = vsel %vm3689, %v4233, %v4234
    %v4394 = vsel %vm3689, %v4232, %v4233
    %v4395 = vsel %vm3689, %v4313, %v4232
    %v4396 = vadd.f32 %v3772, %v4392
    %v4397 = vadd.f32 %v3773, %v4391
    %v4398 = vadd.f32 %v3774, %v4390
    %v4399 = vadd.f32 %v3775, %v4389
    %v4400 = vadd.f32 %v3776, %v4388
    %v4401 = vadd.f32 %v3777, %v4387
    %v4402 = vadd.f32 %v3778, %v4386
    %v4403 = vadd.f32 %v3779, %v4385
    %v4404 = vadd.f32 %v3780, %v4384
    %v4405 = vadd.f32 %v3781, %v4383
    %v4406 = vadd.f32 %v3782, %v4382
    %v4407 = vadd.f32 %v3783, %v4381
    %v4408 = vadd.f32 %v3784, %v4380
    %v4409 = vadd.f32 %v3785, %v4379
    %v4410 = vadd.f32 %v3786, %v4378
    %v4411 = vadd.f32 %v3787, %v4377
    %v4412 = vadd.f32 %v3788, %v4376
    %v4413 = vadd.f32 %v3789, %v4375
    %v4414 = vadd.f32 %v3790, %v4374
    %v4415 = vadd.f32 %v3791, %v4373
    %v4416 = vadd.f32 %v3792, %v4372
    %v4417 = vadd.f32 %v3793, %v4371
    %v4418 = vadd.f32 %v3794, %v4370
    %v4419 = vadd.f32 %v3795, %v4369
    %v4420 = vadd.f32 %v3796, %v4368
    %v4421 = vadd.f32 %v3797, %v4367
    %v4422 = vadd.f32 %v3798, %v4366
    %v4423 = vadd.f32 %v3799, %v4365
    %v4424 = vadd.f32 %v3800, %v4364
    %v4425 = vadd.f32 %v3801, %v4363
    %v4426 = vadd.f32 %v3802, %v4362
    %v4427 = vadd.f32 %v3803, %v4361
    %v4428 = vadd.f32 %v3804, %v4360
    %v4429 = vadd.f32 %v3805, %v4359
    %v4430 = vadd.f32 %v3806, %v4358
    %v4431 = vadd.f32 %v3807, %v4357
    %v4432 = vadd.f32 %v3808, %v4356
    %v4433 = vadd.f32 %v3809, %v4355
    %v4434 = vadd.f32 %v3810, %v4354
    %v4435 = vadd.f32 %v3811, %v4353
    %v4436 = vadd.f32 %v3812, %v4352
    %v4437 = vadd.f32 %v3813, %v4351
    %v4438 = vadd.f32 %v3814, %v4350
    %v4439 = vadd.f32 %v3815, %v4349
    %v4440 = vadd.f32 %v3816, %v4348
    %v4441 = vadd.f32 %v3817, %v4347
    %v4442 = vadd.f32 %v3818, %v4346
    %v4443 = vadd.f32 %v3819, %v4345
    %v4444 = vadd.f32 %v3820, %v4344
    %v4445 = vadd.f32 %v3821, %v4343
    %v4446 = vadd.f32 %v3822, %v4342
    %v4447 = vadd.f32 %v3823, %v4341
    %v4448 = vadd.f32 %v3824, %v4340
    %v4449 = vadd.f32 %v3825, %v4339
    %v4450 = vadd.f32 %v3826, %v4338
    %v4451 = vadd.f32 %v3827, %v4337
    %v4452 = vadd.f32 %v3828, %v4336
    %v4453 = vadd.f32 %v3829, %v4335
    %v4454 = vadd.f32 %v3830, %v4334
    %v4455 = vadd.f32 %v3831, %v4333
    %v4456 = vadd.f32 %v3832, %v4332
    %v4457 = vadd.f32 %v3833, %v4331
    %v4458 = vadd.f32 %v3834, %v4330
    %v4459 = vadd.f32 %v3835, %v4329
    %v4460 = vadd.f32 %v3836, %v4328
    %v4461 = vadd.f32 %v3837, %v4327
    %v4462 = vadd.f32 %v3838, %v4326
    %v4463 = vadd.f32 %v3839, %v4325
    %v4464 = vadd.f32 %v3840, %v4324
    %v4465 = vadd.f32 %v3841, %v4323
    %v4466 = vadd.f32 %v3842, %v4322
    %v4467 = vadd.f32 %v3843, %v4321
    %v4468 = vadd.f32 %v3844, %v4320
    %v4469 = vadd.f32 %v3845, %v4319
    %v4470 = vadd.f32 %v3846, %v4318
    %v4471 = vadd.f32 %v3847, %v4317
    %v4472 = vadd.f32 %v3848, %v4316
    %v4473 = vadd.f32 %v3849, %v4315
    %v4474 = vadd.f32 %v3850, %v4314
    %v4475 = vadd.f32 %v3851, %v4395
    %v4476 = vadd.f32 %v3852, %v4394
    %v4477 = vadd.f32 %v3853, %v4393
    %s4478 = scalar_lea.vmem %s1, 112
    %v4479 = vld [vmem:[%s4478] sm:$0xf]
    %v4480 = vld [vmem:[%s4478 + $0x4] sm:$0xf]
    %v4481 = vld [vmem:[%s4478 + $0x8] sm:$0xf]
    %v4482 = vld [vmem:[%s4478 + $0xc] sm:$0xf]
    %v4487 = vunpack.c.l.b16 %v4479
    %v4488 = vunpack.c.l.b16 %v4480
    %v4489 = vunpack.c.l.b16 %v4481
    %v4490 = vunpack.c.l.b16 %v4482
    %v4491 = vpack.c.b16 %v4488, %v4487
    %v4492 = vpack.c.b16 %v4490, %v4489
    %4495 = vmatprep.subr.bf16.mxu0 0
    %4496 = vmatpush1.bf16.msra.mxu0 %v4491
    %4497 = vmatprep.subr.bf16.mxu0 0
    %4498 = vmatpush1.bf16.msra.mxu0 %v4492
    %4499 = vmatprep.subr.bf16.mxu0 0
    %4500 = vmatpush1.bf16.msra.mxu0 0
    %4501 = vmatprep.subr.bf16.mxu0 0
    %4502 = vmatpush1.bf16.msra.mxu0 0
    %4503 = vmatprep.subr.bf16.mxu0 0
    %4504 = vmatpush1.bf16.msra.mxu0 0
    %4505 = vmatprep.subr.bf16.mxu0 0
    %4506 = vmatpush1.bf16.msra.mxu0 0
    %4507 = vmatprep.subr.bf16.mxu0 0
    %4508 = vmatpush1.bf16.msra.mxu0 0
    %4509 = vmatprep.subr.bf16.mxu0 0
    %4510 = vmatpush1.bf16.msra.mxu0 0
    %4511 = vmatprep.subr.bf16.mxu0 0
    %4512 = vmatpush1.bf16.msra.mxu0 0
    %4513 = vmatprep.subr.bf16.mxu0 0
    %4514 = vmatpush1.bf16.msra.mxu0 0
    %4515 = vmatprep.subr.bf16.mxu0 0
    %4516 = vmatpush1.bf16.msra.mxu0 0
    %4517 = vmatprep.subr.bf16.mxu0 0
    %4518 = vmatpush1.bf16.msra.mxu0 0
    %4519 = vmatprep.subr.bf16.mxu0 0
    %4520 = vmatpush1.bf16.msra.mxu0 0
    %4521 = vmatprep.subr.bf16.mxu0 0
    %4522 = vmatpush1.bf16.msra.mxu0 0
    %4523 = vmatprep.subr.bf16.mxu0 0
    %4524 = vmatpush1.bf16.msra.mxu0 0
    %4525 = vmatprep.subr.bf16.mxu0 0
    %4526 = vmatpush1.bf16.msra.mxu0 0
    %4527 = vmatprep.mubr.bf16.mxu0 0
    %4528 = vmatmul.mubr.bf16.gmra.mrb[0].mxu0 %v332
    %v4529 = vpop.f32.mrb[0].mxu0
    %v4530 = vadd.f32 0.0, %v4529
    %v4531 = vpop.f32.mrb[0].mxu0
    %v4532 = vpop.f32.mrb[0].mxu0
    %v4533 = vadd.f32 0.0, %v4532
    %v4534 = vpop.f32.mrb[0].mxu0
    %4535 = vmatprep.mubr.bf16.mxu0 0
    %4536 = vmatmul.mubr.bf16.gmra.mrb[0].mxu0 %v335
    %v4537 = vpop.f32.mrb[0].mxu0
    %v4538 = vadd.f32 0.0, %v4537
    %v4539 = vpop.f32.mrb[0].mxu0
    %v4540 = vpop.f32.mrb[0].mxu0
    %v4541 = vadd.f32 0.0, %v4540
    %v4542 = vpop.f32.mrb[0].mxu0
    %4543 = vmatprep.mubr.bf16.mxu0 0
    %4544 = vmatmul.mubr.bf16.gmra.mrb[0].mxu0 %v338
    %v4545 = vpop.f32.mrb[0].mxu0
    %v4546 = vadd.f32 0.0, %v4545
    %v4547 = vpop.f32.mrb[0].mxu0
    %v4548 = vpop.f32.mrb[0].mxu0
    %v4549 = vadd.f32 0.0, %v4548
    %v4550 = vpop.f32.mrb[0].mxu0
    %4551 = vmatprep.mubr.bf16.mxu0 0
    %4552 = vmatmul.mubr.bf16.gmra.mrb[0].mxu0 %v341
    %v4553 = vpop.f32.mrb[0].mxu0
    %v4554 = vadd.f32 0.0, %v4553
    %v4555 = vpop.f32.mrb[0].mxu0
    %v4556 = vpop.f32.mrb[0].mxu0
    %v4557 = vadd.f32 0.0, %v4556
    %v4558 = vpop.f32.mrb[0].mxu0
    %4559 = vmatprep.mubr.bf16.mxu0 0
    %4560 = vmatmul.mubr.bf16.gmra.mrb[0].mxu0 %v344
    %v4561 = vpop.f32.mrb[0].mxu0
    %v4562 = vadd.f32 0.0, %v4561
    %v4563 = vpop.f32.mrb[0].mxu0
    %v4564 = vpop.f32.mrb[0].mxu0
    %v4565 = vadd.f32 0.0, %v4564
    %v4566 = vpop.f32.mrb[0].mxu0
    %4567 = vmatprep.mubr.bf16.mxu0 0
    %4568 = vmatmul.mubr.bf16.gmra.mrb[0].mxu0 %v347
    %v4569 = vpop.f32.mrb[0].mxu0
    %v4570 = vadd.f32 0.0, %v4569
    %v4571 = vpop.f32.mrb[0].mxu0
    %v4572 = vpop.f32.mrb[0].mxu0
    %v4573 = vadd.f32 0.0, %v4572
    %v4574 = vpop.f32.mrb[0].mxu0
    %4575 = vmatprep.mubr.bf16.mxu0 0
    %4576 = vmatmul.mubr.bf16.gmra.mrb[0].mxu0 %v350
    %v4577 = vpop.f32.mrb[0].mxu0
    %v4578 = vadd.f32 0.0, %v4577
    %v4579 = vpop.f32.mrb[0].mxu0
    %v4580 = vpop.f32.mrb[0].mxu0
    %v4581 = vadd.f32 0.0, %v4580
    %v4582 = vpop.f32.mrb[0].mxu0
    %4583 = vmatprep.mubr.bf16.mxu0 0
    %4584 = vmatmul.mubr.bf16.gmra.mrb[0].mxu0 %v353
    %v4585 = vpop.f32.mrb[0].mxu0
    %v4586 = vadd.f32 0.0, %v4585
    %v4587 = vpop.f32.mrb[0].mxu0
    %v4588 = vpop.f32.mrb[0].mxu0
    %v4589 = vadd.f32 0.0, %v4588
    %v4590 = vpop.f32.mrb[0].mxu0
    %4591 = vmatprep.mubr.bf16.mxu0 0
    %4592 = vmatmul.mubr.bf16.gmra.mrb[0].mxu0 %v356
    %v4593 = vpop.f32.mrb[0].mxu0
    %v4594 = vadd.f32 0.0, %v4593
    %v4595 = vpop.f32.mrb[0].mxu0
    %v4596 = vpop.f32.mrb[0].mxu0
    %v4597 = vadd.f32 0.0, %v4596
    %v4598 = vpop.f32.mrb[0].mxu0
    %4599 = vmatprep.mubr.bf16.mxu0 0
    %4600 = vmatmul.mubr.bf16.gmra.mrb[0].mxu0 %v359
    %v4601 = vpop.f32.mrb[0].mxu0
    %v4602 = vadd.f32 0.0, %v4601
    %v4603 = vpop.f32.mrb[0].mxu0
    %v4604 = vpop.f32.mrb[0].mxu0
    %v4605 = vadd.f32 0.0, %v4604
    %v4606 = vpop.f32.mrb[0].mxu0
    %4607 = vmatprep.mubr.bf16.mxu0 0
    %4608 = vmatmul.mubr.bf16.gmra.mrb[0].mxu0 %v362
    %v4609 = vpop.f32.mrb[0].mxu0
    %v4610 = vadd.f32 0.0, %v4609
    %v4611 = vpop.f32.mrb[0].mxu0
    %v4612 = vpop.f32.mrb[0].mxu0
    %v4613 = vadd.f32 0.0, %v4612
    %v4614 = vpop.f32.mrb[0].mxu0
    %4615 = vmatprep.mubr.bf16.mxu0 0
    %4616 = vmatmul.mubr.bf16.gmra.mrb[0].mxu0 %v365
    %v4617 = vpop.f32.mrb[0].mxu0
    %v4618 = vadd.f32 0.0, %v4617
    %v4619 = vpop.f32.mrb[0].mxu0
    %v4620 = vpop.f32.mrb[0].mxu0
    %v4621 = vadd.f32 0.0, %v4620
    %v4622 = vpop.f32.mrb[0].mxu0
    %4623 = vmatprep.mubr.bf16.mxu0 0
    %4624 = vmatmul.mubr.bf16.gmra.mrb[0].mxu0 %v368
    %v4625 = vpop.f32.mrb[0].mxu0
    %v4626 = vadd.f32 0.0, %v4625
    %v4627 = vpop.f32.mrb[0].mxu0
    %v4628 = vpop.f32.mrb[0].mxu0
    %v4629 = vadd.f32 0.0, %v4628
    %v4630 = vpop.f32.mrb[0].mxu0
    %4631 = vmatprep.mubr.bf16.mxu0 0
    %4632 = vmatmul.mubr.bf16.gmra.mrb[0].mxu0 %v371
    %v4633 = vpop.f32.mrb[0].mxu0
    %v4634 = vadd.f32 0.0, %v4633
    %v4635 = vpop.f32.mrb[0].mxu0
    %v4636 = vpop.f32.mrb[0].mxu0
    %v4637 = vadd.f32 0.0, %v4636
    %v4638 = vpop.f32.mrb[0].mxu0
    %4639 = vmatprep.mubr.bf16.mxu0 0
    %4640 = vmatmul.mubr.bf16.gmra.mrb[0].mxu0 %v374
    %v4641 = vpop.f32.mrb[0].mxu0
    %v4642 = vadd.f32 0.0, %v4641
    %v4643 = vpop.f32.mrb[0].mxu0
    %v4644 = vpop.f32.mrb[0].mxu0
    %v4645 = vadd.f32 0.0, %v4644
    %v4646 = vpop.f32.mrb[0].mxu0
    %4647 = vmatprep.mubr.bf16.mxu0 0
    %4648 = vmatmul.mubr.bf16.gmra.mrb[0].mxu0 %v377
    %v4649 = vpop.f32.mrb[0].mxu0
    %v4650 = vadd.f32 0.0, %v4649
    %v4651 = vpop.f32.mrb[0].mxu0
    %v4652 = vpop.f32.mrb[0].mxu0
    %v4653 = vadd.f32 0.0, %v4652
    %v4654 = vpop.f32.mrb[0].mxu0
    %4655 = vmatprep.mubr.bf16.mxu0 0
    %4656 = vmatmul.mubr.bf16.gmra.mrb[0].mxu0 %v380
    %v4657 = vpop.f32.mrb[0].mxu0
    %v4658 = vadd.f32 0.0, %v4657
    %v4659 = vpop.f32.mrb[0].mxu0
    %v4660 = vpop.f32.mrb[0].mxu0
    %v4661 = vadd.f32 0.0, %v4660
    %v4662 = vpop.f32.mrb[0].mxu0
    %4663 = vmatprep.mubr.bf16.mxu0 0
    %4664 = vmatmul.mubr.bf16.gmra.mrb[0].mxu0 %v383
    %v4665 = vpop.f32.mrb[0].mxu0
    %v4666 = vadd.f32 0.0, %v4665
    %v4667 = vpop.f32.mrb[0].mxu0
    %v4668 = vpop.f32.mrb[0].mxu0
    %v4669 = vadd.f32 0.0, %v4668
    %v4670 = vpop.f32.mrb[0].mxu0
    %4671 = vmatprep.mubr.bf16.mxu0 0
    %4672 = vmatmul.mubr.bf16.gmra.mrb[0].mxu0 %v386
    %v4673 = vpop.f32.mrb[0].mxu0
    %v4674 = vadd.f32 0.0, %v4673
    %v4675 = vpop.f32.mrb[0].mxu0
    %v4676 = vpop.f32.mrb[0].mxu0
    %v4677 = vadd.f32 0.0, %v4676
    %v4678 = vpop.f32.mrb[0].mxu0
    %4679 = vmatprep.mubr.bf16.mxu0 0
    %4680 = vmatmul.mubr.bf16.gmra.mrb[0].mxu0 %v389
    %v4681 = vpop.f32.mrb[0].mxu0
    %v4682 = vadd.f32 0.0, %v4681
    %v4683 = vpop.f32.mrb[0].mxu0
    %v4684 = vpop.f32.mrb[0].mxu0
    %v4685 = vadd.f32 0.0, %v4684
    %v4686 = vpop.f32.mrb[0].mxu0
    %4687 = vmatprep.mubr.bf16.mxu0 0
    %4688 = vmatmul.mubr.bf16.gmra.mrb[0].mxu0 %v392
    %v4689 = vpop.f32.mrb[0].mxu0
    %v4690 = vadd.f32 0.0, %v4689
    %v4691 = vpop.f32.mrb[0].mxu0
    %v4692 = vpop.f32.mrb[0].mxu0
    %v4693 = vadd.f32 0.0, %v4692
    %v4694 = vpop.f32.mrb[0].mxu0
    %4695 = vmatprep.mubr.bf16.mxu0 0
    %4696 = vmatmul.mubr.bf16.gmra.mrb[0].mxu0 %v395
    %v4697 = vpop.f32.mrb[0].mxu0
    %v4698 = vadd.f32 0.0, %v4697
    %v4699 = vpop.f32.mrb[0].mxu0
    %v4700 = vpop.f32.mrb[0].mxu0
    %v4701 = vadd.f32 0.0, %v4700
    %v4702 = vpop.f32.mrb[0].mxu0
    %4703 = vmatprep.mubr.bf16.mxu0 0
    %4704 = vmatmul.mubr.bf16.gmra.mrb[0].mxu0 %v398
    %v4705 = vpop.f32.mrb[0].mxu0
    %v4706 = vadd.f32 0.0, %v4705
    %v4707 = vpop.f32.mrb[0].mxu0
    %v4708 = vpop.f32.mrb[0].mxu0
    %v4709 = vadd.f32 0.0, %v4708
    %v4710 = vpop.f32.mrb[0].mxu0
    %4711 = vmatprep.mubr.bf16.mxu0 0
    %4712 = vmatmul.mubr.bf16.gmra.mrb[0].mxu0 %v401
    %v4713 = vpop.f32.mrb[0].mxu0
    %v4714 = vadd.f32 0.0, %v4713
    %v4715 = vpop.f32.mrb[0].mxu0
    %v4716 = vpop.f32.mrb[0].mxu0
    %v4717 = vadd.f32 0.0, %v4716
    %v4718 = vpop.f32.mrb[0].mxu0
    %4719 = vmatprep.mubr.bf16.mxu0 0
    %4720 = vmatmul.mubr.bf16.gmra.mrb[0].mxu0 %v404
    %v4721 = vpop.f32.mrb[0].mxu0
    %v4722 = vadd.f32 0.0, %v4721
    %v4723 = vpop.f32.mrb[0].mxu0
    %v4724 = vpop.f32.mrb[0].mxu0
    %v4725 = vadd.f32 0.0, %v4724
    %v4726 = vpop.f32.mrb[0].mxu0
    %4727 = vmatprep.mubr.bf16.mxu0 0
    %4728 = vmatmul.mubr.bf16.gmra.mrb[0].mxu0 %v407
    %v4729 = vpop.f32.mrb[0].mxu0
    %v4730 = vadd.f32 0.0, %v4729
    %v4731 = vpop.f32.mrb[0].mxu0
    %v4732 = vpop.f32.mrb[0].mxu0
    %v4733 = vadd.f32 0.0, %v4732
    %v4734 = vpop.f32.mrb[0].mxu0
    %4735 = vmatprep.mubr.bf16.mxu0 0
    %4736 = vmatmul.mubr.bf16.gmra.mrb[0].mxu0 %v410
    %v4737 = vpop.f32.mrb[0].mxu0
    %v4738 = vadd.f32 0.0, %v4737
    %v4739 = vpop.f32.mrb[0].mxu0
    %v4740 = vpop.f32.mrb[0].mxu0
    %v4741 = vadd.f32 0.0, %v4740
    %v4742 = vpop.f32.mrb[0].mxu0
    %4743 = vmatprep.mubr.bf16.mxu0 0
    %4744 = vmatmul.mubr.bf16.gmra.mrb[0].mxu0 %v413
    %v4745 = vpop.f32.mrb[0].mxu0
    %v4746 = vadd.f32 0.0, %v4745
    %v4747 = vpop.f32.mrb[0].mxu0
    %v4748 = vpop.f32.mrb[0].mxu0
    %v4749 = vadd.f32 0.0, %v4748
    %v4750 = vpop.f32.mrb[0].mxu0
    %4751 = vmatprep.mubr.bf16.mxu0 0
    %4752 = vmatmul.mubr.bf16.gmra.mrb[0].mxu0 %v416
    %v4753 = vpop.f32.mrb[0].mxu0
    %v4754 = vadd.f32 0.0, %v4753
    %v4755 = vpop.f32.mrb[0].mxu0
    %v4756 = vpop.f32.mrb[0].mxu0
    %v4757 = vadd.f32 0.0, %v4756
    %v4758 = vpop.f32.mrb[0].mxu0
    %4759 = vmatprep.mubr.bf16.mxu0 0
    %4760 = vmatmul.mubr.bf16.gmra.mrb[0].mxu0 %v419
    %v4761 = vpop.f32.mrb[0].mxu0
    %v4762 = vadd.f32 0.0, %v4761
    %v4763 = vpop.f32.mrb[0].mxu0
    %v4764 = vpop.f32.mrb[0].mxu0
    %v4765 = vadd.f32 0.0, %v4764
    %v4766 = vpop.f32.mrb[0].mxu0
    %4767 = vmatprep.mubr.bf16.mxu0 0
    %4768 = vmatmul.mubr.bf16.gmra.mrb[0].mxu0 %v422
    %v4769 = vpop.f32.mrb[0].mxu0
    %v4770 = vadd.f32 0.0, %v4769
    %v4771 = vpop.f32.mrb[0].mxu0
    %v4772 = vpop.f32.mrb[0].mxu0
    %v4773 = vadd.f32 0.0, %v4772
    %v4774 = vpop.f32.mrb[0].mxu0
    %4775 = vmatprep.mubr.bf16.mxu0 0
    %4776 = vmatmul.mubr.bf16.gmra.mrb[0].mxu0 %v425
    %v4777 = vpop.f32.mrb[0].mxu0
    %v4778 = vadd.f32 0.0, %v4777
    %v4779 = vpop.f32.mrb[0].mxu0
    %v4780 = vpop.f32.mrb[0].mxu0
    %v4781 = vadd.f32 0.0, %v4780
    %v4782 = vpop.f32.mrb[0].mxu0
    %4783 = vmatprep.mubr.bf16.mxu0 0
    %4784 = vmatmul.mubr.bf16.gmra.mrb[0].mxu0 %v428
    %v4785 = vpop.f32.mrb[0].mxu0
    %v4786 = vadd.f32 0.0, %v4785
    %v4787 = vpop.f32.mrb[0].mxu0
    %v4788 = vpop.f32.mrb[0].mxu0
    %v4789 = vadd.f32 0.0, %v4788
    %v4790 = vpop.f32.mrb[0].mxu0
    %4791 = vmatprep.mubr.bf16.mxu0 0
    %4792 = vmatmul.mubr.bf16.gmra.mrb[0].mxu0 %v431
    %v4793 = vpop.f32.mrb[0].mxu0
    %v4794 = vadd.f32 0.0, %v4793
    %v4795 = vpop.f32.mrb[0].mxu0
    %v4796 = vpop.f32.mrb[0].mxu0
    %v4797 = vadd.f32 0.0, %v4796
    %v4798 = vpop.f32.mrb[0].mxu0
    %4799 = vmatprep.mubr.bf16.mxu0 0
    %4800 = vmatmul.mubr.bf16.gmra.mrb[0].mxu0 %v434
    %v4801 = vpop.f32.mrb[0].mxu0
    %v4802 = vadd.f32 0.0, %v4801
    %v4803 = vpop.f32.mrb[0].mxu0
    %v4804 = vpop.f32.mrb[0].mxu0
    %v4805 = vadd.f32 0.0, %v4804
    %v4806 = vpop.f32.mrb[0].mxu0
    %4807 = vmatprep.mubr.bf16.mxu0 0
    %4808 = vmatmul.mubr.bf16.gmra.mrb[0].mxu0 %v437
    %v4809 = vpop.f32.mrb[0].mxu0
    %v4810 = vadd.f32 0.0, %v4809
    %v4811 = vpop.f32.mrb[0].mxu0
    %v4812 = vpop.f32.mrb[0].mxu0
    %v4813 = vadd.f32 0.0, %v4812
    %v4814 = vpop.f32.mrb[0].mxu0
    %4815 = vmatprep.mubr.bf16.mxu0 0
    %4816 = vmatmul.mubr.bf16.gmra.mrb[0].mxu0 %v440
    %v4817 = vpop.f32.mrb[0].mxu0
    %v4818 = vadd.f32 0.0, %v4817
    %v4819 = vpop.f32.mrb[0].mxu0
    %v4820 = vpop.f32.mrb[0].mxu0
    %v4821 = vadd.f32 0.0, %v4820
    %v4822 = vpop.f32.mrb[0].mxu0
    %4823 = vmatprep.mubr.bf16.mxu0 0
    %4824 = vmatmul.mubr.bf16.gmra.mrb[0].mxu0 %v443
    %v4825 = vpop.f32.mrb[0].mxu0
    %v4826 = vadd.f32 0.0, %v4825
    %v4827 = vpop.f32.mrb[0].mxu0
    %v4828 = vpop.f32.mrb[0].mxu0
    %v4829 = vadd.f32 0.0, %v4828
    %v4830 = vpop.f32.mrb[0].mxu0
    %4831 = vmatprep.mubr.bf16.mxu0 0
    %4832 = vmatmul.mubr.bf16.gmra.mrb[0].mxu0 %v446
    %v4833 = vpop.f32.mrb[0].mxu0
    %v4834 = vadd.f32 0.0, %v4833
    %v4835 = vpop.f32.mrb[0].mxu0
    %v4836 = vpop.f32.mrb[0].mxu0
    %v4837 = vadd.f32 0.0, %v4836
    %v4838 = vpop.f32.mrb[0].mxu0
    %4839 = vmatprep.mubr.bf16.mxu0 0
    %4840 = vmatmul.mubr.bf16.gmra.mrb[0].mxu0 %v449
    %v4841 = vpop.f32.mrb[0].mxu0
    %v4842 = vadd.f32 0.0, %v4841
    %v4843 = vpop.f32.mrb[0].mxu0
    %v4844 = vpop.f32.mrb[0].mxu0
    %v4845 = vadd.f32 0.0, %v4844
    %v4846 = vpop.f32.mrb[0].mxu0
    %4847 = vmatprep.mubr.bf16.mxu0 0
    %4848 = vmatmul.mubr.bf16.gmra.mrb[0].mxu0 %v452
    %v4849 = vpop.f32.mrb[0].mxu0
    %v4850 = vadd.f32 0.0, %v4849
    %v4851 = vpop.f32.mrb[0].mxu0
    %v4852 = vpop.f32.mrb[0].mxu0
    %v4853 = vadd.f32 0.0, %v4852
    %v4854 = vpop.f32.mrb[0].mxu0
    %4855 = vdwg.mxu0
    %v4856 = vrot.slane %v4530, 2
    %v4857 = vrot.slane %v4533, 2
    %v4858 = vrot.slane %v4538, 2
    %v4859 = vrot.slane %v4541, 2
    %v4860 = vrot.slane %v4546, 2
    %v4861 = vrot.slane %v4549, 2
    %v4862 = vrot.slane %v4554, 2
    %v4863 = vrot.slane %v4557, 2
    %v4864 = vrot.slane %v4562, 2
    %v4865 = vrot.slane %v4565, 2
    %v4866 = vrot.slane %v4570, 2
    %v4867 = vrot.slane %v4573, 2
    %v4868 = vrot.slane %v4578, 2
    %v4869 = vrot.slane %v4581, 2
    %v4870 = vrot.slane %v4586, 2
    %v4871 = vrot.slane %v4589, 2
    %v4872 = vrot.slane %v4594, 2
    %v4873 = vrot.slane %v4597, 2
    %v4874 = vrot.slane %v4602, 2
    %v4875 = vrot.slane %v4605, 2
    %v4876 = vrot.slane %v4610, 2
    %v4877 = vrot.slane %v4613, 2
    %v4878 = vrot.slane %v4618, 2
    %v4879 = vrot.slane %v4621, 2
    %v4880 = vrot.slane %v4626, 2
    %v4881 = vrot.slane %v4629, 2
    %v4882 = vrot.slane %v4634, 2
    %v4883 = vrot.slane %v4637, 2
    %v4884 = vrot.slane %v4642, 2
    %v4885 = vrot.slane %v4645, 2
    %v4886 = vrot.slane %v4650, 2
    %v4887 = vrot.slane %v4653, 2
    %v4888 = vrot.slane %v4658, 2
    %v4889 = vrot.slane %v4661, 2
    %v4890 = vrot.slane %v4666, 2
    %v4891 = vrot.slane %v4669, 2
    %v4892 = vrot.slane %v4674, 2
    %v4893 = vrot.slane %v4677, 2
    %v4894 = vrot.slane %v4682, 2
    %v4895 = vrot.slane %v4685, 2
    %v4896 = vrot.slane %v4690, 2
    %v4897 = vrot.slane %v4693, 2
    %v4898 = vrot.slane %v4698, 2
    %v4899 = vrot.slane %v4701, 2
    %v4900 = vrot.slane %v4706, 2
    %v4901 = vrot.slane %v4709, 2
    %v4902 = vrot.slane %v4714, 2
    %v4903 = vrot.slane %v4717, 2
    %v4904 = vrot.slane %v4722, 2
    %v4905 = vrot.slane %v4725, 2
    %v4906 = vrot.slane %v4730, 2
    %v4907 = vrot.slane %v4733, 2
    %v4908 = vrot.slane %v4738, 2
    %v4909 = vrot.slane %v4741, 2
    %v4910 = vrot.slane %v4746, 2
    %v4911 = vrot.slane %v4749, 2
    %v4912 = vrot.slane %v4754, 2
    %v4913 = vrot.slane %v4757, 2
    %v4914 = vrot.slane %v4762, 2
    %v4915 = vrot.slane %v4765, 2
    %v4916 = vrot.slane %v4770, 2
    %v4917 = vrot.slane %v4773, 2
    %v4918 = vrot.slane %v4778, 2
    %v4919 = vrot.slane %v4781, 2
    %v4920 = vrot.slane %v4786, 2
    %v4921 = vrot.slane %v4789, 2
    %v4922 = vrot.slane %v4794, 2
    %v4923 = vrot.slane %v4797, 2
    %v4924 = vrot.slane %v4802, 2
    %v4925 = vrot.slane %v4805, 2
    %v4926 = vrot.slane %v4810, 2
    %v4927 = vrot.slane %v4813, 2
    %v4928 = vrot.slane %v4818, 2
    %v4929 = vrot.slane %v4821, 2
    %v4930 = vrot.slane %v4826, 2
    %v4931 = vrot.slane %v4829, 2
    %v4932 = vrot.slane %v4834, 2
    %v4933 = vrot.slane %v4837, 2
    %v4934 = vrot.slane %v4842, 2
    %v4935 = vrot.slane %v4845, 2
    %v4936 = vrot.slane %v4850, 2
    %v4937 = vrot.slane %v4853, 2
    %vm4938 = vcmp.lt.s32.totalorder %v898, 6
    %v4939 = vsel %vm4938, %v4936, %v4937
    %v4940 = vsel %vm4938, %v4935, %v4936
    %v4941 = vsel %vm4938, %v4934, %v4935
    %v4942 = vsel %vm4938, %v4933, %v4934
    %v4943 = vsel %vm4938, %v4932, %v4933
    %v4944 = vsel %vm4938, %v4931, %v4932
    %v4945 = vsel %vm4938, %v4930, %v4931
    %v4946 = vsel %vm4938, %v4929, %v4930
    %v4947 = vsel %vm4938, %v4928, %v4929
    %v4948 = vsel %vm4938, %v4927, %v4928
    %v4949 = vsel %vm4938, %v4926, %v4927
    %v4950 = vsel %vm4938, %v4925, %v4926
    %v4951 = vsel %vm4938, %v4924, %v4925
    %v4952 = vsel %vm4938, %v4923, %v4924
    %v4953 = vsel %vm4938, %v4922, %v4923
    %v4954 = vsel %vm4938, %v4921, %v4922
    %v4955 = vsel %vm4938, %v4920, %v4921
    %v4956 = vsel %vm4938, %v4919, %v4920
    %v4957 = vsel %vm4938, %v4918, %v4919
    %v4958 = vsel %vm4938, %v4917, %v4918
    %v4959 = vsel %vm4938, %v4916, %v4917
    %v4960 = vsel %vm4938, %v4915, %v4916
    %v4961 = vsel %vm4938, %v4914, %v4915
    %v4962 = vsel %vm4938, %v4913, %v4914
    %v4963 = vsel %vm4938, %v4912, %v4913
    %v4964 = vsel %vm4938, %v4911, %v4912
    %v4965 = vsel %vm4938, %v4910, %v4911
    %v4966 = vsel %vm4938, %v4909, %v4910
    %v4967 = vsel %vm4938, %v4908, %v4909
    %v4968 = vsel %vm4938, %v4907, %v4908
    %v4969 = vsel %vm4938, %v4906, %v4907
    %v4970 = vsel %vm4938, %v4905, %v4906
    %v4971 = vsel %vm4938, %v4904, %v4905
    %v4972 = vsel %vm4938, %v4903, %v4904
    %v4973 = vsel %vm4938, %v4902, %v4903
    %v4974 = vsel %vm4938, %v4901, %v4902
    %v4975 = vsel %vm4938, %v4900, %v4901
    %v4976 = vsel %vm4938, %v4899, %v4900
    %v4977 = vsel %vm4938, %v4898, %v4899
    %v4978 = vsel %vm4938, %v4897, %v4898
    %v4979 = vsel %vm4938, %v4896, %v4897
    %v4980 = vsel %vm4938, %v4895, %v4896
    %v4981 = vsel %vm4938, %v4894, %v4895
    %v4982 = vsel %vm4938, %v4893, %v4894
    %v4983 = vsel %vm4938, %v4892, %v4893
    %v4984 = vsel %vm4938, %v4891, %v4892
    %v4985 = vsel %vm4938, %v4890, %v4891
    %v4986 = vsel %vm4938, %v4889, %v4890
    %v4987 = vsel %vm4938, %v4888, %v4889
    %v4988 = vsel %vm4938, %v4887, %v4888
    %v4989 = vsel %vm4938, %v4886, %v4887
    %v4990 = vsel %vm4938, %v4885, %v4886
    %v4991 = vsel %vm4938, %v4884, %v4885
    %v4992 = vsel %vm4938, %v4883, %v4884
    %v4993 = vsel %vm4938, %v4882, %v4883
    %v4994 = vsel %vm4938, %v4881, %v4882
    %v4995 = vsel %vm4938, %v4880, %v4881
    %v4996 = vsel %vm4938, %v4879, %v4880
    %v4997 = vsel %vm4938, %v4878, %v4879
    %v4998 = vsel %vm4938, %v4877, %v4878
    %v4999 = vsel %vm4938, %v4876, %v4877
    %v5000 = vsel %vm4938, %v4875, %v4876
    %v5001 = vsel %vm4938, %v4874, %v4875
    %v5002 = vsel %vm4938, %v4873, %v4874
    %v5003 = vsel %vm4938, %v4872, %v4873
    %v5004 = vsel %vm4938, %v4871, %v4872
    %v5005 = vsel %vm4938, %v4870, %v4871
    %v5006 = vsel %vm4938, %v4869, %v4870
    %v5007 = vsel %vm4938, %v4868, %v4869
    %v5008 = vsel %vm4938, %v4867, %v4868
    %v5009 = vsel %vm4938, %v4866, %v4867
    %v5010 = vsel %vm4938, %v4865, %v4866
    %v5011 = vsel %vm4938, %v4864, %v4865
    %v5012 = vsel %vm4938, %v4863, %v4864
    %v5013 = vsel %vm4938, %v4862, %v4863
    %v5014 = vsel %vm4938, %v4861, %v4862
    %v5015 = vsel %vm4938, %v4860, %v4861
    %v5016 = vsel %vm4938, %v4859, %v4860
    %v5017 = vsel %vm4938, %v4858, %v4859
    %v5018 = vsel %vm4938, %v4857, %v4858
    %v5019 = vsel %vm4938, %v4856, %v4857
    %v5020 = vsel %vm4938, %v4937, %v4856
    %v5021 = vadd.f32 %v4396, %v5017
    %v5022 = vadd.f32 %v4397, %v5016
    %v5023 = vadd.f32 %v4398, %v5015
    %v5024 = vadd.f32 %v4399, %v5014
    %v5025 = vadd.f32 %v4400, %v5013
    %v5026 = vadd.f32 %v4401, %v5012
    %v5027 = vadd.f32 %v4402, %v5011
    %v5028 = vadd.f32 %v4403, %v5010
    %v5029 = vadd.f32 %v4404, %v5009
    %v5030 = vadd.f32 %v4405, %v5008
    %v5031 = vadd.f32 %v4406, %v5007
    %v5032 = vadd.f32 %v4407, %v5006
    %v5033 = vadd.f32 %v4408, %v5005
    %v5034 = vadd.f32 %v4409, %v5004
    %v5035 = vadd.f32 %v4410, %v5003
    %v5036 = vadd.f32 %v4411, %v5002
    %v5037 = vadd.f32 %v4412, %v5001
    %v5038 = vadd.f32 %v4413, %v5000
    %v5039 = vadd.f32 %v4414, %v4999
    %v5040 = vadd.f32 %v4415, %v4998
    %v5041 = vadd.f32 %v4416, %v4997
    %v5042 = vadd.f32 %v4417, %v4996
    %v5043 = vadd.f32 %v4418, %v4995
    %v5044 = vadd.f32 %v4419, %v4994
    %v5045 = vadd.f32 %v4420, %v4993
    %v5046 = vadd.f32 %v4421, %v4992
    %v5047 = vadd.f32 %v4422, %v4991
    %v5048 = vadd.f32 %v4423, %v4990
    %v5049 = vadd.f32 %v4424, %v4989
    %v5050 = vadd.f32 %v4425, %v4988
    %v5051 = vadd.f32 %v4426, %v4987
    %v5052 = vadd.f32 %v4427, %v4986
    %v5053 = vadd.f32 %v4428, %v4985
    %v5054 = vadd.f32 %v4429, %v4984
    %v5055 = vadd.f32 %v4430, %v4983
    %v5056 = vadd.f32 %v4431, %v4982
    %v5057 = vadd.f32 %v4432, %v4981
    %v5058 = vadd.f32 %v4433, %v4980
    %v5059 = vadd.f32 %v4434, %v4979
    %v5060 = vadd.f32 %v4435, %v4978
    %v5061 = vadd.f32 %v4436, %v4977
    %v5062 = vadd.f32 %v4437, %v4976
    %v5063 = vadd.f32 %v4438, %v4975
    %v5064 = vadd.f32 %v4439, %v4974
    %v5065 = vadd.f32 %v4440, %v4973
    %v5066 = vadd.f32 %v4441, %v4972
    %v5067 = vadd.f32 %v4442, %v4971
    %v5068 = vadd.f32 %v4443, %v4970
    %v5069 = vadd.f32 %v4444, %v4969
    %v5070 = vadd.f32 %v4445, %v4968
    %v5071 = vadd.f32 %v4446, %v4967
    %v5072 = vadd.f32 %v4447, %v4966
    %v5073 = vadd.f32 %v4448, %v4965
    %v5074 = vadd.f32 %v4449, %v4964
    %v5075 = vadd.f32 %v4450, %v4963
    %v5076 = vadd.f32 %v4451, %v4962
    %v5077 = vadd.f32 %v4452, %v4961
    %v5078 = vadd.f32 %v4453, %v4960
    %v5079 = vadd.f32 %v4454, %v4959
    %v5080 = vadd.f32 %v4455, %v4958
    %v5081 = vadd.f32 %v4456, %v4957
    %v5082 = vadd.f32 %v4457, %v4956
    %v5083 = vadd.f32 %v4458, %v4955
    %v5084 = vadd.f32 %v4459, %v4954
    %v5085 = vadd.f32 %v4460, %v4953
    %v5086 = vadd.f32 %v4461, %v4952
    %v5087 = vadd.f32 %v4462, %v4951
    %v5088 = vadd.f32 %v4463, %v4950
    %v5089 = vadd.f32 %v4464, %v4949
    %v5090 = vadd.f32 %v4465, %v4948
    %v5091 = vadd.f32 %v4466, %v4947
    %v5092 = vadd.f32 %v4467, %v4946
    %v5093 = vadd.f32 %v4468, %v4945
    %v5094 = vadd.f32 %v4469, %v4944
    %v5095 = vadd.f32 %v4470, %v4943
    %v5096 = vadd.f32 %v4471, %v4942
    %v5097 = vadd.f32 %v4472, %v4941
    %v5098 = vadd.f32 %v4473, %v4940
    %v5099 = vadd.f32 %v4474, %v4939
    %v5100 = vadd.f32 %v4475, %v5020
    %v5101 = vadd.f32 %v4476, %v5019
    %v5102 = vadd.f32 %v4477, %v5018
    %s5103 = scalar_lea.vmem %s1, 128
    %v5104 = vld [vmem:[%s5103] sm:$0xf]
    %v5105 = vld [vmem:[%s5103 + $0x4] sm:$0xf]
    %v5106 = vld [vmem:[%s5103 + $0x8] sm:$0xf]
    %v5107 = vld [vmem:[%s5103 + $0xc] sm:$0xf]
    %v5112 = vunpack.c.l.b16 %v5104
    %v5113 = vunpack.c.l.b16 %v5105
    %v5114 = vunpack.c.l.b16 %v5106
    %v5115 = vunpack.c.l.b16 %v5107
    %v5116 = vpack.c.b16 %v5113, %v5112
    %v5117 = vpack.c.b16 %v5115, %v5114
    %5120 = vmatprep.subr.bf16.mxu0 0
    %5121 = vmatpush1.bf16.msra.mxu0 %v5116
    %5122 = vmatprep.subr.bf16.mxu0 0
    %5123 = vmatpush1.bf16.msra.mxu0 %v5117
    %5124 = vmatprep.subr.bf16.mxu0 0
    %5125 = vmatpush1.bf16.msra.mxu0 0
    %5126 = vmatprep.subr.bf16.mxu0 0
    %5127 = vmatpush1.bf16.msra.mxu0 0
    %5128 = vmatprep.subr.bf16.mxu0 0
    %5129 = vmatpush1.bf16.msra.mxu0 0
    %5130 = vmatprep.subr.bf16.mxu0 0
    %5131 = vmatpush1.bf16.msra.mxu0 0
    %5132 = vmatprep.subr.bf16.mxu0 0
    %5133 = vmatpush1.bf16.msra.mxu0 0
    %5134 = vmatprep.subr.bf16.mxu0 0
    %5135 = vmatpush1.bf16.msra.mxu0 0
    %5136 = vmatprep.subr.bf16.mxu0 0
    %5137 = vmatpush1.bf16.msra.mxu0 0
    %5138 = vmatprep.subr.bf16.mxu0 0
    %5139 = vmatpush1.bf16.msra.mxu0 0
    %5140 = vmatprep.subr.bf16.mxu0 0
    %5141 = vmatpush1.bf16.msra.mxu0 0
    %5142 = vmatprep.subr.bf16.mxu0 0
    %5143 = vmatpush1.bf16.msra.mxu0 0
    %5144 = vmatprep.subr.bf16.mxu0 0
    %5145 = vmatpush1.bf16.msra.mxu0 0
    %5146 = vmatprep.subr.bf16.mxu0 0
    %5147 = vmatpush1.bf16.msra.mxu0 0
    %5148 = vmatprep.subr.bf16.mxu0 0
    %5149 = vmatpush1.bf16.msra.mxu0 0
    %5150 = vmatprep.subr.bf16.mxu0 0
    %5151 = vmatpush1.bf16.msra.mxu0 0
    %5152 = vmatprep.mubr.bf16.mxu0 0
    %5153 = vmatmul.mubr.bf16.gmra.mrb[0].mxu0 %v332
    %v5154 = vpop.f32.mrb[0].mxu0
    %v5155 = vadd.f32 0.0, %v5154
    %v5156 = vpop.f32.mrb[0].mxu0
    %v5157 = vpop.f32.mrb[0].mxu0
    %v5158 = vadd.f32 0.0, %v5157
    %v5159 = vpop.f32.mrb[0].mxu0
    %5160 = vmatprep.mubr.bf16.mxu0 0
    %5161 = vmatmul.mubr.bf16.gmra.mrb[0].mxu0 %v335
    %v5162 = vpop.f32.mrb[0].mxu0
    %v5163 = vadd.f32 0.0, %v5162
    %v5164 = vpop.f32.mrb[0].mxu0
    %v5165 = vpop.f32.mrb[0].mxu0
    %v5166 = vadd.f32 0.0, %v5165
    %v5167 = vpop.f32.mrb[0].mxu0
    %5168 = vmatprep.mubr.bf16.mxu0 0
    %5169 = vmatmul.mubr.bf16.gmra.mrb[0].mxu0 %v338
    %v5170 = vpop.f32.mrb[0].mxu0
    %v5171 = vadd.f32 0.0, %v5170
    %v5172 = vpop.f32.mrb[0].mxu0
    %v5173 = vpop.f32.mrb[0].mxu0
    %v5174 = vadd.f32 0.0, %v5173
    %v5175 = vpop.f32.mrb[0].mxu0
    %5176 = vmatprep.mubr.bf16.mxu0 0
    %5177 = vmatmul.mubr.bf16.gmra.mrb[0].mxu0 %v341
    %v5178 = vpop.f32.mrb[0].mxu0
    %v5179 = vadd.f32 0.0, %v5178
    %v5180 = vpop.f32.mrb[0].mxu0
    %v5181 = vpop.f32.mrb[0].mxu0
    %v5182 = vadd.f32 0.0, %v5181
    %v5183 = vpop.f32.mrb[0].mxu0
    %5184 = vmatprep.mubr.bf16.mxu0 0
    %5185 = vmatmul.mubr.bf16.gmra.mrb[0].mxu0 %v344
    %v5186 = vpop.f32.mrb[0].mxu0
    %v5187 = vadd.f32 0.0, %v5186
    %v5188 = vpop.f32.mrb[0].mxu0
    %v5189 = vpop.f32.mrb[0].mxu0
    %v5190 = vadd.f32 0.0, %v5189
    %v5191 = vpop.f32.mrb[0].mxu0
    %5192 = vmatprep.mubr.bf16.mxu0 0
    %5193 = vmatmul.mubr.bf16.gmra.mrb[0].mxu0 %v347
    %v5194 = vpop.f32.mrb[0].mxu0
    %v5195 = vadd.f32 0.0, %v5194
    %v5196 = vpop.f32.mrb[0].mxu0
    %v5197 = vpop.f32.mrb[0].mxu0
    %v5198 = vadd.f32 0.0, %v5197
    %v5199 = vpop.f32.mrb[0].mxu0
    %5200 = vmatprep.mubr.bf16.mxu0 0
    %5201 = vmatmul.mubr.bf16.gmra.mrb[0].mxu0 %v350
    %v5202 = vpop.f32.mrb[0].mxu0
    %v5203 = vadd.f32 0.0, %v5202
    %v5204 = vpop.f32.mrb[0].mxu0
    %v5205 = vpop.f32.mrb[0].mxu0
    %v5206 = vadd.f32 0.0, %v5205
    %v5207 = vpop.f32.mrb[0].mxu0
    %5208 = vmatprep.mubr.bf16.mxu0 0
    %5209 = vmatmul.mubr.bf16.gmra.mrb[0].mxu0 %v353
    %v5210 = vpop.f32.mrb[0].mxu0
    %v5211 = vadd.f32 0.0, %v5210
    %v5212 = vpop.f32.mrb[0].mxu0
    %v5213 = vpop.f32.mrb[0].mxu0
    %v5214 = vadd.f32 0.0, %v5213
    %v5215 = vpop.f32.mrb[0].mxu0
    %5216 = vmatprep.mubr.bf16.mxu0 0
    %5217 = vmatmul.mubr.bf16.gmra.mrb[0].mxu0 %v356
    %v5218 = vpop.f32.mrb[0].mxu0
    %v5219 = vadd.f32 0.0, %v5218
    %v5220 = vpop.f32.mrb[0].mxu0
    %v5221 = vpop.f32.mrb[0].mxu0
    %v5222 = vadd.f32 0.0, %v5221
    %v5223 = vpop.f32.mrb[0].mxu0
    %5224 = vmatprep.mubr.bf16.mxu0 0
    %5225 = vmatmul.mubr.bf16.gmra.mrb[0].mxu0 %v359
    %v5226 = vpop.f32.mrb[0].mxu0
    %v5227 = vadd.f32 0.0, %v5226
    %v5228 = vpop.f32.mrb[0].mxu0
    %v5229 = vpop.f32.mrb[0].mxu0
    %v5230 = vadd.f32 0.0, %v5229
    %v5231 = vpop.f32.mrb[0].mxu0
    %5232 = vmatprep.mubr.bf16.mxu0 0
    %5233 = vmatmul.mubr.bf16.gmra.mrb[0].mxu0 %v362
    %v5234 = vpop.f32.mrb[0].mxu0
    %v5235 = vadd.f32 0.0, %v5234
    %v5236 = vpop.f32.mrb[0].mxu0
    %v5237 = vpop.f32.mrb[0].mxu0
    %v5238 = vadd.f32 0.0, %v5237
    %v5239 = vpop.f32.mrb[0].mxu0
    %5240 = vmatprep.mubr.bf16.mxu0 0
    %5241 = vmatmul.mubr.bf16.gmra.mrb[0].mxu0 %v365
    %v5242 = vpop.f32.mrb[0].mxu0
    %v5243 = vadd.f32 0.0, %v5242
    %v5244 = vpop.f32.mrb[0].mxu0
    %v5245 = vpop.f32.mrb[0].mxu0
    %v5246 = vadd.f32 0.0, %v5245
    %v5247 = vpop.f32.mrb[0].mxu0
    %5248 = vmatprep.mubr.bf16.mxu0 0
    %5249 = vmatmul.mubr.bf16.gmra.mrb[0].mxu0 %v368
    %v5250 = vpop.f32.mrb[0].mxu0
    %v5251 = vadd.f32 0.0, %v5250
    %v5252 = vpop.f32.mrb[0].mxu0
    %v5253 = vpop.f32.mrb[0].mxu0
    %v5254 = vadd.f32 0.0, %v5253
    %v5255 = vpop.f32.mrb[0].mxu0
    %5256 = vmatprep.mubr.bf16.mxu0 0
    %5257 = vmatmul.mubr.bf16.gmra.mrb[0].mxu0 %v371
    %v5258 = vpop.f32.mrb[0].mxu0
    %v5259 = vadd.f32 0.0, %v5258
    %v5260 = vpop.f32.mrb[0].mxu0
    %v5261 = vpop.f32.mrb[0].mxu0
    %v5262 = vadd.f32 0.0, %v5261
    %v5263 = vpop.f32.mrb[0].mxu0
    %5264 = vmatprep.mubr.bf16.mxu0 0
    %5265 = vmatmul.mubr.bf16.gmra.mrb[0].mxu0 %v374
    %v5266 = vpop.f32.mrb[0].mxu0
    %v5267 = vadd.f32 0.0, %v5266
    %v5268 = vpop.f32.mrb[0].mxu0
    %v5269 = vpop.f32.mrb[0].mxu0
    %v5270 = vadd.f32 0.0, %v5269
    %v5271 = vpop.f32.mrb[0].mxu0
    %5272 = vmatprep.mubr.bf16.mxu0 0
    %5273 = vmatmul.mubr.bf16.gmra.mrb[0].mxu0 %v377
    %v5274 = vpop.f32.mrb[0].mxu0
    %v5275 = vadd.f32 0.0, %v5274
    %v5276 = vpop.f32.mrb[0].mxu0
    %v5277 = vpop.f32.mrb[0].mxu0
    %v5278 = vadd.f32 0.0, %v5277
    %v5279 = vpop.f32.mrb[0].mxu0
    %5280 = vmatprep.mubr.bf16.mxu0 0
    %5281 = vmatmul.mubr.bf16.gmra.mrb[0].mxu0 %v380
    %v5282 = vpop.f32.mrb[0].mxu0
    %v5283 = vadd.f32 0.0, %v5282
    %v5284 = vpop.f32.mrb[0].mxu0
    %v5285 = vpop.f32.mrb[0].mxu0
    %v5286 = vadd.f32 0.0, %v5285
    %v5287 = vpop.f32.mrb[0].mxu0
    %5288 = vmatprep.mubr.bf16.mxu0 0
    %5289 = vmatmul.mubr.bf16.gmra.mrb[0].mxu0 %v383
    %v5290 = vpop.f32.mrb[0].mxu0
    %v5291 = vadd.f32 0.0, %v5290
    %v5292 = vpop.f32.mrb[0].mxu0
    %v5293 = vpop.f32.mrb[0].mxu0
    %v5294 = vadd.f32 0.0, %v5293
    %v5295 = vpop.f32.mrb[0].mxu0
    %5296 = vmatprep.mubr.bf16.mxu0 0
    %5297 = vmatmul.mubr.bf16.gmra.mrb[0].mxu0 %v386
    %v5298 = vpop.f32.mrb[0].mxu0
    %v5299 = vadd.f32 0.0, %v5298
    %v5300 = vpop.f32.mrb[0].mxu0
    %v5301 = vpop.f32.mrb[0].mxu0
    %v5302 = vadd.f32 0.0, %v5301
    %v5303 = vpop.f32.mrb[0].mxu0
    %5304 = vmatprep.mubr.bf16.mxu0 0
    %5305 = vmatmul.mubr.bf16.gmra.mrb[0].mxu0 %v389
    %v5306 = vpop.f32.mrb[0].mxu0
    %v5307 = vadd.f32 0.0, %v5306
    %v5308 = vpop.f32.mrb[0].mxu0
    %v5309 = vpop.f32.mrb[0].mxu0
    %v5310 = vadd.f32 0.0, %v5309
    %v5311 = vpop.f32.mrb[0].mxu0
    %5312 = vmatprep.mubr.bf16.mxu0 0
    %5313 = vmatmul.mubr.bf16.gmra.mrb[0].mxu0 %v392
    %v5314 = vpop.f32.mrb[0].mxu0
    %v5315 = vadd.f32 0.0, %v5314
    %v5316 = vpop.f32.mrb[0].mxu0
    %v5317 = vpop.f32.mrb[0].mxu0
    %v5318 = vadd.f32 0.0, %v5317
    %v5319 = vpop.f32.mrb[0].mxu0
    %5320 = vmatprep.mubr.bf16.mxu0 0
    %5321 = vmatmul.mubr.bf16.gmra.mrb[0].mxu0 %v395
    %v5322 = vpop.f32.mrb[0].mxu0
    %v5323 = vadd.f32 0.0, %v5322
    %v5324 = vpop.f32.mrb[0].mxu0
    %v5325 = vpop.f32.mrb[0].mxu0
    %v5326 = vadd.f32 0.0, %v5325
    %v5327 = vpop.f32.mrb[0].mxu0
    %5328 = vmatprep.mubr.bf16.mxu0 0
    %5329 = vmatmul.mubr.bf16.gmra.mrb[0].mxu0 %v398
    %v5330 = vpop.f32.mrb[0].mxu0
    %v5331 = vadd.f32 0.0, %v5330
    %v5332 = vpop.f32.mrb[0].mxu0
    %v5333 = vpop.f32.mrb[0].mxu0
    %v5334 = vadd.f32 0.0, %v5333
    %v5335 = vpop.f32.mrb[0].mxu0
    %5336 = vmatprep.mubr.bf16.mxu0 0
    %5337 = vmatmul.mubr.bf16.gmra.mrb[0].mxu0 %v401
    %v5338 = vpop.f32.mrb[0].mxu0
    %v5339 = vadd.f32 0.0, %v5338
    %v5340 = vpop.f32.mrb[0].mxu0
    %v5341 = vpop.f32.mrb[0].mxu0
    %v5342 = vadd.f32 0.0, %v5341
    %v5343 = vpop.f32.mrb[0].mxu0
    %5344 = vmatprep.mubr.bf16.mxu0 0
    %5345 = vmatmul.mubr.bf16.gmra.mrb[0].mxu0 %v404
    %v5346 = vpop.f32.mrb[0].mxu0
    %v5347 = vadd.f32 0.0, %v5346
    %v5348 = vpop.f32.mrb[0].mxu0
    %v5349 = vpop.f32.mrb[0].mxu0
    %v5350 = vadd.f32 0.0, %v5349
    %v5351 = vpop.f32.mrb[0].mxu0
    %5352 = vmatprep.mubr.bf16.mxu0 0
    %5353 = vmatmul.mubr.bf16.gmra.mrb[0].mxu0 %v407
    %v5354 = vpop.f32.mrb[0].mxu0
    %v5355 = vadd.f32 0.0, %v5354
    %v5356 = vpop.f32.mrb[0].mxu0
    %v5357 = vpop.f32.mrb[0].mxu0
    %v5358 = vadd.f32 0.0, %v5357
    %v5359 = vpop.f32.mrb[0].mxu0
    %5360 = vmatprep.mubr.bf16.mxu0 0
    %5361 = vmatmul.mubr.bf16.gmra.mrb[0].mxu0 %v410
    %v5362 = vpop.f32.mrb[0].mxu0
    %v5363 = vadd.f32 0.0, %v5362
    %v5364 = vpop.f32.mrb[0].mxu0
    %v5365 = vpop.f32.mrb[0].mxu0
    %v5366 = vadd.f32 0.0, %v5365
    %v5367 = vpop.f32.mrb[0].mxu0
    %5368 = vmatprep.mubr.bf16.mxu0 0
    %5369 = vmatmul.mubr.bf16.gmra.mrb[0].mxu0 %v413
    %v5370 = vpop.f32.mrb[0].mxu0
    %v5371 = vadd.f32 0.0, %v5370
    %v5372 = vpop.f32.mrb[0].mxu0
    %v5373 = vpop.f32.mrb[0].mxu0
    %v5374 = vadd.f32 0.0, %v5373
    %v5375 = vpop.f32.mrb[0].mxu0
    %5376 = vmatprep.mubr.bf16.mxu0 0
    %5377 = vmatmul.mubr.bf16.gmra.mrb[0].mxu0 %v416
    %v5378 = vpop.f32.mrb[0].mxu0
    %v5379 = vadd.f32 0.0, %v5378
    %v5380 = vpop.f32.mrb[0].mxu0
    %v5381 = vpop.f32.mrb[0].mxu0
    %v5382 = vadd.f32 0.0, %v5381
    %v5383 = vpop.f32.mrb[0].mxu0
    %5384 = vmatprep.mubr.bf16.mxu0 0
    %5385 = vmatmul.mubr.bf16.gmra.mrb[0].mxu0 %v419
    %v5386 = vpop.f32.mrb[0].mxu0
    %v5387 = vadd.f32 0.0, %v5386
    %v5388 = vpop.f32.mrb[0].mxu0
    %v5389 = vpop.f32.mrb[0].mxu0
    %v5390 = vadd.f32 0.0, %v5389
    %v5391 = vpop.f32.mrb[0].mxu0
    %5392 = vmatprep.mubr.bf16.mxu0 0
    %5393 = vmatmul.mubr.bf16.gmra.mrb[0].mxu0 %v422
    %v5394 = vpop.f32.mrb[0].mxu0
    %v5395 = vadd.f32 0.0, %v5394
    %v5396 = vpop.f32.mrb[0].mxu0
    %v5397 = vpop.f32.mrb[0].mxu0
    %v5398 = vadd.f32 0.0, %v5397
    %v5399 = vpop.f32.mrb[0].mxu0
    %5400 = vmatprep.mubr.bf16.mxu0 0
    %5401 = vmatmul.mubr.bf16.gmra.mrb[0].mxu0 %v425
    %v5402 = vpop.f32.mrb[0].mxu0
    %v5403 = vadd.f32 0.0, %v5402
    %v5404 = vpop.f32.mrb[0].mxu0
    %v5405 = vpop.f32.mrb[0].mxu0
    %v5406 = vadd.f32 0.0, %v5405
    %v5407 = vpop.f32.mrb[0].mxu0
    %5408 = vmatprep.mubr.bf16.mxu0 0
    %5409 = vmatmul.mubr.bf16.gmra.mrb[0].mxu0 %v428
    %v5410 = vpop.f32.mrb[0].mxu0
    %v5411 = vadd.f32 0.0, %v5410
    %v5412 = vpop.f32.mrb[0].mxu0
    %v5413 = vpop.f32.mrb[0].mxu0
    %v5414 = vadd.f32 0.0, %v5413
    %v5415 = vpop.f32.mrb[0].mxu0
    %5416 = vmatprep.mubr.bf16.mxu0 0
    %5417 = vmatmul.mubr.bf16.gmra.mrb[0].mxu0 %v431
    %v5418 = vpop.f32.mrb[0].mxu0
    %v5419 = vadd.f32 0.0, %v5418
    %v5420 = vpop.f32.mrb[0].mxu0
    %v5421 = vpop.f32.mrb[0].mxu0
    %v5422 = vadd.f32 0.0, %v5421
    %v5423 = vpop.f32.mrb[0].mxu0
    %5424 = vmatprep.mubr.bf16.mxu0 0
    %5425 = vmatmul.mubr.bf16.gmra.mrb[0].mxu0 %v434
    %v5426 = vpop.f32.mrb[0].mxu0
    %v5427 = vadd.f32 0.0, %v5426
    %v5428 = vpop.f32.mrb[0].mxu0
    %v5429 = vpop.f32.mrb[0].mxu0
    %v5430 = vadd.f32 0.0, %v5429
    %v5431 = vpop.f32.mrb[0].mxu0
    %5432 = vmatprep.mubr.bf16.mxu0 0
    %5433 = vmatmul.mubr.bf16.gmra.mrb[0].mxu0 %v437
    %v5434 = vpop.f32.mrb[0].mxu0
    %v5435 = vadd.f32 0.0, %v5434
    %v5436 = vpop.f32.mrb[0].mxu0
    %v5437 = vpop.f32.mrb[0].mxu0
    %v5438 = vadd.f32 0.0, %v5437
    %v5439 = vpop.f32.mrb[0].mxu0
    %5440 = vmatprep.mubr.bf16.mxu0 0
    %5441 = vmatmul.mubr.bf16.gmra.mrb[0].mxu0 %v440
    %v5442 = vpop.f32.mrb[0].mxu0
    %v5443 = vadd.f32 0.0, %v5442
    %v5444 = vpop.f32.mrb[0].mxu0
    %v5445 = vpop.f32.mrb[0].mxu0
    %v5446 = vadd.f32 0.0, %v5445
    %v5447 = vpop.f32.mrb[0].mxu0
    %5448 = vmatprep.mubr.bf16.mxu0 0
    %5449 = vmatmul.mubr.bf16.gmra.mrb[0].mxu0 %v443
    %v5450 = vpop.f32.mrb[0].mxu0
    %v5451 = vadd.f32 0.0, %v5450
    %v5452 = vpop.f32.mrb[0].mxu0
    %v5453 = vpop.f32.mrb[0].mxu0
    %v5454 = vadd.f32 0.0, %v5453
    %v5455 = vpop.f32.mrb[0].mxu0
    %5456 = vmatprep.mubr.bf16.mxu0 0
    %5457 = vmatmul.mubr.bf16.gmra.mrb[0].mxu0 %v446
    %v5458 = vpop.f32.mrb[0].mxu0
    %v5459 = vadd.f32 0.0, %v5458
    %v5460 = vpop.f32.mrb[0].mxu0
    %v5461 = vpop.f32.mrb[0].mxu0
    %v5462 = vadd.f32 0.0, %v5461
    %v5463 = vpop.f32.mrb[0].mxu0
    %5464 = vmatprep.mubr.bf16.mxu0 0
    %5465 = vmatmul.mubr.bf16.gmra.mrb[0].mxu0 %v449
    %v5466 = vpop.f32.mrb[0].mxu0
    %v5467 = vadd.f32 0.0, %v5466
    %v5468 = vpop.f32.mrb[0].mxu0
    %v5469 = vpop.f32.mrb[0].mxu0
    %v5470 = vadd.f32 0.0, %v5469
    %v5471 = vpop.f32.mrb[0].mxu0
    %5472 = vmatprep.mubr.bf16.mxu0 0
    %5473 = vmatmul.mubr.bf16.gmra.mrb[0].mxu0 %v452
    %v5474 = vpop.f32.mrb[0].mxu0
    %v5475 = vadd.f32 0.0, %v5474
    %v5476 = vpop.f32.mrb[0].mxu0
    %v5477 = vpop.f32.mrb[0].mxu0
    %v5478 = vadd.f32 0.0, %v5477
    %v5479 = vpop.f32.mrb[0].mxu0
    %5480 = vdwg.mxu0
    %v5481 = vrot.slane %v5155, 3
    %v5482 = vrot.slane %v5158, 3
    %v5483 = vrot.slane %v5163, 3
    %v5484 = vrot.slane %v5166, 3
    %v5485 = vrot.slane %v5171, 3
    %v5486 = vrot.slane %v5174, 3
    %v5487 = vrot.slane %v5179, 3
    %v5488 = vrot.slane %v5182, 3
    %v5489 = vrot.slane %v5187, 3
    %v5490 = vrot.slane %v5190, 3
    %v5491 = vrot.slane %v5195, 3
    %v5492 = vrot.slane %v5198, 3
    %v5493 = vrot.slane %v5203, 3
    %v5494 = vrot.slane %v5206, 3
    %v5495 = vrot.slane %v5211, 3
    %v5496 = vrot.slane %v5214, 3
    %v5497 = vrot.slane %v5219, 3
    %v5498 = vrot.slane %v5222, 3
    %v5499 = vrot.slane %v5227, 3
    %v5500 = vrot.slane %v5230, 3
    %v5501 = vrot.slane %v5235, 3
    %v5502 = vrot.slane %v5238, 3
    %v5503 = vrot.slane %v5243, 3
    %v5504 = vrot.slane %v5246, 3
    %v5505 = vrot.slane %v5251, 3
    %v5506 = vrot.slane %v5254, 3
    %v5507 = vrot.slane %v5259, 3
    %v5508 = vrot.slane %v5262, 3
    %v5509 = vrot.slane %v5267, 3
    %v5510 = vrot.slane %v5270, 3
    %v5511 = vrot.slane %v5275, 3
    %v5512 = vrot.slane %v5278, 3
    %v5513 = vrot.slane %v5283, 3
    %v5514 = vrot.slane %v5286, 3
    %v5515 = vrot.slane %v5291, 3
    %v5516 = vrot.slane %v5294, 3
    %v5517 = vrot.slane %v5299, 3
    %v5518 = vrot.slane %v5302, 3
    %v5519 = vrot.slane %v5307, 3
    %v5520 = vrot.slane %v5310, 3
    %v5521 = vrot.slane %v5315, 3
    %v5522 = vrot.slane %v5318, 3
    %v5523 = vrot.slane %v5323, 3
    %v5524 = vrot.slane %v5326, 3
    %v5525 = vrot.slane %v5331, 3
    %v5526 = vrot.slane %v5334, 3
    %v5527 = vrot.slane %v5339, 3
    %v5528 = vrot.slane %v5342, 3
    %v5529 = vrot.slane %v5347, 3
    %v5530 = vrot.slane %v5350, 3
    %v5531 = vrot.slane %v5355, 3
    %v5532 = vrot.slane %v5358, 3
    %v5533 = vrot.slane %v5363, 3
    %v5534 = vrot.slane %v5366, 3
    %v5535 = vrot.slane %v5371, 3
    %v5536 = vrot.slane %v5374, 3
    %v5537 = vrot.slane %v5379, 3
    %v5538 = vrot.slane %v5382, 3
    %v5539 = vrot.slane %v5387, 3
    %v5540 = vrot.slane %v5390, 3
    %v5541 = vrot.slane %v5395, 3
    %v5542 = vrot.slane %v5398, 3
    %v5543 = vrot.slane %v5403, 3
    %v5544 = vrot.slane %v5406, 3
    %v5545 = vrot.slane %v5411, 3
    %v5546 = vrot.slane %v5414, 3
    %v5547 = vrot.slane %v5419, 3
    %v5548 = vrot.slane %v5422, 3
    %v5549 = vrot.slane %v5427, 3
    %v5550 = vrot.slane %v5430, 3
    %v5551 = vrot.slane %v5435, 3
    %v5552 = vrot.slane %v5438, 3
    %v5553 = vrot.slane %v5443, 3
    %v5554 = vrot.slane %v5446, 3
    %v5555 = vrot.slane %v5451, 3
    %v5556 = vrot.slane %v5454, 3
    %v5557 = vrot.slane %v5459, 3
    %v5558 = vrot.slane %v5462, 3
    %v5559 = vrot.slane %v5467, 3
    %v5560 = vrot.slane %v5470, 3
    %v5561 = vrot.slane %v5475, 3
    %v5562 = vrot.slane %v5478, 3
    %vm5563 = vcmp.lt.s32.totalorder %v898, 5
    %v5564 = vsel %vm5563, %v5561, %v5562
    %v5565 = vsel %vm5563, %v5560, %v5561
    %v5566 = vsel %vm5563, %v5559, %v5560
    %v5567 = vsel %vm5563, %v5558, %v5559
    %v5568 = vsel %vm5563, %v5557, %v5558
    %v5569 = vsel %vm5563, %v5556, %v5557
    %v5570 = vsel %vm5563, %v5555, %v5556
    %v5571 = vsel %vm5563, %v5554, %v5555
    %v5572 = vsel %vm5563, %v5553, %v5554
    %v5573 = vsel %vm5563, %v5552, %v5553
    %v5574 = vsel %vm5563, %v5551, %v5552
    %v5575 = vsel %vm5563, %v5550, %v5551
    %v5576 = vsel %vm5563, %v5549, %v5550
    %v5577 = vsel %vm5563, %v5548, %v5549
    %v5578 = vsel %vm5563, %v5547, %v5548
    %v5579 = vsel %vm5563, %v5546, %v5547
    %v5580 = vsel %vm5563, %v5545, %v5546
    %v5581 = vsel %vm5563, %v5544, %v5545
    %v5582 = vsel %vm5563, %v5543, %v5544
    %v5583 = vsel %vm5563, %v5542, %v5543
    %v5584 = vsel %vm5563, %v5541, %v5542
    %v5585 = vsel %vm5563, %v5540, %v5541
    %v5586 = vsel %vm5563, %v5539, %v5540
    %v5587 = vsel %vm5563, %v5538, %v5539
    %v5588 = vsel %vm5563, %v5537, %v5538
    %v5589 = vsel %vm5563, %v5536, %v5537
    %v5590 = vsel %vm5563, %v5535, %v5536
    %v5591 = vsel %vm5563, %v5534, %v5535
    %v5592 = vsel %vm5563, %v5533, %v5534
    %v5593 = vsel %vm5563, %v5532, %v5533
    %v5594 = vsel %vm5563, %v5531, %v5532
    %v5595 = vsel %vm5563, %v5530, %v5531
    %v5596 = vsel %vm5563, %v5529, %v5530
    %v5597 = vsel %vm5563, %v5528, %v5529
    %v5598 = vsel %vm5563, %v5527, %v5528
    %v5599 = vsel %vm5563, %v5526, %v5527
    %v5600 = vsel %vm5563, %v5525, %v5526
    %v5601 = vsel %vm5563, %v5524, %v5525
    %v5602 = vsel %vm5563, %v5523, %v5524
    %v5603 = vsel %vm5563, %v5522, %v5523
    %v5604 = vsel %vm5563, %v5521, %v5522
    %v5605 = vsel %vm5563, %v5520, %v5521
    %v5606 = vsel %vm5563, %v5519, %v5520
    %v5607 = vsel %vm5563, %v5518, %v5519
    %v5608 = vsel %vm5563, %v5517, %v5518
    %v5609 = vsel %vm5563, %v5516, %v5517
    %v5610 = vsel %vm5563, %v5515, %v5516
    %v5611 = vsel %vm5563, %v5514, %v5515
    %v5612 = vsel %vm5563, %v5513, %v5514
    %v5613 = vsel %vm5563, %v5512, %v5513
    %v5614 = vsel %vm5563, %v5511, %v5512
    %v5615 = vsel %vm5563, %v5510, %v5511
    %v5616 = vsel %vm5563, %v5509, %v5510
    %v5617 = vsel %vm5563, %v5508, %v5509
    %v5618 = vsel %vm5563, %v5507, %v5508
    %v5619 = vsel %vm5563, %v5506, %v5507
    %v5620 = vsel %vm5563, %v5505, %v5506
    %v5621 = vsel %vm5563, %v5504, %v5505
    %v5622 = vsel %vm5563, %v5503, %v5504
    %v5623 = vsel %vm5563, %v5502, %v5503
    %v5624 = vsel %vm5563, %v5501, %v5502
    %v5625 = vsel %vm5563, %v5500, %v5501
    %v5626 = vsel %vm5563, %v5499, %v5500
    %v5627 = vsel %vm5563, %v5498, %v5499
    %v5628 = vsel %vm5563, %v5497, %v5498
    %v5629 = vsel %vm5563, %v5496, %v5497
    %v5630 = vsel %vm5563, %v5495, %v5496
    %v5631 = vsel %vm5563, %v5494, %v5495
    %v5632 = vsel %vm5563, %v5493, %v5494
    %v5633 = vsel %vm5563, %v5492, %v5493
    %v5634 = vsel %vm5563, %v5491, %v5492
    %v5635 = vsel %vm5563, %v5490, %v5491
    %v5636 = vsel %vm5563, %v5489, %v5490
    %v5637 = vsel %vm5563, %v5488, %v5489
    %v5638 = vsel %vm5563, %v5487, %v5488
    %v5639 = vsel %vm5563, %v5486, %v5487
    %v5640 = vsel %vm5563, %v5485, %v5486
    %v5641 = vsel %vm5563, %v5484, %v5485
    %v5642 = vsel %vm5563, %v5483, %v5484
    %v5643 = vsel %vm5563, %v5482, %v5483
    %v5644 = vsel %vm5563, %v5481, %v5482
    %v5645 = vsel %vm5563, %v5562, %v5481
    %v5646 = vadd.f32 %v5021, %v5642
    %v5647 = vadd.f32 %v5022, %v5641
    %v5648 = vadd.f32 %v5023, %v5640
    %v5649 = vadd.f32 %v5024, %v5639
    %v5650 = vadd.f32 %v5025, %v5638
    %v5651 = vadd.f32 %v5026, %v5637
    %v5652 = vadd.f32 %v5027, %v5636
    %v5653 = vadd.f32 %v5028, %v5635
    %v5654 = vadd.f32 %v5029, %v5634
    %v5655 = vadd.f32 %v5030, %v5633
    %v5656 = vadd.f32 %v5031, %v5632
    %v5657 = vadd.f32 %v5032, %v5631
    %v5658 = vadd.f32 %v5033, %v5630
    %v5659 = vadd.f32 %v5034, %v5629
    %v5660 = vadd.f32 %v5035, %v5628
    %v5661 = vadd.f32 %v5036, %v5627
    %v5662 = vadd.f32 %v5037, %v5626
    %v5663 = vadd.f32 %v5038, %v5625
    %v5664 = vadd.f32 %v5039, %v5624
    %v5665 = vadd.f32 %v5040, %v5623
    %v5666 = vadd.f32 %v5041, %v5622
    %v5667 = vadd.f32 %v5042, %v5621
    %v5668 = vadd.f32 %v5043, %v5620
    %v5669 = vadd.f32 %v5044, %v5619
    %v5670 = vadd.f32 %v5045, %v5618
    %v5671 = vadd.f32 %v5046, %v5617
    %v5672 = vadd.f32 %v5047, %v5616
    %v5673 = vadd.f32 %v5048, %v5615
    %v5674 = vadd.f32 %v5049, %v5614
    %v5675 = vadd.f32 %v5050, %v5613
    %v5676 = vadd.f32 %v5051, %v5612
    %v5677 = vadd.f32 %v5052, %v5611
    %v5678 = vadd.f32 %v5053, %v5610
    %v5679 = vadd.f32 %v5054, %v5609
    %v5680 = vadd.f32 %v5055, %v5608
    %v5681 = vadd.f32 %v5056, %v5607
    %v5682 = vadd.f32 %v5057, %v5606
    %v5683 = vadd.f32 %v5058, %v5605
    %v5684 = vadd.f32 %v5059, %v5604
    %v5685 = vadd.f32 %v5060, %v5603
    %v5686 = vadd.f32 %v5061, %v5602
    %v5687 = vadd.f32 %v5062, %v5601
    %v5688 = vadd.f32 %v5063, %v5600
    %v5689 = vadd.f32 %v5064, %v5599
    %v5690 = vadd.f32 %v5065, %v5598
    %v5691 = vadd.f32 %v5066, %v5597
    %v5692 = vadd.f32 %v5067, %v5596
    %v5693 = vadd.f32 %v5068, %v5595
    %v5694 = vadd.f32 %v5069, %v5594
    %v5695 = vadd.f32 %v5070, %v5593
    %v5696 = vadd.f32 %v5071, %v5592
    %v5697 = vadd.f32 %v5072, %v5591
    %v5698 = vadd.f32 %v5073, %v5590
    %v5699 = vadd.f32 %v5074, %v5589
    %v5700 = vadd.f32 %v5075, %v5588
    %v5701 = vadd.f32 %v5076, %v5587
    %v5702 = vadd.f32 %v5077, %v5586
    %v5703 = vadd.f32 %v5078, %v5585
    %v5704 = vadd.f32 %v5079, %v5584
    %v5705 = vadd.f32 %v5080, %v5583
    %v5706 = vadd.f32 %v5081, %v5582
    %v5707 = vadd.f32 %v5082, %v5581
    %v5708 = vadd.f32 %v5083, %v5580
    %v5709 = vadd.f32 %v5084, %v5579
    %v5710 = vadd.f32 %v5085, %v5578
    %v5711 = vadd.f32 %v5086, %v5577
    %v5712 = vadd.f32 %v5087, %v5576
    %v5713 = vadd.f32 %v5088, %v5575
    %v5714 = vadd.f32 %v5089, %v5574
    %v5715 = vadd.f32 %v5090, %v5573
    %v5716 = vadd.f32 %v5091, %v5572
    %v5717 = vadd.f32 %v5092, %v5571
    %v5718 = vadd.f32 %v5093, %v5570
    %v5719 = vadd.f32 %v5094, %v5569
    %v5720 = vadd.f32 %v5095, %v5568
    %v5721 = vadd.f32 %v5096, %v5567
    %v5722 = vadd.f32 %v5097, %v5566
    %v5723 = vadd.f32 %v5098, %v5565
    %v5724 = vadd.f32 %v5099, %v5564
    %v5725 = vadd.f32 %v5100, %v5645
    %v5726 = vadd.f32 %v5101, %v5644
    %v5727 = vadd.f32 %v5102, %v5643
    %v5728 = vld [vmem:[%s2] sm:$0x1]
    %v5729 = vlaneseq
    %v5730 = vshrl.u32 %v5729, 7
    %v5731 = vsub.s32 0, %v5730
    %v5732 = vrot.slane %v5728, %v5731
    %v5733 = vmul.f32 %v5646, %v5732
    %v5734 = vmul.f32 %v5647, %v5732
    %v5735 = vmul.f32 %v5648, %v5732
    %v5736 = vmul.f32 %v5649, %v5732
    %v5737 = vmul.f32 %v5650, %v5732
    %v5738 = vmul.f32 %v5651, %v5732
    %v5739 = vmul.f32 %v5652, %v5732
    %v5740 = vmul.f32 %v5653, %v5732
    %v5741 = vmul.f32 %v5654, %v5732
    %v5742 = vmul.f32 %v5655, %v5732
    %v5743 = vmul.f32 %v5656, %v5732
    %v5744 = vmul.f32 %v5657, %v5732
    %v5745 = vmul.f32 %v5658, %v5732
    %v5746 = vmul.f32 %v5659, %v5732
    %v5747 = vmul.f32 %v5660, %v5732
    %v5748 = vmul.f32 %v5661, %v5732
    %v5749 = vmul.f32 %v5662, %v5732
    %v5750 = vmul.f32 %v5663, %v5732
    %v5751 = vmul.f32 %v5664, %v5732
    %v5752 = vmul.f32 %v5665, %v5732
    %v5753 = vmul.f32 %v5666, %v5732
    %v5754 = vmul.f32 %v5667, %v5732
    %v5755 = vmul.f32 %v5668, %v5732
    %v5756 = vmul.f32 %v5669, %v5732
    %v5757 = vmul.f32 %v5670, %v5732
    %v5758 = vmul.f32 %v5671, %v5732
    %v5759 = vmul.f32 %v5672, %v5732
    %v5760 = vmul.f32 %v5673, %v5732
    %v5761 = vmul.f32 %v5674, %v5732
    %v5762 = vmul.f32 %v5675, %v5732
    %v5763 = vmul.f32 %v5676, %v5732
    %v5764 = vmul.f32 %v5677, %v5732
    %v5765 = vmul.f32 %v5678, %v5732
    %v5766 = vmul.f32 %v5679, %v5732
    %v5767 = vmul.f32 %v5680, %v5732
    %v5768 = vmul.f32 %v5681, %v5732
    %v5769 = vmul.f32 %v5682, %v5732
    %v5770 = vmul.f32 %v5683, %v5732
    %v5771 = vmul.f32 %v5684, %v5732
    %v5772 = vmul.f32 %v5685, %v5732
    %v5773 = vmul.f32 %v5686, %v5732
    %v5774 = vmul.f32 %v5687, %v5732
    %v5775 = vmul.f32 %v5688, %v5732
    %v5776 = vmul.f32 %v5689, %v5732
    %v5777 = vmul.f32 %v5690, %v5732
    %v5778 = vmul.f32 %v5691, %v5732
    %v5779 = vmul.f32 %v5692, %v5732
    %v5780 = vmul.f32 %v5693, %v5732
    %v5781 = vmul.f32 %v5694, %v5732
    %v5782 = vmul.f32 %v5695, %v5732
    %v5783 = vmul.f32 %v5696, %v5732
    %v5784 = vmul.f32 %v5697, %v5732
    %v5785 = vmul.f32 %v5698, %v5732
    %v5786 = vmul.f32 %v5699, %v5732
    %v5787 = vmul.f32 %v5700, %v5732
    %v5788 = vmul.f32 %v5701, %v5732
    %v5789 = vmul.f32 %v5702, %v5732
    %v5790 = vmul.f32 %v5703, %v5732
    %v5791 = vmul.f32 %v5704, %v5732
    %v5792 = vmul.f32 %v5705, %v5732
    %v5793 = vmul.f32 %v5706, %v5732
    %v5794 = vmul.f32 %v5707, %v5732
    %v5795 = vmul.f32 %v5708, %v5732
    %v5796 = vmul.f32 %v5709, %v5732
    %v5797 = vmul.f32 %v5710, %v5732
    %v5798 = vmul.f32 %v5711, %v5732
    %v5799 = vmul.f32 %v5712, %v5732
    %v5800 = vmul.f32 %v5713, %v5732
    %v5801 = vmul.f32 %v5714, %v5732
    %v5802 = vmul.f32 %v5715, %v5732
    %v5803 = vmul.f32 %v5716, %v5732
    %v5804 = vmul.f32 %v5717, %v5732
    %v5805 = vmul.f32 %v5718, %v5732
    %v5806 = vmul.f32 %v5719, %v5732
    %v5807 = vmul.f32 %v5720, %v5732
    %v5808 = vmul.f32 %v5721, %v5732
    %v5809 = vmul.f32 %v5722, %v5732
    %v5810 = vmul.f32 %v5723, %v5732
    %v5811 = vmul.f32 %v5724, %v5732
    %v5812 = vmul.f32 %v5725, %v5732
    %v5813 = vmul.f32 %v5726, %v5732
    %v5814 = vmul.f32 %v5727, %v5732
    %v5815 = vld [vmem:[%s2 + $0x1] sm:$0x1]
    %v5816 = vlaneseq
    %v5817 = vshrl.u32 %v5816, 7
    %v5818 = vsub.s32 0, %v5817
    %v5819 = vrot.slane %v5815, %v5818
    %v5820 = vadd.f32 %v5733, %v5819
    %v5821 = vadd.f32 %v5734, %v5819
    %v5822 = vadd.f32 %v5735, %v5819
    %v5823 = vadd.f32 %v5736, %v5819
    %v5824 = vadd.f32 %v5737, %v5819
    %v5825 = vadd.f32 %v5738, %v5819
    %v5826 = vadd.f32 %v5739, %v5819
    %v5827 = vadd.f32 %v5740, %v5819
    %v5828 = vadd.f32 %v5741, %v5819
    %v5829 = vadd.f32 %v5742, %v5819
    %v5830 = vadd.f32 %v5743, %v5819
    %v5831 = vadd.f32 %v5744, %v5819
    %v5832 = vadd.f32 %v5745, %v5819
    %v5833 = vadd.f32 %v5746, %v5819
    %v5834 = vadd.f32 %v5747, %v5819
    %v5835 = vadd.f32 %v5748, %v5819
    %v5836 = vadd.f32 %v5749, %v5819
    %v5837 = vadd.f32 %v5750, %v5819
    %v5838 = vadd.f32 %v5751, %v5819
    %v5839 = vadd.f32 %v5752, %v5819
    %v5840 = vadd.f32 %v5753, %v5819
    %v5841 = vadd.f32 %v5754, %v5819
    %v5842 = vadd.f32 %v5755, %v5819
    %v5843 = vadd.f32 %v5756, %v5819
    %v5844 = vadd.f32 %v5757, %v5819
    %v5845 = vadd.f32 %v5758, %v5819
    %v5846 = vadd.f32 %v5759, %v5819
    %v5847 = vadd.f32 %v5760, %v5819
    %v5848 = vadd.f32 %v5761, %v5819
    %v5849 = vadd.f32 %v5762, %v5819
    %v5850 = vadd.f32 %v5763, %v5819
    %v5851 = vadd.f32 %v5764, %v5819
    %v5852 = vadd.f32 %v5765, %v5819
    %v5853 = vadd.f32 %v5766, %v5819
    %v5854 = vadd.f32 %v5767, %v5819
    %v5855 = vadd.f32 %v5768, %v5819
    %v5856 = vadd.f32 %v5769, %v5819
    %v5857 = vadd.f32 %v5770, %v5819
    %v5858 = vadd.f32 %v5771, %v5819
    %v5859 = vadd.f32 %v5772, %v5819
    %v5860 = vadd.f32 %v5773, %v5819
    %v5861 = vadd.f32 %v5774, %v5819
    %v5862 = vadd.f32 %v5775, %v5819
    %v5863 = vadd.f32 %v5776, %v5819
    %v5864 = vadd.f32 %v5777, %v5819
    %v5865 = vadd.f32 %v5778, %v5819
    %v5866 = vadd.f32 %v5779, %v5819
    %v5867 = vadd.f32 %v5780, %v5819
    %v5868 = vadd.f32 %v5781, %v5819
    %v5869 = vadd.f32 %v5782, %v5819
    %v5870 = vadd.f32 %v5783, %v5819
    %v5871 = vadd.f32 %v5784, %v5819
    %v5872 = vadd.f32 %v5785, %v5819
    %v5873 = vadd.f32 %v5786, %v5819
    %v5874 = vadd.f32 %v5787, %v5819
    %v5875 = vadd.f32 %v5788, %v5819
    %v5876 = vadd.f32 %v5789, %v5819
    %v5877 = vadd.f32 %v5790, %v5819
    %v5878 = vadd.f32 %v5791, %v5819
    %v5879 = vadd.f32 %v5792, %v5819
    %v5880 = vadd.f32 %v5793, %v5819
    %v5881 = vadd.f32 %v5794, %v5819
    %v5882 = vadd.f32 %v5795, %v5819
    %v5883 = vadd.f32 %v5796, %v5819
    %v5884 = vadd.f32 %v5797, %v5819
    %v5885 = vadd.f32 %v5798, %v5819
    %v5886 = vadd.f32 %v5799, %v5819
    %v5887 = vadd.f32 %v5800, %v5819
    %v5888 = vadd.f32 %v5801, %v5819
    %v5889 = vadd.f32 %v5802, %v5819
    %v5890 = vadd.f32 %v5803, %v5819
    %v5891 = vadd.f32 %v5804, %v5819
    %v5892 = vadd.f32 %v5805, %v5819
    %v5893 = vadd.f32 %v5806, %v5819
    %v5894 = vadd.f32 %v5807, %v5819
    %v5895 = vadd.f32 %v5808, %v5819
    %v5896 = vadd.f32 %v5809, %v5819
    %v5897 = vadd.f32 %v5810, %v5819
    %v5898 = vadd.f32 %v5811, %v5819
    %v5899 = vadd.f32 %v5812, %v5819
    %v5900 = vadd.f32 %v5813, %v5819
    %v5901 = vadd.f32 %v5814, %v5819
    %v5902 = vmax.f32 %v5820, 0.0
    %v5903 = vmax.f32 %v5821, 0.0
    %v5904 = vmax.f32 %v5822, 0.0
    %v5905 = vmax.f32 %v5823, 0.0
    %v5906 = vmax.f32 %v5824, 0.0
    %v5907 = vmax.f32 %v5825, 0.0
    %v5908 = vmax.f32 %v5826, 0.0
    %v5909 = vmax.f32 %v5827, 0.0
    %v5910 = vmax.f32 %v5828, 0.0
    %v5911 = vmax.f32 %v5829, 0.0
    %v5912 = vmax.f32 %v5830, 0.0
    %v5913 = vmax.f32 %v5831, 0.0
    %v5914 = vmax.f32 %v5832, 0.0
    %v5915 = vmax.f32 %v5833, 0.0
    %v5916 = vmax.f32 %v5834, 0.0
    %v5917 = vmax.f32 %v5835, 0.0
    %v5918 = vmax.f32 %v5836, 0.0
    %v5919 = vmax.f32 %v5837, 0.0
    %v5920 = vmax.f32 %v5838, 0.0
    %v5921 = vmax.f32 %v5839, 0.0
    %v5922 = vmax.f32 %v5840, 0.0
    %v5923 = vmax.f32 %v5841, 0.0
    %v5924 = vmax.f32 %v5842, 0.0
    %v5925 = vmax.f32 %v5843, 0.0
    %v5926 = vmax.f32 %v5844, 0.0
    %v5927 = vmax.f32 %v5845, 0.0
    %v5928 = vmax.f32 %v5846, 0.0
    %v5929 = vmax.f32 %v5847, 0.0
    %v5930 = vmax.f32 %v5848, 0.0
    %v5931 = vmax.f32 %v5849, 0.0
    %v5932 = vmax.f32 %v5850, 0.0
    %v5933 = vmax.f32 %v5851, 0.0
    %v5934 = vmax.f32 %v5852, 0.0
    %v5935 = vmax.f32 %v5853, 0.0
    %v5936 = vmax.f32 %v5854, 0.0
    %v5937 = vmax.f32 %v5855, 0.0
    %v5938 = vmax.f32 %v5856, 0.0
    %v5939 = vmax.f32 %v5857, 0.0
    %v5940 = vmax.f32 %v5858, 0.0
    %v5941 = vmax.f32 %v5859, 0.0
    %v5942 = vmax.f32 %v5860, 0.0
    %v5943 = vmax.f32 %v5861, 0.0
    %v5944 = vmax.f32 %v5862, 0.0
    %v5945 = vmax.f32 %v5863, 0.0
    %v5946 = vmax.f32 %v5864, 0.0
    %v5947 = vmax.f32 %v5865, 0.0
    %v5948 = vmax.f32 %v5866, 0.0
    %v5949 = vmax.f32 %v5867, 0.0
    %v5950 = vmax.f32 %v5868, 0.0
    %v5951 = vmax.f32 %v5869, 0.0
    %v5952 = vmax.f32 %v5870, 0.0
    %v5953 = vmax.f32 %v5871, 0.0
    %v5954 = vmax.f32 %v5872, 0.0
    %v5955 = vmax.f32 %v5873, 0.0
    %v5956 = vmax.f32 %v5874, 0.0
    %v5957 = vmax.f32 %v5875, 0.0
    %v5958 = vmax.f32 %v5876, 0.0
    %v5959 = vmax.f32 %v5877, 0.0
    %v5960 = vmax.f32 %v5878, 0.0
    %v5961 = vmax.f32 %v5879, 0.0
    %v5962 = vmax.f32 %v5880, 0.0
    %v5963 = vmax.f32 %v5881, 0.0
    %v5964 = vmax.f32 %v5882, 0.0
    %v5965 = vmax.f32 %v5883, 0.0
    %v5966 = vmax.f32 %v5884, 0.0
    %v5967 = vmax.f32 %v5885, 0.0
    %v5968 = vmax.f32 %v5886, 0.0
    %v5969 = vmax.f32 %v5887, 0.0
    %v5970 = vmax.f32 %v5888, 0.0
    %v5971 = vmax.f32 %v5889, 0.0
    %v5972 = vmax.f32 %v5890, 0.0
    %v5973 = vmax.f32 %v5891, 0.0
    %v5974 = vmax.f32 %v5892, 0.0
    %v5975 = vmax.f32 %v5893, 0.0
    %v5976 = vmax.f32 %v5894, 0.0
    %v5977 = vmax.f32 %v5895, 0.0
    %v5978 = vmax.f32 %v5896, 0.0
    %v5979 = vmax.f32 %v5897, 0.0
    %v5980 = vmax.f32 %v5898, 0.0
    %v5981 = vmax.f32 %v5899, 0.0
    %v5982 = vmax.f32 %v5900, 0.0
    %v5983 = vmax.f32 %v5901, 0.0
    %v5984 = vpack.c.bf16 %v5903, %v5902
    %v5985 = vpack.c.bf16 %v5905, %v5904
    %v5986 = vpack.c.bf16 %v5907, %v5906
    %v5987 = vpack.c.bf16 %v5909, %v5908
    %v5988 = vpack.c.bf16 %v5911, %v5910
    %v5989 = vpack.c.bf16 %v5913, %v5912
    %v5990 = vpack.c.bf16 %v5915, %v5914
    %v5991 = vpack.c.bf16 %v5917, %v5916
    %v5992 = vpack.c.bf16 %v5919, %v5918
    %v5993 = vpack.c.bf16 %v5921, %v5920
    %v5994 = vpack.c.bf16 %v5923, %v5922
    %v5995 = vpack.c.bf16 %v5925, %v5924
    %v5996 = vpack.c.bf16 %v5927, %v5926
    %v5997 = vpack.c.bf16 %v5929, %v5928
    %v5998 = vpack.c.bf16 %v5931, %v5930
    %v5999 = vpack.c.bf16 %v5933, %v5932
    %v6000 = vpack.c.bf16 %v5935, %v5934
    %v6001 = vpack.c.bf16 %v5937, %v5936
    %v6002 = vpack.c.bf16 %v5939, %v5938
    %v6003 = vpack.c.bf16 %v5941, %v5940
    %v6004 = vpack.c.bf16 %v5943, %v5942
    %v6005 = vpack.c.bf16 %v5945, %v5944
    %v6006 = vpack.c.bf16 %v5947, %v5946
    %v6007 = vpack.c.bf16 %v5949, %v5948
    %v6008 = vpack.c.bf16 %v5951, %v5950
    %v6009 = vpack.c.bf16 %v5953, %v5952
    %v6010 = vpack.c.bf16 %v5955, %v5954
    %v6011 = vpack.c.bf16 %v5957, %v5956
    %v6012 = vpack.c.bf16 %v5959, %v5958
    %v6013 = vpack.c.bf16 %v5961, %v5960
    %v6014 = vpack.c.bf16 %v5963, %v5962
    %v6015 = vpack.c.bf16 %v5965, %v5964
    %v6016 = vpack.c.bf16 %v5967, %v5966
    %v6017 = vpack.c.bf16 %v5969, %v5968
    %v6018 = vpack.c.bf16 %v5971, %v5970
    %v6019 = vpack.c.bf16 %v5973, %v5972
    %v6020 = vpack.c.bf16 %v5975, %v5974
    %v6021 = vpack.c.bf16 %v5977, %v5976
    %v6022 = vpack.c.bf16 %v5979, %v5978
    %v6023 = vpack.c.bf16 %v5981, %v5980
    %v6024 = vpack.c.bf16 %v5983, %v5982
    %v6025 = vld [vmem:[%s3] sm:$0xf]
    %v6026 = vld [vmem:[%s4] sm:$0x1]
    %v6028 = vlaneseq
    %v6029 = vshrl.u32 %v6028, 7
    %v6030 = vsub.s32 0, %v6029
    %v6031 = vrot.slane %v6026, %v6030
    %vm6033 = vcmask 64512
    %v6035 = vsel %vm6033, %v5984, 0
    %v6038 = vsel %vm6033, %v5985, 0
    %v6041 = vsel %vm6033, %v5986, 0
    %v6044 = vsel %vm6033, %v5987, 0
    %v6047 = vsel %vm6033, %v5988, 0
    %v6050 = vsel %vm6033, %v5989, 0
    %v6053 = vsel %vm6033, %v5990, 0
    %v6056 = vsel %vm6033, %v5991, 0
    %v6059 = vsel %vm6033, %v5992, 0
    %v6062 = vsel %vm6033, %v5993, 0
    %v6065 = vsel %vm6033, %v5994, 0
    %v6068 = vsel %vm6033, %v5995, 0
    %v6071 = vsel %vm6033, %v5996, 0
    %v6074 = vsel %vm6033, %v5997, 0
    %v6077 = vsel %vm6033, %v5998, 0
    %v6080 = vsel %vm6033, %v5999, 0
    %v6083 = vsel %vm6033, %v6000, 0
    %v6086 = vsel %vm6033, %v6001, 0
    %v6089 = vsel %vm6033, %v6002, 0
    %v6092 = vsel %vm6033, %v6003, 0
    %v6095 = vsel %vm6033, %v6004, 0
    %v6098 = vsel %vm6033, %v6005, 0
    %v6101 = vsel %vm6033, %v6006, 0
    %v6104 = vsel %vm6033, %v6007, 0
    %v6107 = vsel %vm6033, %v6008, 0
    %v6110 = vsel %vm6033, %v6009, 0
    %v6113 = vsel %vm6033, %v6010, 0
    %v6116 = vsel %vm6033, %v6011, 0
    %v6119 = vsel %vm6033, %v6012, 0
    %v6122 = vsel %vm6033, %v6013, 0
    %v6125 = vsel %vm6033, %v6014, 0
    %v6128 = vsel %vm6033, %v6015, 0
    %v6131 = vsel %vm6033, %v6016, 0
    %v6134 = vsel %vm6033, %v6017, 0
    %v6137 = vsel %vm6033, %v6018, 0
    %v6140 = vsel %vm6033, %v6019, 0
    %v6143 = vsel %vm6033, %v6020, 0
    %v6146 = vsel %vm6033, %v6021, 0
    %v6149 = vsel %vm6033, %v6022, 0
    %v6152 = vsel %vm6033, %v6023, 0
    %v6155 = vsel %vm6033, %v6024, 0
    %vm6157 = vcmask 1043456
    %v6159 = vsel %vm6157, %v6025, 0
    %6161 = vmatprep.subr.bf16.mxu0 0
    %6162 = vmatpush1.bf16.msra.mxu0 %v6159
    %6163 = vmatprep.subr.bf16.mxu0 0
    %6164 = vmatpush1.bf16.msra.mxu0 0
    %6165 = vmatprep.subr.bf16.mxu0 0
    %6166 = vmatpush1.bf16.msra.mxu0 0
    %6167 = vmatprep.subr.bf16.mxu0 0
    %6168 = vmatpush1.bf16.msra.mxu0 0
    %6169 = vmatprep.subr.bf16.mxu0 0
    %6170 = vmatpush1.bf16.msra.mxu0 0
    %6171 = vmatprep.subr.bf16.mxu0 0
    %6172 = vmatpush1.bf16.msra.mxu0 0
    %6173 = vmatprep.subr.bf16.mxu0 0
    %6174 = vmatpush1.bf16.msra.mxu0 0
    %6175 = vmatprep.subr.bf16.mxu0 0
    %6176 = vmatpush1.bf16.msra.mxu0 0
    %6177 = vmatprep.subr.bf16.mxu0 0
    %6178 = vmatpush1.bf16.msra.mxu0 0
    %6179 = vmatprep.subr.bf16.mxu0 0
    %6180 = vmatpush1.bf16.msra.mxu0 0
    %6181 = vmatprep.subr.bf16.mxu0 0
    %6182 = vmatpush1.bf16.msra.mxu0 0
    %6183 = vmatprep.subr.bf16.mxu0 0
    %6184 = vmatpush1.bf16.msra.mxu0 0
    %6185 = vmatprep.subr.bf16.mxu0 0
    %6186 = vmatpush1.bf16.msra.mxu0 0
    %6187 = vmatprep.subr.bf16.mxu0 0
    %6188 = vmatpush1.bf16.msra.mxu0 0
    %6189 = vmatprep.subr.bf16.mxu0 0
    %6190 = vmatpush1.bf16.msra.mxu0 0
    %6191 = vmatprep.subr.bf16.mxu0 0
    %6192 = vmatpush1.bf16.msra.mxu0 0
    %6193 = vmatprep.mubr.bf16.mxu0 0
    %6194 = vmatmul.mubr.bf16.gmra.mrb[0].mxu0 %v6035
    %v6195 = vpop.f32.mrb[0].mxu0
    %v6196 = vadd.f32 %v6031, %v6195
    %v6197 = vpop.f32.mrb[0].mxu0
    %v6198 = vpop.f32.mrb[0].mxu0
    %v6199 = vadd.f32 %v6031, %v6198
    %v6200 = vpop.f32.mrb[0].mxu0
    %6201 = vmatprep.mubr.bf16.mxu0 0
    %6202 = vmatmul.mubr.bf16.gmra.mrb[0].mxu0 %v6038
    %v6203 = vpop.f32.mrb[0].mxu0
    %v6204 = vadd.f32 %v6031, %v6203
    %v6205 = vpop.f32.mrb[0].mxu0
    %v6206 = vpop.f32.mrb[0].mxu0
    %v6207 = vadd.f32 %v6031, %v6206
    %v6208 = vpop.f32.mrb[0].mxu0
    %6209 = vmatprep.mubr.bf16.mxu0 0
    %6210 = vmatmul.mubr.bf16.gmra.mrb[0].mxu0 %v6041
    %v6211 = vpop.f32.mrb[0].mxu0
    %v6212 = vadd.f32 %v6031, %v6211
    %v6213 = vpop.f32.mrb[0].mxu0
    %v6214 = vpop.f32.mrb[0].mxu0
    %v6215 = vadd.f32 %v6031, %v6214
    %v6216 = vpop.f32.mrb[0].mxu0
    %6217 = vmatprep.mubr.bf16.mxu0 0
    %6218 = vmatmul.mubr.bf16.gmra.mrb[0].mxu0 %v6044
    %v6219 = vpop.f32.mrb[0].mxu0
    %v6220 = vadd.f32 %v6031, %v6219
    %v6221 = vpop.f32.mrb[0].mxu0
    %v6222 = vpop.f32.mrb[0].mxu0
    %v6223 = vadd.f32 %v6031, %v6222
    %v6224 = vpop.f32.mrb[0].mxu0
    %6225 = vmatprep.mubr.bf16.mxu0 0
    %6226 = vmatmul.mubr.bf16.gmra.mrb[0].mxu0 %v6047
    %v6227 = vpop.f32.mrb[0].mxu0
    %v6228 = vadd.f32 %v6031, %v6227
    %v6229 = vpop.f32.mrb[0].mxu0
    %v6230 = vpop.f32.mrb[0].mxu0
    %v6231 = vadd.f32 %v6031, %v6230
    %v6232 = vpop.f32.mrb[0].mxu0
    %6233 = vmatprep.mubr.bf16.mxu0 0
    %6234 = vmatmul.mubr.bf16.gmra.mrb[0].mxu0 %v6050
    %v6235 = vpop.f32.mrb[0].mxu0
    %v6236 = vadd.f32 %v6031, %v6235
    %v6237 = vpop.f32.mrb[0].mxu0
    %v6238 = vpop.f32.mrb[0].mxu0
    %v6239 = vadd.f32 %v6031, %v6238
    %v6240 = vpop.f32.mrb[0].mxu0
    %6241 = vmatprep.mubr.bf16.mxu0 0
    %6242 = vmatmul.mubr.bf16.gmra.mrb[0].mxu0 %v6053
    %v6243 = vpop.f32.mrb[0].mxu0
    %v6244 = vadd.f32 %v6031, %v6243
    %v6245 = vpop.f32.mrb[0].mxu0
    %v6246 = vpop.f32.mrb[0].mxu0
    %v6247 = vadd.f32 %v6031, %v6246
    %v6248 = vpop.f32.mrb[0].mxu0
    %6249 = vmatprep.mubr.bf16.mxu0 0
    %6250 = vmatmul.mubr.bf16.gmra.mrb[0].mxu0 %v6056
    %v6251 = vpop.f32.mrb[0].mxu0
    %v6252 = vadd.f32 %v6031, %v6251
    %v6253 = vpop.f32.mrb[0].mxu0
    %v6254 = vpop.f32.mrb[0].mxu0
    %v6255 = vadd.f32 %v6031, %v6254
    %v6256 = vpop.f32.mrb[0].mxu0
    %6257 = vmatprep.mubr.bf16.mxu0 0
    %6258 = vmatmul.mubr.bf16.gmra.mrb[0].mxu0 %v6059
    %v6259 = vpop.f32.mrb[0].mxu0
    %v6260 = vadd.f32 %v6031, %v6259
    %v6261 = vpop.f32.mrb[0].mxu0
    %v6262 = vpop.f32.mrb[0].mxu0
    %v6263 = vadd.f32 %v6031, %v6262
    %v6264 = vpop.f32.mrb[0].mxu0
    %6265 = vmatprep.mubr.bf16.mxu0 0
    %6266 = vmatmul.mubr.bf16.gmra.mrb[0].mxu0 %v6062
    %v6267 = vpop.f32.mrb[0].mxu0
    %v6268 = vadd.f32 %v6031, %v6267
    %v6269 = vpop.f32.mrb[0].mxu0
    %v6270 = vpop.f32.mrb[0].mxu0
    %v6271 = vadd.f32 %v6031, %v6270
    %v6272 = vpop.f32.mrb[0].mxu0
    %6273 = vmatprep.mubr.bf16.mxu0 0
    %6274 = vmatmul.mubr.bf16.gmra.mrb[0].mxu0 %v6065
    %v6275 = vpop.f32.mrb[0].mxu0
    %v6276 = vadd.f32 %v6031, %v6275
    %v6277 = vpop.f32.mrb[0].mxu0
    %v6278 = vpop.f32.mrb[0].mxu0
    %v6279 = vadd.f32 %v6031, %v6278
    %v6280 = vpop.f32.mrb[0].mxu0
    %6281 = vmatprep.mubr.bf16.mxu0 0
    %6282 = vmatmul.mubr.bf16.gmra.mrb[0].mxu0 %v6068
    %v6283 = vpop.f32.mrb[0].mxu0
    %v6284 = vadd.f32 %v6031, %v6283
    %v6285 = vpop.f32.mrb[0].mxu0
    %v6286 = vpop.f32.mrb[0].mxu0
    %v6287 = vadd.f32 %v6031, %v6286
    %v6288 = vpop.f32.mrb[0].mxu0
    %6289 = vmatprep.mubr.bf16.mxu0 0
    %6290 = vmatmul.mubr.bf16.gmra.mrb[0].mxu0 %v6071
    %v6291 = vpop.f32.mrb[0].mxu0
    %v6292 = vadd.f32 %v6031, %v6291
    %v6293 = vpop.f32.mrb[0].mxu0
    %v6294 = vpop.f32.mrb[0].mxu0
    %v6295 = vadd.f32 %v6031, %v6294
    %v6296 = vpop.f32.mrb[0].mxu0
    %6297 = vmatprep.mubr.bf16.mxu0 0
    %6298 = vmatmul.mubr.bf16.gmra.mrb[0].mxu0 %v6074
    %v6299 = vpop.f32.mrb[0].mxu0
    %v6300 = vadd.f32 %v6031, %v6299
    %v6301 = vpop.f32.mrb[0].mxu0
    %v6302 = vpop.f32.mrb[0].mxu0
    %v6303 = vadd.f32 %v6031, %v6302
    %v6304 = vpop.f32.mrb[0].mxu0
    %6305 = vmatprep.mubr.bf16.mxu0 0
    %6306 = vmatmul.mubr.bf16.gmra.mrb[0].mxu0 %v6077
    %v6307 = vpop.f32.mrb[0].mxu0
    %v6308 = vadd.f32 %v6031, %v6307
    %v6309 = vpop.f32.mrb[0].mxu0
    %v6310 = vpop.f32.mrb[0].mxu0
    %v6311 = vadd.f32 %v6031, %v6310
    %v6312 = vpop.f32.mrb[0].mxu0
    %6313 = vmatprep.mubr.bf16.mxu0 0
    %6314 = vmatmul.mubr.bf16.gmra.mrb[0].mxu0 %v6080
    %v6315 = vpop.f32.mrb[0].mxu0
    %v6316 = vadd.f32 %v6031, %v6315
    %v6317 = vpop.f32.mrb[0].mxu0
    %v6318 = vpop.f32.mrb[0].mxu0
    %v6319 = vadd.f32 %v6031, %v6318
    %v6320 = vpop.f32.mrb[0].mxu0
    %6321 = vmatprep.mubr.bf16.mxu0 0
    %6322 = vmatmul.mubr.bf16.gmra.mrb[0].mxu0 %v6083
    %v6323 = vpop.f32.mrb[0].mxu0
    %v6324 = vadd.f32 %v6031, %v6323
    %v6325 = vpop.f32.mrb[0].mxu0
    %v6326 = vpop.f32.mrb[0].mxu0
    %v6327 = vadd.f32 %v6031, %v6326
    %v6328 = vpop.f32.mrb[0].mxu0
    %6329 = vmatprep.mubr.bf16.mxu0 0
    %6330 = vmatmul.mubr.bf16.gmra.mrb[0].mxu0 %v6086
    %v6331 = vpop.f32.mrb[0].mxu0
    %v6332 = vadd.f32 %v6031, %v6331
    %v6333 = vpop.f32.mrb[0].mxu0
    %v6334 = vpop.f32.mrb[0].mxu0
    %v6335 = vadd.f32 %v6031, %v6334
    %v6336 = vpop.f32.mrb[0].mxu0
    %6337 = vmatprep.mubr.bf16.mxu0 0
    %6338 = vmatmul.mubr.bf16.gmra.mrb[0].mxu0 %v6089
    %v6339 = vpop.f32.mrb[0].mxu0
    %v6340 = vadd.f32 %v6031, %v6339
    %v6341 = vpop.f32.mrb[0].mxu0
    %v6342 = vpop.f32.mrb[0].mxu0
    %v6343 = vadd.f32 %v6031, %v6342
    %v6344 = vpop.f32.mrb[0].mxu0
    %6345 = vmatprep.mubr.bf16.mxu0 0
    %6346 = vmatmul.mubr.bf16.gmra.mrb[0].mxu0 %v6092
    %v6347 = vpop.f32.mrb[0].mxu0
    %v6348 = vadd.f32 %v6031, %v6347
    %v6349 = vpop.f32.mrb[0].mxu0
    %v6350 = vpop.f32.mrb[0].mxu0
    %v6351 = vadd.f32 %v6031, %v6350
    %v6352 = vpop.f32.mrb[0].mxu0
    %6353 = vmatprep.mubr.bf16.mxu0 0
    %6354 = vmatmul.mubr.bf16.gmra.mrb[0].mxu0 %v6095
    %v6355 = vpop.f32.mrb[0].mxu0
    %v6356 = vadd.f32 %v6031, %v6355
    %v6357 = vpop.f32.mrb[0].mxu0
    %v6358 = vpop.f32.mrb[0].mxu0
    %v6359 = vadd.f32 %v6031, %v6358
    %v6360 = vpop.f32.mrb[0].mxu0
    %6361 = vmatprep.mubr.bf16.mxu0 0
    %6362 = vmatmul.mubr.bf16.gmra.mrb[0].mxu0 %v6098
    %v6363 = vpop.f32.mrb[0].mxu0
    %v6364 = vadd.f32 %v6031, %v6363
    %v6365 = vpop.f32.mrb[0].mxu0
    %v6366 = vpop.f32.mrb[0].mxu0
    %v6367 = vadd.f32 %v6031, %v6366
    %v6368 = vpop.f32.mrb[0].mxu0
    %6369 = vmatprep.mubr.bf16.mxu0 0
    %6370 = vmatmul.mubr.bf16.gmra.mrb[0].mxu0 %v6101
    %v6371 = vpop.f32.mrb[0].mxu0
    %v6372 = vadd.f32 %v6031, %v6371
    %v6373 = vpop.f32.mrb[0].mxu0
    %v6374 = vpop.f32.mrb[0].mxu0
    %v6375 = vadd.f32 %v6031, %v6374
    %v6376 = vpop.f32.mrb[0].mxu0
    %6377 = vmatprep.mubr.bf16.mxu0 0
    %6378 = vmatmul.mubr.bf16.gmra.mrb[0].mxu0 %v6104
    %v6379 = vpop.f32.mrb[0].mxu0
    %v6380 = vadd.f32 %v6031, %v6379
    %v6381 = vpop.f32.mrb[0].mxu0
    %v6382 = vpop.f32.mrb[0].mxu0
    %v6383 = vadd.f32 %v6031, %v6382
    %v6384 = vpop.f32.mrb[0].mxu0
    %6385 = vmatprep.mubr.bf16.mxu0 0
    %6386 = vmatmul.mubr.bf16.gmra.mrb[0].mxu0 %v6107
    %v6387 = vpop.f32.mrb[0].mxu0
    %v6388 = vadd.f32 %v6031, %v6387
    %v6389 = vpop.f32.mrb[0].mxu0
    %v6390 = vpop.f32.mrb[0].mxu0
    %v6391 = vadd.f32 %v6031, %v6390
    %v6392 = vpop.f32.mrb[0].mxu0
    %6393 = vmatprep.mubr.bf16.mxu0 0
    %6394 = vmatmul.mubr.bf16.gmra.mrb[0].mxu0 %v6110
    %v6395 = vpop.f32.mrb[0].mxu0
    %v6396 = vadd.f32 %v6031, %v6395
    %v6397 = vpop.f32.mrb[0].mxu0
    %v6398 = vpop.f32.mrb[0].mxu0
    %v6399 = vadd.f32 %v6031, %v6398
    %v6400 = vpop.f32.mrb[0].mxu0
    %6401 = vmatprep.mubr.bf16.mxu0 0
    %6402 = vmatmul.mubr.bf16.gmra.mrb[0].mxu0 %v6113
    %v6403 = vpop.f32.mrb[0].mxu0
    %v6404 = vadd.f32 %v6031, %v6403
    %v6405 = vpop.f32.mrb[0].mxu0
    %v6406 = vpop.f32.mrb[0].mxu0
    %v6407 = vadd.f32 %v6031, %v6406
    %v6408 = vpop.f32.mrb[0].mxu0
    %6409 = vmatprep.mubr.bf16.mxu0 0
    %6410 = vmatmul.mubr.bf16.gmra.mrb[0].mxu0 %v6116
    %v6411 = vpop.f32.mrb[0].mxu0
    %v6412 = vadd.f32 %v6031, %v6411
    %v6413 = vpop.f32.mrb[0].mxu0
    %v6414 = vpop.f32.mrb[0].mxu0
    %v6415 = vadd.f32 %v6031, %v6414
    %v6416 = vpop.f32.mrb[0].mxu0
    %6417 = vmatprep.mubr.bf16.mxu0 0
    %6418 = vmatmul.mubr.bf16.gmra.mrb[0].mxu0 %v6119
    %v6419 = vpop.f32.mrb[0].mxu0
    %v6420 = vadd.f32 %v6031, %v6419
    %v6421 = vpop.f32.mrb[0].mxu0
    %v6422 = vpop.f32.mrb[0].mxu0
    %v6423 = vadd.f32 %v6031, %v6422
    %v6424 = vpop.f32.mrb[0].mxu0
    %6425 = vmatprep.mubr.bf16.mxu0 0
    %6426 = vmatmul.mubr.bf16.gmra.mrb[0].mxu0 %v6122
    %v6427 = vpop.f32.mrb[0].mxu0
    %v6428 = vadd.f32 %v6031, %v6427
    %v6429 = vpop.f32.mrb[0].mxu0
    %v6430 = vpop.f32.mrb[0].mxu0
    %v6431 = vadd.f32 %v6031, %v6430
    %v6432 = vpop.f32.mrb[0].mxu0
    %6433 = vmatprep.mubr.bf16.mxu0 0
    %6434 = vmatmul.mubr.bf16.gmra.mrb[0].mxu0 %v6125
    %v6435 = vpop.f32.mrb[0].mxu0
    %v6436 = vadd.f32 %v6031, %v6435
    %v6437 = vpop.f32.mrb[0].mxu0
    %v6438 = vpop.f32.mrb[0].mxu0
    %v6439 = vadd.f32 %v6031, %v6438
    %v6440 = vpop.f32.mrb[0].mxu0
    %6441 = vmatprep.mubr.bf16.mxu0 0
    %6442 = vmatmul.mubr.bf16.gmra.mrb[0].mxu0 %v6128
    %v6443 = vpop.f32.mrb[0].mxu0
    %v6444 = vadd.f32 %v6031, %v6443
    %v6445 = vpop.f32.mrb[0].mxu0
    %v6446 = vpop.f32.mrb[0].mxu0
    %v6447 = vadd.f32 %v6031, %v6446
    %v6448 = vpop.f32.mrb[0].mxu0
    %6449 = vmatprep.mubr.bf16.mxu0 0
    %6450 = vmatmul.mubr.bf16.gmra.mrb[0].mxu0 %v6131
    %v6451 = vpop.f32.mrb[0].mxu0
    %v6452 = vadd.f32 %v6031, %v6451
    %v6453 = vpop.f32.mrb[0].mxu0
    %v6454 = vpop.f32.mrb[0].mxu0
    %v6455 = vadd.f32 %v6031, %v6454
    %v6456 = vpop.f32.mrb[0].mxu0
    %6457 = vmatprep.mubr.bf16.mxu0 0
    %6458 = vmatmul.mubr.bf16.gmra.mrb[0].mxu0 %v6134
    %v6459 = vpop.f32.mrb[0].mxu0
    %v6460 = vadd.f32 %v6031, %v6459
    %v6461 = vpop.f32.mrb[0].mxu0
    %v6462 = vpop.f32.mrb[0].mxu0
    %v6463 = vadd.f32 %v6031, %v6462
    %v6464 = vpop.f32.mrb[0].mxu0
    %6465 = vmatprep.mubr.bf16.mxu0 0
    %6466 = vmatmul.mubr.bf16.gmra.mrb[0].mxu0 %v6137
    %v6467 = vpop.f32.mrb[0].mxu0
    %v6468 = vadd.f32 %v6031, %v6467
    %v6469 = vpop.f32.mrb[0].mxu0
    %v6470 = vpop.f32.mrb[0].mxu0
    %v6471 = vadd.f32 %v6031, %v6470
    %v6472 = vpop.f32.mrb[0].mxu0
    %6473 = vmatprep.mubr.bf16.mxu0 0
    %6474 = vmatmul.mubr.bf16.gmra.mrb[0].mxu0 %v6140
    %v6475 = vpop.f32.mrb[0].mxu0
    %v6476 = vadd.f32 %v6031, %v6475
    %v6477 = vpop.f32.mrb[0].mxu0
    %v6478 = vpop.f32.mrb[0].mxu0
    %v6479 = vadd.f32 %v6031, %v6478
    %v6480 = vpop.f32.mrb[0].mxu0
    %6481 = vmatprep.mubr.bf16.mxu0 0
    %6482 = vmatmul.mubr.bf16.gmra.mrb[0].mxu0 %v6143
    %v6483 = vpop.f32.mrb[0].mxu0
    %v6484 = vadd.f32 %v6031, %v6483
    %v6485 = vpop.f32.mrb[0].mxu0
    %v6486 = vpop.f32.mrb[0].mxu0
    %v6487 = vadd.f32 %v6031, %v6486
    %v6488 = vpop.f32.mrb[0].mxu0
    %6489 = vmatprep.mubr.bf16.mxu0 0
    %6490 = vmatmul.mubr.bf16.gmra.mrb[0].mxu0 %v6146
    %v6491 = vpop.f32.mrb[0].mxu0
    %v6492 = vadd.f32 %v6031, %v6491
    %v6493 = vpop.f32.mrb[0].mxu0
    %v6494 = vpop.f32.mrb[0].mxu0
    %v6495 = vadd.f32 %v6031, %v6494
    %v6496 = vpop.f32.mrb[0].mxu0
    %6497 = vmatprep.mubr.bf16.mxu0 0
    %6498 = vmatmul.mubr.bf16.gmra.mrb[0].mxu0 %v6149
    %v6499 = vpop.f32.mrb[0].mxu0
    %v6500 = vadd.f32 %v6031, %v6499
    %v6501 = vpop.f32.mrb[0].mxu0
    %v6502 = vpop.f32.mrb[0].mxu0
    %v6503 = vadd.f32 %v6031, %v6502
    %v6504 = vpop.f32.mrb[0].mxu0
    %6505 = vmatprep.mubr.bf16.mxu0 0
    %6506 = vmatmul.mubr.bf16.gmra.mrb[0].mxu0 %v6152
    %v6507 = vpop.f32.mrb[0].mxu0
    %v6508 = vadd.f32 %v6031, %v6507
    %v6509 = vpop.f32.mrb[0].mxu0
    %v6510 = vpop.f32.mrb[0].mxu0
    %v6511 = vadd.f32 %v6031, %v6510
    %v6512 = vpop.f32.mrb[0].mxu0
    %6513 = vmatprep.mubr.bf16.mxu0 0
    %6514 = vmatmul.mubr.bf16.gmra.mrb[0].mxu0 %v6155
    %v6515 = vpop.f32.mrb[0].mxu0
    %v6516 = vadd.f32 %v6031, %v6515
    %v6517 = vpop.f32.mrb[0].mxu0
    %v6518 = vpop.f32.mrb[0].mxu0
    %v6519 = vadd.f32 %v6031, %v6518
    %v6520 = vpop.f32.mrb[0].mxu0
    %6521 = vdwg.mxu0
    %6522 = vst [vmem:[#allocation2] sm:$0xff] %v6196
    %6523 = vst [vmem:[#allocation2 + $0x8] sm:$0xff] %v6199
    %6524 = vst [vmem:[#allocation2 + $0x10] sm:$0xff] %v6204
    %6525 = vst [vmem:[#allocation2 + $0x18] sm:$0xff] %v6207
    %6526 = vst [vmem:[#allocation2 + $0x20] sm:$0xff] %v6212
    %6527 = vst [vmem:[#allocation2 + $0x28] sm:$0xff] %v6215
    %6528 = vst [vmem:[#allocation2 + $0x30] sm:$0xff] %v6220
    %6529 = vst [vmem:[#allocation2 + $0x38] sm:$0xff] %v6223
    %6530 = vst [vmem:[#allocation2 + $0x40] sm:$0xff] %v6228
    %6531 = vst [vmem:[#allocation2 + $0x48] sm:$0xff] %v6231
    %6532 = vst [vmem:[#allocation2 + $0x50] sm:$0xff] %v6236
    %6533 = vst [vmem:[#allocation2 + $0x58] sm:$0xff] %v6239
    %6534 = vst [vmem:[#allocation2 + $0x60] sm:$0xff] %v6244
    %6535 = vst [vmem:[#allocation2 + $0x68] sm:$0xff] %v6247
    %6536 = vst [vmem:[#allocation2 + $0x70] sm:$0xff] %v6252
    %6537 = vst [vmem:[#allocation2 + $0x78] sm:$0xff] %v6255
    %6538 = vst [vmem:[#allocation2 + $0x80] sm:$0xff] %v6260
    %6539 = vst [vmem:[#allocation2 + $0x88] sm:$0xff] %v6263
    %6540 = vst [vmem:[#allocation2 + $0x90] sm:$0xff] %v6268
    %6541 = vst [vmem:[#allocation2 + $0x98] sm:$0xff] %v6271
    %6542 = vst [vmem:[#allocation2 + $0xa0] sm:$0xff] %v6276
    %6543 = vst [vmem:[#allocation2 + $0xa8] sm:$0xff] %v6279
    %6544 = vst [vmem:[#allocation2 + $0xb0] sm:$0xff] %v6284
    %6545 = vst [vmem:[#allocation2 + $0xb8] sm:$0xff] %v6287
    %6546 = vst [vmem:[#allocation2 + $0xc0] sm:$0xff] %v6292
    %6547 = vst [vmem:[#allocation2 + $0xc8] sm:$0xff] %v6295
    %6548 = vst [vmem:[#allocation2 + $0xd0] sm:$0xff] %v6300
    %6549 = vst [vmem:[#allocation2 + $0xd8] sm:$0xff] %v6303
    %6550 = vst [vmem:[#allocation2 + $0xe0] sm:$0xff] %v6308
    %6551 = vst [vmem:[#allocation2 + $0xe8] sm:$0xff] %v6311
    %6552 = vst [vmem:[#allocation2 + $0xf0] sm:$0xff] %v6316
    %6553 = vst [vmem:[#allocation2 + $0xf8] sm:$0xff] %v6319
    %6554 = vst [vmem:[#allocation2 + $0x100] sm:$0xff] %v6324
    %6555 = vst [vmem:[#allocation2 + $0x108] sm:$0xff] %v6327
    %6556 = vst [vmem:[#allocation2 + $0x110] sm:$0xff] %v6332
    %6557 = vst [vmem:[#allocation2 + $0x118] sm:$0xff] %v6335
    %6558 = vst [vmem:[#allocation2 + $0x120] sm:$0xff] %v6340
    %6559 = vst [vmem:[#allocation2 + $0x128] sm:$0xff] %v6343
    %6560 = vst [vmem:[#allocation2 + $0x130] sm:$0xff] %v6348
    %6561 = vst [vmem:[#allocation2 + $0x138] sm:$0xff] %v6351
    %6562 = vst [vmem:[#allocation2 + $0x140] sm:$0xff] %v6356
    %6563 = vst [vmem:[#allocation2 + $0x148] sm:$0xff] %v6359
    %6564 = vst [vmem:[#allocation2 + $0x150] sm:$0xff] %v6364
    %6565 = vst [vmem:[#allocation2 + $0x158] sm:$0xff] %v6367
    %6566 = vst [vmem:[#allocation2 + $0x160] sm:$0xff] %v6372
    %6567 = vst [vmem:[#allocation2 + $0x168] sm:$0xff] %v6375
    %6568 = vst [vmem:[#allocation2 + $0x170] sm:$0xff] %v6380
    %6569 = vst [vmem:[#allocation2 + $0x178] sm:$0xff] %v6383
    %6570 = vst [vmem:[#allocation2 + $0x180] sm:$0xff] %v6388
    %6571 = vst [vmem:[#allocation2 + $0x188] sm:$0xff] %v6391
    %6572 = vst [vmem:[#allocation2 + $0x190] sm:$0xff] %v6396
    %6573 = vst [vmem:[#allocation2 + $0x198] sm:$0xff] %v6399
    %6574 = vst [vmem:[#allocation2 + $0x1a0] sm:$0xff] %v6404
    %6575 = vst [vmem:[#allocation2 + $0x1a8] sm:$0xff] %v6407
    %6576 = vst [vmem:[#allocation2 + $0x1b0] sm:$0xff] %v6412
    %6577 = vst [vmem:[#allocation2 + $0x1b8] sm:$0xff] %v6415
    %6578 = vst [vmem:[#allocation2 + $0x1c0] sm:$0xff] %v6420
    %6579 = vst [vmem:[#allocation2 + $0x1c8] sm:$0xff] %v6423
    %6580 = vst [vmem:[#allocation2 + $0x1d0] sm:$0xff] %v6428
    %6581 = vst [vmem:[#allocation2 + $0x1d8] sm:$0xff] %v6431
    %6582 = vst [vmem:[#allocation2 + $0x1e0] sm:$0xff] %v6436
    %6583 = vst [vmem:[#allocation2 + $0x1e8] sm:$0xff] %v6439
    %6584 = vst [vmem:[#allocation2 + $0x1f0] sm:$0xff] %v6444
    %6585 = vst [vmem:[#allocation2 + $0x1f8] sm:$0xff] %v6447
    %6586 = vst [vmem:[#allocation2 + $0x200] sm:$0xff] %v6452
    %6587 = vst [vmem:[#allocation2 + $0x208] sm:$0xff] %v6455
    %6588 = vst [vmem:[#allocation2 + $0x210] sm:$0xff] %v6460
    %6589 = vst [vmem:[#allocation2 + $0x218] sm:$0xff] %v6463
    %6590 = vst [vmem:[#allocation2 + $0x220] sm:$0xff] %v6468
    %6591 = vst [vmem:[#allocation2 + $0x228] sm:$0xff] %v6471
    %6592 = vst [vmem:[#allocation2 + $0x230] sm:$0xff] %v6476
    %6593 = vst [vmem:[#allocation2 + $0x238] sm:$0xff] %v6479
    %6594 = vst [vmem:[#allocation2 + $0x240] sm:$0xff] %v6484
    %6595 = vst [vmem:[#allocation2 + $0x248] sm:$0xff] %v6487
    %6596 = vst [vmem:[#allocation2 + $0x250] sm:$0xff] %v6492
    %6597 = vst [vmem:[#allocation2 + $0x258] sm:$0xff] %v6495
    %6598 = vst [vmem:[#allocation2 + $0x260] sm:$0xff] %v6500
    %6599 = vst [vmem:[#allocation2 + $0x268] sm:$0xff] %v6503
    %6600 = vst [vmem:[#allocation2 + $0x270] sm:$0xff] %v6508
    %6601 = vst [vmem:[#allocation2 + $0x278] sm:$0xff] %v6511
    %6602 = vst [vmem:[#allocation2 + $0x280] sm:$0xff] %v6516
    %6603 = vst [vmem:[#allocation2 + $0x288] sm:$0xff] %v6519
    // Predicated region
    $region22: #{tpu_custom_call.1} parent=1 // pred_check
      _
    $region23: #{tpu_custom_call.1} parent=1 // pred_check_branch
      %6605 = sbr.rel (0) target = $region25
    $region24: #{tpu_custom_call.1} parent=1 // pred_region
      %s6607 = ssub.s32 10496, 10496
      %6608 = vsyncadd [#allocation3], %s6607
      %s6609 = sshll.u32 [#allocation2], 4
      %s6610 = int_to_ptr.vmem [resolvable:$true] %s6609
      %6615 = dma.vmem_to_hbm [thread:$0]  %s6610, 10496, %s5, [#allocation3], 128, 128, 8
    $region25: #{tpu_custom_call.1} parent=1 // pred_fallthru
      _
    // Predicated region
    $region26: #{tpu_custom_call.1} parent=1 // pred_check
      _
    $region27: #{tpu_custom_call.1} parent=1 // pred_check_branch
      %6617 = sbr.rel (0) target = $region29
    $region28: #{tpu_custom_call.1} parent=1 // pred_region
      %6618 = dma.done [#allocation3], 10496
    $region29: #{tpu_custom_call.1} parent=1 // pred_fallthru
      _
    %6619 = vsyncpa [#allocation3], 1

</llo_original>
